<compile_context>
chip_gen: v7x
topology: tpu7x:2x2x1
jax: 0.10.0
libtpu: 0.0.40
codegen_flags: <defaults>
</compile_context>

<pallas_src>
import jax
import jax.numpy as jnp
from jax.experimental import pallas as pl
from jax.experimental.pallas import tpu as pltpu


def _conv3d_bn_relu_drop_kernel(x_ref, w_ref, a_ref, b_ref, o_ref):
    """One (n, d) grid step: output depth-slice d of sample n.

    x_ref : (D+2, H+2, W+2, Cin)  zero-padded sample volume (resident over d)
    w_ref : (27, Cin, Cout)       conv taps, tap index = kd*9 + kh*3 + kw
    a_ref : (1, Cout)             fused scale = bn_scale * dropout_scale
    b_ref : (1, Cout)             fused shift = bn_shift * dropout_scale
    o_ref : (H, W, Cout)          output depth-slice
    """
    d = pl.program_id(1)
    H, W, Cout = o_ref.shape
    Cin = x_ref.shape[-1]

    acc = jnp.zeros((H * W, Cout), jnp.float32)
    for kd in range(3):
        plane = x_ref[d + kd]                              # (H+2, W+2, Cin)
        for kh in range(3):
            for kw in range(3):
                patch = plane[kh:kh + H, kw:kw + W, :]     # (H, W, Cin)
                lhs = patch.reshape(H * W, Cin)
                acc = acc + jnp.dot(
                    lhs, w_ref[kd * 9 + kh * 3 + kw],
                    preferred_element_type=jnp.float32)

    # Fused epilogue: (conv * bn_scale + bn_shift) -> ReLU -> dropout scale.
    # dropout_scale >= 0, so it is pre-folded into both scale and shift:
    #   drop * relu(z) == relu(drop * z)
    y = jnp.maximum(acc * a_ref[...] + b_ref[...], 0.0)    # (H*W, Cout)
    o_ref[...] = y.reshape(H, W, Cout).astype(o_ref.dtype)


def conv3d_bn_relu_drop_forward(x, weight, bias, gamma, beta,
                                running_mean, running_var,
                                *, eps=1e-5, drop_scale=None):
    """Fused forward of Conv3d(3, pad=1) + BatchNorm3d + ReLU + Dropout3d.

    x            : (N, Cin, D, H, W) float32 (NCDHW, as in PyTorch)
    weight       : (Cout, Cin, 3, 3, 3)
    bias         : (Cout,)
    gamma, beta  : (Cout,) BatchNorm affine
    running_mean, running_var : (Cout,) BatchNorm running statistics
    drop_scale   : optional (N, Cout) Dropout3d per-channel factor
                   (0 or 1/(1-p)); None => identity (eval mode)

    Returns (N, Cout, D, H, W).
    """
    N, Cin, D, H, W = x.shape
    Cout = weight.shape[0]

    # NCDHW -> NDHWC (channels on lanes) + zero-pad all spatial dims by 1.
    x_cl = jnp.transpose(x, (0, 2, 3, 4, 1))
    x_pad = jnp.pad(x_cl, ((0, 0), (1, 1), (1, 1), (1, 1), (0, 0)))

    # (Cout, Cin, 3, 3, 3) -> (27, Cin, Cout), tap index = kd*9 + kh*3 + kw.
    w_r = jnp.transpose(weight, (2, 3, 4, 1, 0)).reshape(27, Cin, Cout)
    w_r = w_r.astype(jnp.float32)

    # Fold conv bias + inference BatchNorm into a per-channel affine.
    # TODO(synk): training-mode BatchNorm (batch statistics) needs an extra
    # cross-volume reduction pass; only running-stats BN is fused here.
    s = gamma * jax.lax.rsqrt(running_var + eps)           # (Cout,)
    t = (bias - running_mean) * s + beta                   # (Cout,)

    if drop_scale is None:
        drop_scale = jnp.ones((N, Cout), jnp.float32)
    ds = drop_scale.astype(jnp.float32)

    # Lane-dense per-sample scale/shift rows (Cout on lanes, same layout as
    # the output tile) -> epilogue is a plain broadcasted VPU FMA.
    A = (s[None, :] * ds).reshape(N, 1, Cout)
    B = (t[None, :] * ds).reshape(N, 1, Cout)

    out_ndhwc = pl.pallas_call(
        _conv3d_bn_relu_drop_kernel,
        out_shape=jax.ShapeDtypeStruct((N, D, H, W, Cout), x.dtype),
        grid_spec=pltpu.PrefetchScalarGridSpec(
            num_scalar_prefetch=0,
            grid=(N, D),
            in_specs=[
                # Padded sample volume, resident across the d axis.
                pl.BlockSpec((None, D + 2, H + 2, W + 2, Cin),
                             lambda n, d: (n, 0, 0, 0, 0)),
                # All 27 conv taps (small, always resident).
                pl.BlockSpec((27, Cin, Cout), lambda n, d: (0, 0, 0)),
                # Fused affine params, per sample.
                pl.BlockSpec((None, 1, Cout), lambda n, d: (n, 0, 0)),
                pl.BlockSpec((None, 1, Cout), lambda n, d: (n, 0, 0)),
            ],
            out_specs=pl.BlockSpec((None, None, H, W, Cout),
                                   lambda n, d: (n, d, 0, 0, 0)),
        ),
        compiler_params=pltpu.CompilerParams(
            # No cross-step accumulator: both axes are independent, so the
            # grid can shard across both TensorCores on v7x.
            dimension_semantics=("parallel", "parallel"),
            # Sized to fit the smallest generation budget (v7x: 64 MiB/TC)
            # with headroom; above the v5e/v6e scoped defaults.
            vmem_limit_bytes=48 * 1024 * 1024,
        ),
    )(x_pad, w_r, A, B)

    # NDHWC -> NCDHW
    return jnp.transpose(out_ndhwc, (0, 4, 1, 2, 3))


def _reference(x, weight, bias, gamma, beta, mean, var, eps, drop_scale):
    """Pure-JAX reference: conv3d + bias + BN(running stats) + ReLU + Dropout3d."""
    y = jax.lax.conv_general_dilated(
        x, weight, window_strides=(1, 1, 1),
        padding=((1, 1), (1, 1), (1, 1)),
        dimension_numbers=("NCDHW", "OIDHW", "NCDHW"))
    y = y + bias[None, :, None, None, None]
    y = (y - mean[None, :, None, None, None]) * \
        jax.lax.rsqrt(var + eps)[None, :, None, None, None]
    y = gamma[None, :, None, None, None] * y + beta[None, :, None, None, None]
    y = jnp.maximum(y, 0.0)
    y = y * drop_scale[:, :, None, None, None]
    return y


if __name__ == "__main__":
    key = jax.random.PRNGKey(0)
    kx, kw, kb, kg, kbe, km, kv, kdrop = jax.random.split(key, 8)

    N, Cin, Cout, D, H, W = 2, 4, 8, 8, 16, 16
    drop_p = 0.25
    eps = 1e-5

    x = jax.random.normal(kx, (N, Cin, D, H, W), dtype=jnp.float32)
    weight = 0.1 * jax.random.normal(kw, (Cout, Cin, 3, 3, 3), dtype=jnp.float32)
    bias = 0.1 * jax.random.normal(kb, (Cout,), dtype=jnp.float32)
    gamma = 1.0 + 0.1 * jax.random.normal(kg, (Cout,), dtype=jnp.float32)
    beta = 0.1 * jax.random.normal(kbe, (Cout,), dtype=jnp.float32)
    running_mean = 0.1 * jax.random.normal(km, (Cout,), dtype=jnp.float32)
    running_var = jax.random.uniform(kv, (Cout,), minval=0.5, maxval=1.5,
                                     dtype=jnp.float32)

    # Dropout3d: per (sample, channel) keep mask, scaled by 1/(1-p).
    keep = jax.random.bernoulli(kdrop, 1.0 - drop_p, (N, Cout))
    drop_scale = keep.astype(jnp.float32) / (1.0 - drop_p)

    out = conv3d_bn_relu_drop_forward(
        x, weight, bias, gamma, beta, running_mean, running_var,
        eps=eps, drop_scale=drop_scale)
    out = jax.block_until_ready(out)

    ref = _reference(x, weight, bias, gamma, beta, running_mean, running_var,
                     eps, drop_scale)

    assert out.shape == (N, Cout, D, H, W)
    assert jnp.allclose(out, ref, rtol=1e-4, atol=1e-4), \
        f"mismatch vs reference, max abs err = {float(jnp.max(jnp.abs(out - ref)))}"

    print("KERNEL_OK")
</pallas_src>

<mosaic_0001>
module attributes {stable_mosaic.version = 11 : i64} {
  func.func @_conv3d_bn_relu_drop_kernel(%arg0: i32, %arg1: i32, %arg2: memref<1x10x18x18x4xf32, #tpu.memory_space<vmem>>, %arg3: memref<27x4x8xf32, #tpu.memory_space<vmem>>, %arg4: memref<1x1x8xf32, #tpu.memory_space<vmem>>, %arg5: memref<1x1x8xf32, #tpu.memory_space<vmem>>, %arg6: memref<1x1x16x16x8xf32, #tpu.memory_space<vmem>>) attributes {dimension_semantics = [#tpu.dimension_semantics<parallel>, #tpu.dimension_semantics<parallel>], iteration_bounds = array<i64: 2, 8>, scalar_prefetch = 0 : i64, scratch_operands = 0 : i64, tpu.core_type = #tpu.core_type<tc>, window_params = [{transform_indices = @transform_0, window_bounds = array<i64: 1, 10, 18, 18, 4>}, {pipeline_mode = #tpu.pipeline_mode<synchronous>, transform_indices = @transform_1, window_bounds = array<i64: 27, 4, 8>}, {transform_indices = @transform_2, window_bounds = array<i64: 1, 1, 8>}, {transform_indices = @transform_3, window_bounds = array<i64: 1, 1, 8>}, {transform_indices = @transform_4, window_bounds = array<i64: 1, 1, 16, 16, 8>}]} {
    %cst = arith.constant 0.000000e+00 : f32
    %0 = vector.broadcast %cst : f32 to vector<256x8xf32>
    %c0_i32 = arith.constant 0 : i32
    %1 = arith.addi %arg1, %c0_i32 : i32
    %c0 = arith.constant 0 : index
    %2 = arith.index_cast %1 : i32 to index
    %c0_0 = arith.constant 0 : index
    %c0_1 = arith.constant 0 : index
    %c0_2 = arith.constant 0 : index
    %3 = vector.load %arg2[%c0, %2, %c0_0, %c0_1, %c0_2] : memref<1x10x18x18x4xf32, #tpu.memory_space<vmem>>, vector<1x1x18x18x4xf32>
    %4 = vector.shape_cast %3 : vector<1x1x18x18x4xf32> to vector<18x18x4xf32>
    %5 = vector.extract_strided_slice %4 {offsets = [0, 0, 0], sizes = [16, 16, 4], strides = [1, 1, 1]} : vector<18x18x4xf32> to vector<16x16x4xf32>
    %6 = vector.shape_cast %5 : vector<16x16x4xf32> to vector<256x4xf32>
    %c0_3 = arith.constant 0 : index
    %c0_4 = arith.constant 0 : index
    %c0_5 = arith.constant 0 : index
    %7 = vector.load %arg3[%c0_3, %c0_4, %c0_5] : memref<27x4x8xf32, #tpu.memory_space<vmem>>, vector<1x4x8xf32>
    %8 = vector.shape_cast %7 : vector<1x4x8xf32> to vector<4x8xf32>
    %cst_6 = arith.constant dense<0.000000e+00> : vector<256x8xf32>
    %9 = tpu.matmul %6, %8, %cst_6 {dimension_numbers = #tpu.dot_dimension_numbers<[1], [0], [0], [1], [0, 0, 1, 1], [], []>} : vector<256x4xf32>, vector<4x8xf32>, vector<256x8xf32> -> vector<256x8xf32>
    %10 = arith.addf %0, %9 : vector<256x8xf32>
    %11 = vector.extract_strided_slice %4 {offsets = [0, 1, 0], sizes = [16, 16, 4], strides = [1, 1, 1]} : vector<18x18x4xf32> to vector<16x16x4xf32>
    %12 = vector.shape_cast %11 : vector<16x16x4xf32> to vector<256x4xf32>
    %c1 = arith.constant 1 : index
    %c0_7 = arith.constant 0 : index
    %c0_8 = arith.constant 0 : index
    %13 = vector.load %arg3[%c1, %c0_7, %c0_8] : memref<27x4x8xf32, #tpu.memory_space<vmem>>, vector<1x4x8xf32>
    %14 = vector.shape_cast %13 : vector<1x4x8xf32> to vector<4x8xf32>
    %cst_9 = arith.constant dense<0.000000e+00> : vector<256x8xf32>
    %15 = tpu.matmul %12, %14, %cst_9 {dimension_numbers = #tpu.dot_dimension_numbers<[1], [0], [0], [1], [0, 0, 1, 1], [], []>} : vector<256x4xf32>, vector<4x8xf32>, vector<256x8xf32> -> vector<256x8xf32>
    %16 = arith.addf %10, %15 : vector<256x8xf32>
    %17 = vector.extract_strided_slice %4 {offsets = [0, 2, 0], sizes = [16, 16, 4], strides = [1, 1, 1]} : vector<18x18x4xf32> to vector<16x16x4xf32>
    %18 = vector.shape_cast %17 : vector<16x16x4xf32> to vector<256x4xf32>
    %c2 = arith.constant 2 : index
    %c0_10 = arith.constant 0 : index
    %c0_11 = arith.constant 0 : index
    %19 = vector.load %arg3[%c2, %c0_10, %c0_11] : memref<27x4x8xf32, #tpu.memory_space<vmem>>, vector<1x4x8xf32>
    %20 = vector.shape_cast %19 : vector<1x4x8xf32> to vector<4x8xf32>
    %cst_12 = arith.constant dense<0.000000e+00> : vector<256x8xf32>
    %21 = tpu.matmul %18, %20, %cst_12 {dimension_numbers = #tpu.dot_dimension_numbers<[1], [0], [0], [1], [0, 0, 1, 1], [], []>} : vector<256x4xf32>, vector<4x8xf32>, vector<256x8xf32> -> vector<256x8xf32>
    %22 = arith.addf %16, %21 : vector<256x8xf32>
    %23 = vector.extract_strided_slice %4 {offsets = [1, 0, 0], sizes = [16, 16, 4], strides = [1, 1, 1]} : vector<18x18x4xf32> to vector<16x16x4xf32>
    %24 = vector.shape_cast %23 : vector<16x16x4xf32> to vector<256x4xf32>
    %c3 = arith.constant 3 : index
    %c0_13 = arith.constant 0 : index
    %c0_14 = arith.constant 0 : index
    %25 = vector.load %arg3[%c3, %c0_13, %c0_14] : memref<27x4x8xf32, #tpu.memory_space<vmem>>, vector<1x4x8xf32>
    %26 = vector.shape_cast %25 : vector<1x4x8xf32> to vector<4x8xf32>
    %cst_15 = arith.constant dense<0.000000e+00> : vector<256x8xf32>
    %27 = tpu.matmul %24, %26, %cst_15 {dimension_numbers = #tpu.dot_dimension_numbers<[1], [0], [0], [1], [0, 0, 1, 1], [], []>} : vector<256x4xf32>, vector<4x8xf32>, vector<256x8xf32> -> vector<256x8xf32>
    %28 = arith.addf %22, %27 : vector<256x8xf32>
    %29 = vector.extract_strided_slice %4 {offsets = [1, 1, 0], sizes = [16, 16, 4], strides = [1, 1, 1]} : vector<18x18x4xf32> to vector<16x16x4xf32>
    %30 = vector.shape_cast %29 : vector<16x16x4xf32> to vector<256x4xf32>
    %c4 = arith.constant 4 : index
    %c0_16 = arith.constant 0 : index
    %c0_17 = arith.constant 0 : index
    %31 = vector.load %arg3[%c4, %c0_16, %c0_17] : memref<27x4x8xf32, #tpu.memory_space<vmem>>, vector<1x4x8xf32>
    %32 = vector.shape_cast %31 : vector<1x4x8xf32> to vector<4x8xf32>
    %cst_18 = arith.constant dense<0.000000e+00> : vector<256x8xf32>
    %33 = tpu.matmul %30, %32, %cst_18 {dimension_numbers = #tpu.dot_dimension_numbers<[1], [0], [0], [1], [0, 0, 1, 1], [], []>} : vector<256x4xf32>, vector<4x8xf32>, vector<256x8xf32> -> vector<256x8xf32>
    %34 = arith.addf %28, %33 : vector<256x8xf32>
    %35 = vector.extract_strided_slice %4 {offsets = [1, 2, 0], sizes = [16, 16, 4], strides = [1, 1, 1]} : vector<18x18x4xf32> to vector<16x16x4xf32>
    %36 = vector.shape_cast %35 : vector<16x16x4xf32> to vector<256x4xf32>
    %c5 = arith.constant 5 : index
    %c0_19 = arith.constant 0 : index
    %c0_20 = arith.constant 0 : index
    %37 = vector.load %arg3[%c5, %c0_19, %c0_20] : memref<27x4x8xf32, #tpu.memory_space<vmem>>, vector<1x4x8xf32>
    %38 = vector.shape_cast %37 : vector<1x4x8xf32> to vector<4x8xf32>
    %cst_21 = arith.constant dense<0.000000e+00> : vector<256x8xf32>
    %39 = tpu.matmul %36, %38, %cst_21 {dimension_numbers = #tpu.dot_dimension_numbers<[1], [0], [0], [1], [0, 0, 1, 1], [], []>} : vector<256x4xf32>, vector<4x8xf32>, vector<256x8xf32> -> vector<256x8xf32>
    %40 = arith.addf %34, %39 : vector<256x8xf32>
    %41 = vector.extract_strided_slice %4 {offsets = [2, 0, 0], sizes = [16, 16, 4], strides = [1, 1, 1]} : vector<18x18x4xf32> to vector<16x16x4xf32>
    %42 = vector.shape_cast %41 : vector<16x16x4xf32> to vector<256x4xf32>
    %c6 = arith.constant 6 : index
    %c0_22 = arith.constant 0 : index
    %c0_23 = arith.constant 0 : index
    %43 = vector.load %arg3[%c6, %c0_22, %c0_23] : memref<27x4x8xf32, #tpu.memory_space<vmem>>, vector<1x4x8xf32>
    %44 = vector.shape_cast %43 : vector<1x4x8xf32> to vector<4x8xf32>
    %cst_24 = arith.constant dense<0.000000e+00> : vector<256x8xf32>
    %45 = tpu.matmul %42, %44, %cst_24 {dimension_numbers = #tpu.dot_dimension_numbers<[1], [0], [0], [1], [0, 0, 1, 1], [], []>} : vector<256x4xf32>, vector<4x8xf32>, vector<256x8xf32> -> vector<256x8xf32>
    %46 = arith.addf %40, %45 : vector<256x8xf32>
    %47 = vector.extract_strided_slice %4 {offsets = [2, 1, 0], sizes = [16, 16, 4], strides = [1, 1, 1]} : vector<18x18x4xf32> to vector<16x16x4xf32>
    %48 = vector.shape_cast %47 : vector<16x16x4xf32> to vector<256x4xf32>
    %c7 = arith.constant 7 : index
    %c0_25 = arith.constant 0 : index
    %c0_26 = arith.constant 0 : index
    %49 = vector.load %arg3[%c7, %c0_25, %c0_26] : memref<27x4x8xf32, #tpu.memory_space<vmem>>, vector<1x4x8xf32>
    %50 = vector.shape_cast %49 : vector<1x4x8xf32> to vector<4x8xf32>
    %cst_27 = arith.constant dense<0.000000e+00> : vector<256x8xf32>
    %51 = tpu.matmul %48, %50, %cst_27 {dimension_numbers = #tpu.dot_dimension_numbers<[1], [0], [0], [1], [0, 0, 1, 1], [], []>} : vector<256x4xf32>, vector<4x8xf32>, vector<256x8xf32> -> vector<256x8xf32>
    %52 = arith.addf %46, %51 : vector<256x8xf32>
    %53 = vector.extract_strided_slice %4 {offsets = [2, 2, 0], sizes = [16, 16, 4], strides = [1, 1, 1]} : vector<18x18x4xf32> to vector<16x16x4xf32>
    %54 = vector.shape_cast %53 : vector<16x16x4xf32> to vector<256x4xf32>
    %c8 = arith.constant 8 : index
    %c0_28 = arith.constant 0 : index
    %c0_29 = arith.constant 0 : index
    %55 = vector.load %arg3[%c8, %c0_28, %c0_29] : memref<27x4x8xf32, #tpu.memory_space<vmem>>, vector<1x4x8xf32>
    %56 = vector.shape_cast %55 : vector<1x4x8xf32> to vector<4x8xf32>
    %cst_30 = arith.constant dense<0.000000e+00> : vector<256x8xf32>
    %57 = tpu.matmul %54, %56, %cst_30 {dimension_numbers = #tpu.dot_dimension_numbers<[1], [0], [0], [1], [0, 0, 1, 1], [], []>} : vector<256x4xf32>, vector<4x8xf32>, vector<256x8xf32> -> vector<256x8xf32>
    %58 = arith.addf %52, %57 : vector<256x8xf32>
    %c1_i32 = arith.constant 1 : i32
    %59 = arith.addi %arg1, %c1_i32 : i32
    %c0_31 = arith.constant 0 : index
    %60 = arith.index_cast %59 : i32 to index
    %c0_32 = arith.constant 0 : index
    %c0_33 = arith.constant 0 : index
    %c0_34 = arith.constant 0 : index
    %61 = vector.load %arg2[%c0_31, %60, %c0_32, %c0_33, %c0_34] : memref<1x10x18x18x4xf32, #tpu.memory_space<vmem>>, vector<1x1x18x18x4xf32>
    %62 = vector.shape_cast %61 : vector<1x1x18x18x4xf32> to vector<18x18x4xf32>
    %63 = vector.extract_strided_slice %62 {offsets = [0, 0, 0], sizes = [16, 16, 4], strides = [1, 1, 1]} : vector<18x18x4xf32> to vector<16x16x4xf32>
    %64 = vector.shape_cast %63 : vector<16x16x4xf32> to vector<256x4xf32>
    %c9 = arith.constant 9 : index
    %c0_35 = arith.constant 0 : index
    %c0_36 = arith.constant 0 : index
    %65 = vector.load %arg3[%c9, %c0_35, %c0_36] : memref<27x4x8xf32, #tpu.memory_space<vmem>>, vector<1x4x8xf32>
    %66 = vector.shape_cast %65 : vector<1x4x8xf32> to vector<4x8xf32>
    %cst_37 = arith.constant dense<0.000000e+00> : vector<256x8xf32>
    %67 = tpu.matmul %64, %66, %cst_37 {dimension_numbers = #tpu.dot_dimension_numbers<[1], [0], [0], [1], [0, 0, 1, 1], [], []>} : vector<256x4xf32>, vector<4x8xf32>, vector<256x8xf32> -> vector<256x8xf32>
    %68 = arith.addf %58, %67 : vector<256x8xf32>
    %69 = vector.extract_strided_slice %62 {offsets = [0, 1, 0], sizes = [16, 16, 4], strides = [1, 1, 1]} : vector<18x18x4xf32> to vector<16x16x4xf32>
    %70 = vector.shape_cast %69 : vector<16x16x4xf32> to vector<256x4xf32>
    %c10 = arith.constant 10 : index
    %c0_38 = arith.constant 0 : index
    %c0_39 = arith.constant 0 : index
    %71 = vector.load %arg3[%c10, %c0_38, %c0_39] : memref<27x4x8xf32, #tpu.memory_space<vmem>>, vector<1x4x8xf32>
    %72 = vector.shape_cast %71 : vector<1x4x8xf32> to vector<4x8xf32>
    %cst_40 = arith.constant dense<0.000000e+00> : vector<256x8xf32>
    %73 = tpu.matmul %70, %72, %cst_40 {dimension_numbers = #tpu.dot_dimension_numbers<[1], [0], [0], [1], [0, 0, 1, 1], [], []>} : vector<256x4xf32>, vector<4x8xf32>, vector<256x8xf32> -> vector<256x8xf32>
    %74 = arith.addf %68, %73 : vector<256x8xf32>
    %75 = vector.extract_strided_slice %62 {offsets = [0, 2, 0], sizes = [16, 16, 4], strides = [1, 1, 1]} : vector<18x18x4xf32> to vector<16x16x4xf32>
    %76 = vector.shape_cast %75 : vector<16x16x4xf32> to vector<256x4xf32>
    %c11 = arith.constant 11 : index
    %c0_41 = arith.constant 0 : index
    %c0_42 = arith.constant 0 : index
    %77 = vector.load %arg3[%c11, %c0_41, %c0_42] : memref<27x4x8xf32, #tpu.memory_space<vmem>>, vector<1x4x8xf32>
    %78 = vector.shape_cast %77 : vector<1x4x8xf32> to vector<4x8xf32>
    %cst_43 = arith.constant dense<0.000000e+00> : vector<256x8xf32>
    %79 = tpu.matmul %76, %78, %cst_43 {dimension_numbers = #tpu.dot_dimension_numbers<[1], [0], [0], [1], [0, 0, 1, 1], [], []>} : vector<256x4xf32>, vector<4x8xf32>, vector<256x8xf32> -> vector<256x8xf32>
    %80 = arith.addf %74, %79 : vector<256x8xf32>
    %81 = vector.extract_strided_slice %62 {offsets = [1, 0, 0], sizes = [16, 16, 4], strides = [1, 1, 1]} : vector<18x18x4xf32> to vector<16x16x4xf32>
    %82 = vector.shape_cast %81 : vector<16x16x4xf32> to vector<256x4xf32>
    %c12 = arith.constant 12 : index
    %c0_44 = arith.constant 0 : index
    %c0_45 = arith.constant 0 : index
    %83 = vector.load %arg3[%c12, %c0_44, %c0_45] : memref<27x4x8xf32, #tpu.memory_space<vmem>>, vector<1x4x8xf32>
    %84 = vector.shape_cast %83 : vector<1x4x8xf32> to vector<4x8xf32>
    %cst_46 = arith.constant dense<0.000000e+00> : vector<256x8xf32>
    %85 = tpu.matmul %82, %84, %cst_46 {dimension_numbers = #tpu.dot_dimension_numbers<[1], [0], [0], [1], [0, 0, 1, 1], [], []>} : vector<256x4xf32>, vector<4x8xf32>, vector<256x8xf32> -> vector<256x8xf32>
    %86 = arith.addf %80, %85 : vector<256x8xf32>
    %87 = vector.extract_strided_slice %62 {offsets = [1, 1, 0], sizes = [16, 16, 4], strides = [1, 1, 1]} : vector<18x18x4xf32> to vector<16x16x4xf32>
    %88 = vector.shape_cast %87 : vector<16x16x4xf32> to vector<256x4xf32>
    %c13 = arith.constant 13 : index
    %c0_47 = arith.constant 0 : index
    %c0_48 = arith.constant 0 : index
    %89 = vector.load %arg3[%c13, %c0_47, %c0_48] : memref<27x4x8xf32, #tpu.memory_space<vmem>>, vector<1x4x8xf32>
    %90 = vector.shape_cast %89 : vector<1x4x8xf32> to vector<4x8xf32>
    %cst_49 = arith.constant dense<0.000000e+00> : vector<256x8xf32>
    %91 = tpu.matmul %88, %90, %cst_49 {dimension_numbers = #tpu.dot_dimension_numbers<[1], [0], [0], [1], [0, 0, 1, 1], [], []>} : vector<256x4xf32>, vector<4x8xf32>, vector<256x8xf32> -> vector<256x8xf32>
    %92 = arith.addf %86, %91 : vector<256x8xf32>
    %93 = vector.extract_strided_slice %62 {offsets = [1, 2, 0], sizes = [16, 16, 4], strides = [1, 1, 1]} : vector<18x18x4xf32> to vector<16x16x4xf32>
    %94 = vector.shape_cast %93 : vector<16x16x4xf32> to vector<256x4xf32>
    %c14 = arith.constant 14 : index
    %c0_50 = arith.constant 0 : index
    %c0_51 = arith.constant 0 : index
    %95 = vector.load %arg3[%c14, %c0_50, %c0_51] : memref<27x4x8xf32, #tpu.memory_space<vmem>>, vector<1x4x8xf32>
    %96 = vector.shape_cast %95 : vector<1x4x8xf32> to vector<4x8xf32>
    %cst_52 = arith.constant dense<0.000000e+00> : vector<256x8xf32>
    %97 = tpu.matmul %94, %96, %cst_52 {dimension_numbers = #tpu.dot_dimension_numbers<[1], [0], [0], [1], [0, 0, 1, 1], [], []>} : vector<256x4xf32>, vector<4x8xf32>, vector<256x8xf32> -> vector<256x8xf32>
    %98 = arith.addf %92, %97 : vector<256x8xf32>
    %99 = vector.extract_strided_slice %62 {offsets = [2, 0, 0], sizes = [16, 16, 4], strides = [1, 1, 1]} : vector<18x18x4xf32> to vector<16x16x4xf32>
    %100 = vector.shape_cast %99 : vector<16x16x4xf32> to vector<256x4xf32>
    %c15 = arith.constant 15 : index
    %c0_53 = arith.constant 0 : index
    %c0_54 = arith.constant 0 : index
    %101 = vector.load %arg3[%c15, %c0_53, %c0_54] : memref<27x4x8xf32, #tpu.memory_space<vmem>>, vector<1x4x8xf32>
    %102 = vector.shape_cast %101 : vector<1x4x8xf32> to vector<4x8xf32>
    %cst_55 = arith.constant dense<0.000000e+00> : vector<256x8xf32>
    %103 = tpu.matmul %100, %102, %cst_55 {dimension_numbers = #tpu.dot_dimension_numbers<[1], [0], [0], [1], [0, 0, 1, 1], [], []>} : vector<256x4xf32>, vector<4x8xf32>, vector<256x8xf32> -> vector<256x8xf32>
    %104 = arith.addf %98, %103 : vector<256x8xf32>
    %105 = vector.extract_strided_slice %62 {offsets = [2, 1, 0], sizes = [16, 16, 4], strides = [1, 1, 1]} : vector<18x18x4xf32> to vector<16x16x4xf32>
    %106 = vector.shape_cast %105 : vector<16x16x4xf32> to vector<256x4xf32>
    %c16 = arith.constant 16 : index
    %c0_56 = arith.constant 0 : index
    %c0_57 = arith.constant 0 : index
    %107 = vector.load %arg3[%c16, %c0_56, %c0_57] : memref<27x4x8xf32, #tpu.memory_space<vmem>>, vector<1x4x8xf32>
    %108 = vector.shape_cast %107 : vector<1x4x8xf32> to vector<4x8xf32>
    %cst_58 = arith.constant dense<0.000000e+00> : vector<256x8xf32>
    %109 = tpu.matmul %106, %108, %cst_58 {dimension_numbers = #tpu.dot_dimension_numbers<[1], [0], [0], [1], [0, 0, 1, 1], [], []>} : vector<256x4xf32>, vector<4x8xf32>, vector<256x8xf32> -> vector<256x8xf32>
    %110 = arith.addf %104, %109 : vector<256x8xf32>
    %111 = vector.extract_strided_slice %62 {offsets = [2, 2, 0], sizes = [16, 16, 4], strides = [1, 1, 1]} : vector<18x18x4xf32> to vector<16x16x4xf32>
    %112 = vector.shape_cast %111 : vector<16x16x4xf32> to vector<256x4xf32>
    %c17 = arith.constant 17 : index
    %c0_59 = arith.constant 0 : index
    %c0_60 = arith.constant 0 : index
    %113 = vector.load %arg3[%c17, %c0_59, %c0_60] : memref<27x4x8xf32, #tpu.memory_space<vmem>>, vector<1x4x8xf32>
    %114 = vector.shape_cast %113 : vector<1x4x8xf32> to vector<4x8xf32>
    %cst_61 = arith.constant dense<0.000000e+00> : vector<256x8xf32>
    %115 = tpu.matmul %112, %114, %cst_61 {dimension_numbers = #tpu.dot_dimension_numbers<[1], [0], [0], [1], [0, 0, 1, 1], [], []>} : vector<256x4xf32>, vector<4x8xf32>, vector<256x8xf32> -> vector<256x8xf32>
    %116 = arith.addf %110, %115 : vector<256x8xf32>
    %c2_i32 = arith.constant 2 : i32
    %117 = arith.addi %arg1, %c2_i32 : i32
    %c0_62 = arith.constant 0 : index
    %118 = arith.index_cast %117 : i32 to index
    %c0_63 = arith.constant 0 : index
    %c0_64 = arith.constant 0 : index
    %c0_65 = arith.constant 0 : index
    %119 = vector.load %arg2[%c0_62, %118, %c0_63, %c0_64, %c0_65] : memref<1x10x18x18x4xf32, #tpu.memory_space<vmem>>, vector<1x1x18x18x4xf32>
    %120 = vector.shape_cast %119 : vector<1x1x18x18x4xf32> to vector<18x18x4xf32>
    %121 = vector.extract_strided_slice %120 {offsets = [0, 0, 0], sizes = [16, 16, 4], strides = [1, 1, 1]} : vector<18x18x4xf32> to vector<16x16x4xf32>
    %122 = vector.shape_cast %121 : vector<16x16x4xf32> to vector<256x4xf32>
    %c18 = arith.constant 18 : index
    %c0_66 = arith.constant 0 : index
    %c0_67 = arith.constant 0 : index
    %123 = vector.load %arg3[%c18, %c0_66, %c0_67] : memref<27x4x8xf32, #tpu.memory_space<vmem>>, vector<1x4x8xf32>
    %124 = vector.shape_cast %123 : vector<1x4x8xf32> to vector<4x8xf32>
    %cst_68 = arith.constant dense<0.000000e+00> : vector<256x8xf32>
    %125 = tpu.matmul %122, %124, %cst_68 {dimension_numbers = #tpu.dot_dimension_numbers<[1], [0], [0], [1], [0, 0, 1, 1], [], []>} : vector<256x4xf32>, vector<4x8xf32>, vector<256x8xf32> -> vector<256x8xf32>
    %126 = arith.addf %116, %125 : vector<256x8xf32>
    %127 = vector.extract_strided_slice %120 {offsets = [0, 1, 0], sizes = [16, 16, 4], strides = [1, 1, 1]} : vector<18x18x4xf32> to vector<16x16x4xf32>
    %128 = vector.shape_cast %127 : vector<16x16x4xf32> to vector<256x4xf32>
    %c19 = arith.constant 19 : index
    %c0_69 = arith.constant 0 : index
    %c0_70 = arith.constant 0 : index
    %129 = vector.load %arg3[%c19, %c0_69, %c0_70] : memref<27x4x8xf32, #tpu.memory_space<vmem>>, vector<1x4x8xf32>
    %130 = vector.shape_cast %129 : vector<1x4x8xf32> to vector<4x8xf32>
    %cst_71 = arith.constant dense<0.000000e+00> : vector<256x8xf32>
    %131 = tpu.matmul %128, %130, %cst_71 {dimension_numbers = #tpu.dot_dimension_numbers<[1], [0], [0], [1], [0, 0, 1, 1], [], []>} : vector<256x4xf32>, vector<4x8xf32>, vector<256x8xf32> -> vector<256x8xf32>
    %132 = arith.addf %126, %131 : vector<256x8xf32>
    %133 = vector.extract_strided_slice %120 {offsets = [0, 2, 0], sizes = [16, 16, 4], strides = [1, 1, 1]} : vector<18x18x4xf32> to vector<16x16x4xf32>
    %134 = vector.shape_cast %133 : vector<16x16x4xf32> to vector<256x4xf32>
    %c20 = arith.constant 20 : index
    %c0_72 = arith.constant 0 : index
    %c0_73 = arith.constant 0 : index
    %135 = vector.load %arg3[%c20, %c0_72, %c0_73] : memref<27x4x8xf32, #tpu.memory_space<vmem>>, vector<1x4x8xf32>
    %136 = vector.shape_cast %135 : vector<1x4x8xf32> to vector<4x8xf32>
    %cst_74 = arith.constant dense<0.000000e+00> : vector<256x8xf32>
    %137 = tpu.matmul %134, %136, %cst_74 {dimension_numbers = #tpu.dot_dimension_numbers<[1], [0], [0], [1], [0, 0, 1, 1], [], []>} : vector<256x4xf32>, vector<4x8xf32>, vector<256x8xf32> -> vector<256x8xf32>
    %138 = arith.addf %132, %137 : vector<256x8xf32>
    %139 = vector.extract_strided_slice %120 {offsets = [1, 0, 0], sizes = [16, 16, 4], strides = [1, 1, 1]} : vector<18x18x4xf32> to vector<16x16x4xf32>
    %140 = vector.shape_cast %139 : vector<16x16x4xf32> to vector<256x4xf32>
    %c21 = arith.constant 21 : index
    %c0_75 = arith.constant 0 : index
    %c0_76 = arith.constant 0 : index
    %141 = vector.load %arg3[%c21, %c0_75, %c0_76] : memref<27x4x8xf32, #tpu.memory_space<vmem>>, vector<1x4x8xf32>
    %142 = vector.shape_cast %141 : vector<1x4x8xf32> to vector<4x8xf32>
    %cst_77 = arith.constant dense<0.000000e+00> : vector<256x8xf32>
    %143 = tpu.matmul %140, %142, %cst_77 {dimension_numbers = #tpu.dot_dimension_numbers<[1], [0], [0], [1], [0, 0, 1, 1], [], []>} : vector<256x4xf32>, vector<4x8xf32>, vector<256x8xf32> -> vector<256x8xf32>
    %144 = arith.addf %138, %143 : vector<256x8xf32>
    %145 = vector.extract_strided_slice %120 {offsets = [1, 1, 0], sizes = [16, 16, 4], strides = [1, 1, 1]} : vector<18x18x4xf32> to vector<16x16x4xf32>
    %146 = vector.shape_cast %145 : vector<16x16x4xf32> to vector<256x4xf32>
    %c22 = arith.constant 22 : index
    %c0_78 = arith.constant 0 : index
    %c0_79 = arith.constant 0 : index
    %147 = vector.load %arg3[%c22, %c0_78, %c0_79] : memref<27x4x8xf32, #tpu.memory_space<vmem>>, vector<1x4x8xf32>
    %148 = vector.shape_cast %147 : vector<1x4x8xf32> to vector<4x8xf32>
    %cst_80 = arith.constant dense<0.000000e+00> : vector<256x8xf32>
    %149 = tpu.matmul %146, %148, %cst_80 {dimension_numbers = #tpu.dot_dimension_numbers<[1], [0], [0], [1], [0, 0, 1, 1], [], []>} : vector<256x4xf32>, vector<4x8xf32>, vector<256x8xf32> -> vector<256x8xf32>
    %150 = arith.addf %144, %149 : vector<256x8xf32>
    %151 = vector.extract_strided_slice %120 {offsets = [1, 2, 0], sizes = [16, 16, 4], strides = [1, 1, 1]} : vector<18x18x4xf32> to vector<16x16x4xf32>
    %152 = vector.shape_cast %151 : vector<16x16x4xf32> to vector<256x4xf32>
    %c23 = arith.constant 23 : index
    %c0_81 = arith.constant 0 : index
    %c0_82 = arith.constant 0 : index
    %153 = vector.load %arg3[%c23, %c0_81, %c0_82] : memref<27x4x8xf32, #tpu.memory_space<vmem>>, vector<1x4x8xf32>
    %154 = vector.shape_cast %153 : vector<1x4x8xf32> to vector<4x8xf32>
    %cst_83 = arith.constant dense<0.000000e+00> : vector<256x8xf32>
    %155 = tpu.matmul %152, %154, %cst_83 {dimension_numbers = #tpu.dot_dimension_numbers<[1], [0], [0], [1], [0, 0, 1, 1], [], []>} : vector<256x4xf32>, vector<4x8xf32>, vector<256x8xf32> -> vector<256x8xf32>
    %156 = arith.addf %150, %155 : vector<256x8xf32>
    %157 = vector.extract_strided_slice %120 {offsets = [2, 0, 0], sizes = [16, 16, 4], strides = [1, 1, 1]} : vector<18x18x4xf32> to vector<16x16x4xf32>
    %158 = vector.shape_cast %157 : vector<16x16x4xf32> to vector<256x4xf32>
    %c24 = arith.constant 24 : index
    %c0_84 = arith.constant 0 : index
    %c0_85 = arith.constant 0 : index
    %159 = vector.load %arg3[%c24, %c0_84, %c0_85] : memref<27x4x8xf32, #tpu.memory_space<vmem>>, vector<1x4x8xf32>
    %160 = vector.shape_cast %159 : vector<1x4x8xf32> to vector<4x8xf32>
    %cst_86 = arith.constant dense<0.000000e+00> : vector<256x8xf32>
    %161 = tpu.matmul %158, %160, %cst_86 {dimension_numbers = #tpu.dot_dimension_numbers<[1], [0], [0], [1], [0, 0, 1, 1], [], []>} : vector<256x4xf32>, vector<4x8xf32>, vector<256x8xf32> -> vector<256x8xf32>
    %162 = arith.addf %156, %161 : vector<256x8xf32>
    %163 = vector.extract_strided_slice %120 {offsets = [2, 1, 0], sizes = [16, 16, 4], strides = [1, 1, 1]} : vector<18x18x4xf32> to vector<16x16x4xf32>
    %164 = vector.shape_cast %163 : vector<16x16x4xf32> to vector<256x4xf32>
    %c25 = arith.constant 25 : index
    %c0_87 = arith.constant 0 : index
    %c0_88 = arith.constant 0 : index
    %165 = vector.load %arg3[%c25, %c0_87, %c0_88] : memref<27x4x8xf32, #tpu.memory_space<vmem>>, vector<1x4x8xf32>
    %166 = vector.shape_cast %165 : vector<1x4x8xf32> to vector<4x8xf32>
    %cst_89 = arith.constant dense<0.000000e+00> : vector<256x8xf32>
    %167 = tpu.matmul %164, %166, %cst_89 {dimension_numbers = #tpu.dot_dimension_numbers<[1], [0], [0], [1], [0, 0, 1, 1], [], []>} : vector<256x4xf32>, vector<4x8xf32>, vector<256x8xf32> -> vector<256x8xf32>
    %168 = arith.addf %162, %167 : vector<256x8xf32>
    %169 = vector.extract_strided_slice %120 {offsets = [2, 2, 0], sizes = [16, 16, 4], strides = [1, 1, 1]} : vector<18x18x4xf32> to vector<16x16x4xf32>
    %170 = vector.shape_cast %169 : vector<16x16x4xf32> to vector<256x4xf32>
    %c26 = arith.constant 26 : index
    %c0_90 = arith.constant 0 : index
    %c0_91 = arith.constant 0 : index
    %171 = vector.load %arg3[%c26, %c0_90, %c0_91] : memref<27x4x8xf32, #tpu.memory_space<vmem>>, vector<1x4x8xf32>
    %172 = vector.shape_cast %171 : vector<1x4x8xf32> to vector<4x8xf32>
    %cst_92 = arith.constant dense<0.000000e+00> : vector<256x8xf32>
    %173 = tpu.matmul %170, %172, %cst_92 {dimension_numbers = #tpu.dot_dimension_numbers<[1], [0], [0], [1], [0, 0, 1, 1], [], []>} : vector<256x4xf32>, vector<4x8xf32>, vector<256x8xf32> -> vector<256x8xf32>
    %174 = arith.addf %168, %173 : vector<256x8xf32>
    %c0_93 = arith.constant 0 : index
    %c0_94 = arith.constant 0 : index
    %c0_95 = arith.constant 0 : index
    %175 = vector.load %arg4[%c0_93, %c0_94, %c0_95] : memref<1x1x8xf32, #tpu.memory_space<vmem>>, vector<1x1x8xf32>
    %176 = vector.shape_cast %175 : vector<1x1x8xf32> to vector<1x8xf32>
    %177 = vector.broadcast %176 : vector<1x8xf32> to vector<256x8xf32>
    %178 = arith.mulf %174, %177 : vector<256x8xf32>
    %c0_96 = arith.constant 0 : index
    %c0_97 = arith.constant 0 : index
    %c0_98 = arith.constant 0 : index
    %179 = vector.load %arg5[%c0_96, %c0_97, %c0_98] : memref<1x1x8xf32, #tpu.memory_space<vmem>>, vector<1x1x8xf32>
    %180 = vector.shape_cast %179 : vector<1x1x8xf32> to vector<1x8xf32>
    %181 = vector.broadcast %180 : vector<1x8xf32> to vector<256x8xf32>
    %182 = arith.addf %178, %181 : vector<256x8xf32>
    %cst_99 = arith.constant 0.000000e+00 : f32
    %183 = vector.broadcast %cst_99 : f32 to vector<256x8xf32>
    %184 = arith.maximumf %182, %183 : vector<256x8xf32>
    %185 = vector.shape_cast %184 : vector<256x8xf32> to vector<16x16x8xf32>
    %c0_100 = arith.constant 0 : index
    %c0_101 = arith.constant 0 : index
    %c0_102 = arith.constant 0 : index
    %c0_103 = arith.constant 0 : index
    %c0_104 = arith.constant 0 : index
    %186 = vector.load %arg6[%c0_100, %c0_101, %c0_102, %c0_103, %c0_104] : memref<1x1x16x16x8xf32, #tpu.memory_space<vmem>>, vector<1x1x16x16x8xf32>
    %187 = vector.shape_cast %186 : vector<1x1x16x16x8xf32> to vector<16x16x8xf32>
    %188 = vector.shape_cast %185 : vector<16x16x8xf32> to vector<1x1x16x16x8xf32>
    tpu.vector_store %arg6[%c0_100, %c0_101, %c0_102, %c0_103, %c0_104], %188 {strides = array<i32>} : memref<1x1x16x16x8xf32, #tpu.memory_space<vmem>>, vector<1x1x16x16x8xf32>,
    return
  }
  func.func @transform_0(%arg0: i32, %arg1: i32) -> (i32, i32, i32, i32, i32) {
    %c0_i32 = arith.constant 0 : i32
    %c0_i32_0 = arith.constant 0 : i32
    %c0_i32_1 = arith.constant 0 : i32
    %c0_i32_2 = arith.constant 0 : i32
    %c0_i32_3 = arith.constant 0 : i32
    return %arg0, %c0_i32, %c0_i32_0, %c0_i32_1, %c0_i32_2 : i32, i32, i32, i32, i32
  }
  func.func @transform_1(%arg0: i32, %arg1: i32) -> (i32, i32, i32) {
    %c0_i32 = arith.constant 0 : i32
    %c0_i32_0 = arith.constant 0 : i32
    %c0_i32_1 = arith.constant 0 : i32
    %c0_i32_2 = arith.constant 0 : i32
    return %c0_i32, %c0_i32_0, %c0_i32_1 : i32, i32, i32
  }
  func.func @transform_2(%arg0: i32, %arg1: i32) -> (i32, i32, i32) {
    %c0_i32 = arith.constant 0 : i32
    %c0_i32_0 = arith.constant 0 : i32
    %c0_i32_1 = arith.constant 0 : i32
    return %arg0, %c0_i32, %c0_i32_0 : i32, i32, i32
  }
  func.func @transform_3(%arg0: i32, %arg1: i32) -> (i32, i32, i32) {
    %c0_i32 = arith.constant 0 : i32
    %c0_i32_0 = arith.constant 0 : i32
    %c0_i32_1 = arith.constant 0 : i32
    return %arg0, %c0_i32, %c0_i32_0 : i32, i32, i32
  }
  func.func @transform_4(%arg0: i32, %arg1: i32) -> (i32, i32, i32, i32, i32) {
    %c0_i32 = arith.constant 0 : i32
    %c0_i32_0 = arith.constant 0 : i32
    %c0_i32_1 = arith.constant 0 : i32
    %c0_i32_2 = arith.constant 0 : i32
    return %arg0, %arg1, %c0_i32, %c0_i32_0, %c0_i32_1 : i32, i32, i32, i32, i32
  }
}

</mosaic_0001>

<llo_original>
// kernel: tpu_custom_call.1
$region0: #{tpu_custom_call.1}
  #allocation0 [shape = 'u32[]', space=smem, size = 0x4, offset = 0x4, fixed_abs, tag = 'smem constant byte address 0x4 - core index']
  #allocation1 [shape = 'u32[144,128]{1,0:T(1,128)}', space=vmem, size = 0x12000, scoped, tag = 'internal scratch']
  %s0 = inlined_call_operand.vmem [shape: f32[2,10,18,18,4], index: 0, kind: input, shape index: {}]
  %s1 = inlined_call_operand.vmem [shape: f32[27,4,8], index: 1, kind: input, shape index: {}]
  %s2 = inlined_call_operand.vmem [shape: f32[2,1,8], index: 2, kind: input, shape index: {}]
  %s3 = inlined_call_operand.vmem [shape: f32[2,1,8], index: 3, kind: input, shape index: {}]
  %s4 = inlined_call_operand.vmem [shape: f32[2,8,16,16,8], index: 4, kind: output, shape index: {}]
  %s5 = sld [smem:[#allocation0]]
  $region49: #{tpu_custom_call.1} parent=0
    _
  %s7 = ssub.s32 1, %s5
  %s8 = scalar_select 0, %s7, %s5
  loop: start=0, step=1, limit=18
  $region2: #{tpu_custom_call.1} parent=0 // loop_pre_header
    _
  $region3: #{tpu_custom_call.1} parent=0 // loop_header
    %s10 = sphi 0, %s14
    %p11 = scmp.ge.s32.totalorder %s10, 18
    %s17 = sphi 0, %s29
    %s18 = sphi 0, %s25
    %s19 = sphi 0, %s17
    %s20 = sphi 0, %s18
    %s21 = sphi 0, %s19
    %s22 = sphi 0, %s20
    %s32 = sphi 0, %s34
    %s35 = sphi 0, %s32
    %s36 = sphi 0, %s35
    %s52 = sphi 0, %s36
    %s56 = sphi 0, %s56
    %s58 = sphi 0, %s56
    %s59 = sphi 0, %s58
    %s73 = sphi 0, %s59
    %s79 = sphi 0, %s81
    %s82 = sphi 0, %s79
    %s83 = sphi 0, %s82
    %s99 = sphi 0, %s83
    %s105 = sphi 0, %s107
    %s108 = sphi 0, %s105
    %s109 = sphi 0, %s108
    %s125 = sphi 0, %s109
    %s133 = sphi 0, %s135
    %s136 = sphi 0, %s133
    %s137 = sphi 0, %s136
    %s153 = sphi 0, %s137
  $region4: #{tpu_custom_call.1} parent=0 // loop_header_branch
    %13 = sbr.rel (%p11) target = $region8
  $region5: #{tpu_custom_call.1} parent=0 // loop_body
    %s15 = ssub.s32 %s10, 1
    %s16 = ssub.s32 %s10, 2
    %s23 = sadd.s32 1, %s18
    %p24 = scmp.ge.s32.totalorder %s23, 8
    %s25 = scalar_select %p24, 0, %s23
    %s26 = sadd.s32 1, %s17
    %s27 = scalar_select %p24, %s26, %s17
    %p28 = scmp.ge.s32.totalorder %s27, 2
    %s29 = scalar_select %p28, 0, %s27
    %s30 = ssub.s32 %s17, %s29
    %p31 = scmp.eq.s32.totalorder %s30, 0
    %s33 = sadd.s32 %s32, 1
    %s34 = scalar_select %p31, %s32, %s33
    %p37 = pneg %p31
    %p38 = scmp.eq.s32.totalorder %s10, 15
    %p39 = por %p37, %p38
    %p40 = scmp.ne.s32.totalorder %s32, %s35
    %p41 = scmp.eq.s32.totalorder %s10, 0
    %p42 = por %p40, %p41
    %p43 = scmp.ne.s32.totalorder %s32, %s35
    %p44 = scmp.eq.s32.totalorder %s15, 15
    %p45 = por %p43, %p44
    %p46 = scmp.ne.s32.totalorder %s35, %s36
    %p47 = scmp.eq.s32.totalorder %s15, 0
    %p48 = por %p46, %p47
    %p49 = scmp.ne.s32.totalorder %s35, %s36
    %p50 = scmp.eq.s32.totalorder %s16, 15
    %p51 = por %p49, %p50
    %p53 = scmp.ne.s32.totalorder %s36, %s52
    %p54 = scmp.eq.s32.totalorder %s16, 0
    %p55 = por %p53, %p54
    %s57 = sadd.s32 %s56, 1
    %p60 = scmp.eq.s32.totalorder %s10, 15
    %p61 = scmp.ne.s32.totalorder %s56, %s58
    %p62 = scmp.eq.s32.totalorder %s10, 0
    %p63 = por %p61, %p62
    %p64 = scmp.ne.s32.totalorder %s56, %s58
    %p65 = scmp.eq.s32.totalorder %s15, 15
    %p66 = por %p64, %p65
    %p67 = scmp.ne.s32.totalorder %s58, %s59
    %p68 = scmp.eq.s32.totalorder %s15, 0
    %p69 = por %p67, %p68
    %p70 = scmp.ne.s32.totalorder %s58, %s59
    %p71 = scmp.eq.s32.totalorder %s16, 15
    %p72 = por %p70, %p71
    %p74 = scmp.ne.s32.totalorder %s59, %s73
    %p75 = scmp.eq.s32.totalorder %s16, 0
    %p76 = por %p74, %p75
    %s77 = ssub.s32 %s17, %s29
    %p78 = scmp.eq.s32.totalorder %s77, 0
    %s80 = sadd.s32 %s79, 1
    %s81 = scalar_select %p78, %s79, %s80
    %p84 = pneg %p78
    %p85 = scmp.eq.s32.totalorder %s10, 15
    %p86 = por %p84, %p85
    %p87 = scmp.ne.s32.totalorder %s79, %s82
    %p88 = scmp.eq.s32.totalorder %s10, 0
    %p89 = por %p87, %p88
    %p90 = scmp.ne.s32.totalorder %s79, %s82
    %p91 = scmp.eq.s32.totalorder %s15, 15
    %p92 = por %p90, %p91
    %p93 = scmp.ne.s32.totalorder %s82, %s83
    %p94 = scmp.eq.s32.totalorder %s15, 0
    %p95 = por %p93, %p94
    %p96 = scmp.ne.s32.totalorder %s82, %s83
    %p97 = scmp.eq.s32.totalorder %s16, 15
    %p98 = por %p96, %p97
    %p100 = scmp.ne.s32.totalorder %s83, %s99
    %p101 = scmp.eq.s32.totalorder %s16, 0
    %p102 = por %p100, %p101
    %s103 = ssub.s32 %s17, %s29
    %p104 = scmp.eq.s32.totalorder %s103, 0
    %s106 = sadd.s32 %s105, 1
    %s107 = scalar_select %p104, %s105, %s106
    %p110 = pneg %p104
    %p111 = scmp.eq.s32.totalorder %s10, 15
    %p112 = por %p110, %p111
    %p113 = scmp.ne.s32.totalorder %s105, %s108
    %p114 = scmp.eq.s32.totalorder %s10, 0
    %p115 = por %p113, %p114
    %p116 = scmp.ne.s32.totalorder %s105, %s108
    %p117 = scmp.eq.s32.totalorder %s15, 15
    %p118 = por %p116, %p117
    %p119 = scmp.ne.s32.totalorder %s108, %s109
    %p120 = scmp.eq.s32.totalorder %s15, 0
    %p121 = por %p119, %p120
    %p122 = scmp.ne.s32.totalorder %s108, %s109
    %p123 = scmp.eq.s32.totalorder %s16, 15
    %p124 = por %p122, %p123
    %p126 = scmp.ne.s32.totalorder %s109, %s125
    %p127 = scmp.eq.s32.totalorder %s16, 0
    %p128 = por %p126, %p127
    %s129 = ssub.s32 %s17, %s29
    %s130 = ssub.s32 %s18, %s25
    %s131 = sor.u32 %s129, %s130
    %p132 = scmp.eq.s32.totalorder %s131, 0
    %s134 = sadd.s32 %s133, 1
    %s135 = scalar_select %p132, %s133, %s134
    %p138 = pneg %p132
    %p139 = scmp.eq.s32.totalorder %s10, 15
    %p140 = por %p138, %p139
    %p141 = scmp.ne.s32.totalorder %s133, %s136
    %p142 = scmp.eq.s32.totalorder %s10, 0
    %p143 = por %p141, %p142
    %p144 = scmp.ne.s32.totalorder %s133, %s136
    %p145 = scmp.eq.s32.totalorder %s15, 15
    %p146 = por %p144, %p145
    %p147 = scmp.ne.s32.totalorder %s136, %s137
    %p148 = scmp.eq.s32.totalorder %s15, 0
    %p149 = por %p147, %p148
    %p150 = scmp.ne.s32.totalorder %s136, %s137
    %p151 = scmp.eq.s32.totalorder %s16, 15
    %p152 = por %p150, %p151
    %p154 = scmp.ne.s32.totalorder %s137, %s153
    %p155 = scmp.eq.s32.totalorder %s16, 0
    %p156 = por %p154, %p155
    %p157 = scmp.le.s32.totalorder 1, %s10
    %p158 = scmp.lt.s32.totalorder %s10, 17
    %p159 = pnand %p157, %p158
    %p160 = pneg %p159
    // Predicated region
    $region9: #{tpu_custom_call.1} parent=5 // pred_check
      _
    $region10: #{tpu_custom_call.1} parent=5 // pred_check_branch
      %162 = sbr.rel (%p159) target = $region12
    $region11: #{tpu_custom_call.1} parent=5 // pred_region
      %s163 = ssub.s32 %s10, 1
      // Predicated region
      $region13: #{tpu_custom_call.1} parent=11 // pred_check
        %p164 = pneg %p69
      $region14: #{tpu_custom_call.1} parent=11 // pred_check_branch
        %166 = sbr.rel (%p164) target = $region16
      $region15: #{tpu_custom_call.1} parent=11 // pred_region
        _
      $region16: #{tpu_custom_call.1} parent=11 // pred_fallthru
        _
    $region12: #{tpu_custom_call.1} parent=5 // pred_fallthru
      _
    %p167 = scmp.lt.s32.totalorder %s10, 16
    // Predicated region
    $region17: #{tpu_custom_call.1} parent=5 // pred_check
      %p168 = pneg %p167
    $region18: #{tpu_custom_call.1} parent=5 // pred_check_branch
      %170 = sbr.rel (%p168) target = $region20
    $region19: #{tpu_custom_call.1} parent=5 // pred_region
      // Predicated region
      $region21: #{tpu_custom_call.1} parent=19 // pred_check
        %p171 = pneg %p42
      $region22: #{tpu_custom_call.1} parent=19 // pred_check_branch
        %173 = sbr.rel (%p171) target = $region24
      $region23: #{tpu_custom_call.1} parent=19 // pred_region
        %p174 = scmp.lt.s32.totalorder %s17, 1
        %s175 = scalar_select %p174, %s17, 1
        %s176 = smul.addr %s175, 540
        %s177 = smul.addr %s176, 8
        %s178 = scalar_lea.vmem %s0, %s177
      $region24: #{tpu_custom_call.1} parent=19 // pred_fallthru
        _
      // Predicated region
      $region25: #{tpu_custom_call.1} parent=19 // pred_check
        %p179 = pneg %p89
      $region26: #{tpu_custom_call.1} parent=19 // pred_check_branch
        %181 = sbr.rel (%p179) target = $region28
      $region27: #{tpu_custom_call.1} parent=19 // pred_region
        %p182 = scmp.lt.s32.totalorder %s17, 1
        %s183 = scalar_select %p182, %s17, 1
        %s184 = scalar_lea.vmem %s2, %s183
      $region28: #{tpu_custom_call.1} parent=19 // pred_fallthru
        _
      // Predicated region
      $region29: #{tpu_custom_call.1} parent=19 // pred_check
        %p185 = pneg %p115
      $region30: #{tpu_custom_call.1} parent=19 // pred_check_branch
        %187 = sbr.rel (%p185) target = $region32
      $region31: #{tpu_custom_call.1} parent=19 // pred_region
        %p188 = scmp.lt.s32.totalorder %s17, 1
        %s189 = scalar_select %p188, %s17, 1
        %s190 = scalar_lea.vmem %s3, %s189
      $region32: #{tpu_custom_call.1} parent=19 // pred_fallthru
        _
    $region20: #{tpu_custom_call.1} parent=5 // pred_fallthru
      _
    %p191 = scmp.le.s32.totalorder 1, %s10
    %p192 = scmp.lt.s32.totalorder %s10, 17
    %p193 = pnand %p191, %p192
    %p194 = pneg %p193
    // Predicated region
    $region33: #{tpu_custom_call.1} parent=5 // pred_check
      _
    $region34: #{tpu_custom_call.1} parent=5 // pred_check_branch
      %196 = sbr.rel (%p193) target = $region36
    $region35: #{tpu_custom_call.1} parent=5 // pred_region
      %s197 = ssub.s32 %s10, 1
      %p198 = scmp.lt.s32.totalorder %s19, 1
      %s199 = scalar_select %p198, %s19, 1
      %s200 = smul.addr %s199, 540
      %s201 = smul.addr %s200, 8
      %s202 = scalar_lea.vmem %s0, %s201
      %p203 = pneg %p48
      %p204 = pneg %p45
      %p205 = pneg %p69
      %p206 = pneg %p66
      %p207 = scmp.lt.s32.totalorder %s19, 1
      %s208 = scalar_select %p207, %s19, 1
      %s209 = scalar_lea.vmem %s2, %s208
      %p210 = pneg %p95
      %p211 = pneg %p92
      %p212 = scmp.lt.s32.totalorder %s19, 1
      %s213 = scalar_select %p212, %s19, 1
      %s214 = scalar_lea.vmem %s3, %s213
      %p215 = pneg %p121
      %p216 = pneg %p118
      %p217 = pneg %p149
      %p218 = pneg %p146
      %p219 = scmp.lt.s32.totalorder %s19, 1
      %s220 = scalar_select %p219, %s19, 1
      %p221 = scmp.lt.s32.totalorder %s20, 7
      %s222 = scalar_select %p221, %s20, 7
      %s223 = smul.addr %s222, 32
      %s224 = smul.addr %s220, 256
      %s225 = sadd.s32 %s223, %s224
      %s226 = smul.addr %s225, 8
      %s227 = scalar_lea.vmem %s4, %s226
      %p228 = scmp.lt.s32.totalorder %s19, 1
      %s229 = scalar_select %p228, %s19, 1
      %s230 = smul.addr %s229, 540
      %s231 = smul.addr %s230, 8
      %s232 = scalar_lea.vmem %s0, %s231
      %p233 = scmp.lt.s32.totalorder %s19, 1
      %s234 = scalar_select %p233, %s19, 1
      %s235 = scalar_lea.vmem %s2, %s234
      %p236 = scmp.lt.s32.totalorder %s19, 1
      %s237 = scalar_select %p236, %s19, 1
      %s238 = scalar_lea.vmem %s3, %s237
      %p239 = scmp.lt.s32.totalorder %s19, 1
      %s240 = scalar_select %p239, %s19, 1
      %p241 = scmp.lt.s32.totalorder %s20, 7
      %s242 = scalar_select %p241, %s20, 7
      %s243 = smul.addr %s242, 32
      %s244 = smul.addr %s240, 256
      %s245 = sadd.s32 %s243, %s244
      %s246 = smul.addr %s245, 8
      %s247 = scalar_lea.vmem %s4, %s246
      %s248 = smul.u32 %s20, 432
      %s249 = scalar_lea.vmem %s232, %s248
      %v250 = vld [vmem:[%s249] sm:$0xff]
      %v251 = vld [vmem:[%s249 + $0x8] sm:$0xff]
      %v252 = vld [vmem:[%s249 + $0x10] sm:$0x3]
      %v253 = vld [vmem:[%s249 + $0x18] sm:$0xff]
      %v254 = vld [vmem:[%s249 + $0x20] sm:$0xff]
      %v255 = vld [vmem:[%s249 + $0x28] sm:$0x3]
      %v256 = vld [vmem:[%s249 + $0x30] sm:$0xff]
      %v257 = vld [vmem:[%s249 + $0x38] sm:$0xff]
      %v258 = vld [vmem:[%s249 + $0x40] sm:$0x3]
      %v259 = vld [vmem:[%s249 + $0x48] sm:$0xff]
      %v260 = vld [vmem:[%s249 + $0x50] sm:$0xff]
      %v261 = vld [vmem:[%s249 + $0x58] sm:$0x3]
      %v262 = vld [vmem:[%s249 + $0x60] sm:$0xff]
      %v263 = vld [vmem:[%s249 + $0x68] sm:$0xff]
      %v264 = vld [vmem:[%s249 + $0x70] sm:$0x3]
      %v265 = vld [vmem:[%s249 + $0x78] sm:$0xff]
      %v266 = vld [vmem:[%s249 + $0x80] sm:$0xff]
      %v267 = vld [vmem:[%s249 + $0x88] sm:$0x3]
      %v268 = vld [vmem:[%s249 + $0x90] sm:$0xff]
      %v269 = vld [vmem:[%s249 + $0x98] sm:$0xff]
      %v270 = vld [vmem:[%s249 + $0xa0] sm:$0x3]
      %v271 = vld [vmem:[%s249 + $0xa8] sm:$0xff]
      %v272 = vld [vmem:[%s249 + $0xb0] sm:$0xff]
      %v273 = vld [vmem:[%s249 + $0xb8] sm:$0x3]
      %v274 = vld [vmem:[%s249 + $0xc0] sm:$0xff]
      %v275 = vld [vmem:[%s249 + $0xc8] sm:$0xff]
      %v276 = vld [vmem:[%s249 + $0xd0] sm:$0x3]
      %v277 = vld [vmem:[%s249 + $0xd8] sm:$0xff]
      %v278 = vld [vmem:[%s249 + $0xe0] sm:$0xff]
      %v279 = vld [vmem:[%s249 + $0xe8] sm:$0x3]
      %v280 = vld [vmem:[%s249 + $0xf0] sm:$0xff]
      %v281 = vld [vmem:[%s249 + $0xf8] sm:$0xff]
      %v282 = vld [vmem:[%s249 + $0x100] sm:$0x3]
      %v283 = vld [vmem:[%s249 + $0x108] sm:$0xff]
      %v284 = vld [vmem:[%s249 + $0x110] sm:$0xff]
      %v285 = vld [vmem:[%s249 + $0x118] sm:$0x3]
      %v286 = vld [vmem:[%s249 + $0x120] sm:$0xff]
      %v287 = vld [vmem:[%s249 + $0x128] sm:$0xff]
      %v288 = vld [vmem:[%s249 + $0x130] sm:$0x3]
      %v289 = vld [vmem:[%s249 + $0x138] sm:$0xff]
      %v290 = vld [vmem:[%s249 + $0x140] sm:$0xff]
      %v291 = vld [vmem:[%s249 + $0x148] sm:$0x3]
      %v292 = vld [vmem:[%s249 + $0x150] sm:$0xff]
      %v293 = vld [vmem:[%s249 + $0x158] sm:$0xff]
      %v294 = vld [vmem:[%s249 + $0x160] sm:$0x3]
      %v295 = vld [vmem:[%s249 + $0x168] sm:$0xff]
      %v296 = vld [vmem:[%s249 + $0x170] sm:$0xff]
      %v297 = vld [vmem:[%s249 + $0x178] sm:$0x3]
      %v298 = vld [vmem:[%s249 + $0x180] sm:$0xff]
      %v299 = vld [vmem:[%s249 + $0x188] sm:$0xff]
      %v300 = vld [vmem:[%s249 + $0x190] sm:$0x3]
      %v301 = vld [vmem:[%s249 + $0x198] sm:$0xff]
      %v302 = vld [vmem:[%s249 + $0x1a0] sm:$0xff]
      %v303 = vld [vmem:[%s249 + $0x1a8] sm:$0x3]
      %v304 = vld [vmem:[%s1] sm:$0xf]
      %vm353 = vcmask 1046528
      %v354 = vrot.slane %v250, 1
      %v355 = vrot.slane %v251, 1
      %v356 = vsel %vm353, %v354, %v355
      %v357 = vrot.slane %v252, 1
      %v358 = vsel %vm353, %v355, %v357
      %v359 = vrot.slane %v253, 1
      %v360 = vrot.slane %v254, 1
      %v361 = vsel %vm353, %v359, %v360
      %v362 = vrot.slane %v255, 1
      %v363 = vsel %vm353, %v360, %v362
      %v364 = vrot.slane %v256, 1
      %v365 = vrot.slane %v257, 1
      %v366 = vsel %vm353, %v364, %v365
      %v367 = vrot.slane %v258, 1
      %v368 = vsel %vm353, %v365, %v367
      %v369 = vrot.slane %v259, 1
      %v370 = vrot.slane %v260, 1
      %v371 = vsel %vm353, %v369, %v370
      %v372 = vrot.slane %v261, 1
      %v373 = vsel %vm353, %v370, %v372
      %v374 = vrot.slane %v262, 1
      %v375 = vrot.slane %v263, 1
      %v376 = vsel %vm353, %v374, %v375
      %v377 = vrot.slane %v264, 1
      %v378 = vsel %vm353, %v375, %v377
      %v379 = vrot.slane %v265, 1
      %v380 = vrot.slane %v266, 1
      %v381 = vsel %vm353, %v379, %v380
      %v382 = vrot.slane %v267, 1
      %v383 = vsel %vm353, %v380, %v382
      %v384 = vrot.slane %v268, 1
      %v385 = vrot.slane %v269, 1
      %v386 = vsel %vm353, %v384, %v385
      %v387 = vrot.slane %v270, 1
      %v388 = vsel %vm353, %v385, %v387
      %v389 = vrot.slane %v271, 1
      %v390 = vrot.slane %v272, 1
      %v391 = vsel %vm353, %v389, %v390
      %v392 = vrot.slane %v273, 1
      %v393 = vsel %vm353, %v390, %v392
      %v394 = vrot.slane %v274, 1
      %v395 = vrot.slane %v275, 1
      %v396 = vsel %vm353, %v394, %v395
      %v397 = vrot.slane %v276, 1
      %v398 = vsel %vm353, %v395, %v397
      %v399 = vrot.slane %v277, 1
      %v400 = vrot.slane %v278, 1
      %v401 = vsel %vm353, %v399, %v400
      %v402 = vrot.slane %v279, 1
      %v403 = vsel %vm353, %v400, %v402
      %v404 = vrot.slane %v280, 1
      %v405 = vrot.slane %v281, 1
      %v406 = vsel %vm353, %v404, %v405
      %v407 = vrot.slane %v282, 1
      %v408 = vsel %vm353, %v405, %v407
      %v409 = vrot.slane %v283, 1
      %v410 = vrot.slane %v284, 1
      %v411 = vsel %vm353, %v409, %v410
      %v412 = vrot.slane %v285, 1
      %v413 = vsel %vm353, %v410, %v412
      %v414 = vrot.slane %v286, 1
      %v415 = vrot.slane %v287, 1
      %v416 = vsel %vm353, %v414, %v415
      %v417 = vrot.slane %v288, 1
      %v418 = vsel %vm353, %v415, %v417
      %v419 = vrot.slane %v289, 1
      %v420 = vrot.slane %v290, 1
      %v421 = vsel %vm353, %v419, %v420
      %v422 = vrot.slane %v291, 1
      %v423 = vsel %vm353, %v420, %v422
      %v424 = vrot.slane %v292, 1
      %v425 = vrot.slane %v293, 1
      %v426 = vsel %vm353, %v424, %v425
      %v427 = vrot.slane %v294, 1
      %v428 = vsel %vm353, %v425, %v427
      %v429 = vrot.slane %v295, 1
      %v430 = vrot.slane %v296, 1
      %v431 = vsel %vm353, %v429, %v430
      %v432 = vrot.slane %v297, 1
      %v433 = vsel %vm353, %v430, %v432
      %s434 = scalar_lea.vmem %s1, 4
      %v435 = vld [vmem:[%s434] sm:$0xf]
      %vm436 = vcmask 31744
      %v437 = vsel %vm436, %v356, 0
      %v439 = vsel %vm436, %v358, 0
      %v441 = vsel %vm436, %v361, 0
      %v443 = vsel %vm436, %v363, 0
      %v445 = vsel %vm436, %v366, 0
      %v447 = vsel %vm436, %v368, 0
      %v449 = vsel %vm436, %v371, 0
      %v451 = vsel %vm436, %v373, 0
      %v453 = vsel %vm436, %v376, 0
      %v455 = vsel %vm436, %v378, 0
      %v457 = vsel %vm436, %v381, 0
      %v459 = vsel %vm436, %v383, 0
      %v461 = vsel %vm436, %v386, 0
      %v463 = vsel %vm436, %v388, 0
      %v465 = vsel %vm436, %v391, 0
      %v467 = vsel %vm436, %v393, 0
      %v469 = vsel %vm436, %v396, 0
      %v471 = vsel %vm436, %v398, 0
      %v473 = vsel %vm436, %v401, 0
      %v475 = vsel %vm436, %v403, 0
      %v477 = vsel %vm436, %v406, 0
      %v479 = vsel %vm436, %v408, 0
      %v481 = vsel %vm436, %v411, 0
      %v483 = vsel %vm436, %v413, 0
      %v485 = vsel %vm436, %v416, 0
      %v487 = vsel %vm436, %v418, 0
      %v489 = vsel %vm436, %v421, 0
      %v491 = vsel %vm436, %v423, 0
      %v493 = vsel %vm436, %v426, 0
      %v495 = vsel %vm436, %v428, 0
      %v497 = vsel %vm436, %v431, 0
      %v499 = vsel %vm436, %v433, 0
      %vm501 = vcmask 1043456
      %v503 = vsel %vm501, %v435, 0
      %505 = vmatprep.subr.mxu0 0.0
      %506 = vmatpush1.msra.mxu0 %v503
      %507 = vmatprep.subr.mxu0 0.0
      %508 = vmatpush1.msra.mxu0 0.0
      %509 = vmatprep.subr.mxu0 0.0
      %510 = vmatpush1.msra.mxu0 0.0
      %511 = vmatprep.subr.mxu0 0.0
      %512 = vmatpush1.msra.mxu0 0.0
      %513 = vmatprep.subr.mxu0 0.0
      %514 = vmatpush1.msra.mxu0 0.0
      %515 = vmatprep.subr.mxu0 0.0
      %516 = vmatpush1.msra.mxu0 0.0
      %517 = vmatprep.subr.mxu0 0.0
      %518 = vmatpush1.msra.mxu0 0.0
      %519 = vmatprep.subr.mxu0 0.0
      %520 = vmatpush1.msra.mxu0 0.0
      %521 = vmatprep.subr.mxu0 0.0
      %522 = vmatpush1.msra.mxu0 0.0
      %523 = vmatprep.subr.mxu0 0.0
      %524 = vmatpush1.msra.mxu0 0.0
      %525 = vmatprep.subr.mxu0 0.0
      %526 = vmatpush1.msra.mxu0 0.0
      %527 = vmatprep.subr.mxu0 0.0
      %528 = vmatpush1.msra.mxu0 0.0
      %529 = vmatprep.subr.mxu0 0.0
      %530 = vmatpush1.msra.mxu0 0.0
      %531 = vmatprep.subr.mxu0 0.0
      %532 = vmatpush1.msra.mxu0 0.0
      %533 = vmatprep.subr.mxu0 0.0
      %534 = vmatpush1.msra.mxu0 0.0
      %535 = vmatprep.subr.mxu0 0.0
      %536 = vmatpush1.msra.mxu0 0.0
      %537 = vmatprep.subr.mxu0 0.0
      %538 = vmatpush1.msra.mxu0 0.0
      %539 = vmatprep.subr.mxu0 0.0
      %540 = vmatpush1.msra.mxu0 0.0
      %541 = vmatprep.subr.mxu0 0.0
      %542 = vmatpush1.msra.mxu0 0.0
      %543 = vmatprep.subr.mxu0 0.0
      %544 = vmatpush1.msra.mxu0 0.0
      %545 = vmatprep.subr.mxu0 0.0
      %546 = vmatpush1.msra.mxu0 0.0
      %547 = vmatprep.subr.mxu0 0.0
      %548 = vmatpush1.msra.mxu0 0.0
      %549 = vmatprep.subr.mxu0 0.0
      %550 = vmatpush1.msra.mxu0 0.0
      %551 = vmatprep.subr.mxu0 0.0
      %552 = vmatpush1.msra.mxu0 0.0
      %553 = vmatprep.subr.mxu0 0.0
      %554 = vmatpush1.msra.mxu0 0.0
      %555 = vmatprep.subr.mxu0 0.0
      %556 = vmatpush1.msra.mxu0 0.0
      %557 = vmatprep.subr.mxu0 0.0
      %558 = vmatpush1.msra.mxu0 0.0
      %559 = vmatprep.subr.mxu0 0.0
      %560 = vmatpush1.msra.mxu0 0.0
      %561 = vmatprep.subr.mxu0 0.0
      %562 = vmatpush1.msra.mxu0 0.0
      %563 = vmatprep.subr.mxu0 0.0
      %564 = vmatpush1.msra.mxu0 0.0
      %565 = vmatprep.subr.mxu0 0.0
      %566 = vmatpush1.msra.mxu0 0.0
      %567 = vmatprep.subr.mxu0 0.0
      %568 = vmatpush1.msra.mxu0 0.0
      %569 = vmatprep.mubr.f32.mxu0 0.0
      %570 = vmatmul.mubr.f32.gmra.mrb[0].mxu0 %v437
      %v571 = vpop.f32.mrb[0].mxu0
      %v572 = vadd.f32 0.0, %v571
      %v573 = vpop.f32.mrb[0].mxu0
      %574 = vmatprep.mubr.f32.mxu0 0.0
      %575 = vmatmul.mubr.f32.gmra.mrb[0].mxu0 %v439
      %v576 = vpop.f32.mrb[0].mxu0
      %v577 = vadd.f32 0.0, %v576
      %v578 = vpop.f32.mrb[0].mxu0
      %579 = vmatprep.mubr.f32.mxu0 0.0
      %580 = vmatmul.mubr.f32.gmra.mrb[0].mxu0 %v441
      %v581 = vpop.f32.mrb[0].mxu0
      %v582 = vadd.f32 0.0, %v581
      %v583 = vpop.f32.mrb[0].mxu0
      %584 = vmatprep.mubr.f32.mxu0 0.0
      %585 = vmatmul.mubr.f32.gmra.mrb[0].mxu0 %v443
      %v586 = vpop.f32.mrb[0].mxu0
      %v587 = vadd.f32 0.0, %v586
      %v588 = vpop.f32.mrb[0].mxu0
      %589 = vmatprep.mubr.f32.mxu0 0.0
      %590 = vmatmul.mubr.f32.gmra.mrb[0].mxu0 %v445
      %v591 = vpop.f32.mrb[0].mxu0
      %v592 = vadd.f32 0.0, %v591
      %v593 = vpop.f32.mrb[0].mxu0
      %594 = vmatprep.mubr.f32.mxu0 0.0
      %595 = vmatmul.mubr.f32.gmra.mrb[0].mxu0 %v447
      %v596 = vpop.f32.mrb[0].mxu0
      %v597 = vadd.f32 0.0, %v596
      %v598 = vpop.f32.mrb[0].mxu0
      %599 = vmatprep.mubr.f32.mxu0 0.0
      %600 = vmatmul.mubr.f32.gmra.mrb[0].mxu0 %v449
      %v601 = vpop.f32.mrb[0].mxu0
      %v602 = vadd.f32 0.0, %v601
      %v603 = vpop.f32.mrb[0].mxu0
      %604 = vmatprep.mubr.f32.mxu0 0.0
      %605 = vmatmul.mubr.f32.gmra.mrb[0].mxu0 %v451
      %v606 = vpop.f32.mrb[0].mxu0
      %v607 = vadd.f32 0.0, %v606
      %v608 = vpop.f32.mrb[0].mxu0
      %609 = vmatprep.mubr.f32.mxu0 0.0
      %610 = vmatmul.mubr.f32.gmra.mrb[0].mxu0 %v453
      %v611 = vpop.f32.mrb[0].mxu0
      %v612 = vadd.f32 0.0, %v611
      %v613 = vpop.f32.mrb[0].mxu0
      %614 = vmatprep.mubr.f32.mxu0 0.0
      %615 = vmatmul.mubr.f32.gmra.mrb[0].mxu0 %v455
      %v616 = vpop.f32.mrb[0].mxu0
      %v617 = vadd.f32 0.0, %v616
      %v618 = vpop.f32.mrb[0].mxu0
      %619 = vmatprep.mubr.f32.mxu0 0.0
      %620 = vmatmul.mubr.f32.gmra.mrb[0].mxu0 %v457
      %v621 = vpop.f32.mrb[0].mxu0
      %v622 = vadd.f32 0.0, %v621
      %v623 = vpop.f32.mrb[0].mxu0
      %624 = vmatprep.mubr.f32.mxu0 0.0
      %625 = vmatmul.mubr.f32.gmra.mrb[0].mxu0 %v459
      %v626 = vpop.f32.mrb[0].mxu0
      %v627 = vadd.f32 0.0, %v626
      %v628 = vpop.f32.mrb[0].mxu0
      %629 = vmatprep.mubr.f32.mxu0 0.0
      %630 = vmatmul.mubr.f32.gmra.mrb[0].mxu0 %v461
      %v631 = vpop.f32.mrb[0].mxu0
      %v632 = vadd.f32 0.0, %v631
      %v633 = vpop.f32.mrb[0].mxu0
      %634 = vmatprep.mubr.f32.mxu0 0.0
      %635 = vmatmul.mubr.f32.gmra.mrb[0].mxu0 %v463
      %v636 = vpop.f32.mrb[0].mxu0
      %v637 = vadd.f32 0.0, %v636
      %v638 = vpop.f32.mrb[0].mxu0
      %639 = vmatprep.mubr.f32.mxu0 0.0
      %640 = vmatmul.mubr.f32.gmra.mrb[0].mxu0 %v465
      %v641 = vpop.f32.mrb[0].mxu0
      %v642 = vadd.f32 0.0, %v641
      %v643 = vpop.f32.mrb[0].mxu0
      %644 = vmatprep.mubr.f32.mxu0 0.0
      %645 = vmatmul.mubr.f32.gmra.mrb[0].mxu0 %v467
      %v646 = vpop.f32.mrb[0].mxu0
      %v647 = vadd.f32 0.0, %v646
      %v648 = vpop.f32.mrb[0].mxu0
      %649 = vmatprep.mubr.f32.mxu0 0.0
      %650 = vmatmul.mubr.f32.gmra.mrb[0].mxu0 %v469
      %v651 = vpop.f32.mrb[0].mxu0
      %v652 = vadd.f32 0.0, %v651
      %v653 = vpop.f32.mrb[0].mxu0
      %654 = vmatprep.mubr.f32.mxu0 0.0
      %655 = vmatmul.mubr.f32.gmra.mrb[0].mxu0 %v471
      %v656 = vpop.f32.mrb[0].mxu0
      %v657 = vadd.f32 0.0, %v656
      %v658 = vpop.f32.mrb[0].mxu0
      %659 = vmatprep.mubr.f32.mxu0 0.0
      %660 = vmatmul.mubr.f32.gmra.mrb[0].mxu0 %v473
      %v661 = vpop.f32.mrb[0].mxu0
      %v662 = vadd.f32 0.0, %v661
      %v663 = vpop.f32.mrb[0].mxu0
      %664 = vmatprep.mubr.f32.mxu0 0.0
      %665 = vmatmul.mubr.f32.gmra.mrb[0].mxu0 %v475
      %v666 = vpop.f32.mrb[0].mxu0
      %v667 = vadd.f32 0.0, %v666
      %v668 = vpop.f32.mrb[0].mxu0
      %669 = vmatprep.mubr.f32.mxu0 0.0
      %670 = vmatmul.mubr.f32.gmra.mrb[0].mxu0 %v477
      %v671 = vpop.f32.mrb[0].mxu0
      %v672 = vadd.f32 0.0, %v671
      %v673 = vpop.f32.mrb[0].mxu0
      %674 = vmatprep.mubr.f32.mxu0 0.0
      %675 = vmatmul.mubr.f32.gmra.mrb[0].mxu0 %v479
      %v676 = vpop.f32.mrb[0].mxu0
      %v677 = vadd.f32 0.0, %v676
      %v678 = vpop.f32.mrb[0].mxu0
      %679 = vmatprep.mubr.f32.mxu0 0.0
      %680 = vmatmul.mubr.f32.gmra.mrb[0].mxu0 %v481
      %v681 = vpop.f32.mrb[0].mxu0
      %v682 = vadd.f32 0.0, %v681
      %v683 = vpop.f32.mrb[0].mxu0
      %684 = vmatprep.mubr.f32.mxu0 0.0
      %685 = vmatmul.mubr.f32.gmra.mrb[0].mxu0 %v483
      %v686 = vpop.f32.mrb[0].mxu0
      %v687 = vadd.f32 0.0, %v686
      %v688 = vpop.f32.mrb[0].mxu0
      %689 = vmatprep.mubr.f32.mxu0 0.0
      %690 = vmatmul.mubr.f32.gmra.mrb[0].mxu0 %v485
      %v691 = vpop.f32.mrb[0].mxu0
      %v692 = vadd.f32 0.0, %v691
      %v693 = vpop.f32.mrb[0].mxu0
      %694 = vmatprep.mubr.f32.mxu0 0.0
      %695 = vmatmul.mubr.f32.gmra.mrb[0].mxu0 %v487
      %v696 = vpop.f32.mrb[0].mxu0
      %v697 = vadd.f32 0.0, %v696
      %v698 = vpop.f32.mrb[0].mxu0
      %699 = vmatprep.mubr.f32.mxu0 0.0
      %700 = vmatmul.mubr.f32.gmra.mrb[0].mxu0 %v489
      %v701 = vpop.f32.mrb[0].mxu0
      %v702 = vadd.f32 0.0, %v701
      %v703 = vpop.f32.mrb[0].mxu0
      %704 = vmatprep.mubr.f32.mxu0 0.0
      %705 = vmatmul.mubr.f32.gmra.mrb[0].mxu0 %v491
      %v706 = vpop.f32.mrb[0].mxu0
      %v707 = vadd.f32 0.0, %v706
      %v708 = vpop.f32.mrb[0].mxu0
      %709 = vmatprep.mubr.f32.mxu0 0.0
      %710 = vmatmul.mubr.f32.gmra.mrb[0].mxu0 %v493
      %v711 = vpop.f32.mrb[0].mxu0
      %v712 = vadd.f32 0.0, %v711
      %v713 = vpop.f32.mrb[0].mxu0
      %714 = vmatprep.mubr.f32.mxu0 0.0
      %715 = vmatmul.mubr.f32.gmra.mrb[0].mxu0 %v495
      %v716 = vpop.f32.mrb[0].mxu0
      %v717 = vadd.f32 0.0, %v716
      %v718 = vpop.f32.mrb[0].mxu0
      %719 = vmatprep.mubr.f32.mxu0 0.0
      %720 = vmatmul.mubr.f32.gmra.mrb[0].mxu0 %v497
      %v721 = vpop.f32.mrb[0].mxu0
      %v722 = vadd.f32 0.0, %v721
      %v723 = vpop.f32.mrb[0].mxu0
      %724 = vmatprep.mubr.f32.mxu0 0.0
      %725 = vmatmul.mubr.f32.gmra.mrb[0].mxu0 %v499
      %v726 = vpop.f32.mrb[0].mxu0
      %v727 = vadd.f32 0.0, %v726
      %v728 = vpop.f32.mrb[0].mxu0
      %729 = vdwg.mxu0
      %v730 = vsel %vm436, %v250, 0
      %v732 = vsel %vm436, %v251, 0
      %v734 = vsel %vm436, %v253, 0
      %v736 = vsel %vm436, %v254, 0
      %v738 = vsel %vm436, %v256, 0
      %v740 = vsel %vm436, %v257, 0
      %v742 = vsel %vm436, %v259, 0
      %v744 = vsel %vm436, %v260, 0
      %v746 = vsel %vm436, %v262, 0
      %v748 = vsel %vm436, %v263, 0
      %v750 = vsel %vm436, %v265, 0
      %v752 = vsel %vm436, %v266, 0
      %v754 = vsel %vm436, %v268, 0
      %v756 = vsel %vm436, %v269, 0
      %v758 = vsel %vm436, %v271, 0
      %v760 = vsel %vm436, %v272, 0
      %v762 = vsel %vm436, %v274, 0
      %v764 = vsel %vm436, %v275, 0
      %v766 = vsel %vm436, %v277, 0
      %v768 = vsel %vm436, %v278, 0
      %v770 = vsel %vm436, %v280, 0
      %v772 = vsel %vm436, %v281, 0
      %v774 = vsel %vm436, %v283, 0
      %v776 = vsel %vm436, %v284, 0
      %v778 = vsel %vm436, %v286, 0
      %v780 = vsel %vm436, %v287, 0
      %v782 = vsel %vm436, %v289, 0
      %v784 = vsel %vm436, %v290, 0
      %v786 = vsel %vm436, %v292, 0
      %v788 = vsel %vm436, %v293, 0
      %v790 = vsel %vm436, %v295, 0
      %v792 = vsel %vm436, %v296, 0
      %v795 = vsel %vm501, %v304, 0
      %797 = vmatprep.subr.mxu0 0.0
      %798 = vmatpush1.msra.mxu0 %v795
      %799 = vmatprep.subr.mxu0 0.0
      %800 = vmatpush1.msra.mxu0 0.0
      %801 = vmatprep.subr.mxu0 0.0
      %802 = vmatpush1.msra.mxu0 0.0
      %803 = vmatprep.subr.mxu0 0.0
      %804 = vmatpush1.msra.mxu0 0.0
      %805 = vmatprep.subr.mxu0 0.0
      %806 = vmatpush1.msra.mxu0 0.0
      %807 = vmatprep.subr.mxu0 0.0
      %808 = vmatpush1.msra.mxu0 0.0
      %809 = vmatprep.subr.mxu0 0.0
      %810 = vmatpush1.msra.mxu0 0.0
      %811 = vmatprep.subr.mxu0 0.0
      %812 = vmatpush1.msra.mxu0 0.0
      %813 = vmatprep.subr.mxu0 0.0
      %814 = vmatpush1.msra.mxu0 0.0
      %815 = vmatprep.subr.mxu0 0.0
      %816 = vmatpush1.msra.mxu0 0.0
      %817 = vmatprep.subr.mxu0 0.0
      %818 = vmatpush1.msra.mxu0 0.0
      %819 = vmatprep.subr.mxu0 0.0
      %820 = vmatpush1.msra.mxu0 0.0
      %821 = vmatprep.subr.mxu0 0.0
      %822 = vmatpush1.msra.mxu0 0.0
      %823 = vmatprep.subr.mxu0 0.0
      %824 = vmatpush1.msra.mxu0 0.0
      %825 = vmatprep.subr.mxu0 0.0
      %826 = vmatpush1.msra.mxu0 0.0
      %827 = vmatprep.subr.mxu0 0.0
      %828 = vmatpush1.msra.mxu0 0.0
      %829 = vmatprep.subr.mxu0 0.0
      %830 = vmatpush1.msra.mxu0 0.0
      %831 = vmatprep.subr.mxu0 0.0
      %832 = vmatpush1.msra.mxu0 0.0
      %833 = vmatprep.subr.mxu0 0.0
      %834 = vmatpush1.msra.mxu0 0.0
      %835 = vmatprep.subr.mxu0 0.0
      %836 = vmatpush1.msra.mxu0 0.0
      %837 = vmatprep.subr.mxu0 0.0
      %838 = vmatpush1.msra.mxu0 0.0
      %839 = vmatprep.subr.mxu0 0.0
      %840 = vmatpush1.msra.mxu0 0.0
      %841 = vmatprep.subr.mxu0 0.0
      %842 = vmatpush1.msra.mxu0 0.0
      %843 = vmatprep.subr.mxu0 0.0
      %844 = vmatpush1.msra.mxu0 0.0
      %845 = vmatprep.subr.mxu0 0.0
      %846 = vmatpush1.msra.mxu0 0.0
      %847 = vmatprep.subr.mxu0 0.0
      %848 = vmatpush1.msra.mxu0 0.0
      %849 = vmatprep.subr.mxu0 0.0
      %850 = vmatpush1.msra.mxu0 0.0
      %851 = vmatprep.subr.mxu0 0.0
      %852 = vmatpush1.msra.mxu0 0.0
      %853 = vmatprep.subr.mxu0 0.0
      %854 = vmatpush1.msra.mxu0 0.0
      %855 = vmatprep.subr.mxu0 0.0
      %856 = vmatpush1.msra.mxu0 0.0
      %857 = vmatprep.subr.mxu0 0.0
      %858 = vmatpush1.msra.mxu0 0.0
      %859 = vmatprep.subr.mxu0 0.0
      %860 = vmatpush1.msra.mxu0 0.0
      %861 = vmatprep.mubr.f32.mxu0 0.0
      %862 = vmatmul.mubr.f32.gmra.mrb[0].mxu0 %v730
      %v863 = vpop.f32.mrb[0].mxu0
      %v864 = vadd.f32 %v572, %v863
      %v865 = vpop.f32.mrb[0].mxu0
      %866 = vmatprep.mubr.f32.mxu0 0.0
      %867 = vmatmul.mubr.f32.gmra.mrb[0].mxu0 %v732
      %v868 = vpop.f32.mrb[0].mxu0
      %v869 = vadd.f32 %v577, %v868
      %v870 = vpop.f32.mrb[0].mxu0
      %871 = vmatprep.mubr.f32.mxu0 0.0
      %872 = vmatmul.mubr.f32.gmra.mrb[0].mxu0 %v734
      %v873 = vpop.f32.mrb[0].mxu0
      %v874 = vadd.f32 %v582, %v873
      %v875 = vpop.f32.mrb[0].mxu0
      %876 = vmatprep.mubr.f32.mxu0 0.0
      %877 = vmatmul.mubr.f32.gmra.mrb[0].mxu0 %v736
      %v878 = vpop.f32.mrb[0].mxu0
      %v879 = vadd.f32 %v587, %v878
      %v880 = vpop.f32.mrb[0].mxu0
      %881 = vmatprep.mubr.f32.mxu0 0.0
      %882 = vmatmul.mubr.f32.gmra.mrb[0].mxu0 %v738
      %v883 = vpop.f32.mrb[0].mxu0
      %v884 = vadd.f32 %v592, %v883
      %v885 = vpop.f32.mrb[0].mxu0
      %886 = vmatprep.mubr.f32.mxu0 0.0
      %887 = vmatmul.mubr.f32.gmra.mrb[0].mxu0 %v740
      %v888 = vpop.f32.mrb[0].mxu0
      %v889 = vadd.f32 %v597, %v888
      %v890 = vpop.f32.mrb[0].mxu0
      %891 = vmatprep.mubr.f32.mxu0 0.0
      %892 = vmatmul.mubr.f32.gmra.mrb[0].mxu0 %v742
      %v893 = vpop.f32.mrb[0].mxu0
      %v894 = vadd.f32 %v602, %v893
      %v895 = vpop.f32.mrb[0].mxu0
      %896 = vmatprep.mubr.f32.mxu0 0.0
      %897 = vmatmul.mubr.f32.gmra.mrb[0].mxu0 %v744
      %v898 = vpop.f32.mrb[0].mxu0
      %v899 = vadd.f32 %v607, %v898
      %v900 = vpop.f32.mrb[0].mxu0
      %901 = vmatprep.mubr.f32.mxu0 0.0
      %902 = vmatmul.mubr.f32.gmra.mrb[0].mxu0 %v746
      %v903 = vpop.f32.mrb[0].mxu0
      %v904 = vadd.f32 %v612, %v903
      %v905 = vpop.f32.mrb[0].mxu0
      %906 = vmatprep.mubr.f32.mxu0 0.0
      %907 = vmatmul.mubr.f32.gmra.mrb[0].mxu0 %v748
      %v908 = vpop.f32.mrb[0].mxu0
      %v909 = vadd.f32 %v617, %v908
      %v910 = vpop.f32.mrb[0].mxu0
      %911 = vmatprep.mubr.f32.mxu0 0.0
      %912 = vmatmul.mubr.f32.gmra.mrb[0].mxu0 %v750
      %v913 = vpop.f32.mrb[0].mxu0
      %v914 = vadd.f32 %v622, %v913
      %v915 = vpop.f32.mrb[0].mxu0
      %916 = vmatprep.mubr.f32.mxu0 0.0
      %917 = vmatmul.mubr.f32.gmra.mrb[0].mxu0 %v752
      %v918 = vpop.f32.mrb[0].mxu0
      %v919 = vadd.f32 %v627, %v918
      %v920 = vpop.f32.mrb[0].mxu0
      %921 = vmatprep.mubr.f32.mxu0 0.0
      %922 = vmatmul.mubr.f32.gmra.mrb[0].mxu0 %v754
      %v923 = vpop.f32.mrb[0].mxu0
      %v924 = vadd.f32 %v632, %v923
      %v925 = vpop.f32.mrb[0].mxu0
      %926 = vmatprep.mubr.f32.mxu0 0.0
      %927 = vmatmul.mubr.f32.gmra.mrb[0].mxu0 %v756
      %v928 = vpop.f32.mrb[0].mxu0
      %v929 = vadd.f32 %v637, %v928
      %v930 = vpop.f32.mrb[0].mxu0
      %931 = vmatprep.mubr.f32.mxu0 0.0
      %932 = vmatmul.mubr.f32.gmra.mrb[0].mxu0 %v758
      %v933 = vpop.f32.mrb[0].mxu0
      %v934 = vadd.f32 %v642, %v933
      %v935 = vpop.f32.mrb[0].mxu0
      %936 = vmatprep.mubr.f32.mxu0 0.0
      %937 = vmatmul.mubr.f32.gmra.mrb[0].mxu0 %v760
      %v938 = vpop.f32.mrb[0].mxu0
      %v939 = vadd.f32 %v647, %v938
      %v940 = vpop.f32.mrb[0].mxu0
      %941 = vmatprep.mubr.f32.mxu0 0.0
      %942 = vmatmul.mubr.f32.gmra.mrb[0].mxu0 %v762
      %v943 = vpop.f32.mrb[0].mxu0
      %v944 = vadd.f32 %v652, %v943
      %v945 = vpop.f32.mrb[0].mxu0
      %946 = vmatprep.mubr.f32.mxu0 0.0
      %947 = vmatmul.mubr.f32.gmra.mrb[0].mxu0 %v764
      %v948 = vpop.f32.mrb[0].mxu0
      %v949 = vadd.f32 %v657, %v948
      %v950 = vpop.f32.mrb[0].mxu0
      %951 = vmatprep.mubr.f32.mxu0 0.0
      %952 = vmatmul.mubr.f32.gmra.mrb[0].mxu0 %v766
      %v953 = vpop.f32.mrb[0].mxu0
      %v954 = vadd.f32 %v662, %v953
      %v955 = vpop.f32.mrb[0].mxu0
      %956 = vmatprep.mubr.f32.mxu0 0.0
      %957 = vmatmul.mubr.f32.gmra.mrb[0].mxu0 %v768
      %v958 = vpop.f32.mrb[0].mxu0
      %v959 = vadd.f32 %v667, %v958
      %v960 = vpop.f32.mrb[0].mxu0
      %961 = vmatprep.mubr.f32.mxu0 0.0
      %962 = vmatmul.mubr.f32.gmra.mrb[0].mxu0 %v770
      %v963 = vpop.f32.mrb[0].mxu0
      %v964 = vadd.f32 %v672, %v963
      %v965 = vpop.f32.mrb[0].mxu0
      %966 = vmatprep.mubr.f32.mxu0 0.0
      %967 = vmatmul.mubr.f32.gmra.mrb[0].mxu0 %v772
      %v968 = vpop.f32.mrb[0].mxu0
      %v969 = vadd.f32 %v677, %v968
      %v970 = vpop.f32.mrb[0].mxu0
      %971 = vmatprep.mubr.f32.mxu0 0.0
      %972 = vmatmul.mubr.f32.gmra.mrb[0].mxu0 %v774
      %v973 = vpop.f32.mrb[0].mxu0
      %v974 = vadd.f32 %v682, %v973
      %v975 = vpop.f32.mrb[0].mxu0
      %976 = vmatprep.mubr.f32.mxu0 0.0
      %977 = vmatmul.mubr.f32.gmra.mrb[0].mxu0 %v776
      %v978 = vpop.f32.mrb[0].mxu0
      %v979 = vadd.f32 %v687, %v978
      %v980 = vpop.f32.mrb[0].mxu0
      %981 = vmatprep.mubr.f32.mxu0 0.0
      %982 = vmatmul.mubr.f32.gmra.mrb[0].mxu0 %v778
      %v983 = vpop.f32.mrb[0].mxu0
      %v984 = vadd.f32 %v692, %v983
      %v985 = vpop.f32.mrb[0].mxu0
      %986 = vmatprep.mubr.f32.mxu0 0.0
      %987 = vmatmul.mubr.f32.gmra.mrb[0].mxu0 %v780
      %v988 = vpop.f32.mrb[0].mxu0
      %v989 = vadd.f32 %v697, %v988
      %v990 = vpop.f32.mrb[0].mxu0
      %991 = vmatprep.mubr.f32.mxu0 0.0
      %992 = vmatmul.mubr.f32.gmra.mrb[0].mxu0 %v782
      %v993 = vpop.f32.mrb[0].mxu0
      %v994 = vadd.f32 %v702, %v993
      %v995 = vpop.f32.mrb[0].mxu0
      %996 = vmatprep.mubr.f32.mxu0 0.0
      %997 = vmatmul.mubr.f32.gmra.mrb[0].mxu0 %v784
      %v998 = vpop.f32.mrb[0].mxu0
      %v999 = vadd.f32 %v707, %v998
      %v1000 = vpop.f32.mrb[0].mxu0
      %1001 = vmatprep.mubr.f32.mxu0 0.0
      %1002 = vmatmul.mubr.f32.gmra.mrb[0].mxu0 %v786
      %v1003 = vpop.f32.mrb[0].mxu0
      %v1004 = vadd.f32 %v712, %v1003
      %v1005 = vpop.f32.mrb[0].mxu0
      %1006 = vmatprep.mubr.f32.mxu0 0.0
      %1007 = vmatmul.mubr.f32.gmra.mrb[0].mxu0 %v788
      %v1008 = vpop.f32.mrb[0].mxu0
      %v1009 = vadd.f32 %v717, %v1008
      %v1010 = vpop.f32.mrb[0].mxu0
      %1011 = vmatprep.mubr.f32.mxu0 0.0
      %1012 = vmatmul.mubr.f32.gmra.mrb[0].mxu0 %v790
      %v1013 = vpop.f32.mrb[0].mxu0
      %v1014 = vadd.f32 %v722, %v1013
      %v1015 = vpop.f32.mrb[0].mxu0
      %1016 = vmatprep.mubr.f32.mxu0 0.0
      %1017 = vmatmul.mubr.f32.gmra.mrb[0].mxu0 %v792
      %v1018 = vpop.f32.mrb[0].mxu0
      %v1019 = vadd.f32 %v727, %v1018
      %v1020 = vpop.f32.mrb[0].mxu0
      %1021 = vdwg.mxu0
      %vm1022 = vcmask 1045504
      %v1023 = vrot.slane %v250, 2
      %v1024 = vrot.slane %v251, 2
      %v1025 = vsel %vm1022, %v1023, %v1024
      %v1026 = vrot.slane %v252, 2
      %v1027 = vsel %vm1022, %v1024, %v1026
      %v1028 = vrot.slane %v253, 2
      %v1029 = vrot.slane %v254, 2
      %v1030 = vsel %vm1022, %v1028, %v1029
      %v1031 = vrot.slane %v255, 2
      %v1032 = vsel %vm1022, %v1029, %v1031
      %v1033 = vrot.slane %v256, 2
      %v1034 = vrot.slane %v257, 2
      %v1035 = vsel %vm1022, %v1033, %v1034
      %v1036 = vrot.slane %v258, 2
      %v1037 = vsel %vm1022, %v1034, %v1036
      %v1038 = vrot.slane %v259, 2
      %v1039 = vrot.slane %v260, 2
      %v1040 = vsel %vm1022, %v1038, %v1039
      %v1041 = vrot.slane %v261, 2
      %v1042 = vsel %vm1022, %v1039, %v1041
      %v1043 = vrot.slane %v262, 2
      %v1044 = vrot.slane %v263, 2
      %v1045 = vsel %vm1022, %v1043, %v1044
      %v1046 = vrot.slane %v264, 2
      %v1047 = vsel %vm1022, %v1044, %v1046
      %v1048 = vrot.slane %v265, 2
      %v1049 = vrot.slane %v266, 2
      %v1050 = vsel %vm1022, %v1048, %v1049
      %v1051 = vrot.slane %v267, 2
      %v1052 = vsel %vm1022, %v1049, %v1051
      %v1053 = vrot.slane %v268, 2
      %v1054 = vrot.slane %v269, 2
      %v1055 = vsel %vm1022, %v1053, %v1054
      %v1056 = vrot.slane %v270, 2
      %v1057 = vsel %vm1022, %v1054, %v1056
      %v1058 = vrot.slane %v271, 2
      %v1059 = vrot.slane %v272, 2
      %v1060 = vsel %vm1022, %v1058, %v1059
      %v1061 = vrot.slane %v273, 2
      %v1062 = vsel %vm1022, %v1059, %v1061
      %v1063 = vrot.slane %v274, 2
      %v1064 = vrot.slane %v275, 2
      %v1065 = vsel %vm1022, %v1063, %v1064
      %v1066 = vrot.slane %v276, 2
      %v1067 = vsel %vm1022, %v1064, %v1066
      %v1068 = vrot.slane %v277, 2
      %v1069 = vrot.slane %v278, 2
      %v1070 = vsel %vm1022, %v1068, %v1069
      %v1071 = vrot.slane %v279, 2
      %v1072 = vsel %vm1022, %v1069, %v1071
      %v1073 = vrot.slane %v280, 2
      %v1074 = vrot.slane %v281, 2
      %v1075 = vsel %vm1022, %v1073, %v1074
      %v1076 = vrot.slane %v282, 2
      %v1077 = vsel %vm1022, %v1074, %v1076
      %v1078 = vrot.slane %v283, 2
      %v1079 = vrot.slane %v284, 2
      %v1080 = vsel %vm1022, %v1078, %v1079
      %v1081 = vrot.slane %v285, 2
      %v1082 = vsel %vm1022, %v1079, %v1081
      %v1083 = vrot.slane %v286, 2
      %v1084 = vrot.slane %v287, 2
      %v1085 = vsel %vm1022, %v1083, %v1084
      %v1086 = vrot.slane %v288, 2
      %v1087 = vsel %vm1022, %v1084, %v1086
      %v1088 = vrot.slane %v289, 2
      %v1089 = vrot.slane %v290, 2
      %v1090 = vsel %vm1022, %v1088, %v1089
      %v1091 = vrot.slane %v291, 2
      %v1092 = vsel %vm1022, %v1089, %v1091
      %v1093 = vrot.slane %v292, 2
      %v1094 = vrot.slane %v293, 2
      %v1095 = vsel %vm1022, %v1093, %v1094
      %v1096 = vrot.slane %v294, 2
      %v1097 = vsel %vm1022, %v1094, %v1096
      %v1098 = vrot.slane %v295, 2
      %v1099 = vrot.slane %v296, 2
      %v1100 = vsel %vm1022, %v1098, %v1099
      %v1101 = vrot.slane %v297, 2
      %v1102 = vsel %vm1022, %v1099, %v1101
      %s1103 = scalar_lea.vmem %s1, 8
      %v1104 = vld [vmem:[%s1103] sm:$0xf]
      %v1105 = vsel %vm436, %v1025, 0
      %v1107 = vsel %vm436, %v1027, 0
      %v1109 = vsel %vm436, %v1030, 0
      %v1111 = vsel %vm436, %v1032, 0
      %v1113 = vsel %vm436, %v1035, 0
      %v1115 = vsel %vm436, %v1037, 0
      %v1117 = vsel %vm436, %v1040, 0
      %v1119 = vsel %vm436, %v1042, 0
      %v1121 = vsel %vm436, %v1045, 0
      %v1123 = vsel %vm436, %v1047, 0
      %v1125 = vsel %vm436, %v1050, 0
      %v1127 = vsel %vm436, %v1052, 0
      %v1129 = vsel %vm436, %v1055, 0
      %v1131 = vsel %vm436, %v1057, 0
      %v1133 = vsel %vm436, %v1060, 0
      %v1135 = vsel %vm436, %v1062, 0
      %v1137 = vsel %vm436, %v1065, 0
      %v1139 = vsel %vm436, %v1067, 0
      %v1141 = vsel %vm436, %v1070, 0
      %v1143 = vsel %vm436, %v1072, 0
      %v1145 = vsel %vm436, %v1075, 0
      %v1147 = vsel %vm436, %v1077, 0
      %v1149 = vsel %vm436, %v1080, 0
      %v1151 = vsel %vm436, %v1082, 0
      %v1153 = vsel %vm436, %v1085, 0
      %v1155 = vsel %vm436, %v1087, 0
      %v1157 = vsel %vm436, %v1090, 0
      %v1159 = vsel %vm436, %v1092, 0
      %v1161 = vsel %vm436, %v1095, 0
      %v1163 = vsel %vm436, %v1097, 0
      %v1165 = vsel %vm436, %v1100, 0
      %v1167 = vsel %vm436, %v1102, 0
      %v1170 = vsel %vm501, %v1104, 0
      %1172 = vmatprep.subr.mxu0 0.0
      %1173 = vmatpush1.msra.mxu0 %v1170
      %1174 = vmatprep.subr.mxu0 0.0
      %1175 = vmatpush1.msra.mxu0 0.0
      %1176 = vmatprep.subr.mxu0 0.0
      %1177 = vmatpush1.msra.mxu0 0.0
      %1178 = vmatprep.subr.mxu0 0.0
      %1179 = vmatpush1.msra.mxu0 0.0
      %1180 = vmatprep.subr.mxu0 0.0
      %1181 = vmatpush1.msra.mxu0 0.0
      %1182 = vmatprep.subr.mxu0 0.0
      %1183 = vmatpush1.msra.mxu0 0.0
      %1184 = vmatprep.subr.mxu0 0.0
      %1185 = vmatpush1.msra.mxu0 0.0
      %1186 = vmatprep.subr.mxu0 0.0
      %1187 = vmatpush1.msra.mxu0 0.0
      %1188 = vmatprep.subr.mxu0 0.0
      %1189 = vmatpush1.msra.mxu0 0.0
      %1190 = vmatprep.subr.mxu0 0.0
      %1191 = vmatpush1.msra.mxu0 0.0
      %1192 = vmatprep.subr.mxu0 0.0
      %1193 = vmatpush1.msra.mxu0 0.0
      %1194 = vmatprep.subr.mxu0 0.0
      %1195 = vmatpush1.msra.mxu0 0.0
      %1196 = vmatprep.subr.mxu0 0.0
      %1197 = vmatpush1.msra.mxu0 0.0
      %1198 = vmatprep.subr.mxu0 0.0
      %1199 = vmatpush1.msra.mxu0 0.0
      %1200 = vmatprep.subr.mxu0 0.0
      %1201 = vmatpush1.msra.mxu0 0.0
      %1202 = vmatprep.subr.mxu0 0.0
      %1203 = vmatpush1.msra.mxu0 0.0
      %1204 = vmatprep.subr.mxu0 0.0
      %1205 = vmatpush1.msra.mxu0 0.0
      %1206 = vmatprep.subr.mxu0 0.0
      %1207 = vmatpush1.msra.mxu0 0.0
      %1208 = vmatprep.subr.mxu0 0.0
      %1209 = vmatpush1.msra.mxu0 0.0
      %1210 = vmatprep.subr.mxu0 0.0
      %1211 = vmatpush1.msra.mxu0 0.0
      %1212 = vmatprep.subr.mxu0 0.0
      %1213 = vmatpush1.msra.mxu0 0.0
      %1214 = vmatprep.subr.mxu0 0.0
      %1215 = vmatpush1.msra.mxu0 0.0
      %1216 = vmatprep.subr.mxu0 0.0
      %1217 = vmatpush1.msra.mxu0 0.0
      %1218 = vmatprep.subr.mxu0 0.0
      %1219 = vmatpush1.msra.mxu0 0.0
      %1220 = vmatprep.subr.mxu0 0.0
      %1221 = vmatpush1.msra.mxu0 0.0
      %1222 = vmatprep.subr.mxu0 0.0
      %1223 = vmatpush1.msra.mxu0 0.0
      %1224 = vmatprep.subr.mxu0 0.0
      %1225 = vmatpush1.msra.mxu0 0.0
      %1226 = vmatprep.subr.mxu0 0.0
      %1227 = vmatpush1.msra.mxu0 0.0
      %1228 = vmatprep.subr.mxu0 0.0
      %1229 = vmatpush1.msra.mxu0 0.0
      %1230 = vmatprep.subr.mxu0 0.0
      %1231 = vmatpush1.msra.mxu0 0.0
      %1232 = vmatprep.subr.mxu0 0.0
      %1233 = vmatpush1.msra.mxu0 0.0
      %1234 = vmatprep.subr.mxu0 0.0
      %1235 = vmatpush1.msra.mxu0 0.0
      %1236 = vmatprep.mubr.f32.mxu0 0.0
      %1237 = vmatmul.mubr.f32.gmra.mrb[0].mxu0 %v1105
      %v1238 = vpop.f32.mrb[0].mxu0
      %v1239 = vadd.f32 0.0, %v1238
      %v1240 = vpop.f32.mrb[0].mxu0
      %1241 = vmatprep.mubr.f32.mxu0 0.0
      %1242 = vmatmul.mubr.f32.gmra.mrb[0].mxu0 %v1107
      %v1243 = vpop.f32.mrb[0].mxu0
      %v1244 = vadd.f32 0.0, %v1243
      %v1245 = vpop.f32.mrb[0].mxu0
      %1246 = vmatprep.mubr.f32.mxu0 0.0
      %1247 = vmatmul.mubr.f32.gmra.mrb[0].mxu0 %v1109
      %v1248 = vpop.f32.mrb[0].mxu0
      %v1249 = vadd.f32 0.0, %v1248
      %v1250 = vpop.f32.mrb[0].mxu0
      %1251 = vmatprep.mubr.f32.mxu0 0.0
      %1252 = vmatmul.mubr.f32.gmra.mrb[0].mxu0 %v1111
      %v1253 = vpop.f32.mrb[0].mxu0
      %v1254 = vadd.f32 0.0, %v1253
      %v1255 = vpop.f32.mrb[0].mxu0
      %1256 = vmatprep.mubr.f32.mxu0 0.0
      %1257 = vmatmul.mubr.f32.gmra.mrb[0].mxu0 %v1113
      %v1258 = vpop.f32.mrb[0].mxu0
      %v1259 = vadd.f32 0.0, %v1258
      %v1260 = vpop.f32.mrb[0].mxu0
      %1261 = vmatprep.mubr.f32.mxu0 0.0
      %1262 = vmatmul.mubr.f32.gmra.mrb[0].mxu0 %v1115
      %v1263 = vpop.f32.mrb[0].mxu0
      %v1264 = vadd.f32 0.0, %v1263
      %v1265 = vpop.f32.mrb[0].mxu0
      %1266 = vmatprep.mubr.f32.mxu0 0.0
      %1267 = vmatmul.mubr.f32.gmra.mrb[0].mxu0 %v1117
      %v1268 = vpop.f32.mrb[0].mxu0
      %v1269 = vadd.f32 0.0, %v1268
      %v1270 = vpop.f32.mrb[0].mxu0
      %1271 = vmatprep.mubr.f32.mxu0 0.0
      %1272 = vmatmul.mubr.f32.gmra.mrb[0].mxu0 %v1119
      %v1273 = vpop.f32.mrb[0].mxu0
      %v1274 = vadd.f32 0.0, %v1273
      %v1275 = vpop.f32.mrb[0].mxu0
      %1276 = vmatprep.mubr.f32.mxu0 0.0
      %1277 = vmatmul.mubr.f32.gmra.mrb[0].mxu0 %v1121
      %v1278 = vpop.f32.mrb[0].mxu0
      %v1279 = vadd.f32 0.0, %v1278
      %v1280 = vpop.f32.mrb[0].mxu0
      %1281 = vmatprep.mubr.f32.mxu0 0.0
      %1282 = vmatmul.mubr.f32.gmra.mrb[0].mxu0 %v1123
      %v1283 = vpop.f32.mrb[0].mxu0
      %v1284 = vadd.f32 0.0, %v1283
      %v1285 = vpop.f32.mrb[0].mxu0
      %1286 = vmatprep.mubr.f32.mxu0 0.0
      %1287 = vmatmul.mubr.f32.gmra.mrb[0].mxu0 %v1125
      %v1288 = vpop.f32.mrb[0].mxu0
      %v1289 = vadd.f32 0.0, %v1288
      %v1290 = vpop.f32.mrb[0].mxu0
      %1291 = vmatprep.mubr.f32.mxu0 0.0
      %1292 = vmatmul.mubr.f32.gmra.mrb[0].mxu0 %v1127
      %v1293 = vpop.f32.mrb[0].mxu0
      %v1294 = vadd.f32 0.0, %v1293
      %v1295 = vpop.f32.mrb[0].mxu0
      %1296 = vmatprep.mubr.f32.mxu0 0.0
      %1297 = vmatmul.mubr.f32.gmra.mrb[0].mxu0 %v1129
      %v1298 = vpop.f32.mrb[0].mxu0
      %v1299 = vadd.f32 0.0, %v1298
      %v1300 = vpop.f32.mrb[0].mxu0
      %1301 = vmatprep.mubr.f32.mxu0 0.0
      %1302 = vmatmul.mubr.f32.gmra.mrb[0].mxu0 %v1131
      %v1303 = vpop.f32.mrb[0].mxu0
      %v1304 = vadd.f32 0.0, %v1303
      %v1305 = vpop.f32.mrb[0].mxu0
      %1306 = vmatprep.mubr.f32.mxu0 0.0
      %1307 = vmatmul.mubr.f32.gmra.mrb[0].mxu0 %v1133
      %v1308 = vpop.f32.mrb[0].mxu0
      %v1309 = vadd.f32 0.0, %v1308
      %v1310 = vpop.f32.mrb[0].mxu0
      %1311 = vmatprep.mubr.f32.mxu0 0.0
      %1312 = vmatmul.mubr.f32.gmra.mrb[0].mxu0 %v1135
      %v1313 = vpop.f32.mrb[0].mxu0
      %v1314 = vadd.f32 0.0, %v1313
      %v1315 = vpop.f32.mrb[0].mxu0
      %1316 = vmatprep.mubr.f32.mxu0 0.0
      %1317 = vmatmul.mubr.f32.gmra.mrb[0].mxu0 %v1137
      %v1318 = vpop.f32.mrb[0].mxu0
      %v1319 = vadd.f32 0.0, %v1318
      %v1320 = vpop.f32.mrb[0].mxu0
      %1321 = vmatprep.mubr.f32.mxu0 0.0
      %1322 = vmatmul.mubr.f32.gmra.mrb[0].mxu0 %v1139
      %v1323 = vpop.f32.mrb[0].mxu0
      %v1324 = vadd.f32 0.0, %v1323
      %v1325 = vpop.f32.mrb[0].mxu0
      %1326 = vmatprep.mubr.f32.mxu0 0.0
      %1327 = vmatmul.mubr.f32.gmra.mrb[0].mxu0 %v1141
      %v1328 = vpop.f32.mrb[0].mxu0
      %v1329 = vadd.f32 0.0, %v1328
      %v1330 = vpop.f32.mrb[0].mxu0
      %1331 = vmatprep.mubr.f32.mxu0 0.0
      %1332 = vmatmul.mubr.f32.gmra.mrb[0].mxu0 %v1143
      %v1333 = vpop.f32.mrb[0].mxu0
      %v1334 = vadd.f32 0.0, %v1333
      %v1335 = vpop.f32.mrb[0].mxu0
      %1336 = vmatprep.mubr.f32.mxu0 0.0
      %1337 = vmatmul.mubr.f32.gmra.mrb[0].mxu0 %v1145
      %v1338 = vpop.f32.mrb[0].mxu0
      %v1339 = vadd.f32 0.0, %v1338
      %v1340 = vpop.f32.mrb[0].mxu0
      %1341 = vmatprep.mubr.f32.mxu0 0.0
      %1342 = vmatmul.mubr.f32.gmra.mrb[0].mxu0 %v1147
      %v1343 = vpop.f32.mrb[0].mxu0
      %v1344 = vadd.f32 0.0, %v1343
      %v1345 = vpop.f32.mrb[0].mxu0
      %1346 = vmatprep.mubr.f32.mxu0 0.0
      %1347 = vmatmul.mubr.f32.gmra.mrb[0].mxu0 %v1149
      %v1348 = vpop.f32.mrb[0].mxu0
      %v1349 = vadd.f32 0.0, %v1348
      %v1350 = vpop.f32.mrb[0].mxu0
      %1351 = vmatprep.mubr.f32.mxu0 0.0
      %1352 = vmatmul.mubr.f32.gmra.mrb[0].mxu0 %v1151
      %v1353 = vpop.f32.mrb[0].mxu0
      %v1354 = vadd.f32 0.0, %v1353
      %v1355 = vpop.f32.mrb[0].mxu0
      %1356 = vmatprep.mubr.f32.mxu0 0.0
      %1357 = vmatmul.mubr.f32.gmra.mrb[0].mxu0 %v1153
      %v1358 = vpop.f32.mrb[0].mxu0
      %v1359 = vadd.f32 0.0, %v1358
      %v1360 = vpop.f32.mrb[0].mxu0
      %1361 = vmatprep.mubr.f32.mxu0 0.0
      %1362 = vmatmul.mubr.f32.gmra.mrb[0].mxu0 %v1155
      %v1363 = vpop.f32.mrb[0].mxu0
      %v1364 = vadd.f32 0.0, %v1363
      %v1365 = vpop.f32.mrb[0].mxu0
      %1366 = vmatprep.mubr.f32.mxu0 0.0
      %1367 = vmatmul.mubr.f32.gmra.mrb[0].mxu0 %v1157
      %v1368 = vpop.f32.mrb[0].mxu0
      %v1369 = vadd.f32 0.0, %v1368
      %v1370 = vpop.f32.mrb[0].mxu0
      %1371 = vmatprep.mubr.f32.mxu0 0.0
      %1372 = vmatmul.mubr.f32.gmra.mrb[0].mxu0 %v1159
      %v1373 = vpop.f32.mrb[0].mxu0
      %v1374 = vadd.f32 0.0, %v1373
      %v1375 = vpop.f32.mrb[0].mxu0
      %1376 = vmatprep.mubr.f32.mxu0 0.0
      %1377 = vmatmul.mubr.f32.gmra.mrb[0].mxu0 %v1161
      %v1378 = vpop.f32.mrb[0].mxu0
      %v1379 = vadd.f32 0.0, %v1378
      %v1380 = vpop.f32.mrb[0].mxu0
      %1381 = vmatprep.mubr.f32.mxu0 0.0
      %1382 = vmatmul.mubr.f32.gmra.mrb[0].mxu0 %v1163
      %v1383 = vpop.f32.mrb[0].mxu0
      %v1384 = vadd.f32 0.0, %v1383
      %v1385 = vpop.f32.mrb[0].mxu0
      %1386 = vmatprep.mubr.f32.mxu0 0.0
      %1387 = vmatmul.mubr.f32.gmra.mrb[0].mxu0 %v1165
      %v1388 = vpop.f32.mrb[0].mxu0
      %v1389 = vadd.f32 0.0, %v1388
      %v1390 = vpop.f32.mrb[0].mxu0
      %1391 = vmatprep.mubr.f32.mxu0 0.0
      %1392 = vmatmul.mubr.f32.gmra.mrb[0].mxu0 %v1167
      %v1393 = vpop.f32.mrb[0].mxu0
      %v1394 = vadd.f32 0.0, %v1393
      %v1395 = vpop.f32.mrb[0].mxu0
      %1396 = vdwg.mxu0
      %v1397 = vadd.f32 %v864, %v1239
      %v1398 = vadd.f32 %v869, %v1244
      %v1399 = vadd.f32 %v874, %v1249
      %v1400 = vadd.f32 %v879, %v1254
      %v1401 = vadd.f32 %v884, %v1259
      %v1402 = vadd.f32 %v889, %v1264
      %v1403 = vadd.f32 %v894, %v1269
      %v1404 = vadd.f32 %v899, %v1274
      %v1405 = vadd.f32 %v904, %v1279
      %v1406 = vadd.f32 %v909, %v1284
      %v1407 = vadd.f32 %v914, %v1289
      %v1408 = vadd.f32 %v919, %v1294
      %v1409 = vadd.f32 %v924, %v1299
      %v1410 = vadd.f32 %v929, %v1304
      %v1411 = vadd.f32 %v934, %v1309
      %v1412 = vadd.f32 %v939, %v1314
      %v1413 = vadd.f32 %v944, %v1319
      %v1414 = vadd.f32 %v949, %v1324
      %v1415 = vadd.f32 %v954, %v1329
      %v1416 = vadd.f32 %v959, %v1334
      %v1417 = vadd.f32 %v964, %v1339
      %v1418 = vadd.f32 %v969, %v1344
      %v1419 = vadd.f32 %v974, %v1349
      %v1420 = vadd.f32 %v979, %v1354
      %v1421 = vadd.f32 %v984, %v1359
      %v1422 = vadd.f32 %v989, %v1364
      %v1423 = vadd.f32 %v994, %v1369
      %v1424 = vadd.f32 %v999, %v1374
      %v1425 = vadd.f32 %v1004, %v1379
      %v1426 = vadd.f32 %v1009, %v1384
      %v1427 = vadd.f32 %v1014, %v1389
      %v1428 = vadd.f32 %v1019, %v1394
      %s1429 = scalar_lea.vmem %s1, 12
      %v1430 = vld [vmem:[%s1429] sm:$0xf]
      %v1432 = vsel %vm436, %v298, 0
      %v1435 = vsel %vm436, %v299, 0
      %v1438 = vsel %vm501, %v1430, 0
      %1440 = vmatprep.subr.mxu0 0.0
      %1441 = vmatpush1.msra.mxu0 %v1438
      %1442 = vmatprep.subr.mxu0 0.0
      %1443 = vmatpush1.msra.mxu0 0.0
      %1444 = vmatprep.subr.mxu0 0.0
      %1445 = vmatpush1.msra.mxu0 0.0
      %1446 = vmatprep.subr.mxu0 0.0
      %1447 = vmatpush1.msra.mxu0 0.0
      %1448 = vmatprep.subr.mxu0 0.0
      %1449 = vmatpush1.msra.mxu0 0.0
      %1450 = vmatprep.subr.mxu0 0.0
      %1451 = vmatpush1.msra.mxu0 0.0
      %1452 = vmatprep.subr.mxu0 0.0
      %1453 = vmatpush1.msra.mxu0 0.0
      %1454 = vmatprep.subr.mxu0 0.0
      %1455 = vmatpush1.msra.mxu0 0.0
      %1456 = vmatprep.subr.mxu0 0.0
      %1457 = vmatpush1.msra.mxu0 0.0
      %1458 = vmatprep.subr.mxu0 0.0
      %1459 = vmatpush1.msra.mxu0 0.0
      %1460 = vmatprep.subr.mxu0 0.0
      %1461 = vmatpush1.msra.mxu0 0.0
      %1462 = vmatprep.subr.mxu0 0.0
      %1463 = vmatpush1.msra.mxu0 0.0
      %1464 = vmatprep.subr.mxu0 0.0
      %1465 = vmatpush1.msra.mxu0 0.0
      %1466 = vmatprep.subr.mxu0 0.0
      %1467 = vmatpush1.msra.mxu0 0.0
      %1468 = vmatprep.subr.mxu0 0.0
      %1469 = vmatpush1.msra.mxu0 0.0
      %1470 = vmatprep.subr.mxu0 0.0
      %1471 = vmatpush1.msra.mxu0 0.0
      %1472 = vmatprep.subr.mxu0 0.0
      %1473 = vmatpush1.msra.mxu0 0.0
      %1474 = vmatprep.subr.mxu0 0.0
      %1475 = vmatpush1.msra.mxu0 0.0
      %1476 = vmatprep.subr.mxu0 0.0
      %1477 = vmatpush1.msra.mxu0 0.0
      %1478 = vmatprep.subr.mxu0 0.0
      %1479 = vmatpush1.msra.mxu0 0.0
      %1480 = vmatprep.subr.mxu0 0.0
      %1481 = vmatpush1.msra.mxu0 0.0
      %1482 = vmatprep.subr.mxu0 0.0
      %1483 = vmatpush1.msra.mxu0 0.0
      %1484 = vmatprep.subr.mxu0 0.0
      %1485 = vmatpush1.msra.mxu0 0.0
      %1486 = vmatprep.subr.mxu0 0.0
      %1487 = vmatpush1.msra.mxu0 0.0
      %1488 = vmatprep.subr.mxu0 0.0
      %1489 = vmatpush1.msra.mxu0 0.0
      %1490 = vmatprep.subr.mxu0 0.0
      %1491 = vmatpush1.msra.mxu0 0.0
      %1492 = vmatprep.subr.mxu0 0.0
      %1493 = vmatpush1.msra.mxu0 0.0
      %1494 = vmatprep.subr.mxu0 0.0
      %1495 = vmatpush1.msra.mxu0 0.0
      %1496 = vmatprep.subr.mxu0 0.0
      %1497 = vmatpush1.msra.mxu0 0.0
      %1498 = vmatprep.subr.mxu0 0.0
      %1499 = vmatpush1.msra.mxu0 0.0
      %1500 = vmatprep.subr.mxu0 0.0
      %1501 = vmatpush1.msra.mxu0 0.0
      %1502 = vmatprep.subr.mxu0 0.0
      %1503 = vmatpush1.msra.mxu0 0.0
      %1504 = vmatprep.mubr.f32.mxu0 0.0
      %1505 = vmatmul.mubr.f32.gmra.mrb[0].mxu0 %v734
      %v1506 = vpop.f32.mrb[0].mxu0
      %v1507 = vadd.f32 0.0, %v1506
      %v1508 = vpop.f32.mrb[0].mxu0
      %1509 = vmatprep.mubr.f32.mxu0 0.0
      %1510 = vmatmul.mubr.f32.gmra.mrb[0].mxu0 %v736
      %v1511 = vpop.f32.mrb[0].mxu0
      %v1512 = vadd.f32 0.0, %v1511
      %v1513 = vpop.f32.mrb[0].mxu0
      %1514 = vmatprep.mubr.f32.mxu0 0.0
      %1515 = vmatmul.mubr.f32.gmra.mrb[0].mxu0 %v738
      %v1516 = vpop.f32.mrb[0].mxu0
      %v1517 = vadd.f32 0.0, %v1516
      %v1518 = vpop.f32.mrb[0].mxu0
      %1519 = vmatprep.mubr.f32.mxu0 0.0
      %1520 = vmatmul.mubr.f32.gmra.mrb[0].mxu0 %v740
      %v1521 = vpop.f32.mrb[0].mxu0
      %v1522 = vadd.f32 0.0, %v1521
      %v1523 = vpop.f32.mrb[0].mxu0
      %1524 = vmatprep.mubr.f32.mxu0 0.0
      %1525 = vmatmul.mubr.f32.gmra.mrb[0].mxu0 %v742
      %v1526 = vpop.f32.mrb[0].mxu0
      %v1527 = vadd.f32 0.0, %v1526
      %v1528 = vpop.f32.mrb[0].mxu0
      %1529 = vmatprep.mubr.f32.mxu0 0.0
      %1530 = vmatmul.mubr.f32.gmra.mrb[0].mxu0 %v744
      %v1531 = vpop.f32.mrb[0].mxu0
      %v1532 = vadd.f32 0.0, %v1531
      %v1533 = vpop.f32.mrb[0].mxu0
      %1534 = vmatprep.mubr.f32.mxu0 0.0
      %1535 = vmatmul.mubr.f32.gmra.mrb[0].mxu0 %v746
      %v1536 = vpop.f32.mrb[0].mxu0
      %v1537 = vadd.f32 0.0, %v1536
      %v1538 = vpop.f32.mrb[0].mxu0
      %1539 = vmatprep.mubr.f32.mxu0 0.0
      %1540 = vmatmul.mubr.f32.gmra.mrb[0].mxu0 %v748
      %v1541 = vpop.f32.mrb[0].mxu0
      %v1542 = vadd.f32 0.0, %v1541
      %v1543 = vpop.f32.mrb[0].mxu0
      %1544 = vmatprep.mubr.f32.mxu0 0.0
      %1545 = vmatmul.mubr.f32.gmra.mrb[0].mxu0 %v750
      %v1546 = vpop.f32.mrb[0].mxu0
      %v1547 = vadd.f32 0.0, %v1546
      %v1548 = vpop.f32.mrb[0].mxu0
      %1549 = vmatprep.mubr.f32.mxu0 0.0
      %1550 = vmatmul.mubr.f32.gmra.mrb[0].mxu0 %v752
      %v1551 = vpop.f32.mrb[0].mxu0
      %v1552 = vadd.f32 0.0, %v1551
      %v1553 = vpop.f32.mrb[0].mxu0
      %1554 = vmatprep.mubr.f32.mxu0 0.0
      %1555 = vmatmul.mubr.f32.gmra.mrb[0].mxu0 %v754
      %v1556 = vpop.f32.mrb[0].mxu0
      %v1557 = vadd.f32 0.0, %v1556
      %v1558 = vpop.f32.mrb[0].mxu0
      %1559 = vmatprep.mubr.f32.mxu0 0.0
      %1560 = vmatmul.mubr.f32.gmra.mrb[0].mxu0 %v756
      %v1561 = vpop.f32.mrb[0].mxu0
      %v1562 = vadd.f32 0.0, %v1561
      %v1563 = vpop.f32.mrb[0].mxu0
      %1564 = vmatprep.mubr.f32.mxu0 0.0
      %1565 = vmatmul.mubr.f32.gmra.mrb[0].mxu0 %v758
      %v1566 = vpop.f32.mrb[0].mxu0
      %v1567 = vadd.f32 0.0, %v1566
      %v1568 = vpop.f32.mrb[0].mxu0
      %1569 = vmatprep.mubr.f32.mxu0 0.0
      %1570 = vmatmul.mubr.f32.gmra.mrb[0].mxu0 %v760
      %v1571 = vpop.f32.mrb[0].mxu0
      %v1572 = vadd.f32 0.0, %v1571
      %v1573 = vpop.f32.mrb[0].mxu0
      %1574 = vmatprep.mubr.f32.mxu0 0.0
      %1575 = vmatmul.mubr.f32.gmra.mrb[0].mxu0 %v762
      %v1576 = vpop.f32.mrb[0].mxu0
      %v1577 = vadd.f32 0.0, %v1576
      %v1578 = vpop.f32.mrb[0].mxu0
      %1579 = vmatprep.mubr.f32.mxu0 0.0
      %1580 = vmatmul.mubr.f32.gmra.mrb[0].mxu0 %v764
      %v1581 = vpop.f32.mrb[0].mxu0
      %v1582 = vadd.f32 0.0, %v1581
      %v1583 = vpop.f32.mrb[0].mxu0
      %1584 = vmatprep.mubr.f32.mxu0 0.0
      %1585 = vmatmul.mubr.f32.gmra.mrb[0].mxu0 %v766
      %v1586 = vpop.f32.mrb[0].mxu0
      %v1587 = vadd.f32 0.0, %v1586
      %v1588 = vpop.f32.mrb[0].mxu0
      %1589 = vmatprep.mubr.f32.mxu0 0.0
      %1590 = vmatmul.mubr.f32.gmra.mrb[0].mxu0 %v768
      %v1591 = vpop.f32.mrb[0].mxu0
      %v1592 = vadd.f32 0.0, %v1591
      %v1593 = vpop.f32.mrb[0].mxu0
      %1594 = vmatprep.mubr.f32.mxu0 0.0
      %1595 = vmatmul.mubr.f32.gmra.mrb[0].mxu0 %v770
      %v1596 = vpop.f32.mrb[0].mxu0
      %v1597 = vadd.f32 0.0, %v1596
      %v1598 = vpop.f32.mrb[0].mxu0
      %1599 = vmatprep.mubr.f32.mxu0 0.0
      %1600 = vmatmul.mubr.f32.gmra.mrb[0].mxu0 %v772
      %v1601 = vpop.f32.mrb[0].mxu0
      %v1602 = vadd.f32 0.0, %v1601
      %v1603 = vpop.f32.mrb[0].mxu0
      %1604 = vmatprep.mubr.f32.mxu0 0.0
      %1605 = vmatmul.mubr.f32.gmra.mrb[0].mxu0 %v774
      %v1606 = vpop.f32.mrb[0].mxu0
      %v1607 = vadd.f32 0.0, %v1606
      %v1608 = vpop.f32.mrb[0].mxu0
      %1609 = vmatprep.mubr.f32.mxu0 0.0
      %1610 = vmatmul.mubr.f32.gmra.mrb[0].mxu0 %v776
      %v1611 = vpop.f32.mrb[0].mxu0
      %v1612 = vadd.f32 0.0, %v1611
      %v1613 = vpop.f32.mrb[0].mxu0
      %1614 = vmatprep.mubr.f32.mxu0 0.0
      %1615 = vmatmul.mubr.f32.gmra.mrb[0].mxu0 %v778
      %v1616 = vpop.f32.mrb[0].mxu0
      %v1617 = vadd.f32 0.0, %v1616
      %v1618 = vpop.f32.mrb[0].mxu0
      %1619 = vmatprep.mubr.f32.mxu0 0.0
      %1620 = vmatmul.mubr.f32.gmra.mrb[0].mxu0 %v780
      %v1621 = vpop.f32.mrb[0].mxu0
      %v1622 = vadd.f32 0.0, %v1621
      %v1623 = vpop.f32.mrb[0].mxu0
      %1624 = vmatprep.mubr.f32.mxu0 0.0
      %1625 = vmatmul.mubr.f32.gmra.mrb[0].mxu0 %v782
      %v1626 = vpop.f32.mrb[0].mxu0
      %v1627 = vadd.f32 0.0, %v1626
      %v1628 = vpop.f32.mrb[0].mxu0
      %1629 = vmatprep.mubr.f32.mxu0 0.0
      %1630 = vmatmul.mubr.f32.gmra.mrb[0].mxu0 %v784
      %v1631 = vpop.f32.mrb[0].mxu0
      %v1632 = vadd.f32 0.0, %v1631
      %v1633 = vpop.f32.mrb[0].mxu0
      %1634 = vmatprep.mubr.f32.mxu0 0.0
      %1635 = vmatmul.mubr.f32.gmra.mrb[0].mxu0 %v786
      %v1636 = vpop.f32.mrb[0].mxu0
      %v1637 = vadd.f32 0.0, %v1636
      %v1638 = vpop.f32.mrb[0].mxu0
      %1639 = vmatprep.mubr.f32.mxu0 0.0
      %1640 = vmatmul.mubr.f32.gmra.mrb[0].mxu0 %v788
      %v1641 = vpop.f32.mrb[0].mxu0
      %v1642 = vadd.f32 0.0, %v1641
      %v1643 = vpop.f32.mrb[0].mxu0
      %1644 = vmatprep.mubr.f32.mxu0 0.0
      %1645 = vmatmul.mubr.f32.gmra.mrb[0].mxu0 %v790
      %v1646 = vpop.f32.mrb[0].mxu0
      %v1647 = vadd.f32 0.0, %v1646
      %v1648 = vpop.f32.mrb[0].mxu0
      %1649 = vmatprep.mubr.f32.mxu0 0.0
      %1650 = vmatmul.mubr.f32.gmra.mrb[0].mxu0 %v792
      %v1651 = vpop.f32.mrb[0].mxu0
      %v1652 = vadd.f32 0.0, %v1651
      %v1653 = vpop.f32.mrb[0].mxu0
      %1654 = vmatprep.mubr.f32.mxu0 0.0
      %1655 = vmatmul.mubr.f32.gmra.mrb[0].mxu0 %v1432
      %v1656 = vpop.f32.mrb[0].mxu0
      %v1657 = vadd.f32 0.0, %v1656
      %v1658 = vpop.f32.mrb[0].mxu0
      %1659 = vmatprep.mubr.f32.mxu0 0.0
      %1660 = vmatmul.mubr.f32.gmra.mrb[0].mxu0 %v1435
      %v1661 = vpop.f32.mrb[0].mxu0
      %v1662 = vadd.f32 0.0, %v1661
      %v1663 = vpop.f32.mrb[0].mxu0
      %1664 = vdwg.mxu0
      %v1665 = vadd.f32 %v1397, %v1507
      %v1666 = vadd.f32 %v1398, %v1512
      %v1667 = vadd.f32 %v1399, %v1517
      %v1668 = vadd.f32 %v1400, %v1522
      %v1669 = vadd.f32 %v1401, %v1527
      %v1670 = vadd.f32 %v1402, %v1532
      %v1671 = vadd.f32 %v1403, %v1537
      %v1672 = vadd.f32 %v1404, %v1542
      %v1673 = vadd.f32 %v1405, %v1547
      %v1674 = vadd.f32 %v1406, %v1552
      %v1675 = vadd.f32 %v1407, %v1557
      %v1676 = vadd.f32 %v1408, %v1562
      %v1677 = vadd.f32 %v1409, %v1567
      %v1678 = vadd.f32 %v1410, %v1572
      %v1679 = vadd.f32 %v1411, %v1577
      %v1680 = vadd.f32 %v1412, %v1582
      %v1681 = vadd.f32 %v1413, %v1587
      %v1682 = vadd.f32 %v1414, %v1592
      %v1683 = vadd.f32 %v1415, %v1597
      %v1684 = vadd.f32 %v1416, %v1602
      %v1685 = vadd.f32 %v1417, %v1607
      %v1686 = vadd.f32 %v1418, %v1612
      %v1687 = vadd.f32 %v1419, %v1617
      %v1688 = vadd.f32 %v1420, %v1622
      %v1689 = vadd.f32 %v1421, %v1627
      %v1690 = vadd.f32 %v1422, %v1632
      %v1691 = vadd.f32 %v1423, %v1637
      %v1692 = vadd.f32 %v1424, %v1642
      %v1693 = vadd.f32 %v1425, %v1647
      %v1694 = vadd.f32 %v1426, %v1652
      %v1695 = vadd.f32 %v1427, %v1657
      %v1696 = vadd.f32 %v1428, %v1662
      %v1698 = vrot.slane %v298, 1
      %v1699 = vrot.slane %v299, 1
      %v1700 = vsel %vm353, %v1698, %v1699
      %v1701 = vrot.slane %v300, 1
      %v1702 = vsel %vm353, %v1699, %v1701
      %s1703 = scalar_lea.vmem %s1, 16
      %v1704 = vld [vmem:[%s1703] sm:$0xf]
      %v1705 = vsel %vm436, %v1700, 0
      %v1707 = vsel %vm436, %v1702, 0
      %v1710 = vsel %vm501, %v1704, 0
      %1712 = vmatprep.subr.mxu0 0.0
      %1713 = vmatpush1.msra.mxu0 %v1710
      %1714 = vmatprep.subr.mxu0 0.0
      %1715 = vmatpush1.msra.mxu0 0.0
      %1716 = vmatprep.subr.mxu0 0.0
      %1717 = vmatpush1.msra.mxu0 0.0
      %1718 = vmatprep.subr.mxu0 0.0
      %1719 = vmatpush1.msra.mxu0 0.0
      %1720 = vmatprep.subr.mxu0 0.0
      %1721 = vmatpush1.msra.mxu0 0.0
      %1722 = vmatprep.subr.mxu0 0.0
      %1723 = vmatpush1.msra.mxu0 0.0
      %1724 = vmatprep.subr.mxu0 0.0
      %1725 = vmatpush1.msra.mxu0 0.0
      %1726 = vmatprep.subr.mxu0 0.0
      %1727 = vmatpush1.msra.mxu0 0.0
      %1728 = vmatprep.subr.mxu0 0.0
      %1729 = vmatpush1.msra.mxu0 0.0
      %1730 = vmatprep.subr.mxu0 0.0
      %1731 = vmatpush1.msra.mxu0 0.0
      %1732 = vmatprep.subr.mxu0 0.0
      %1733 = vmatpush1.msra.mxu0 0.0
      %1734 = vmatprep.subr.mxu0 0.0
      %1735 = vmatpush1.msra.mxu0 0.0
      %1736 = vmatprep.subr.mxu0 0.0
      %1737 = vmatpush1.msra.mxu0 0.0
      %1738 = vmatprep.subr.mxu0 0.0
      %1739 = vmatpush1.msra.mxu0 0.0
      %1740 = vmatprep.subr.mxu0 0.0
      %1741 = vmatpush1.msra.mxu0 0.0
      %1742 = vmatprep.subr.mxu0 0.0
      %1743 = vmatpush1.msra.mxu0 0.0
      %1744 = vmatprep.subr.mxu0 0.0
      %1745 = vmatpush1.msra.mxu0 0.0
      %1746 = vmatprep.subr.mxu0 0.0
      %1747 = vmatpush1.msra.mxu0 0.0
      %1748 = vmatprep.subr.mxu0 0.0
      %1749 = vmatpush1.msra.mxu0 0.0
      %1750 = vmatprep.subr.mxu0 0.0
      %1751 = vmatpush1.msra.mxu0 0.0
      %1752 = vmatprep.subr.mxu0 0.0
      %1753 = vmatpush1.msra.mxu0 0.0
      %1754 = vmatprep.subr.mxu0 0.0
      %1755 = vmatpush1.msra.mxu0 0.0
      %1756 = vmatprep.subr.mxu0 0.0
      %1757 = vmatpush1.msra.mxu0 0.0
      %1758 = vmatprep.subr.mxu0 0.0
      %1759 = vmatpush1.msra.mxu0 0.0
      %1760 = vmatprep.subr.mxu0 0.0
      %1761 = vmatpush1.msra.mxu0 0.0
      %1762 = vmatprep.subr.mxu0 0.0
      %1763 = vmatpush1.msra.mxu0 0.0
      %1764 = vmatprep.subr.mxu0 0.0
      %1765 = vmatpush1.msra.mxu0 0.0
      %1766 = vmatprep.subr.mxu0 0.0
      %1767 = vmatpush1.msra.mxu0 0.0
      %1768 = vmatprep.subr.mxu0 0.0
      %1769 = vmatpush1.msra.mxu0 0.0
      %1770 = vmatprep.subr.mxu0 0.0
      %1771 = vmatpush1.msra.mxu0 0.0
      %1772 = vmatprep.subr.mxu0 0.0
      %1773 = vmatpush1.msra.mxu0 0.0
      %1774 = vmatprep.subr.mxu0 0.0
      %1775 = vmatpush1.msra.mxu0 0.0
      %1776 = vmatprep.mubr.f32.mxu0 0.0
      %1777 = vmatmul.mubr.f32.gmra.mrb[0].mxu0 %v441
      %v1778 = vpop.f32.mrb[0].mxu0
      %v1779 = vadd.f32 0.0, %v1778
      %v1780 = vpop.f32.mrb[0].mxu0
      %1781 = vmatprep.mubr.f32.mxu0 0.0
      %1782 = vmatmul.mubr.f32.gmra.mrb[0].mxu0 %v443
      %v1783 = vpop.f32.mrb[0].mxu0
      %v1784 = vadd.f32 0.0, %v1783
      %v1785 = vpop.f32.mrb[0].mxu0
      %1786 = vmatprep.mubr.f32.mxu0 0.0
      %1787 = vmatmul.mubr.f32.gmra.mrb[0].mxu0 %v445
      %v1788 = vpop.f32.mrb[0].mxu0
      %v1789 = vadd.f32 0.0, %v1788
      %v1790 = vpop.f32.mrb[0].mxu0
      %1791 = vmatprep.mubr.f32.mxu0 0.0
      %1792 = vmatmul.mubr.f32.gmra.mrb[0].mxu0 %v447
      %v1793 = vpop.f32.mrb[0].mxu0
      %v1794 = vadd.f32 0.0, %v1793
      %v1795 = vpop.f32.mrb[0].mxu0
      %1796 = vmatprep.mubr.f32.mxu0 0.0
      %1797 = vmatmul.mubr.f32.gmra.mrb[0].mxu0 %v449
      %v1798 = vpop.f32.mrb[0].mxu0
      %v1799 = vadd.f32 0.0, %v1798
      %v1800 = vpop.f32.mrb[0].mxu0
      %1801 = vmatprep.mubr.f32.mxu0 0.0
      %1802 = vmatmul.mubr.f32.gmra.mrb[0].mxu0 %v451
      %v1803 = vpop.f32.mrb[0].mxu0
      %v1804 = vadd.f32 0.0, %v1803
      %v1805 = vpop.f32.mrb[0].mxu0
      %1806 = vmatprep.mubr.f32.mxu0 0.0
      %1807 = vmatmul.mubr.f32.gmra.mrb[0].mxu0 %v453
      %v1808 = vpop.f32.mrb[0].mxu0
      %v1809 = vadd.f32 0.0, %v1808
      %v1810 = vpop.f32.mrb[0].mxu0
      %1811 = vmatprep.mubr.f32.mxu0 0.0
      %1812 = vmatmul.mubr.f32.gmra.mrb[0].mxu0 %v455
      %v1813 = vpop.f32.mrb[0].mxu0
      %v1814 = vadd.f32 0.0, %v1813
      %v1815 = vpop.f32.mrb[0].mxu0
      %1816 = vmatprep.mubr.f32.mxu0 0.0
      %1817 = vmatmul.mubr.f32.gmra.mrb[0].mxu0 %v457
      %v1818 = vpop.f32.mrb[0].mxu0
      %v1819 = vadd.f32 0.0, %v1818
      %v1820 = vpop.f32.mrb[0].mxu0
      %1821 = vmatprep.mubr.f32.mxu0 0.0
      %1822 = vmatmul.mubr.f32.gmra.mrb[0].mxu0 %v459
      %v1823 = vpop.f32.mrb[0].mxu0
      %v1824 = vadd.f32 0.0, %v1823
      %v1825 = vpop.f32.mrb[0].mxu0
      %1826 = vmatprep.mubr.f32.mxu0 0.0
      %1827 = vmatmul.mubr.f32.gmra.mrb[0].mxu0 %v461
      %v1828 = vpop.f32.mrb[0].mxu0
      %v1829 = vadd.f32 0.0, %v1828
      %v1830 = vpop.f32.mrb[0].mxu0
      %1831 = vmatprep.mubr.f32.mxu0 0.0
      %1832 = vmatmul.mubr.f32.gmra.mrb[0].mxu0 %v463
      %v1833 = vpop.f32.mrb[0].mxu0
      %v1834 = vadd.f32 0.0, %v1833
      %v1835 = vpop.f32.mrb[0].mxu0
      %1836 = vmatprep.mubr.f32.mxu0 0.0
      %1837 = vmatmul.mubr.f32.gmra.mrb[0].mxu0 %v465
      %v1838 = vpop.f32.mrb[0].mxu0
      %v1839 = vadd.f32 0.0, %v1838
      %v1840 = vpop.f32.mrb[0].mxu0
      %1841 = vmatprep.mubr.f32.mxu0 0.0
      %1842 = vmatmul.mubr.f32.gmra.mrb[0].mxu0 %v467
      %v1843 = vpop.f32.mrb[0].mxu0
      %v1844 = vadd.f32 0.0, %v1843
      %v1845 = vpop.f32.mrb[0].mxu0
      %1846 = vmatprep.mubr.f32.mxu0 0.0
      %1847 = vmatmul.mubr.f32.gmra.mrb[0].mxu0 %v469
      %v1848 = vpop.f32.mrb[0].mxu0
      %v1849 = vadd.f32 0.0, %v1848
      %v1850 = vpop.f32.mrb[0].mxu0
      %1851 = vmatprep.mubr.f32.mxu0 0.0
      %1852 = vmatmul.mubr.f32.gmra.mrb[0].mxu0 %v471
      %v1853 = vpop.f32.mrb[0].mxu0
      %v1854 = vadd.f32 0.0, %v1853
      %v1855 = vpop.f32.mrb[0].mxu0
      %1856 = vmatprep.mubr.f32.mxu0 0.0
      %1857 = vmatmul.mubr.f32.gmra.mrb[0].mxu0 %v473
      %v1858 = vpop.f32.mrb[0].mxu0
      %v1859 = vadd.f32 0.0, %v1858
      %v1860 = vpop.f32.mrb[0].mxu0
      %1861 = vmatprep.mubr.f32.mxu0 0.0
      %1862 = vmatmul.mubr.f32.gmra.mrb[0].mxu0 %v475
      %v1863 = vpop.f32.mrb[0].mxu0
      %v1864 = vadd.f32 0.0, %v1863
      %v1865 = vpop.f32.mrb[0].mxu0
      %1866 = vmatprep.mubr.f32.mxu0 0.0
      %1867 = vmatmul.mubr.f32.gmra.mrb[0].mxu0 %v477
      %v1868 = vpop.f32.mrb[0].mxu0
      %v1869 = vadd.f32 0.0, %v1868
      %v1870 = vpop.f32.mrb[0].mxu0
      %1871 = vmatprep.mubr.f32.mxu0 0.0
      %1872 = vmatmul.mubr.f32.gmra.mrb[0].mxu0 %v479
      %v1873 = vpop.f32.mrb[0].mxu0
      %v1874 = vadd.f32 0.0, %v1873
      %v1875 = vpop.f32.mrb[0].mxu0
      %1876 = vmatprep.mubr.f32.mxu0 0.0
      %1877 = vmatmul.mubr.f32.gmra.mrb[0].mxu0 %v481
      %v1878 = vpop.f32.mrb[0].mxu0
      %v1879 = vadd.f32 0.0, %v1878
      %v1880 = vpop.f32.mrb[0].mxu0
      %1881 = vmatprep.mubr.f32.mxu0 0.0
      %1882 = vmatmul.mubr.f32.gmra.mrb[0].mxu0 %v483
      %v1883 = vpop.f32.mrb[0].mxu0
      %v1884 = vadd.f32 0.0, %v1883
      %v1885 = vpop.f32.mrb[0].mxu0
      %1886 = vmatprep.mubr.f32.mxu0 0.0
      %1887 = vmatmul.mubr.f32.gmra.mrb[0].mxu0 %v485
      %v1888 = vpop.f32.mrb[0].mxu0
      %v1889 = vadd.f32 0.0, %v1888
      %v1890 = vpop.f32.mrb[0].mxu0
      %1891 = vmatprep.mubr.f32.mxu0 0.0
      %1892 = vmatmul.mubr.f32.gmra.mrb[0].mxu0 %v487
      %v1893 = vpop.f32.mrb[0].mxu0
      %v1894 = vadd.f32 0.0, %v1893
      %v1895 = vpop.f32.mrb[0].mxu0
      %1896 = vmatprep.mubr.f32.mxu0 0.0
      %1897 = vmatmul.mubr.f32.gmra.mrb[0].mxu0 %v489
      %v1898 = vpop.f32.mrb[0].mxu0
      %v1899 = vadd.f32 0.0, %v1898
      %v1900 = vpop.f32.mrb[0].mxu0
      %1901 = vmatprep.mubr.f32.mxu0 0.0
      %1902 = vmatmul.mubr.f32.gmra.mrb[0].mxu0 %v491
      %v1903 = vpop.f32.mrb[0].mxu0
      %v1904 = vadd.f32 0.0, %v1903
      %v1905 = vpop.f32.mrb[0].mxu0
      %1906 = vmatprep.mubr.f32.mxu0 0.0
      %1907 = vmatmul.mubr.f32.gmra.mrb[0].mxu0 %v493
      %v1908 = vpop.f32.mrb[0].mxu0
      %v1909 = vadd.f32 0.0, %v1908
      %v1910 = vpop.f32.mrb[0].mxu0
      %1911 = vmatprep.mubr.f32.mxu0 0.0
      %1912 = vmatmul.mubr.f32.gmra.mrb[0].mxu0 %v495
      %v1913 = vpop.f32.mrb[0].mxu0
      %v1914 = vadd.f32 0.0, %v1913
      %v1915 = vpop.f32.mrb[0].mxu0
      %1916 = vmatprep.mubr.f32.mxu0 0.0
      %1917 = vmatmul.mubr.f32.gmra.mrb[0].mxu0 %v497
      %v1918 = vpop.f32.mrb[0].mxu0
      %v1919 = vadd.f32 0.0, %v1918
      %v1920 = vpop.f32.mrb[0].mxu0
      %1921 = vmatprep.mubr.f32.mxu0 0.0
      %1922 = vmatmul.mubr.f32.gmra.mrb[0].mxu0 %v499
      %v1923 = vpop.f32.mrb[0].mxu0
      %v1924 = vadd.f32 0.0, %v1923
      %v1925 = vpop.f32.mrb[0].mxu0
      %1926 = vmatprep.mubr.f32.mxu0 0.0
      %1927 = vmatmul.mubr.f32.gmra.mrb[0].mxu0 %v1705
      %v1928 = vpop.f32.mrb[0].mxu0
      %v1929 = vadd.f32 0.0, %v1928
      %v1930 = vpop.f32.mrb[0].mxu0
      %1931 = vmatprep.mubr.f32.mxu0 0.0
      %1932 = vmatmul.mubr.f32.gmra.mrb[0].mxu0 %v1707
      %v1933 = vpop.f32.mrb[0].mxu0
      %v1934 = vadd.f32 0.0, %v1933
      %v1935 = vpop.f32.mrb[0].mxu0
      %1936 = vdwg.mxu0
      %v1937 = vadd.f32 %v1665, %v1779
      %v1938 = vadd.f32 %v1666, %v1784
      %v1939 = vadd.f32 %v1667, %v1789
      %v1940 = vadd.f32 %v1668, %v1794
      %v1941 = vadd.f32 %v1669, %v1799
      %v1942 = vadd.f32 %v1670, %v1804
      %v1943 = vadd.f32 %v1671, %v1809
      %v1944 = vadd.f32 %v1672, %v1814
      %v1945 = vadd.f32 %v1673, %v1819
      %v1946 = vadd.f32 %v1674, %v1824
      %v1947 = vadd.f32 %v1675, %v1829
      %v1948 = vadd.f32 %v1676, %v1834
      %v1949 = vadd.f32 %v1677, %v1839
      %v1950 = vadd.f32 %v1678, %v1844
      %v1951 = vadd.f32 %v1679, %v1849
      %v1952 = vadd.f32 %v1680, %v1854
      %v1953 = vadd.f32 %v1681, %v1859
      %v1954 = vadd.f32 %v1682, %v1864
      %v1955 = vadd.f32 %v1683, %v1869
      %v1956 = vadd.f32 %v1684, %v1874
      %v1957 = vadd.f32 %v1685, %v1879
      %v1958 = vadd.f32 %v1686, %v1884
      %v1959 = vadd.f32 %v1687, %v1889
      %v1960 = vadd.f32 %v1688, %v1894
      %v1961 = vadd.f32 %v1689, %v1899
      %v1962 = vadd.f32 %v1690, %v1904
      %v1963 = vadd.f32 %v1691, %v1909
      %v1964 = vadd.f32 %v1692, %v1914
      %v1965 = vadd.f32 %v1693, %v1919
      %v1966 = vadd.f32 %v1694, %v1924
      %v1967 = vadd.f32 %v1695, %v1929
      %v1968 = vadd.f32 %v1696, %v1934
      %v1969 = vrot.slane %v298, 2
      %v1970 = vrot.slane %v299, 2
      %v1971 = vsel %vm1022, %v1969, %v1970
      %v1972 = vrot.slane %v300, 2
      %v1973 = vsel %vm1022, %v1970, %v1972
      %s1974 = scalar_lea.vmem %s1, 20
      %v1975 = vld [vmem:[%s1974] sm:$0xf]
      %v1976 = vsel %vm436, %v1971, 0
      %v1978 = vsel %vm436, %v1973, 0
      %v1981 = vsel %vm501, %v1975, 0
      %1983 = vmatprep.subr.mxu0 0.0
      %1984 = vmatpush1.msra.mxu0 %v1981
      %1985 = vmatprep.subr.mxu0 0.0
      %1986 = vmatpush1.msra.mxu0 0.0
      %1987 = vmatprep.subr.mxu0 0.0
      %1988 = vmatpush1.msra.mxu0 0.0
      %1989 = vmatprep.subr.mxu0 0.0
      %1990 = vmatpush1.msra.mxu0 0.0
      %1991 = vmatprep.subr.mxu0 0.0
      %1992 = vmatpush1.msra.mxu0 0.0
      %1993 = vmatprep.subr.mxu0 0.0
      %1994 = vmatpush1.msra.mxu0 0.0
      %1995 = vmatprep.subr.mxu0 0.0
      %1996 = vmatpush1.msra.mxu0 0.0
      %1997 = vmatprep.subr.mxu0 0.0
      %1998 = vmatpush1.msra.mxu0 0.0
      %1999 = vmatprep.subr.mxu0 0.0
      %2000 = vmatpush1.msra.mxu0 0.0
      %2001 = vmatprep.subr.mxu0 0.0
      %2002 = vmatpush1.msra.mxu0 0.0
      %2003 = vmatprep.subr.mxu0 0.0
      %2004 = vmatpush1.msra.mxu0 0.0
      %2005 = vmatprep.subr.mxu0 0.0
      %2006 = vmatpush1.msra.mxu0 0.0
      %2007 = vmatprep.subr.mxu0 0.0
      %2008 = vmatpush1.msra.mxu0 0.0
      %2009 = vmatprep.subr.mxu0 0.0
      %2010 = vmatpush1.msra.mxu0 0.0
      %2011 = vmatprep.subr.mxu0 0.0
      %2012 = vmatpush1.msra.mxu0 0.0
      %2013 = vmatprep.subr.mxu0 0.0
      %2014 = vmatpush1.msra.mxu0 0.0
      %2015 = vmatprep.subr.mxu0 0.0
      %2016 = vmatpush1.msra.mxu0 0.0
      %2017 = vmatprep.subr.mxu0 0.0
      %2018 = vmatpush1.msra.mxu0 0.0
      %2019 = vmatprep.subr.mxu0 0.0
      %2020 = vmatpush1.msra.mxu0 0.0
      %2021 = vmatprep.subr.mxu0 0.0
      %2022 = vmatpush1.msra.mxu0 0.0
      %2023 = vmatprep.subr.mxu0 0.0
      %2024 = vmatpush1.msra.mxu0 0.0
      %2025 = vmatprep.subr.mxu0 0.0
      %2026 = vmatpush1.msra.mxu0 0.0
      %2027 = vmatprep.subr.mxu0 0.0
      %2028 = vmatpush1.msra.mxu0 0.0
      %2029 = vmatprep.subr.mxu0 0.0
      %2030 = vmatpush1.msra.mxu0 0.0
      %2031 = vmatprep.subr.mxu0 0.0
      %2032 = vmatpush1.msra.mxu0 0.0
      %2033 = vmatprep.subr.mxu0 0.0
      %2034 = vmatpush1.msra.mxu0 0.0
      %2035 = vmatprep.subr.mxu0 0.0
      %2036 = vmatpush1.msra.mxu0 0.0
      %2037 = vmatprep.subr.mxu0 0.0
      %2038 = vmatpush1.msra.mxu0 0.0
      %2039 = vmatprep.subr.mxu0 0.0
      %2040 = vmatpush1.msra.mxu0 0.0
      %2041 = vmatprep.subr.mxu0 0.0
      %2042 = vmatpush1.msra.mxu0 0.0
      %2043 = vmatprep.subr.mxu0 0.0
      %2044 = vmatpush1.msra.mxu0 0.0
      %2045 = vmatprep.subr.mxu0 0.0
      %2046 = vmatpush1.msra.mxu0 0.0
      %2047 = vmatprep.mubr.f32.mxu0 0.0
      %2048 = vmatmul.mubr.f32.gmra.mrb[0].mxu0 %v1109
      %v2049 = vpop.f32.mrb[0].mxu0
      %v2050 = vadd.f32 0.0, %v2049
      %v2051 = vpop.f32.mrb[0].mxu0
      %2052 = vmatprep.mubr.f32.mxu0 0.0
      %2053 = vmatmul.mubr.f32.gmra.mrb[0].mxu0 %v1111
      %v2054 = vpop.f32.mrb[0].mxu0
      %v2055 = vadd.f32 0.0, %v2054
      %v2056 = vpop.f32.mrb[0].mxu0
      %2057 = vmatprep.mubr.f32.mxu0 0.0
      %2058 = vmatmul.mubr.f32.gmra.mrb[0].mxu0 %v1113
      %v2059 = vpop.f32.mrb[0].mxu0
      %v2060 = vadd.f32 0.0, %v2059
      %v2061 = vpop.f32.mrb[0].mxu0
      %2062 = vmatprep.mubr.f32.mxu0 0.0
      %2063 = vmatmul.mubr.f32.gmra.mrb[0].mxu0 %v1115
      %v2064 = vpop.f32.mrb[0].mxu0
      %v2065 = vadd.f32 0.0, %v2064
      %v2066 = vpop.f32.mrb[0].mxu0
      %2067 = vmatprep.mubr.f32.mxu0 0.0
      %2068 = vmatmul.mubr.f32.gmra.mrb[0].mxu0 %v1117
      %v2069 = vpop.f32.mrb[0].mxu0
      %v2070 = vadd.f32 0.0, %v2069
      %v2071 = vpop.f32.mrb[0].mxu0
      %2072 = vmatprep.mubr.f32.mxu0 0.0
      %2073 = vmatmul.mubr.f32.gmra.mrb[0].mxu0 %v1119
      %v2074 = vpop.f32.mrb[0].mxu0
      %v2075 = vadd.f32 0.0, %v2074
      %v2076 = vpop.f32.mrb[0].mxu0
      %2077 = vmatprep.mubr.f32.mxu0 0.0
      %2078 = vmatmul.mubr.f32.gmra.mrb[0].mxu0 %v1121
      %v2079 = vpop.f32.mrb[0].mxu0
      %v2080 = vadd.f32 0.0, %v2079
      %v2081 = vpop.f32.mrb[0].mxu0
      %2082 = vmatprep.mubr.f32.mxu0 0.0
      %2083 = vmatmul.mubr.f32.gmra.mrb[0].mxu0 %v1123
      %v2084 = vpop.f32.mrb[0].mxu0
      %v2085 = vadd.f32 0.0, %v2084
      %v2086 = vpop.f32.mrb[0].mxu0
      %2087 = vmatprep.mubr.f32.mxu0 0.0
      %2088 = vmatmul.mubr.f32.gmra.mrb[0].mxu0 %v1125
      %v2089 = vpop.f32.mrb[0].mxu0
      %v2090 = vadd.f32 0.0, %v2089
      %v2091 = vpop.f32.mrb[0].mxu0
      %2092 = vmatprep.mubr.f32.mxu0 0.0
      %2093 = vmatmul.mubr.f32.gmra.mrb[0].mxu0 %v1127
      %v2094 = vpop.f32.mrb[0].mxu0
      %v2095 = vadd.f32 0.0, %v2094
      %v2096 = vpop.f32.mrb[0].mxu0
      %2097 = vmatprep.mubr.f32.mxu0 0.0
      %2098 = vmatmul.mubr.f32.gmra.mrb[0].mxu0 %v1129
      %v2099 = vpop.f32.mrb[0].mxu0
      %v2100 = vadd.f32 0.0, %v2099
      %v2101 = vpop.f32.mrb[0].mxu0
      %2102 = vmatprep.mubr.f32.mxu0 0.0
      %2103 = vmatmul.mubr.f32.gmra.mrb[0].mxu0 %v1131
      %v2104 = vpop.f32.mrb[0].mxu0
      %v2105 = vadd.f32 0.0, %v2104
      %v2106 = vpop.f32.mrb[0].mxu0
      %2107 = vmatprep.mubr.f32.mxu0 0.0
      %2108 = vmatmul.mubr.f32.gmra.mrb[0].mxu0 %v1133
      %v2109 = vpop.f32.mrb[0].mxu0
      %v2110 = vadd.f32 0.0, %v2109
      %v2111 = vpop.f32.mrb[0].mxu0
      %2112 = vmatprep.mubr.f32.mxu0 0.0
      %2113 = vmatmul.mubr.f32.gmra.mrb[0].mxu0 %v1135
      %v2114 = vpop.f32.mrb[0].mxu0
      %v2115 = vadd.f32 0.0, %v2114
      %v2116 = vpop.f32.mrb[0].mxu0
      %2117 = vmatprep.mubr.f32.mxu0 0.0
      %2118 = vmatmul.mubr.f32.gmra.mrb[0].mxu0 %v1137
      %v2119 = vpop.f32.mrb[0].mxu0
      %v2120 = vadd.f32 0.0, %v2119
      %v2121 = vpop.f32.mrb[0].mxu0
      %2122 = vmatprep.mubr.f32.mxu0 0.0
      %2123 = vmatmul.mubr.f32.gmra.mrb[0].mxu0 %v1139
      %v2124 = vpop.f32.mrb[0].mxu0
      %v2125 = vadd.f32 0.0, %v2124
      %v2126 = vpop.f32.mrb[0].mxu0
      %2127 = vmatprep.mubr.f32.mxu0 0.0
      %2128 = vmatmul.mubr.f32.gmra.mrb[0].mxu0 %v1141
      %v2129 = vpop.f32.mrb[0].mxu0
      %v2130 = vadd.f32 0.0, %v2129
      %v2131 = vpop.f32.mrb[0].mxu0
      %2132 = vmatprep.mubr.f32.mxu0 0.0
      %2133 = vmatmul.mubr.f32.gmra.mrb[0].mxu0 %v1143
      %v2134 = vpop.f32.mrb[0].mxu0
      %v2135 = vadd.f32 0.0, %v2134
      %v2136 = vpop.f32.mrb[0].mxu0
      %2137 = vmatprep.mubr.f32.mxu0 0.0
      %2138 = vmatmul.mubr.f32.gmra.mrb[0].mxu0 %v1145
      %v2139 = vpop.f32.mrb[0].mxu0
      %v2140 = vadd.f32 0.0, %v2139
      %v2141 = vpop.f32.mrb[0].mxu0
      %2142 = vmatprep.mubr.f32.mxu0 0.0
      %2143 = vmatmul.mubr.f32.gmra.mrb[0].mxu0 %v1147
      %v2144 = vpop.f32.mrb[0].mxu0
      %v2145 = vadd.f32 0.0, %v2144
      %v2146 = vpop.f32.mrb[0].mxu0
      %2147 = vmatprep.mubr.f32.mxu0 0.0
      %2148 = vmatmul.mubr.f32.gmra.mrb[0].mxu0 %v1149
      %v2149 = vpop.f32.mrb[0].mxu0
      %v2150 = vadd.f32 0.0, %v2149
      %v2151 = vpop.f32.mrb[0].mxu0
      %2152 = vmatprep.mubr.f32.mxu0 0.0
      %2153 = vmatmul.mubr.f32.gmra.mrb[0].mxu0 %v1151
      %v2154 = vpop.f32.mrb[0].mxu0
      %v2155 = vadd.f32 0.0, %v2154
      %v2156 = vpop.f32.mrb[0].mxu0
      %2157 = vmatprep.mubr.f32.mxu0 0.0
      %2158 = vmatmul.mubr.f32.gmra.mrb[0].mxu0 %v1153
      %v2159 = vpop.f32.mrb[0].mxu0
      %v2160 = vadd.f32 0.0, %v2159
      %v2161 = vpop.f32.mrb[0].mxu0
      %2162 = vmatprep.mubr.f32.mxu0 0.0
      %2163 = vmatmul.mubr.f32.gmra.mrb[0].mxu0 %v1155
      %v2164 = vpop.f32.mrb[0].mxu0
      %v2165 = vadd.f32 0.0, %v2164
      %v2166 = vpop.f32.mrb[0].mxu0
      %2167 = vmatprep.mubr.f32.mxu0 0.0
      %2168 = vmatmul.mubr.f32.gmra.mrb[0].mxu0 %v1157
      %v2169 = vpop.f32.mrb[0].mxu0
      %v2170 = vadd.f32 0.0, %v2169
      %v2171 = vpop.f32.mrb[0].mxu0
      %2172 = vmatprep.mubr.f32.mxu0 0.0
      %2173 = vmatmul.mubr.f32.gmra.mrb[0].mxu0 %v1159
      %v2174 = vpop.f32.mrb[0].mxu0
      %v2175 = vadd.f32 0.0, %v2174
      %v2176 = vpop.f32.mrb[0].mxu0
      %2177 = vmatprep.mubr.f32.mxu0 0.0
      %2178 = vmatmul.mubr.f32.gmra.mrb[0].mxu0 %v1161
      %v2179 = vpop.f32.mrb[0].mxu0
      %v2180 = vadd.f32 0.0, %v2179
      %v2181 = vpop.f32.mrb[0].mxu0
      %2182 = vmatprep.mubr.f32.mxu0 0.0
      %2183 = vmatmul.mubr.f32.gmra.mrb[0].mxu0 %v1163
      %v2184 = vpop.f32.mrb[0].mxu0
      %v2185 = vadd.f32 0.0, %v2184
      %v2186 = vpop.f32.mrb[0].mxu0
      %2187 = vmatprep.mubr.f32.mxu0 0.0
      %2188 = vmatmul.mubr.f32.gmra.mrb[0].mxu0 %v1165
      %v2189 = vpop.f32.mrb[0].mxu0
      %v2190 = vadd.f32 0.0, %v2189
      %v2191 = vpop.f32.mrb[0].mxu0
      %2192 = vmatprep.mubr.f32.mxu0 0.0
      %2193 = vmatmul.mubr.f32.gmra.mrb[0].mxu0 %v1167
      %v2194 = vpop.f32.mrb[0].mxu0
      %v2195 = vadd.f32 0.0, %v2194
      %v2196 = vpop.f32.mrb[0].mxu0
      %2197 = vmatprep.mubr.f32.mxu0 0.0
      %2198 = vmatmul.mubr.f32.gmra.mrb[0].mxu0 %v1976
      %v2199 = vpop.f32.mrb[0].mxu0
      %v2200 = vadd.f32 0.0, %v2199
      %v2201 = vpop.f32.mrb[0].mxu0
      %2202 = vmatprep.mubr.f32.mxu0 0.0
      %2203 = vmatmul.mubr.f32.gmra.mrb[0].mxu0 %v1978
      %v2204 = vpop.f32.mrb[0].mxu0
      %v2205 = vadd.f32 0.0, %v2204
      %v2206 = vpop.f32.mrb[0].mxu0
      %2207 = vdwg.mxu0
      %v2208 = vadd.f32 %v1937, %v2050
      %v2209 = vadd.f32 %v1938, %v2055
      %v2210 = vadd.f32 %v1939, %v2060
      %v2211 = vadd.f32 %v1940, %v2065
      %v2212 = vadd.f32 %v1941, %v2070
      %v2213 = vadd.f32 %v1942, %v2075
      %v2214 = vadd.f32 %v1943, %v2080
      %v2215 = vadd.f32 %v1944, %v2085
      %v2216 = vadd.f32 %v1945, %v2090
      %v2217 = vadd.f32 %v1946, %v2095
      %v2218 = vadd.f32 %v1947, %v2100
      %v2219 = vadd.f32 %v1948, %v2105
      %v2220 = vadd.f32 %v1949, %v2110
      %v2221 = vadd.f32 %v1950, %v2115
      %v2222 = vadd.f32 %v1951, %v2120
      %v2223 = vadd.f32 %v1952, %v2125
      %v2224 = vadd.f32 %v1953, %v2130
      %v2225 = vadd.f32 %v1954, %v2135
      %v2226 = vadd.f32 %v1955, %v2140
      %v2227 = vadd.f32 %v1956, %v2145
      %v2228 = vadd.f32 %v1957, %v2150
      %v2229 = vadd.f32 %v1958, %v2155
      %v2230 = vadd.f32 %v1959, %v2160
      %v2231 = vadd.f32 %v1960, %v2165
      %v2232 = vadd.f32 %v1961, %v2170
      %v2233 = vadd.f32 %v1962, %v2175
      %v2234 = vadd.f32 %v1963, %v2180
      %v2235 = vadd.f32 %v1964, %v2185
      %v2236 = vadd.f32 %v1965, %v2190
      %v2237 = vadd.f32 %v1966, %v2195
      %v2238 = vadd.f32 %v1967, %v2200
      %v2239 = vadd.f32 %v1968, %v2205
      %s2240 = scalar_lea.vmem %s1, 24
      %v2241 = vld [vmem:[%s2240] sm:$0xf]
      %v2243 = vsel %vm436, %v301, 0
      %v2246 = vsel %vm436, %v302, 0
      %v2249 = vsel %vm501, %v2241, 0
      %2251 = vmatprep.subr.mxu0 0.0
      %2252 = vmatpush1.msra.mxu0 %v2249
      %2253 = vmatprep.subr.mxu0 0.0
      %2254 = vmatpush1.msra.mxu0 0.0
      %2255 = vmatprep.subr.mxu0 0.0
      %2256 = vmatpush1.msra.mxu0 0.0
      %2257 = vmatprep.subr.mxu0 0.0
      %2258 = vmatpush1.msra.mxu0 0.0
      %2259 = vmatprep.subr.mxu0 0.0
      %2260 = vmatpush1.msra.mxu0 0.0
      %2261 = vmatprep.subr.mxu0 0.0
      %2262 = vmatpush1.msra.mxu0 0.0
      %2263 = vmatprep.subr.mxu0 0.0
      %2264 = vmatpush1.msra.mxu0 0.0
      %2265 = vmatprep.subr.mxu0 0.0
      %2266 = vmatpush1.msra.mxu0 0.0
      %2267 = vmatprep.subr.mxu0 0.0
      %2268 = vmatpush1.msra.mxu0 0.0
      %2269 = vmatprep.subr.mxu0 0.0
      %2270 = vmatpush1.msra.mxu0 0.0
      %2271 = vmatprep.subr.mxu0 0.0
      %2272 = vmatpush1.msra.mxu0 0.0
      %2273 = vmatprep.subr.mxu0 0.0
      %2274 = vmatpush1.msra.mxu0 0.0
      %2275 = vmatprep.subr.mxu0 0.0
      %2276 = vmatpush1.msra.mxu0 0.0
      %2277 = vmatprep.subr.mxu0 0.0
      %2278 = vmatpush1.msra.mxu0 0.0
      %2279 = vmatprep.subr.mxu0 0.0
      %2280 = vmatpush1.msra.mxu0 0.0
      %2281 = vmatprep.subr.mxu0 0.0
      %2282 = vmatpush1.msra.mxu0 0.0
      %2283 = vmatprep.subr.mxu0 0.0
      %2284 = vmatpush1.msra.mxu0 0.0
      %2285 = vmatprep.subr.mxu0 0.0
      %2286 = vmatpush1.msra.mxu0 0.0
      %2287 = vmatprep.subr.mxu0 0.0
      %2288 = vmatpush1.msra.mxu0 0.0
      %2289 = vmatprep.subr.mxu0 0.0
      %2290 = vmatpush1.msra.mxu0 0.0
      %2291 = vmatprep.subr.mxu0 0.0
      %2292 = vmatpush1.msra.mxu0 0.0
      %2293 = vmatprep.subr.mxu0 0.0
      %2294 = vmatpush1.msra.mxu0 0.0
      %2295 = vmatprep.subr.mxu0 0.0
      %2296 = vmatpush1.msra.mxu0 0.0
      %2297 = vmatprep.subr.mxu0 0.0
      %2298 = vmatpush1.msra.mxu0 0.0
      %2299 = vmatprep.subr.mxu0 0.0
      %2300 = vmatpush1.msra.mxu0 0.0
      %2301 = vmatprep.subr.mxu0 0.0
      %2302 = vmatpush1.msra.mxu0 0.0
      %2303 = vmatprep.subr.mxu0 0.0
      %2304 = vmatpush1.msra.mxu0 0.0
      %2305 = vmatprep.subr.mxu0 0.0
      %2306 = vmatpush1.msra.mxu0 0.0
      %2307 = vmatprep.subr.mxu0 0.0
      %2308 = vmatpush1.msra.mxu0 0.0
      %2309 = vmatprep.subr.mxu0 0.0
      %2310 = vmatpush1.msra.mxu0 0.0
      %2311 = vmatprep.subr.mxu0 0.0
      %2312 = vmatpush1.msra.mxu0 0.0
      %2313 = vmatprep.subr.mxu0 0.0
      %2314 = vmatpush1.msra.mxu0 0.0
      %2315 = vmatprep.mubr.f32.mxu0 0.0
      %2316 = vmatmul.mubr.f32.gmra.mrb[0].mxu0 %v738
      %v2317 = vpop.f32.mrb[0].mxu0
      %v2318 = vadd.f32 0.0, %v2317
      %v2319 = vpop.f32.mrb[0].mxu0
      %2320 = vmatprep.mubr.f32.mxu0 0.0
      %2321 = vmatmul.mubr.f32.gmra.mrb[0].mxu0 %v740
      %v2322 = vpop.f32.mrb[0].mxu0
      %v2323 = vadd.f32 0.0, %v2322
      %v2324 = vpop.f32.mrb[0].mxu0
      %2325 = vmatprep.mubr.f32.mxu0 0.0
      %2326 = vmatmul.mubr.f32.gmra.mrb[0].mxu0 %v742
      %v2327 = vpop.f32.mrb[0].mxu0
      %v2328 = vadd.f32 0.0, %v2327
      %v2329 = vpop.f32.mrb[0].mxu0
      %2330 = vmatprep.mubr.f32.mxu0 0.0
      %2331 = vmatmul.mubr.f32.gmra.mrb[0].mxu0 %v744
      %v2332 = vpop.f32.mrb[0].mxu0
      %v2333 = vadd.f32 0.0, %v2332
      %v2334 = vpop.f32.mrb[0].mxu0
      %2335 = vmatprep.mubr.f32.mxu0 0.0
      %2336 = vmatmul.mubr.f32.gmra.mrb[0].mxu0 %v746
      %v2337 = vpop.f32.mrb[0].mxu0
      %v2338 = vadd.f32 0.0, %v2337
      %v2339 = vpop.f32.mrb[0].mxu0
      %2340 = vmatprep.mubr.f32.mxu0 0.0
      %2341 = vmatmul.mubr.f32.gmra.mrb[0].mxu0 %v748
      %v2342 = vpop.f32.mrb[0].mxu0
      %v2343 = vadd.f32 0.0, %v2342
      %v2344 = vpop.f32.mrb[0].mxu0
      %2345 = vmatprep.mubr.f32.mxu0 0.0
      %2346 = vmatmul.mubr.f32.gmra.mrb[0].mxu0 %v750
      %v2347 = vpop.f32.mrb[0].mxu0
      %v2348 = vadd.f32 0.0, %v2347
      %v2349 = vpop.f32.mrb[0].mxu0
      %2350 = vmatprep.mubr.f32.mxu0 0.0
      %2351 = vmatmul.mubr.f32.gmra.mrb[0].mxu0 %v752
      %v2352 = vpop.f32.mrb[0].mxu0
      %v2353 = vadd.f32 0.0, %v2352
      %v2354 = vpop.f32.mrb[0].mxu0
      %2355 = vmatprep.mubr.f32.mxu0 0.0
      %2356 = vmatmul.mubr.f32.gmra.mrb[0].mxu0 %v754
      %v2357 = vpop.f32.mrb[0].mxu0
      %v2358 = vadd.f32 0.0, %v2357
      %v2359 = vpop.f32.mrb[0].mxu0
      %2360 = vmatprep.mubr.f32.mxu0 0.0
      %2361 = vmatmul.mubr.f32.gmra.mrb[0].mxu0 %v756
      %v2362 = vpop.f32.mrb[0].mxu0
      %v2363 = vadd.f32 0.0, %v2362
      %v2364 = vpop.f32.mrb[0].mxu0
      %2365 = vmatprep.mubr.f32.mxu0 0.0
      %2366 = vmatmul.mubr.f32.gmra.mrb[0].mxu0 %v758
      %v2367 = vpop.f32.mrb[0].mxu0
      %v2368 = vadd.f32 0.0, %v2367
      %v2369 = vpop.f32.mrb[0].mxu0
      %2370 = vmatprep.mubr.f32.mxu0 0.0
      %2371 = vmatmul.mubr.f32.gmra.mrb[0].mxu0 %v760
      %v2372 = vpop.f32.mrb[0].mxu0
      %v2373 = vadd.f32 0.0, %v2372
      %v2374 = vpop.f32.mrb[0].mxu0
      %2375 = vmatprep.mubr.f32.mxu0 0.0
      %2376 = vmatmul.mubr.f32.gmra.mrb[0].mxu0 %v762
      %v2377 = vpop.f32.mrb[0].mxu0
      %v2378 = vadd.f32 0.0, %v2377
      %v2379 = vpop.f32.mrb[0].mxu0
      %2380 = vmatprep.mubr.f32.mxu0 0.0
      %2381 = vmatmul.mubr.f32.gmra.mrb[0].mxu0 %v764
      %v2382 = vpop.f32.mrb[0].mxu0
      %v2383 = vadd.f32 0.0, %v2382
      %v2384 = vpop.f32.mrb[0].mxu0
      %2385 = vmatprep.mubr.f32.mxu0 0.0
      %2386 = vmatmul.mubr.f32.gmra.mrb[0].mxu0 %v766
      %v2387 = vpop.f32.mrb[0].mxu0
      %v2388 = vadd.f32 0.0, %v2387
      %v2389 = vpop.f32.mrb[0].mxu0
      %2390 = vmatprep.mubr.f32.mxu0 0.0
      %2391 = vmatmul.mubr.f32.gmra.mrb[0].mxu0 %v768
      %v2392 = vpop.f32.mrb[0].mxu0
      %v2393 = vadd.f32 0.0, %v2392
      %v2394 = vpop.f32.mrb[0].mxu0
      %2395 = vmatprep.mubr.f32.mxu0 0.0
      %2396 = vmatmul.mubr.f32.gmra.mrb[0].mxu0 %v770
      %v2397 = vpop.f32.mrb[0].mxu0
      %v2398 = vadd.f32 0.0, %v2397
      %v2399 = vpop.f32.mrb[0].mxu0
      %2400 = vmatprep.mubr.f32.mxu0 0.0
      %2401 = vmatmul.mubr.f32.gmra.mrb[0].mxu0 %v772
      %v2402 = vpop.f32.mrb[0].mxu0
      %v2403 = vadd.f32 0.0, %v2402
      %v2404 = vpop.f32.mrb[0].mxu0
      %2405 = vmatprep.mubr.f32.mxu0 0.0
      %2406 = vmatmul.mubr.f32.gmra.mrb[0].mxu0 %v774
      %v2407 = vpop.f32.mrb[0].mxu0
      %v2408 = vadd.f32 0.0, %v2407
      %v2409 = vpop.f32.mrb[0].mxu0
      %2410 = vmatprep.mubr.f32.mxu0 0.0
      %2411 = vmatmul.mubr.f32.gmra.mrb[0].mxu0 %v776
      %v2412 = vpop.f32.mrb[0].mxu0
      %v2413 = vadd.f32 0.0, %v2412
      %v2414 = vpop.f32.mrb[0].mxu0
      %2415 = vmatprep.mubr.f32.mxu0 0.0
      %2416 = vmatmul.mubr.f32.gmra.mrb[0].mxu0 %v778
      %v2417 = vpop.f32.mrb[0].mxu0
      %v2418 = vadd.f32 0.0, %v2417
      %v2419 = vpop.f32.mrb[0].mxu0
      %2420 = vmatprep.mubr.f32.mxu0 0.0
      %2421 = vmatmul.mubr.f32.gmra.mrb[0].mxu0 %v780
      %v2422 = vpop.f32.mrb[0].mxu0
      %v2423 = vadd.f32 0.0, %v2422
      %v2424 = vpop.f32.mrb[0].mxu0
      %2425 = vmatprep.mubr.f32.mxu0 0.0
      %2426 = vmatmul.mubr.f32.gmra.mrb[0].mxu0 %v782
      %v2427 = vpop.f32.mrb[0].mxu0
      %v2428 = vadd.f32 0.0, %v2427
      %v2429 = vpop.f32.mrb[0].mxu0
      %2430 = vmatprep.mubr.f32.mxu0 0.0
      %2431 = vmatmul.mubr.f32.gmra.mrb[0].mxu0 %v784
      %v2432 = vpop.f32.mrb[0].mxu0
      %v2433 = vadd.f32 0.0, %v2432
      %v2434 = vpop.f32.mrb[0].mxu0
      %2435 = vmatprep.mubr.f32.mxu0 0.0
      %2436 = vmatmul.mubr.f32.gmra.mrb[0].mxu0 %v786
      %v2437 = vpop.f32.mrb[0].mxu0
      %v2438 = vadd.f32 0.0, %v2437
      %v2439 = vpop.f32.mrb[0].mxu0
      %2440 = vmatprep.mubr.f32.mxu0 0.0
      %2441 = vmatmul.mubr.f32.gmra.mrb[0].mxu0 %v788
      %v2442 = vpop.f32.mrb[0].mxu0
      %v2443 = vadd.f32 0.0, %v2442
      %v2444 = vpop.f32.mrb[0].mxu0
      %2445 = vmatprep.mubr.f32.mxu0 0.0
      %2446 = vmatmul.mubr.f32.gmra.mrb[0].mxu0 %v790
      %v2447 = vpop.f32.mrb[0].mxu0
      %v2448 = vadd.f32 0.0, %v2447
      %v2449 = vpop.f32.mrb[0].mxu0
      %2450 = vmatprep.mubr.f32.mxu0 0.0
      %2451 = vmatmul.mubr.f32.gmra.mrb[0].mxu0 %v792
      %v2452 = vpop.f32.mrb[0].mxu0
      %v2453 = vadd.f32 0.0, %v2452
      %v2454 = vpop.f32.mrb[0].mxu0
      %2455 = vmatprep.mubr.f32.mxu0 0.0
      %2456 = vmatmul.mubr.f32.gmra.mrb[0].mxu0 %v1432
      %v2457 = vpop.f32.mrb[0].mxu0
      %v2458 = vadd.f32 0.0, %v2457
      %v2459 = vpop.f32.mrb[0].mxu0
      %2460 = vmatprep.mubr.f32.mxu0 0.0
      %2461 = vmatmul.mubr.f32.gmra.mrb[0].mxu0 %v1435
      %v2462 = vpop.f32.mrb[0].mxu0
      %v2463 = vadd.f32 0.0, %v2462
      %v2464 = vpop.f32.mrb[0].mxu0
      %2465 = vmatprep.mubr.f32.mxu0 0.0
      %2466 = vmatmul.mubr.f32.gmra.mrb[0].mxu0 %v2243
      %v2467 = vpop.f32.mrb[0].mxu0
      %v2468 = vadd.f32 0.0, %v2467
      %v2469 = vpop.f32.mrb[0].mxu0
      %2470 = vmatprep.mubr.f32.mxu0 0.0
      %2471 = vmatmul.mubr.f32.gmra.mrb[0].mxu0 %v2246
      %v2472 = vpop.f32.mrb[0].mxu0
      %v2473 = vadd.f32 0.0, %v2472
      %v2474 = vpop.f32.mrb[0].mxu0
      %2475 = vdwg.mxu0
      %v2476 = vadd.f32 %v2208, %v2318
      %v2477 = vadd.f32 %v2209, %v2323
      %v2478 = vadd.f32 %v2210, %v2328
      %v2479 = vadd.f32 %v2211, %v2333
      %v2480 = vadd.f32 %v2212, %v2338
      %v2481 = vadd.f32 %v2213, %v2343
      %v2482 = vadd.f32 %v2214, %v2348
      %v2483 = vadd.f32 %v2215, %v2353
      %v2484 = vadd.f32 %v2216, %v2358
      %v2485 = vadd.f32 %v2217, %v2363
      %v2486 = vadd.f32 %v2218, %v2368
      %v2487 = vadd.f32 %v2219, %v2373
      %v2488 = vadd.f32 %v2220, %v2378
      %v2489 = vadd.f32 %v2221, %v2383
      %v2490 = vadd.f32 %v2222, %v2388
      %v2491 = vadd.f32 %v2223, %v2393
      %v2492 = vadd.f32 %v2224, %v2398
      %v2493 = vadd.f32 %v2225, %v2403
      %v2494 = vadd.f32 %v2226, %v2408
      %v2495 = vadd.f32 %v2227, %v2413
      %v2496 = vadd.f32 %v2228, %v2418
      %v2497 = vadd.f32 %v2229, %v2423
      %v2498 = vadd.f32 %v2230, %v2428
      %v2499 = vadd.f32 %v2231, %v2433
      %v2500 = vadd.f32 %v2232, %v2438
      %v2501 = vadd.f32 %v2233, %v2443
      %v2502 = vadd.f32 %v2234, %v2448
      %v2503 = vadd.f32 %v2235, %v2453
      %v2504 = vadd.f32 %v2236, %v2458
      %v2505 = vadd.f32 %v2237, %v2463
      %v2506 = vadd.f32 %v2238, %v2468
      %v2507 = vadd.f32 %v2239, %v2473
      %v2509 = vrot.slane %v301, 1
      %v2510 = vrot.slane %v302, 1
      %v2511 = vsel %vm353, %v2509, %v2510
      %v2512 = vrot.slane %v303, 1
      %v2513 = vsel %vm353, %v2510, %v2512
      %s2514 = scalar_lea.vmem %s1, 28
      %v2515 = vld [vmem:[%s2514] sm:$0xf]
      %v2516 = vsel %vm436, %v2511, 0
      %v2518 = vsel %vm436, %v2513, 0
      %v2521 = vsel %vm501, %v2515, 0
      %2523 = vmatprep.subr.mxu0 0.0
      %2524 = vmatpush1.msra.mxu0 %v2521
      %2525 = vmatprep.subr.mxu0 0.0
      %2526 = vmatpush1.msra.mxu0 0.0
      %2527 = vmatprep.subr.mxu0 0.0
      %2528 = vmatpush1.msra.mxu0 0.0
      %2529 = vmatprep.subr.mxu0 0.0
      %2530 = vmatpush1.msra.mxu0 0.0
      %2531 = vmatprep.subr.mxu0 0.0
      %2532 = vmatpush1.msra.mxu0 0.0
      %2533 = vmatprep.subr.mxu0 0.0
      %2534 = vmatpush1.msra.mxu0 0.0
      %2535 = vmatprep.subr.mxu0 0.0
      %2536 = vmatpush1.msra.mxu0 0.0
      %2537 = vmatprep.subr.mxu0 0.0
      %2538 = vmatpush1.msra.mxu0 0.0
      %2539 = vmatprep.subr.mxu0 0.0
      %2540 = vmatpush1.msra.mxu0 0.0
      %2541 = vmatprep.subr.mxu0 0.0
      %2542 = vmatpush1.msra.mxu0 0.0
      %2543 = vmatprep.subr.mxu0 0.0
      %2544 = vmatpush1.msra.mxu0 0.0
      %2545 = vmatprep.subr.mxu0 0.0
      %2546 = vmatpush1.msra.mxu0 0.0
      %2547 = vmatprep.subr.mxu0 0.0
      %2548 = vmatpush1.msra.mxu0 0.0
      %2549 = vmatprep.subr.mxu0 0.0
      %2550 = vmatpush1.msra.mxu0 0.0
      %2551 = vmatprep.subr.mxu0 0.0
      %2552 = vmatpush1.msra.mxu0 0.0
      %2553 = vmatprep.subr.mxu0 0.0
      %2554 = vmatpush1.msra.mxu0 0.0
      %2555 = vmatprep.subr.mxu0 0.0
      %2556 = vmatpush1.msra.mxu0 0.0
      %2557 = vmatprep.subr.mxu0 0.0
      %2558 = vmatpush1.msra.mxu0 0.0
      %2559 = vmatprep.subr.mxu0 0.0
      %2560 = vmatpush1.msra.mxu0 0.0
      %2561 = vmatprep.subr.mxu0 0.0
      %2562 = vmatpush1.msra.mxu0 0.0
      %2563 = vmatprep.subr.mxu0 0.0
      %2564 = vmatpush1.msra.mxu0 0.0
      %2565 = vmatprep.subr.mxu0 0.0
      %2566 = vmatpush1.msra.mxu0 0.0
      %2567 = vmatprep.subr.mxu0 0.0
      %2568 = vmatpush1.msra.mxu0 0.0
      %2569 = vmatprep.subr.mxu0 0.0
      %2570 = vmatpush1.msra.mxu0 0.0
      %2571 = vmatprep.subr.mxu0 0.0
      %2572 = vmatpush1.msra.mxu0 0.0
      %2573 = vmatprep.subr.mxu0 0.0
      %2574 = vmatpush1.msra.mxu0 0.0
      %2575 = vmatprep.subr.mxu0 0.0
      %2576 = vmatpush1.msra.mxu0 0.0
      %2577 = vmatprep.subr.mxu0 0.0
      %2578 = vmatpush1.msra.mxu0 0.0
      %2579 = vmatprep.subr.mxu0 0.0
      %2580 = vmatpush1.msra.mxu0 0.0
      %2581 = vmatprep.subr.mxu0 0.0
      %2582 = vmatpush1.msra.mxu0 0.0
      %2583 = vmatprep.subr.mxu0 0.0
      %2584 = vmatpush1.msra.mxu0 0.0
      %2585 = vmatprep.subr.mxu0 0.0
      %2586 = vmatpush1.msra.mxu0 0.0
      %2587 = vmatprep.mubr.f32.mxu0 0.0
      %2588 = vmatmul.mubr.f32.gmra.mrb[0].mxu0 %v445
      %v2589 = vpop.f32.mrb[0].mxu0
      %v2590 = vadd.f32 0.0, %v2589
      %v2591 = vpop.f32.mrb[0].mxu0
      %2592 = vmatprep.mubr.f32.mxu0 0.0
      %2593 = vmatmul.mubr.f32.gmra.mrb[0].mxu0 %v447
      %v2594 = vpop.f32.mrb[0].mxu0
      %v2595 = vadd.f32 0.0, %v2594
      %v2596 = vpop.f32.mrb[0].mxu0
      %2597 = vmatprep.mubr.f32.mxu0 0.0
      %2598 = vmatmul.mubr.f32.gmra.mrb[0].mxu0 %v449
      %v2599 = vpop.f32.mrb[0].mxu0
      %v2600 = vadd.f32 0.0, %v2599
      %v2601 = vpop.f32.mrb[0].mxu0
      %2602 = vmatprep.mubr.f32.mxu0 0.0
      %2603 = vmatmul.mubr.f32.gmra.mrb[0].mxu0 %v451
      %v2604 = vpop.f32.mrb[0].mxu0
      %v2605 = vadd.f32 0.0, %v2604
      %v2606 = vpop.f32.mrb[0].mxu0
      %2607 = vmatprep.mubr.f32.mxu0 0.0
      %2608 = vmatmul.mubr.f32.gmra.mrb[0].mxu0 %v453
      %v2609 = vpop.f32.mrb[0].mxu0
      %v2610 = vadd.f32 0.0, %v2609
      %v2611 = vpop.f32.mrb[0].mxu0
      %2612 = vmatprep.mubr.f32.mxu0 0.0
      %2613 = vmatmul.mubr.f32.gmra.mrb[0].mxu0 %v455
      %v2614 = vpop.f32.mrb[0].mxu0
      %v2615 = vadd.f32 0.0, %v2614
      %v2616 = vpop.f32.mrb[0].mxu0
      %2617 = vmatprep.mubr.f32.mxu0 0.0
      %2618 = vmatmul.mubr.f32.gmra.mrb[0].mxu0 %v457
      %v2619 = vpop.f32.mrb[0].mxu0
      %v2620 = vadd.f32 0.0, %v2619
      %v2621 = vpop.f32.mrb[0].mxu0
      %2622 = vmatprep.mubr.f32.mxu0 0.0
      %2623 = vmatmul.mubr.f32.gmra.mrb[0].mxu0 %v459
      %v2624 = vpop.f32.mrb[0].mxu0
      %v2625 = vadd.f32 0.0, %v2624
      %v2626 = vpop.f32.mrb[0].mxu0
      %2627 = vmatprep.mubr.f32.mxu0 0.0
      %2628 = vmatmul.mubr.f32.gmra.mrb[0].mxu0 %v461
      %v2629 = vpop.f32.mrb[0].mxu0
      %v2630 = vadd.f32 0.0, %v2629
      %v2631 = vpop.f32.mrb[0].mxu0
      %2632 = vmatprep.mubr.f32.mxu0 0.0
      %2633 = vmatmul.mubr.f32.gmra.mrb[0].mxu0 %v463
      %v2634 = vpop.f32.mrb[0].mxu0
      %v2635 = vadd.f32 0.0, %v2634
      %v2636 = vpop.f32.mrb[0].mxu0
      %2637 = vmatprep.mubr.f32.mxu0 0.0
      %2638 = vmatmul.mubr.f32.gmra.mrb[0].mxu0 %v465
      %v2639 = vpop.f32.mrb[0].mxu0
      %v2640 = vadd.f32 0.0, %v2639
      %v2641 = vpop.f32.mrb[0].mxu0
      %2642 = vmatprep.mubr.f32.mxu0 0.0
      %2643 = vmatmul.mubr.f32.gmra.mrb[0].mxu0 %v467
      %v2644 = vpop.f32.mrb[0].mxu0
      %v2645 = vadd.f32 0.0, %v2644
      %v2646 = vpop.f32.mrb[0].mxu0
      %2647 = vmatprep.mubr.f32.mxu0 0.0
      %2648 = vmatmul.mubr.f32.gmra.mrb[0].mxu0 %v469
      %v2649 = vpop.f32.mrb[0].mxu0
      %v2650 = vadd.f32 0.0, %v2649
      %v2651 = vpop.f32.mrb[0].mxu0
      %2652 = vmatprep.mubr.f32.mxu0 0.0
      %2653 = vmatmul.mubr.f32.gmra.mrb[0].mxu0 %v471
      %v2654 = vpop.f32.mrb[0].mxu0
      %v2655 = vadd.f32 0.0, %v2654
      %v2656 = vpop.f32.mrb[0].mxu0
      %2657 = vmatprep.mubr.f32.mxu0 0.0
      %2658 = vmatmul.mubr.f32.gmra.mrb[0].mxu0 %v473
      %v2659 = vpop.f32.mrb[0].mxu0
      %v2660 = vadd.f32 0.0, %v2659
      %v2661 = vpop.f32.mrb[0].mxu0
      %2662 = vmatprep.mubr.f32.mxu0 0.0
      %2663 = vmatmul.mubr.f32.gmra.mrb[0].mxu0 %v475
      %v2664 = vpop.f32.mrb[0].mxu0
      %v2665 = vadd.f32 0.0, %v2664
      %v2666 = vpop.f32.mrb[0].mxu0
      %2667 = vmatprep.mubr.f32.mxu0 0.0
      %2668 = vmatmul.mubr.f32.gmra.mrb[0].mxu0 %v477
      %v2669 = vpop.f32.mrb[0].mxu0
      %v2670 = vadd.f32 0.0, %v2669
      %v2671 = vpop.f32.mrb[0].mxu0
      %2672 = vmatprep.mubr.f32.mxu0 0.0
      %2673 = vmatmul.mubr.f32.gmra.mrb[0].mxu0 %v479
      %v2674 = vpop.f32.mrb[0].mxu0
      %v2675 = vadd.f32 0.0, %v2674
      %v2676 = vpop.f32.mrb[0].mxu0
      %2677 = vmatprep.mubr.f32.mxu0 0.0
      %2678 = vmatmul.mubr.f32.gmra.mrb[0].mxu0 %v481
      %v2679 = vpop.f32.mrb[0].mxu0
      %v2680 = vadd.f32 0.0, %v2679
      %v2681 = vpop.f32.mrb[0].mxu0
      %2682 = vmatprep.mubr.f32.mxu0 0.0
      %2683 = vmatmul.mubr.f32.gmra.mrb[0].mxu0 %v483
      %v2684 = vpop.f32.mrb[0].mxu0
      %v2685 = vadd.f32 0.0, %v2684
      %v2686 = vpop.f32.mrb[0].mxu0
      %2687 = vmatprep.mubr.f32.mxu0 0.0
      %2688 = vmatmul.mubr.f32.gmra.mrb[0].mxu0 %v485
      %v2689 = vpop.f32.mrb[0].mxu0
      %v2690 = vadd.f32 0.0, %v2689
      %v2691 = vpop.f32.mrb[0].mxu0
      %2692 = vmatprep.mubr.f32.mxu0 0.0
      %2693 = vmatmul.mubr.f32.gmra.mrb[0].mxu0 %v487
      %v2694 = vpop.f32.mrb[0].mxu0
      %v2695 = vadd.f32 0.0, %v2694
      %v2696 = vpop.f32.mrb[0].mxu0
      %2697 = vmatprep.mubr.f32.mxu0 0.0
      %2698 = vmatmul.mubr.f32.gmra.mrb[0].mxu0 %v489
      %v2699 = vpop.f32.mrb[0].mxu0
      %v2700 = vadd.f32 0.0, %v2699
      %v2701 = vpop.f32.mrb[0].mxu0
      %2702 = vmatprep.mubr.f32.mxu0 0.0
      %2703 = vmatmul.mubr.f32.gmra.mrb[0].mxu0 %v491
      %v2704 = vpop.f32.mrb[0].mxu0
      %v2705 = vadd.f32 0.0, %v2704
      %v2706 = vpop.f32.mrb[0].mxu0
      %2707 = vmatprep.mubr.f32.mxu0 0.0
      %2708 = vmatmul.mubr.f32.gmra.mrb[0].mxu0 %v493
      %v2709 = vpop.f32.mrb[0].mxu0
      %v2710 = vadd.f32 0.0, %v2709
      %v2711 = vpop.f32.mrb[0].mxu0
      %2712 = vmatprep.mubr.f32.mxu0 0.0
      %2713 = vmatmul.mubr.f32.gmra.mrb[0].mxu0 %v495
      %v2714 = vpop.f32.mrb[0].mxu0
      %v2715 = vadd.f32 0.0, %v2714
      %v2716 = vpop.f32.mrb[0].mxu0
      %2717 = vmatprep.mubr.f32.mxu0 0.0
      %2718 = vmatmul.mubr.f32.gmra.mrb[0].mxu0 %v497
      %v2719 = vpop.f32.mrb[0].mxu0
      %v2720 = vadd.f32 0.0, %v2719
      %v2721 = vpop.f32.mrb[0].mxu0
      %2722 = vmatprep.mubr.f32.mxu0 0.0
      %2723 = vmatmul.mubr.f32.gmra.mrb[0].mxu0 %v499
      %v2724 = vpop.f32.mrb[0].mxu0
      %v2725 = vadd.f32 0.0, %v2724
      %v2726 = vpop.f32.mrb[0].mxu0
      %2727 = vmatprep.mubr.f32.mxu0 0.0
      %2728 = vmatmul.mubr.f32.gmra.mrb[0].mxu0 %v1705
      %v2729 = vpop.f32.mrb[0].mxu0
      %v2730 = vadd.f32 0.0, %v2729
      %v2731 = vpop.f32.mrb[0].mxu0
      %2732 = vmatprep.mubr.f32.mxu0 0.0
      %2733 = vmatmul.mubr.f32.gmra.mrb[0].mxu0 %v1707
      %v2734 = vpop.f32.mrb[0].mxu0
      %v2735 = vadd.f32 0.0, %v2734
      %v2736 = vpop.f32.mrb[0].mxu0
      %2737 = vmatprep.mubr.f32.mxu0 0.0
      %2738 = vmatmul.mubr.f32.gmra.mrb[0].mxu0 %v2516
      %v2739 = vpop.f32.mrb[0].mxu0
      %v2740 = vadd.f32 0.0, %v2739
      %v2741 = vpop.f32.mrb[0].mxu0
      %2742 = vmatprep.mubr.f32.mxu0 0.0
      %2743 = vmatmul.mubr.f32.gmra.mrb[0].mxu0 %v2518
      %v2744 = vpop.f32.mrb[0].mxu0
      %v2745 = vadd.f32 0.0, %v2744
      %v2746 = vpop.f32.mrb[0].mxu0
      %2747 = vdwg.mxu0
      %v2748 = vadd.f32 %v2476, %v2590
      %v2749 = vadd.f32 %v2477, %v2595
      %v2750 = vadd.f32 %v2478, %v2600
      %v2751 = vadd.f32 %v2479, %v2605
      %v2752 = vadd.f32 %v2480, %v2610
      %v2753 = vadd.f32 %v2481, %v2615
      %v2754 = vadd.f32 %v2482, %v2620
      %v2755 = vadd.f32 %v2483, %v2625
      %v2756 = vadd.f32 %v2484, %v2630
      %v2757 = vadd.f32 %v2485, %v2635
      %v2758 = vadd.f32 %v2486, %v2640
      %v2759 = vadd.f32 %v2487, %v2645
      %v2760 = vadd.f32 %v2488, %v2650
      %v2761 = vadd.f32 %v2489, %v2655
      %v2762 = vadd.f32 %v2490, %v2660
      %v2763 = vadd.f32 %v2491, %v2665
      %v2764 = vadd.f32 %v2492, %v2670
      %v2765 = vadd.f32 %v2493, %v2675
      %v2766 = vadd.f32 %v2494, %v2680
      %v2767 = vadd.f32 %v2495, %v2685
      %v2768 = vadd.f32 %v2496, %v2690
      %v2769 = vadd.f32 %v2497, %v2695
      %v2770 = vadd.f32 %v2498, %v2700
      %v2771 = vadd.f32 %v2499, %v2705
      %v2772 = vadd.f32 %v2500, %v2710
      %v2773 = vadd.f32 %v2501, %v2715
      %v2774 = vadd.f32 %v2502, %v2720
      %v2775 = vadd.f32 %v2503, %v2725
      %v2776 = vadd.f32 %v2504, %v2730
      %v2777 = vadd.f32 %v2505, %v2735
      %v2778 = vadd.f32 %v2506, %v2740
      %v2779 = vadd.f32 %v2507, %v2745
      %v2780 = vrot.slane %v301, 2
      %v2781 = vrot.slane %v302, 2
      %v2782 = vsel %vm1022, %v2780, %v2781
      %v2783 = vrot.slane %v303, 2
      %v2784 = vsel %vm1022, %v2781, %v2783
      %s2785 = scalar_lea.vmem %s1, 32
      %v2786 = vld [vmem:[%s2785] sm:$0xf]
      %v2787 = vsel %vm436, %v2782, 0
      %v2789 = vsel %vm436, %v2784, 0
      %v2792 = vsel %vm501, %v2786, 0
      %2794 = vmatprep.subr.mxu0 0.0
      %2795 = vmatpush1.msra.mxu0 %v2792
      %2796 = vmatprep.subr.mxu0 0.0
      %2797 = vmatpush1.msra.mxu0 0.0
      %2798 = vmatprep.subr.mxu0 0.0
      %2799 = vmatpush1.msra.mxu0 0.0
      %2800 = vmatprep.subr.mxu0 0.0
      %2801 = vmatpush1.msra.mxu0 0.0
      %2802 = vmatprep.subr.mxu0 0.0
      %2803 = vmatpush1.msra.mxu0 0.0
      %2804 = vmatprep.subr.mxu0 0.0
      %2805 = vmatpush1.msra.mxu0 0.0
      %2806 = vmatprep.subr.mxu0 0.0
      %2807 = vmatpush1.msra.mxu0 0.0
      %2808 = vmatprep.subr.mxu0 0.0
      %2809 = vmatpush1.msra.mxu0 0.0
      %2810 = vmatprep.subr.mxu0 0.0
      %2811 = vmatpush1.msra.mxu0 0.0
      %2812 = vmatprep.subr.mxu0 0.0
      %2813 = vmatpush1.msra.mxu0 0.0
      %2814 = vmatprep.subr.mxu0 0.0
      %2815 = vmatpush1.msra.mxu0 0.0
      %2816 = vmatprep.subr.mxu0 0.0
      %2817 = vmatpush1.msra.mxu0 0.0
      %2818 = vmatprep.subr.mxu0 0.0
      %2819 = vmatpush1.msra.mxu0 0.0
      %2820 = vmatprep.subr.mxu0 0.0
      %2821 = vmatpush1.msra.mxu0 0.0
      %2822 = vmatprep.subr.mxu0 0.0
      %2823 = vmatpush1.msra.mxu0 0.0
      %2824 = vmatprep.subr.mxu0 0.0
      %2825 = vmatpush1.msra.mxu0 0.0
      %2826 = vmatprep.subr.mxu0 0.0
      %2827 = vmatpush1.msra.mxu0 0.0
      %2828 = vmatprep.subr.mxu0 0.0
      %2829 = vmatpush1.msra.mxu0 0.0
      %2830 = vmatprep.subr.mxu0 0.0
      %2831 = vmatpush1.msra.mxu0 0.0
      %2832 = vmatprep.subr.mxu0 0.0
      %2833 = vmatpush1.msra.mxu0 0.0
      %2834 = vmatprep.subr.mxu0 0.0
      %2835 = vmatpush1.msra.mxu0 0.0
      %2836 = vmatprep.subr.mxu0 0.0
      %2837 = vmatpush1.msra.mxu0 0.0
      %2838 = vmatprep.subr.mxu0 0.0
      %2839 = vmatpush1.msra.mxu0 0.0
      %2840 = vmatprep.subr.mxu0 0.0
      %2841 = vmatpush1.msra.mxu0 0.0
      %2842 = vmatprep.subr.mxu0 0.0
      %2843 = vmatpush1.msra.mxu0 0.0
      %2844 = vmatprep.subr.mxu0 0.0
      %2845 = vmatpush1.msra.mxu0 0.0
      %2846 = vmatprep.subr.mxu0 0.0
      %2847 = vmatpush1.msra.mxu0 0.0
      %2848 = vmatprep.subr.mxu0 0.0
      %2849 = vmatpush1.msra.mxu0 0.0
      %2850 = vmatprep.subr.mxu0 0.0
      %2851 = vmatpush1.msra.mxu0 0.0
      %2852 = vmatprep.subr.mxu0 0.0
      %2853 = vmatpush1.msra.mxu0 0.0
      %2854 = vmatprep.subr.mxu0 0.0
      %2855 = vmatpush1.msra.mxu0 0.0
      %2856 = vmatprep.subr.mxu0 0.0
      %2857 = vmatpush1.msra.mxu0 0.0
      %2858 = vmatprep.mubr.f32.mxu0 0.0
      %2859 = vmatmul.mubr.f32.gmra.mrb[0].mxu0 %v1113
      %v2860 = vpop.f32.mrb[0].mxu0
      %v2861 = vadd.f32 0.0, %v2860
      %v2862 = vpop.f32.mrb[0].mxu0
      %2863 = vmatprep.mubr.f32.mxu0 0.0
      %2864 = vmatmul.mubr.f32.gmra.mrb[0].mxu0 %v1115
      %v2865 = vpop.f32.mrb[0].mxu0
      %v2866 = vadd.f32 0.0, %v2865
      %v2867 = vpop.f32.mrb[0].mxu0
      %2868 = vmatprep.mubr.f32.mxu0 0.0
      %2869 = vmatmul.mubr.f32.gmra.mrb[0].mxu0 %v1117
      %v2870 = vpop.f32.mrb[0].mxu0
      %v2871 = vadd.f32 0.0, %v2870
      %v2872 = vpop.f32.mrb[0].mxu0
      %2873 = vmatprep.mubr.f32.mxu0 0.0
      %2874 = vmatmul.mubr.f32.gmra.mrb[0].mxu0 %v1119
      %v2875 = vpop.f32.mrb[0].mxu0
      %v2876 = vadd.f32 0.0, %v2875
      %v2877 = vpop.f32.mrb[0].mxu0
      %2878 = vmatprep.mubr.f32.mxu0 0.0
      %2879 = vmatmul.mubr.f32.gmra.mrb[0].mxu0 %v1121
      %v2880 = vpop.f32.mrb[0].mxu0
      %v2881 = vadd.f32 0.0, %v2880
      %v2882 = vpop.f32.mrb[0].mxu0
      %2883 = vmatprep.mubr.f32.mxu0 0.0
      %2884 = vmatmul.mubr.f32.gmra.mrb[0].mxu0 %v1123
      %v2885 = vpop.f32.mrb[0].mxu0
      %v2886 = vadd.f32 0.0, %v2885
      %v2887 = vpop.f32.mrb[0].mxu0
      %2888 = vmatprep.mubr.f32.mxu0 0.0
      %2889 = vmatmul.mubr.f32.gmra.mrb[0].mxu0 %v1125
      %v2890 = vpop.f32.mrb[0].mxu0
      %v2891 = vadd.f32 0.0, %v2890
      %v2892 = vpop.f32.mrb[0].mxu0
      %2893 = vmatprep.mubr.f32.mxu0 0.0
      %2894 = vmatmul.mubr.f32.gmra.mrb[0].mxu0 %v1127
      %v2895 = vpop.f32.mrb[0].mxu0
      %v2896 = vadd.f32 0.0, %v2895
      %v2897 = vpop.f32.mrb[0].mxu0
      %2898 = vmatprep.mubr.f32.mxu0 0.0
      %2899 = vmatmul.mubr.f32.gmra.mrb[0].mxu0 %v1129
      %v2900 = vpop.f32.mrb[0].mxu0
      %v2901 = vadd.f32 0.0, %v2900
      %v2902 = vpop.f32.mrb[0].mxu0
      %2903 = vmatprep.mubr.f32.mxu0 0.0
      %2904 = vmatmul.mubr.f32.gmra.mrb[0].mxu0 %v1131
      %v2905 = vpop.f32.mrb[0].mxu0
      %v2906 = vadd.f32 0.0, %v2905
      %v2907 = vpop.f32.mrb[0].mxu0
      %2908 = vmatprep.mubr.f32.mxu0 0.0
      %2909 = vmatmul.mubr.f32.gmra.mrb[0].mxu0 %v1133
      %v2910 = vpop.f32.mrb[0].mxu0
      %v2911 = vadd.f32 0.0, %v2910
      %v2912 = vpop.f32.mrb[0].mxu0
      %2913 = vmatprep.mubr.f32.mxu0 0.0
      %2914 = vmatmul.mubr.f32.gmra.mrb[0].mxu0 %v1135
      %v2915 = vpop.f32.mrb[0].mxu0
      %v2916 = vadd.f32 0.0, %v2915
      %v2917 = vpop.f32.mrb[0].mxu0
      %2918 = vmatprep.mubr.f32.mxu0 0.0
      %2919 = vmatmul.mubr.f32.gmra.mrb[0].mxu0 %v1137
      %v2920 = vpop.f32.mrb[0].mxu0
      %v2921 = vadd.f32 0.0, %v2920
      %v2922 = vpop.f32.mrb[0].mxu0
      %2923 = vmatprep.mubr.f32.mxu0 0.0
      %2924 = vmatmul.mubr.f32.gmra.mrb[0].mxu0 %v1139
      %v2925 = vpop.f32.mrb[0].mxu0
      %v2926 = vadd.f32 0.0, %v2925
      %v2927 = vpop.f32.mrb[0].mxu0
      %2928 = vmatprep.mubr.f32.mxu0 0.0
      %2929 = vmatmul.mubr.f32.gmra.mrb[0].mxu0 %v1141
      %v2930 = vpop.f32.mrb[0].mxu0
      %v2931 = vadd.f32 0.0, %v2930
      %v2932 = vpop.f32.mrb[0].mxu0
      %2933 = vmatprep.mubr.f32.mxu0 0.0
      %2934 = vmatmul.mubr.f32.gmra.mrb[0].mxu0 %v1143
      %v2935 = vpop.f32.mrb[0].mxu0
      %v2936 = vadd.f32 0.0, %v2935
      %v2937 = vpop.f32.mrb[0].mxu0
      %2938 = vmatprep.mubr.f32.mxu0 0.0
      %2939 = vmatmul.mubr.f32.gmra.mrb[0].mxu0 %v1145
      %v2940 = vpop.f32.mrb[0].mxu0
      %v2941 = vadd.f32 0.0, %v2940
      %v2942 = vpop.f32.mrb[0].mxu0
      %2943 = vmatprep.mubr.f32.mxu0 0.0
      %2944 = vmatmul.mubr.f32.gmra.mrb[0].mxu0 %v1147
      %v2945 = vpop.f32.mrb[0].mxu0
      %v2946 = vadd.f32 0.0, %v2945
      %v2947 = vpop.f32.mrb[0].mxu0
      %2948 = vmatprep.mubr.f32.mxu0 0.0
      %2949 = vmatmul.mubr.f32.gmra.mrb[0].mxu0 %v1149
      %v2950 = vpop.f32.mrb[0].mxu0
      %v2951 = vadd.f32 0.0, %v2950
      %v2952 = vpop.f32.mrb[0].mxu0
      %2953 = vmatprep.mubr.f32.mxu0 0.0
      %2954 = vmatmul.mubr.f32.gmra.mrb[0].mxu0 %v1151
      %v2955 = vpop.f32.mrb[0].mxu0
      %v2956 = vadd.f32 0.0, %v2955
      %v2957 = vpop.f32.mrb[0].mxu0
      %2958 = vmatprep.mubr.f32.mxu0 0.0
      %2959 = vmatmul.mubr.f32.gmra.mrb[0].mxu0 %v1153
      %v2960 = vpop.f32.mrb[0].mxu0
      %v2961 = vadd.f32 0.0, %v2960
      %v2962 = vpop.f32.mrb[0].mxu0
      %2963 = vmatprep.mubr.f32.mxu0 0.0
      %2964 = vmatmul.mubr.f32.gmra.mrb[0].mxu0 %v1155
      %v2965 = vpop.f32.mrb[0].mxu0
      %v2966 = vadd.f32 0.0, %v2965
      %v2967 = vpop.f32.mrb[0].mxu0
      %2968 = vmatprep.mubr.f32.mxu0 0.0
      %2969 = vmatmul.mubr.f32.gmra.mrb[0].mxu0 %v1157
      %v2970 = vpop.f32.mrb[0].mxu0
      %v2971 = vadd.f32 0.0, %v2970
      %v2972 = vpop.f32.mrb[0].mxu0
      %2973 = vmatprep.mubr.f32.mxu0 0.0
      %2974 = vmatmul.mubr.f32.gmra.mrb[0].mxu0 %v1159
      %v2975 = vpop.f32.mrb[0].mxu0
      %v2976 = vadd.f32 0.0, %v2975
      %v2977 = vpop.f32.mrb[0].mxu0
      %2978 = vmatprep.mubr.f32.mxu0 0.0
      %2979 = vmatmul.mubr.f32.gmra.mrb[0].mxu0 %v1161
      %v2980 = vpop.f32.mrb[0].mxu0
      %v2981 = vadd.f32 0.0, %v2980
      %v2982 = vpop.f32.mrb[0].mxu0
      %2983 = vmatprep.mubr.f32.mxu0 0.0
      %2984 = vmatmul.mubr.f32.gmra.mrb[0].mxu0 %v1163
      %v2985 = vpop.f32.mrb[0].mxu0
      %v2986 = vadd.f32 0.0, %v2985
      %v2987 = vpop.f32.mrb[0].mxu0
      %2988 = vmatprep.mubr.f32.mxu0 0.0
      %2989 = vmatmul.mubr.f32.gmra.mrb[0].mxu0 %v1165
      %v2990 = vpop.f32.mrb[0].mxu0
      %v2991 = vadd.f32 0.0, %v2990
      %v2992 = vpop.f32.mrb[0].mxu0
      %2993 = vmatprep.mubr.f32.mxu0 0.0
      %2994 = vmatmul.mubr.f32.gmra.mrb[0].mxu0 %v1167
      %v2995 = vpop.f32.mrb[0].mxu0
      %v2996 = vadd.f32 0.0, %v2995
      %v2997 = vpop.f32.mrb[0].mxu0
      %2998 = vmatprep.mubr.f32.mxu0 0.0
      %2999 = vmatmul.mubr.f32.gmra.mrb[0].mxu0 %v1976
      %v3000 = vpop.f32.mrb[0].mxu0
      %v3001 = vadd.f32 0.0, %v3000
      %v3002 = vpop.f32.mrb[0].mxu0
      %3003 = vmatprep.mubr.f32.mxu0 0.0
      %3004 = vmatmul.mubr.f32.gmra.mrb[0].mxu0 %v1978
      %v3005 = vpop.f32.mrb[0].mxu0
      %v3006 = vadd.f32 0.0, %v3005
      %v3007 = vpop.f32.mrb[0].mxu0
      %3008 = vmatprep.mubr.f32.mxu0 0.0
      %3009 = vmatmul.mubr.f32.gmra.mrb[0].mxu0 %v2787
      %v3010 = vpop.f32.mrb[0].mxu0
      %v3011 = vadd.f32 0.0, %v3010
      %v3012 = vpop.f32.mrb[0].mxu0
      %3013 = vmatprep.mubr.f32.mxu0 0.0
      %3014 = vmatmul.mubr.f32.gmra.mrb[0].mxu0 %v2789
      %v3015 = vpop.f32.mrb[0].mxu0
      %v3016 = vadd.f32 0.0, %v3015
      %v3017 = vpop.f32.mrb[0].mxu0
      %3018 = vdwg.mxu0
      %v3019 = vadd.f32 %v2748, %v2861
      %v3020 = vadd.f32 %v2749, %v2866
      %v3021 = vadd.f32 %v2750, %v2871
      %v3022 = vadd.f32 %v2751, %v2876
      %v3023 = vadd.f32 %v2752, %v2881
      %v3024 = vadd.f32 %v2753, %v2886
      %v3025 = vadd.f32 %v2754, %v2891
      %v3026 = vadd.f32 %v2755, %v2896
      %v3027 = vadd.f32 %v2756, %v2901
      %v3028 = vadd.f32 %v2757, %v2906
      %v3029 = vadd.f32 %v2758, %v2911
      %v3030 = vadd.f32 %v2759, %v2916
      %v3031 = vadd.f32 %v2760, %v2921
      %v3032 = vadd.f32 %v2761, %v2926
      %v3033 = vadd.f32 %v2762, %v2931
      %v3034 = vadd.f32 %v2763, %v2936
      %v3035 = vadd.f32 %v2764, %v2941
      %v3036 = vadd.f32 %v2765, %v2946
      %v3037 = vadd.f32 %v2766, %v2951
      %v3038 = vadd.f32 %v2767, %v2956
      %v3039 = vadd.f32 %v2768, %v2961
      %v3040 = vadd.f32 %v2769, %v2966
      %v3041 = vadd.f32 %v2770, %v2971
      %v3042 = vadd.f32 %v2771, %v2976
      %v3043 = vadd.f32 %v2772, %v2981
      %v3044 = vadd.f32 %v2773, %v2986
      %v3045 = vadd.f32 %v2774, %v2991
      %v3046 = vadd.f32 %v2775, %v2996
      %v3047 = vadd.f32 %v2776, %v3001
      %v3048 = vadd.f32 %v2777, %v3006
      %v3049 = vadd.f32 %v2778, %v3011
      %v3050 = vadd.f32 %v2779, %v3016
      %s3051 = sadd.s32 %s20, 1
      %s3052 = smul.u32 %s3051, 432
      %s3053 = scalar_lea.vmem %s232, %s3052
      %v3054 = vld [vmem:[%s3053] sm:$0xff]
      %v3055 = vld [vmem:[%s3053 + $0x8] sm:$0xff]
      %v3056 = vld [vmem:[%s3053 + $0x10] sm:$0x3]
      %v3057 = vld [vmem:[%s3053 + $0x18] sm:$0xff]
      %v3058 = vld [vmem:[%s3053 + $0x20] sm:$0xff]
      %v3059 = vld [vmem:[%s3053 + $0x28] sm:$0x3]
      %v3060 = vld [vmem:[%s3053 + $0x30] sm:$0xff]
      %v3061 = vld [vmem:[%s3053 + $0x38] sm:$0xff]
      %v3062 = vld [vmem:[%s3053 + $0x40] sm:$0x3]
      %v3063 = vld [vmem:[%s3053 + $0x48] sm:$0xff]
      %v3064 = vld [vmem:[%s3053 + $0x50] sm:$0xff]
      %v3065 = vld [vmem:[%s3053 + $0x58] sm:$0x3]
      %v3066 = vld [vmem:[%s3053 + $0x60] sm:$0xff]
      %v3067 = vld [vmem:[%s3053 + $0x68] sm:$0xff]
      %v3068 = vld [vmem:[%s3053 + $0x70] sm:$0x3]
      %v3069 = vld [vmem:[%s3053 + $0x78] sm:$0xff]
      %v3070 = vld [vmem:[%s3053 + $0x80] sm:$0xff]
      %v3071 = vld [vmem:[%s3053 + $0x88] sm:$0x3]
      %v3072 = vld [vmem:[%s3053 + $0x90] sm:$0xff]
      %v3073 = vld [vmem:[%s3053 + $0x98] sm:$0xff]
      %v3074 = vld [vmem:[%s3053 + $0xa0] sm:$0x3]
      %v3075 = vld [vmem:[%s3053 + $0xa8] sm:$0xff]
      %v3076 = vld [vmem:[%s3053 + $0xb0] sm:$0xff]
      %v3077 = vld [vmem:[%s3053 + $0xb8] sm:$0x3]
      %v3078 = vld [vmem:[%s3053 + $0xc0] sm:$0xff]
      %v3079 = vld [vmem:[%s3053 + $0xc8] sm:$0xff]
      %v3080 = vld [vmem:[%s3053 + $0xd0] sm:$0x3]
      %v3081 = vld [vmem:[%s3053 + $0xd8] sm:$0xff]
      %v3082 = vld [vmem:[%s3053 + $0xe0] sm:$0xff]
      %v3083 = vld [vmem:[%s3053 + $0xe8] sm:$0x3]
      %v3084 = vld [vmem:[%s3053 + $0xf0] sm:$0xff]
      %v3085 = vld [vmem:[%s3053 + $0xf8] sm:$0xff]
      %v3086 = vld [vmem:[%s3053 + $0x100] sm:$0x3]
      %v3087 = vld [vmem:[%s3053 + $0x108] sm:$0xff]
      %v3088 = vld [vmem:[%s3053 + $0x110] sm:$0xff]
      %v3089 = vld [vmem:[%s3053 + $0x118] sm:$0x3]
      %v3090 = vld [vmem:[%s3053 + $0x120] sm:$0xff]
      %v3091 = vld [vmem:[%s3053 + $0x128] sm:$0xff]
      %v3092 = vld [vmem:[%s3053 + $0x130] sm:$0x3]
      %v3093 = vld [vmem:[%s3053 + $0x138] sm:$0xff]
      %v3094 = vld [vmem:[%s3053 + $0x140] sm:$0xff]
      %v3095 = vld [vmem:[%s3053 + $0x148] sm:$0x3]
      %v3096 = vld [vmem:[%s3053 + $0x150] sm:$0xff]
      %v3097 = vld [vmem:[%s3053 + $0x158] sm:$0xff]
      %v3098 = vld [vmem:[%s3053 + $0x160] sm:$0x3]
      %v3099 = vld [vmem:[%s3053 + $0x168] sm:$0xff]
      %v3100 = vld [vmem:[%s3053 + $0x170] sm:$0xff]
      %v3101 = vld [vmem:[%s3053 + $0x178] sm:$0x3]
      %v3102 = vld [vmem:[%s3053 + $0x180] sm:$0xff]
      %v3103 = vld [vmem:[%s3053 + $0x188] sm:$0xff]
      %v3104 = vld [vmem:[%s3053 + $0x190] sm:$0x3]
      %v3105 = vld [vmem:[%s3053 + $0x198] sm:$0xff]
      %v3106 = vld [vmem:[%s3053 + $0x1a0] sm:$0xff]
      %v3107 = vld [vmem:[%s3053 + $0x1a8] sm:$0x3]
      %s3108 = scalar_lea.vmem %s1, 36
      %v3109 = vld [vmem:[%s3108] sm:$0xf]
      %v3111 = vsel %vm436, %v3054, 0
      %v3114 = vsel %vm436, %v3055, 0
      %v3117 = vsel %vm436, %v3057, 0
      %v3120 = vsel %vm436, %v3058, 0
      %v3123 = vsel %vm436, %v3060, 0
      %v3126 = vsel %vm436, %v3061, 0
      %v3129 = vsel %vm436, %v3063, 0
      %v3132 = vsel %vm436, %v3064, 0
      %v3135 = vsel %vm436, %v3066, 0
      %v3138 = vsel %vm436, %v3067, 0
      %v3141 = vsel %vm436, %v3069, 0
      %v3144 = vsel %vm436, %v3070, 0
      %v3147 = vsel %vm436, %v3072, 0
      %v3150 = vsel %vm436, %v3073, 0
      %v3153 = vsel %vm436, %v3075, 0
      %v3156 = vsel %vm436, %v3076, 0
      %v3159 = vsel %vm436, %v3078, 0
      %v3162 = vsel %vm436, %v3079, 0
      %v3165 = vsel %vm436, %v3081, 0
      %v3168 = vsel %vm436, %v3082, 0
      %v3171 = vsel %vm436, %v3084, 0
      %v3174 = vsel %vm436, %v3085, 0
      %v3177 = vsel %vm436, %v3087, 0
      %v3180 = vsel %vm436, %v3088, 0
      %v3183 = vsel %vm436, %v3090, 0
      %v3186 = vsel %vm436, %v3091, 0
      %v3189 = vsel %vm436, %v3093, 0
      %v3192 = vsel %vm436, %v3094, 0
      %v3195 = vsel %vm436, %v3096, 0
      %v3198 = vsel %vm436, %v3097, 0
      %v3201 = vsel %vm436, %v3099, 0
      %v3204 = vsel %vm436, %v3100, 0
      %v3207 = vsel %vm501, %v3109, 0
      %3209 = vmatprep.subr.mxu0 0.0
      %3210 = vmatpush1.msra.mxu0 %v3207
      %3211 = vmatprep.subr.mxu0 0.0
      %3212 = vmatpush1.msra.mxu0 0.0
      %3213 = vmatprep.subr.mxu0 0.0
      %3214 = vmatpush1.msra.mxu0 0.0
      %3215 = vmatprep.subr.mxu0 0.0
      %3216 = vmatpush1.msra.mxu0 0.0
      %3217 = vmatprep.subr.mxu0 0.0
      %3218 = vmatpush1.msra.mxu0 0.0
      %3219 = vmatprep.subr.mxu0 0.0
      %3220 = vmatpush1.msra.mxu0 0.0
      %3221 = vmatprep.subr.mxu0 0.0
      %3222 = vmatpush1.msra.mxu0 0.0
      %3223 = vmatprep.subr.mxu0 0.0
      %3224 = vmatpush1.msra.mxu0 0.0
      %3225 = vmatprep.subr.mxu0 0.0
      %3226 = vmatpush1.msra.mxu0 0.0
      %3227 = vmatprep.subr.mxu0 0.0
      %3228 = vmatpush1.msra.mxu0 0.0
      %3229 = vmatprep.subr.mxu0 0.0
      %3230 = vmatpush1.msra.mxu0 0.0
      %3231 = vmatprep.subr.mxu0 0.0
      %3232 = vmatpush1.msra.mxu0 0.0
      %3233 = vmatprep.subr.mxu0 0.0
      %3234 = vmatpush1.msra.mxu0 0.0
      %3235 = vmatprep.subr.mxu0 0.0
      %3236 = vmatpush1.msra.mxu0 0.0
      %3237 = vmatprep.subr.mxu0 0.0
      %3238 = vmatpush1.msra.mxu0 0.0
      %3239 = vmatprep.subr.mxu0 0.0
      %3240 = vmatpush1.msra.mxu0 0.0
      %3241 = vmatprep.subr.mxu0 0.0
      %3242 = vmatpush1.msra.mxu0 0.0
      %3243 = vmatprep.subr.mxu0 0.0
      %3244 = vmatpush1.msra.mxu0 0.0
      %3245 = vmatprep.subr.mxu0 0.0
      %3246 = vmatpush1.msra.mxu0 0.0
      %3247 = vmatprep.subr.mxu0 0.0
      %3248 = vmatpush1.msra.mxu0 0.0
      %3249 = vmatprep.subr.mxu0 0.0
      %3250 = vmatpush1.msra.mxu0 0.0
      %3251 = vmatprep.subr.mxu0 0.0
      %3252 = vmatpush1.msra.mxu0 0.0
      %3253 = vmatprep.subr.mxu0 0.0
      %3254 = vmatpush1.msra.mxu0 0.0
      %3255 = vmatprep.subr.mxu0 0.0
      %3256 = vmatpush1.msra.mxu0 0.0
      %3257 = vmatprep.subr.mxu0 0.0
      %3258 = vmatpush1.msra.mxu0 0.0
      %3259 = vmatprep.subr.mxu0 0.0
      %3260 = vmatpush1.msra.mxu0 0.0
      %3261 = vmatprep.subr.mxu0 0.0
      %3262 = vmatpush1.msra.mxu0 0.0
      %3263 = vmatprep.subr.mxu0 0.0
      %3264 = vmatpush1.msra.mxu0 0.0
      %3265 = vmatprep.subr.mxu0 0.0
      %3266 = vmatpush1.msra.mxu0 0.0
      %3267 = vmatprep.subr.mxu0 0.0
      %3268 = vmatpush1.msra.mxu0 0.0
      %3269 = vmatprep.subr.mxu0 0.0
      %3270 = vmatpush1.msra.mxu0 0.0
      %3271 = vmatprep.subr.mxu0 0.0
      %3272 = vmatpush1.msra.mxu0 0.0
      %3273 = vmatprep.mubr.f32.mxu0 0.0
      %3274 = vmatmul.mubr.f32.gmra.mrb[0].mxu0 %v3111
      %v3275 = vpop.f32.mrb[0].mxu0
      %v3276 = vadd.f32 0.0, %v3275
      %v3277 = vpop.f32.mrb[0].mxu0
      %3278 = vmatprep.mubr.f32.mxu0 0.0
      %3279 = vmatmul.mubr.f32.gmra.mrb[0].mxu0 %v3114
      %v3280 = vpop.f32.mrb[0].mxu0
      %v3281 = vadd.f32 0.0, %v3280
      %v3282 = vpop.f32.mrb[0].mxu0
      %3283 = vmatprep.mubr.f32.mxu0 0.0
      %3284 = vmatmul.mubr.f32.gmra.mrb[0].mxu0 %v3117
      %v3285 = vpop.f32.mrb[0].mxu0
      %v3286 = vadd.f32 0.0, %v3285
      %v3287 = vpop.f32.mrb[0].mxu0
      %3288 = vmatprep.mubr.f32.mxu0 0.0
      %3289 = vmatmul.mubr.f32.gmra.mrb[0].mxu0 %v3120
      %v3290 = vpop.f32.mrb[0].mxu0
      %v3291 = vadd.f32 0.0, %v3290
      %v3292 = vpop.f32.mrb[0].mxu0
      %3293 = vmatprep.mubr.f32.mxu0 0.0
      %3294 = vmatmul.mubr.f32.gmra.mrb[0].mxu0 %v3123
      %v3295 = vpop.f32.mrb[0].mxu0
      %v3296 = vadd.f32 0.0, %v3295
      %v3297 = vpop.f32.mrb[0].mxu0
      %3298 = vmatprep.mubr.f32.mxu0 0.0
      %3299 = vmatmul.mubr.f32.gmra.mrb[0].mxu0 %v3126
      %v3300 = vpop.f32.mrb[0].mxu0
      %v3301 = vadd.f32 0.0, %v3300
      %v3302 = vpop.f32.mrb[0].mxu0
      %3303 = vmatprep.mubr.f32.mxu0 0.0
      %3304 = vmatmul.mubr.f32.gmra.mrb[0].mxu0 %v3129
      %v3305 = vpop.f32.mrb[0].mxu0
      %v3306 = vadd.f32 0.0, %v3305
      %v3307 = vpop.f32.mrb[0].mxu0
      %3308 = vmatprep.mubr.f32.mxu0 0.0
      %3309 = vmatmul.mubr.f32.gmra.mrb[0].mxu0 %v3132
      %v3310 = vpop.f32.mrb[0].mxu0
      %v3311 = vadd.f32 0.0, %v3310
      %v3312 = vpop.f32.mrb[0].mxu0
      %3313 = vmatprep.mubr.f32.mxu0 0.0
      %3314 = vmatmul.mubr.f32.gmra.mrb[0].mxu0 %v3135
      %v3315 = vpop.f32.mrb[0].mxu0
      %v3316 = vadd.f32 0.0, %v3315
      %v3317 = vpop.f32.mrb[0].mxu0
      %3318 = vmatprep.mubr.f32.mxu0 0.0
      %3319 = vmatmul.mubr.f32.gmra.mrb[0].mxu0 %v3138
      %v3320 = vpop.f32.mrb[0].mxu0
      %v3321 = vadd.f32 0.0, %v3320
      %v3322 = vpop.f32.mrb[0].mxu0
      %3323 = vmatprep.mubr.f32.mxu0 0.0
      %3324 = vmatmul.mubr.f32.gmra.mrb[0].mxu0 %v3141
      %v3325 = vpop.f32.mrb[0].mxu0
      %v3326 = vadd.f32 0.0, %v3325
      %v3327 = vpop.f32.mrb[0].mxu0
      %3328 = vmatprep.mubr.f32.mxu0 0.0
      %3329 = vmatmul.mubr.f32.gmra.mrb[0].mxu0 %v3144
      %v3330 = vpop.f32.mrb[0].mxu0
      %v3331 = vadd.f32 0.0, %v3330
      %v3332 = vpop.f32.mrb[0].mxu0
      %3333 = vmatprep.mubr.f32.mxu0 0.0
      %3334 = vmatmul.mubr.f32.gmra.mrb[0].mxu0 %v3147
      %v3335 = vpop.f32.mrb[0].mxu0
      %v3336 = vadd.f32 0.0, %v3335
      %v3337 = vpop.f32.mrb[0].mxu0
      %3338 = vmatprep.mubr.f32.mxu0 0.0
      %3339 = vmatmul.mubr.f32.gmra.mrb[0].mxu0 %v3150
      %v3340 = vpop.f32.mrb[0].mxu0
      %v3341 = vadd.f32 0.0, %v3340
      %v3342 = vpop.f32.mrb[0].mxu0
      %3343 = vmatprep.mubr.f32.mxu0 0.0
      %3344 = vmatmul.mubr.f32.gmra.mrb[0].mxu0 %v3153
      %v3345 = vpop.f32.mrb[0].mxu0
      %v3346 = vadd.f32 0.0, %v3345
      %v3347 = vpop.f32.mrb[0].mxu0
      %3348 = vmatprep.mubr.f32.mxu0 0.0
      %3349 = vmatmul.mubr.f32.gmra.mrb[0].mxu0 %v3156
      %v3350 = vpop.f32.mrb[0].mxu0
      %v3351 = vadd.f32 0.0, %v3350
      %v3352 = vpop.f32.mrb[0].mxu0
      %3353 = vmatprep.mubr.f32.mxu0 0.0
      %3354 = vmatmul.mubr.f32.gmra.mrb[0].mxu0 %v3159
      %v3355 = vpop.f32.mrb[0].mxu0
      %v3356 = vadd.f32 0.0, %v3355
      %v3357 = vpop.f32.mrb[0].mxu0
      %3358 = vmatprep.mubr.f32.mxu0 0.0
      %3359 = vmatmul.mubr.f32.gmra.mrb[0].mxu0 %v3162
      %v3360 = vpop.f32.mrb[0].mxu0
      %v3361 = vadd.f32 0.0, %v3360
      %v3362 = vpop.f32.mrb[0].mxu0
      %3363 = vmatprep.mubr.f32.mxu0 0.0
      %3364 = vmatmul.mubr.f32.gmra.mrb[0].mxu0 %v3165
      %v3365 = vpop.f32.mrb[0].mxu0
      %v3366 = vadd.f32 0.0, %v3365
      %v3367 = vpop.f32.mrb[0].mxu0
      %3368 = vmatprep.mubr.f32.mxu0 0.0
      %3369 = vmatmul.mubr.f32.gmra.mrb[0].mxu0 %v3168
      %v3370 = vpop.f32.mrb[0].mxu0
      %v3371 = vadd.f32 0.0, %v3370
      %v3372 = vpop.f32.mrb[0].mxu0
      %3373 = vmatprep.mubr.f32.mxu0 0.0
      %3374 = vmatmul.mubr.f32.gmra.mrb[0].mxu0 %v3171
      %v3375 = vpop.f32.mrb[0].mxu0
      %v3376 = vadd.f32 0.0, %v3375
      %v3377 = vpop.f32.mrb[0].mxu0
      %3378 = vmatprep.mubr.f32.mxu0 0.0
      %3379 = vmatmul.mubr.f32.gmra.mrb[0].mxu0 %v3174
      %v3380 = vpop.f32.mrb[0].mxu0
      %v3381 = vadd.f32 0.0, %v3380
      %v3382 = vpop.f32.mrb[0].mxu0
      %3383 = vmatprep.mubr.f32.mxu0 0.0
      %3384 = vmatmul.mubr.f32.gmra.mrb[0].mxu0 %v3177
      %v3385 = vpop.f32.mrb[0].mxu0
      %v3386 = vadd.f32 0.0, %v3385
      %v3387 = vpop.f32.mrb[0].mxu0
      %3388 = vmatprep.mubr.f32.mxu0 0.0
      %3389 = vmatmul.mubr.f32.gmra.mrb[0].mxu0 %v3180
      %v3390 = vpop.f32.mrb[0].mxu0
      %v3391 = vadd.f32 0.0, %v3390
      %v3392 = vpop.f32.mrb[0].mxu0
      %3393 = vmatprep.mubr.f32.mxu0 0.0
      %3394 = vmatmul.mubr.f32.gmra.mrb[0].mxu0 %v3183
      %v3395 = vpop.f32.mrb[0].mxu0
      %v3396 = vadd.f32 0.0, %v3395
      %v3397 = vpop.f32.mrb[0].mxu0
      %3398 = vmatprep.mubr.f32.mxu0 0.0
      %3399 = vmatmul.mubr.f32.gmra.mrb[0].mxu0 %v3186
      %v3400 = vpop.f32.mrb[0].mxu0
      %v3401 = vadd.f32 0.0, %v3400
      %v3402 = vpop.f32.mrb[0].mxu0
      %3403 = vmatprep.mubr.f32.mxu0 0.0
      %3404 = vmatmul.mubr.f32.gmra.mrb[0].mxu0 %v3189
      %v3405 = vpop.f32.mrb[0].mxu0
      %v3406 = vadd.f32 0.0, %v3405
      %v3407 = vpop.f32.mrb[0].mxu0
      %3408 = vmatprep.mubr.f32.mxu0 0.0
      %3409 = vmatmul.mubr.f32.gmra.mrb[0].mxu0 %v3192
      %v3410 = vpop.f32.mrb[0].mxu0
      %v3411 = vadd.f32 0.0, %v3410
      %v3412 = vpop.f32.mrb[0].mxu0
      %3413 = vmatprep.mubr.f32.mxu0 0.0
      %3414 = vmatmul.mubr.f32.gmra.mrb[0].mxu0 %v3195
      %v3415 = vpop.f32.mrb[0].mxu0
      %v3416 = vadd.f32 0.0, %v3415
      %v3417 = vpop.f32.mrb[0].mxu0
      %3418 = vmatprep.mubr.f32.mxu0 0.0
      %3419 = vmatmul.mubr.f32.gmra.mrb[0].mxu0 %v3198
      %v3420 = vpop.f32.mrb[0].mxu0
      %v3421 = vadd.f32 0.0, %v3420
      %v3422 = vpop.f32.mrb[0].mxu0
      %3423 = vmatprep.mubr.f32.mxu0 0.0
      %3424 = vmatmul.mubr.f32.gmra.mrb[0].mxu0 %v3201
      %v3425 = vpop.f32.mrb[0].mxu0
      %v3426 = vadd.f32 0.0, %v3425
      %v3427 = vpop.f32.mrb[0].mxu0
      %3428 = vmatprep.mubr.f32.mxu0 0.0
      %3429 = vmatmul.mubr.f32.gmra.mrb[0].mxu0 %v3204
      %v3430 = vpop.f32.mrb[0].mxu0
      %v3431 = vadd.f32 0.0, %v3430
      %v3432 = vpop.f32.mrb[0].mxu0
      %3433 = vdwg.mxu0
      %v3434 = vadd.f32 %v3019, %v3276
      %v3435 = vadd.f32 %v3020, %v3281
      %v3436 = vadd.f32 %v3021, %v3286
      %v3437 = vadd.f32 %v3022, %v3291
      %v3438 = vadd.f32 %v3023, %v3296
      %v3439 = vadd.f32 %v3024, %v3301
      %v3440 = vadd.f32 %v3025, %v3306
      %v3441 = vadd.f32 %v3026, %v3311
      %v3442 = vadd.f32 %v3027, %v3316
      %v3443 = vadd.f32 %v3028, %v3321
      %v3444 = vadd.f32 %v3029, %v3326
      %v3445 = vadd.f32 %v3030, %v3331
      %v3446 = vadd.f32 %v3031, %v3336
      %v3447 = vadd.f32 %v3032, %v3341
      %v3448 = vadd.f32 %v3033, %v3346
      %v3449 = vadd.f32 %v3034, %v3351
      %v3450 = vadd.f32 %v3035, %v3356
      %v3451 = vadd.f32 %v3036, %v3361
      %v3452 = vadd.f32 %v3037, %v3366
      %v3453 = vadd.f32 %v3038, %v3371
      %v3454 = vadd.f32 %v3039, %v3376
      %v3455 = vadd.f32 %v3040, %v3381
      %v3456 = vadd.f32 %v3041, %v3386
      %v3457 = vadd.f32 %v3042, %v3391
      %v3458 = vadd.f32 %v3043, %v3396
      %v3459 = vadd.f32 %v3044, %v3401
      %v3460 = vadd.f32 %v3045, %v3406
      %v3461 = vadd.f32 %v3046, %v3411
      %v3462 = vadd.f32 %v3047, %v3416
      %v3463 = vadd.f32 %v3048, %v3421
      %v3464 = vadd.f32 %v3049, %v3426
      %v3465 = vadd.f32 %v3050, %v3431
      %v3482 = vrot.slane %v3054, 1
      %v3483 = vrot.slane %v3055, 1
      %v3484 = vsel %vm353, %v3482, %v3483
      %v3485 = vrot.slane %v3056, 1
      %v3486 = vsel %vm353, %v3483, %v3485
      %v3487 = vrot.slane %v3057, 1
      %v3488 = vrot.slane %v3058, 1
      %v3489 = vsel %vm353, %v3487, %v3488
      %v3490 = vrot.slane %v3059, 1
      %v3491 = vsel %vm353, %v3488, %v3490
      %v3492 = vrot.slane %v3060, 1
      %v3493 = vrot.slane %v3061, 1
      %v3494 = vsel %vm353, %v3492, %v3493
      %v3495 = vrot.slane %v3062, 1
      %v3496 = vsel %vm353, %v3493, %v3495
      %v3497 = vrot.slane %v3063, 1
      %v3498 = vrot.slane %v3064, 1
      %v3499 = vsel %vm353, %v3497, %v3498
      %v3500 = vrot.slane %v3065, 1
      %v3501 = vsel %vm353, %v3498, %v3500
      %v3502 = vrot.slane %v3066, 1
      %v3503 = vrot.slane %v3067, 1
      %v3504 = vsel %vm353, %v3502, %v3503
      %v3505 = vrot.slane %v3068, 1
      %v3506 = vsel %vm353, %v3503, %v3505
      %v3507 = vrot.slane %v3069, 1
      %v3508 = vrot.slane %v3070, 1
      %v3509 = vsel %vm353, %v3507, %v3508
      %v3510 = vrot.slane %v3071, 1
      %v3511 = vsel %vm353, %v3508, %v3510
      %v3512 = vrot.slane %v3072, 1
      %v3513 = vrot.slane %v3073, 1
      %v3514 = vsel %vm353, %v3512, %v3513
      %v3515 = vrot.slane %v3074, 1
      %v3516 = vsel %vm353, %v3513, %v3515
      %v3517 = vrot.slane %v3075, 1
      %v3518 = vrot.slane %v3076, 1
      %v3519 = vsel %vm353, %v3517, %v3518
      %v3520 = vrot.slane %v3077, 1
      %v3521 = vsel %vm353, %v3518, %v3520
      %v3522 = vrot.slane %v3078, 1
      %v3523 = vrot.slane %v3079, 1
      %v3524 = vsel %vm353, %v3522, %v3523
      %v3525 = vrot.slane %v3080, 1
      %v3526 = vsel %vm353, %v3523, %v3525
      %v3527 = vrot.slane %v3081, 1
      %v3528 = vrot.slane %v3082, 1
      %v3529 = vsel %vm353, %v3527, %v3528
      %v3530 = vrot.slane %v3083, 1
      %v3531 = vsel %vm353, %v3528, %v3530
      %v3532 = vrot.slane %v3084, 1
      %v3533 = vrot.slane %v3085, 1
      %v3534 = vsel %vm353, %v3532, %v3533
      %v3535 = vrot.slane %v3086, 1
      %v3536 = vsel %vm353, %v3533, %v3535
      %v3537 = vrot.slane %v3087, 1
      %v3538 = vrot.slane %v3088, 1
      %v3539 = vsel %vm353, %v3537, %v3538
      %v3540 = vrot.slane %v3089, 1
      %v3541 = vsel %vm353, %v3538, %v3540
      %v3542 = vrot.slane %v3090, 1
      %v3543 = vrot.slane %v3091, 1
      %v3544 = vsel %vm353, %v3542, %v3543
      %v3545 = vrot.slane %v3092, 1
      %v3546 = vsel %vm353, %v3543, %v3545
      %v3547 = vrot.slane %v3093, 1
      %v3548 = vrot.slane %v3094, 1
      %v3549 = vsel %vm353, %v3547, %v3548
      %v3550 = vrot.slane %v3095, 1
      %v3551 = vsel %vm353, %v3548, %v3550
      %v3552 = vrot.slane %v3096, 1
      %v3553 = vrot.slane %v3097, 1
      %v3554 = vsel %vm353, %v3552, %v3553
      %v3555 = vrot.slane %v3098, 1
      %v3556 = vsel %vm353, %v3553, %v3555
      %v3557 = vrot.slane %v3099, 1
      %v3558 = vrot.slane %v3100, 1
      %v3559 = vsel %vm353, %v3557, %v3558
      %v3560 = vrot.slane %v3101, 1
      %v3561 = vsel %vm353, %v3558, %v3560
      %s3562 = scalar_lea.vmem %s1, 40
      %v3563 = vld [vmem:[%s3562] sm:$0xf]
      %v3564 = vsel %vm436, %v3484, 0
      %v3566 = vsel %vm436, %v3486, 0
      %v3568 = vsel %vm436, %v3489, 0
      %v3570 = vsel %vm436, %v3491, 0
      %v3572 = vsel %vm436, %v3494, 0
      %v3574 = vsel %vm436, %v3496, 0
      %v3576 = vsel %vm436, %v3499, 0
      %v3578 = vsel %vm436, %v3501, 0
      %v3580 = vsel %vm436, %v3504, 0
      %v3582 = vsel %vm436, %v3506, 0
      %v3584 = vsel %vm436, %v3509, 0
      %v3586 = vsel %vm436, %v3511, 0
      %v3588 = vsel %vm436, %v3514, 0
      %v3590 = vsel %vm436, %v3516, 0
      %v3592 = vsel %vm436, %v3519, 0
      %v3594 = vsel %vm436, %v3521, 0
      %v3596 = vsel %vm436, %v3524, 0
      %v3598 = vsel %vm436, %v3526, 0
      %v3600 = vsel %vm436, %v3529, 0
      %v3602 = vsel %vm436, %v3531, 0
      %v3604 = vsel %vm436, %v3534, 0
      %v3606 = vsel %vm436, %v3536, 0
      %v3608 = vsel %vm436, %v3539, 0
      %v3610 = vsel %vm436, %v3541, 0
      %v3612 = vsel %vm436, %v3544, 0
      %v3614 = vsel %vm436, %v3546, 0
      %v3616 = vsel %vm436, %v3549, 0
      %v3618 = vsel %vm436, %v3551, 0
      %v3620 = vsel %vm436, %v3554, 0
      %v3622 = vsel %vm436, %v3556, 0
      %v3624 = vsel %vm436, %v3559, 0
      %v3626 = vsel %vm436, %v3561, 0
      %v3629 = vsel %vm501, %v3563, 0
      %3631 = vmatprep.subr.mxu0 0.0
      %3632 = vmatpush1.msra.mxu0 %v3629
      %3633 = vmatprep.subr.mxu0 0.0
      %3634 = vmatpush1.msra.mxu0 0.0
      %3635 = vmatprep.subr.mxu0 0.0
      %3636 = vmatpush1.msra.mxu0 0.0
      %3637 = vmatprep.subr.mxu0 0.0
      %3638 = vmatpush1.msra.mxu0 0.0
      %3639 = vmatprep.subr.mxu0 0.0
      %3640 = vmatpush1.msra.mxu0 0.0
      %3641 = vmatprep.subr.mxu0 0.0
      %3642 = vmatpush1.msra.mxu0 0.0
      %3643 = vmatprep.subr.mxu0 0.0
      %3644 = vmatpush1.msra.mxu0 0.0
      %3645 = vmatprep.subr.mxu0 0.0
      %3646 = vmatpush1.msra.mxu0 0.0
      %3647 = vmatprep.subr.mxu0 0.0
      %3648 = vmatpush1.msra.mxu0 0.0
      %3649 = vmatprep.subr.mxu0 0.0
      %3650 = vmatpush1.msra.mxu0 0.0
      %3651 = vmatprep.subr.mxu0 0.0
      %3652 = vmatpush1.msra.mxu0 0.0
      %3653 = vmatprep.subr.mxu0 0.0
      %3654 = vmatpush1.msra.mxu0 0.0
      %3655 = vmatprep.subr.mxu0 0.0
      %3656 = vmatpush1.msra.mxu0 0.0
      %3657 = vmatprep.subr.mxu0 0.0
      %3658 = vmatpush1.msra.mxu0 0.0
      %3659 = vmatprep.subr.mxu0 0.0
      %3660 = vmatpush1.msra.mxu0 0.0
      %3661 = vmatprep.subr.mxu0 0.0
      %3662 = vmatpush1.msra.mxu0 0.0
      %3663 = vmatprep.subr.mxu0 0.0
      %3664 = vmatpush1.msra.mxu0 0.0
      %3665 = vmatprep.subr.mxu0 0.0
      %3666 = vmatpush1.msra.mxu0 0.0
      %3667 = vmatprep.subr.mxu0 0.0
      %3668 = vmatpush1.msra.mxu0 0.0
      %3669 = vmatprep.subr.mxu0 0.0
      %3670 = vmatpush1.msra.mxu0 0.0
      %3671 = vmatprep.subr.mxu0 0.0
      %3672 = vmatpush1.msra.mxu0 0.0
      %3673 = vmatprep.subr.mxu0 0.0
      %3674 = vmatpush1.msra.mxu0 0.0
      %3675 = vmatprep.subr.mxu0 0.0
      %3676 = vmatpush1.msra.mxu0 0.0
      %3677 = vmatprep.subr.mxu0 0.0
      %3678 = vmatpush1.msra.mxu0 0.0
      %3679 = vmatprep.subr.mxu0 0.0
      %3680 = vmatpush1.msra.mxu0 0.0
      %3681 = vmatprep.subr.mxu0 0.0
      %3682 = vmatpush1.msra.mxu0 0.0
      %3683 = vmatprep.subr.mxu0 0.0
      %3684 = vmatpush1.msra.mxu0 0.0
      %3685 = vmatprep.subr.mxu0 0.0
      %3686 = vmatpush1.msra.mxu0 0.0
      %3687 = vmatprep.subr.mxu0 0.0
      %3688 = vmatpush1.msra.mxu0 0.0
      %3689 = vmatprep.subr.mxu0 0.0
      %3690 = vmatpush1.msra.mxu0 0.0
      %3691 = vmatprep.subr.mxu0 0.0
      %3692 = vmatpush1.msra.mxu0 0.0
      %3693 = vmatprep.subr.mxu0 0.0
      %3694 = vmatpush1.msra.mxu0 0.0
      %3695 = vmatprep.mubr.f32.mxu0 0.0
      %3696 = vmatmul.mubr.f32.gmra.mrb[0].mxu0 %v3564
      %v3697 = vpop.f32.mrb[0].mxu0
      %v3698 = vadd.f32 0.0, %v3697
      %v3699 = vpop.f32.mrb[0].mxu0
      %3700 = vmatprep.mubr.f32.mxu0 0.0
      %3701 = vmatmul.mubr.f32.gmra.mrb[0].mxu0 %v3566
      %v3702 = vpop.f32.mrb[0].mxu0
      %v3703 = vadd.f32 0.0, %v3702
      %v3704 = vpop.f32.mrb[0].mxu0
      %3705 = vmatprep.mubr.f32.mxu0 0.0
      %3706 = vmatmul.mubr.f32.gmra.mrb[0].mxu0 %v3568
      %v3707 = vpop.f32.mrb[0].mxu0
      %v3708 = vadd.f32 0.0, %v3707
      %v3709 = vpop.f32.mrb[0].mxu0
      %3710 = vmatprep.mubr.f32.mxu0 0.0
      %3711 = vmatmul.mubr.f32.gmra.mrb[0].mxu0 %v3570
      %v3712 = vpop.f32.mrb[0].mxu0
      %v3713 = vadd.f32 0.0, %v3712
      %v3714 = vpop.f32.mrb[0].mxu0
      %3715 = vmatprep.mubr.f32.mxu0 0.0
      %3716 = vmatmul.mubr.f32.gmra.mrb[0].mxu0 %v3572
      %v3717 = vpop.f32.mrb[0].mxu0
      %v3718 = vadd.f32 0.0, %v3717
      %v3719 = vpop.f32.mrb[0].mxu0
      %3720 = vmatprep.mubr.f32.mxu0 0.0
      %3721 = vmatmul.mubr.f32.gmra.mrb[0].mxu0 %v3574
      %v3722 = vpop.f32.mrb[0].mxu0
      %v3723 = vadd.f32 0.0, %v3722
      %v3724 = vpop.f32.mrb[0].mxu0
      %3725 = vmatprep.mubr.f32.mxu0 0.0
      %3726 = vmatmul.mubr.f32.gmra.mrb[0].mxu0 %v3576
      %v3727 = vpop.f32.mrb[0].mxu0
      %v3728 = vadd.f32 0.0, %v3727
      %v3729 = vpop.f32.mrb[0].mxu0
      %3730 = vmatprep.mubr.f32.mxu0 0.0
      %3731 = vmatmul.mubr.f32.gmra.mrb[0].mxu0 %v3578
      %v3732 = vpop.f32.mrb[0].mxu0
      %v3733 = vadd.f32 0.0, %v3732
      %v3734 = vpop.f32.mrb[0].mxu0
      %3735 = vmatprep.mubr.f32.mxu0 0.0
      %3736 = vmatmul.mubr.f32.gmra.mrb[0].mxu0 %v3580
      %v3737 = vpop.f32.mrb[0].mxu0
      %v3738 = vadd.f32 0.0, %v3737
      %v3739 = vpop.f32.mrb[0].mxu0
      %3740 = vmatprep.mubr.f32.mxu0 0.0
      %3741 = vmatmul.mubr.f32.gmra.mrb[0].mxu0 %v3582
      %v3742 = vpop.f32.mrb[0].mxu0
      %v3743 = vadd.f32 0.0, %v3742
      %v3744 = vpop.f32.mrb[0].mxu0
      %3745 = vmatprep.mubr.f32.mxu0 0.0
      %3746 = vmatmul.mubr.f32.gmra.mrb[0].mxu0 %v3584
      %v3747 = vpop.f32.mrb[0].mxu0
      %v3748 = vadd.f32 0.0, %v3747
      %v3749 = vpop.f32.mrb[0].mxu0
      %3750 = vmatprep.mubr.f32.mxu0 0.0
      %3751 = vmatmul.mubr.f32.gmra.mrb[0].mxu0 %v3586
      %v3752 = vpop.f32.mrb[0].mxu0
      %v3753 = vadd.f32 0.0, %v3752
      %v3754 = vpop.f32.mrb[0].mxu0
      %3755 = vmatprep.mubr.f32.mxu0 0.0
      %3756 = vmatmul.mubr.f32.gmra.mrb[0].mxu0 %v3588
      %v3757 = vpop.f32.mrb[0].mxu0
      %v3758 = vadd.f32 0.0, %v3757
      %v3759 = vpop.f32.mrb[0].mxu0
      %3760 = vmatprep.mubr.f32.mxu0 0.0
      %3761 = vmatmul.mubr.f32.gmra.mrb[0].mxu0 %v3590
      %v3762 = vpop.f32.mrb[0].mxu0
      %v3763 = vadd.f32 0.0, %v3762
      %v3764 = vpop.f32.mrb[0].mxu0
      %3765 = vmatprep.mubr.f32.mxu0 0.0
      %3766 = vmatmul.mubr.f32.gmra.mrb[0].mxu0 %v3592
      %v3767 = vpop.f32.mrb[0].mxu0
      %v3768 = vadd.f32 0.0, %v3767
      %v3769 = vpop.f32.mrb[0].mxu0
      %3770 = vmatprep.mubr.f32.mxu0 0.0
      %3771 = vmatmul.mubr.f32.gmra.mrb[0].mxu0 %v3594
      %v3772 = vpop.f32.mrb[0].mxu0
      %v3773 = vadd.f32 0.0, %v3772
      %v3774 = vpop.f32.mrb[0].mxu0
      %3775 = vmatprep.mubr.f32.mxu0 0.0
      %3776 = vmatmul.mubr.f32.gmra.mrb[0].mxu0 %v3596
      %v3777 = vpop.f32.mrb[0].mxu0
      %v3778 = vadd.f32 0.0, %v3777
      %v3779 = vpop.f32.mrb[0].mxu0
      %3780 = vmatprep.mubr.f32.mxu0 0.0
      %3781 = vmatmul.mubr.f32.gmra.mrb[0].mxu0 %v3598
      %v3782 = vpop.f32.mrb[0].mxu0
      %v3783 = vadd.f32 0.0, %v3782
      %v3784 = vpop.f32.mrb[0].mxu0
      %3785 = vmatprep.mubr.f32.mxu0 0.0
      %3786 = vmatmul.mubr.f32.gmra.mrb[0].mxu0 %v3600
      %v3787 = vpop.f32.mrb[0].mxu0
      %v3788 = vadd.f32 0.0, %v3787
      %v3789 = vpop.f32.mrb[0].mxu0
      %3790 = vmatprep.mubr.f32.mxu0 0.0
      %3791 = vmatmul.mubr.f32.gmra.mrb[0].mxu0 %v3602
      %v3792 = vpop.f32.mrb[0].mxu0
      %v3793 = vadd.f32 0.0, %v3792
      %v3794 = vpop.f32.mrb[0].mxu0
      %3795 = vmatprep.mubr.f32.mxu0 0.0
      %3796 = vmatmul.mubr.f32.gmra.mrb[0].mxu0 %v3604
      %v3797 = vpop.f32.mrb[0].mxu0
      %v3798 = vadd.f32 0.0, %v3797
      %v3799 = vpop.f32.mrb[0].mxu0
      %3800 = vmatprep.mubr.f32.mxu0 0.0
      %3801 = vmatmul.mubr.f32.gmra.mrb[0].mxu0 %v3606
      %v3802 = vpop.f32.mrb[0].mxu0
      %v3803 = vadd.f32 0.0, %v3802
      %v3804 = vpop.f32.mrb[0].mxu0
      %3805 = vmatprep.mubr.f32.mxu0 0.0
      %3806 = vmatmul.mubr.f32.gmra.mrb[0].mxu0 %v3608
      %v3807 = vpop.f32.mrb[0].mxu0
      %v3808 = vadd.f32 0.0, %v3807
      %v3809 = vpop.f32.mrb[0].mxu0
      %3810 = vmatprep.mubr.f32.mxu0 0.0
      %3811 = vmatmul.mubr.f32.gmra.mrb[0].mxu0 %v3610
      %v3812 = vpop.f32.mrb[0].mxu0
      %v3813 = vadd.f32 0.0, %v3812
      %v3814 = vpop.f32.mrb[0].mxu0
      %3815 = vmatprep.mubr.f32.mxu0 0.0
      %3816 = vmatmul.mubr.f32.gmra.mrb[0].mxu0 %v3612
      %v3817 = vpop.f32.mrb[0].mxu0
      %v3818 = vadd.f32 0.0, %v3817
      %v3819 = vpop.f32.mrb[0].mxu0
      %3820 = vmatprep.mubr.f32.mxu0 0.0
      %3821 = vmatmul.mubr.f32.gmra.mrb[0].mxu0 %v3614
      %v3822 = vpop.f32.mrb[0].mxu0
      %v3823 = vadd.f32 0.0, %v3822
      %v3824 = vpop.f32.mrb[0].mxu0
      %3825 = vmatprep.mubr.f32.mxu0 0.0
      %3826 = vmatmul.mubr.f32.gmra.mrb[0].mxu0 %v3616
      %v3827 = vpop.f32.mrb[0].mxu0
      %v3828 = vadd.f32 0.0, %v3827
      %v3829 = vpop.f32.mrb[0].mxu0
      %3830 = vmatprep.mubr.f32.mxu0 0.0
      %3831 = vmatmul.mubr.f32.gmra.mrb[0].mxu0 %v3618
      %v3832 = vpop.f32.mrb[0].mxu0
      %v3833 = vadd.f32 0.0, %v3832
      %v3834 = vpop.f32.mrb[0].mxu0
      %3835 = vmatprep.mubr.f32.mxu0 0.0
      %3836 = vmatmul.mubr.f32.gmra.mrb[0].mxu0 %v3620
      %v3837 = vpop.f32.mrb[0].mxu0
      %v3838 = vadd.f32 0.0, %v3837
      %v3839 = vpop.f32.mrb[0].mxu0
      %3840 = vmatprep.mubr.f32.mxu0 0.0
      %3841 = vmatmul.mubr.f32.gmra.mrb[0].mxu0 %v3622
      %v3842 = vpop.f32.mrb[0].mxu0
      %v3843 = vadd.f32 0.0, %v3842
      %v3844 = vpop.f32.mrb[0].mxu0
      %3845 = vmatprep.mubr.f32.mxu0 0.0
      %3846 = vmatmul.mubr.f32.gmra.mrb[0].mxu0 %v3624
      %v3847 = vpop.f32.mrb[0].mxu0
      %v3848 = vadd.f32 0.0, %v3847
      %v3849 = vpop.f32.mrb[0].mxu0
      %3850 = vmatprep.mubr.f32.mxu0 0.0
      %3851 = vmatmul.mubr.f32.gmra.mrb[0].mxu0 %v3626
      %v3852 = vpop.f32.mrb[0].mxu0
      %v3853 = vadd.f32 0.0, %v3852
      %v3854 = vpop.f32.mrb[0].mxu0
      %3855 = vdwg.mxu0
      %v3856 = vadd.f32 %v3434, %v3698
      %v3857 = vadd.f32 %v3435, %v3703
      %v3858 = vadd.f32 %v3436, %v3708
      %v3859 = vadd.f32 %v3437, %v3713
      %v3860 = vadd.f32 %v3438, %v3718
      %v3861 = vadd.f32 %v3439, %v3723
      %v3862 = vadd.f32 %v3440, %v3728
      %v3863 = vadd.f32 %v3441, %v3733
      %v3864 = vadd.f32 %v3442, %v3738
      %v3865 = vadd.f32 %v3443, %v3743
      %v3866 = vadd.f32 %v3444, %v3748
      %v3867 = vadd.f32 %v3445, %v3753
      %v3868 = vadd.f32 %v3446, %v3758
      %v3869 = vadd.f32 %v3447, %v3763
      %v3870 = vadd.f32 %v3448, %v3768
      %v3871 = vadd.f32 %v3449, %v3773
      %v3872 = vadd.f32 %v3450, %v3778
      %v3873 = vadd.f32 %v3451, %v3783
      %v3874 = vadd.f32 %v3452, %v3788
      %v3875 = vadd.f32 %v3453, %v3793
      %v3876 = vadd.f32 %v3454, %v3798
      %v3877 = vadd.f32 %v3455, %v3803
      %v3878 = vadd.f32 %v3456, %v3808
      %v3879 = vadd.f32 %v3457, %v3813
      %v3880 = vadd.f32 %v3458, %v3818
      %v3881 = vadd.f32 %v3459, %v3823
      %v3882 = vadd.f32 %v3460, %v3828
      %v3883 = vadd.f32 %v3461, %v3833
      %v3884 = vadd.f32 %v3462, %v3838
      %v3885 = vadd.f32 %v3463, %v3843
      %v3886 = vadd.f32 %v3464, %v3848
      %v3887 = vadd.f32 %v3465, %v3853
      %v3888 = vrot.slane %v3054, 2
      %v3889 = vrot.slane %v3055, 2
      %v3890 = vsel %vm1022, %v3888, %v3889
      %v3891 = vrot.slane %v3056, 2
      %v3892 = vsel %vm1022, %v3889, %v3891
      %v3893 = vrot.slane %v3057, 2
      %v3894 = vrot.slane %v3058, 2
      %v3895 = vsel %vm1022, %v3893, %v3894
      %v3896 = vrot.slane %v3059, 2
      %v3897 = vsel %vm1022, %v3894, %v3896
      %v3898 = vrot.slane %v3060, 2
      %v3899 = vrot.slane %v3061, 2
      %v3900 = vsel %vm1022, %v3898, %v3899
      %v3901 = vrot.slane %v3062, 2
      %v3902 = vsel %vm1022, %v3899, %v3901
      %v3903 = vrot.slane %v3063, 2
      %v3904 = vrot.slane %v3064, 2
      %v3905 = vsel %vm1022, %v3903, %v3904
      %v3906 = vrot.slane %v3065, 2
      %v3907 = vsel %vm1022, %v3904, %v3906
      %v3908 = vrot.slane %v3066, 2
      %v3909 = vrot.slane %v3067, 2
      %v3910 = vsel %vm1022, %v3908, %v3909
      %v3911 = vrot.slane %v3068, 2
      %v3912 = vsel %vm1022, %v3909, %v3911
      %v3913 = vrot.slane %v3069, 2
      %v3914 = vrot.slane %v3070, 2
      %v3915 = vsel %vm1022, %v3913, %v3914
      %v3916 = vrot.slane %v3071, 2
      %v3917 = vsel %vm1022, %v3914, %v3916
      %v3918 = vrot.slane %v3072, 2
      %v3919 = vrot.slane %v3073, 2
      %v3920 = vsel %vm1022, %v3918, %v3919
      %v3921 = vrot.slane %v3074, 2
      %v3922 = vsel %vm1022, %v3919, %v3921
      %v3923 = vrot.slane %v3075, 2
      %v3924 = vrot.slane %v3076, 2
      %v3925 = vsel %vm1022, %v3923, %v3924
      %v3926 = vrot.slane %v3077, 2
      %v3927 = vsel %vm1022, %v3924, %v3926
      %v3928 = vrot.slane %v3078, 2
      %v3929 = vrot.slane %v3079, 2
      %v3930 = vsel %vm1022, %v3928, %v3929
      %v3931 = vrot.slane %v3080, 2
      %v3932 = vsel %vm1022, %v3929, %v3931
      %v3933 = vrot.slane %v3081, 2
      %v3934 = vrot.slane %v3082, 2
      %v3935 = vsel %vm1022, %v3933, %v3934
      %v3936 = vrot.slane %v3083, 2
      %v3937 = vsel %vm1022, %v3934, %v3936
      %v3938 = vrot.slane %v3084, 2
      %v3939 = vrot.slane %v3085, 2
      %v3940 = vsel %vm1022, %v3938, %v3939
      %v3941 = vrot.slane %v3086, 2
      %v3942 = vsel %vm1022, %v3939, %v3941
      %v3943 = vrot.slane %v3087, 2
      %v3944 = vrot.slane %v3088, 2
      %v3945 = vsel %vm1022, %v3943, %v3944
      %v3946 = vrot.slane %v3089, 2
      %v3947 = vsel %vm1022, %v3944, %v3946
      %v3948 = vrot.slane %v3090, 2
      %v3949 = vrot.slane %v3091, 2
      %v3950 = vsel %vm1022, %v3948, %v3949
      %v3951 = vrot.slane %v3092, 2
      %v3952 = vsel %vm1022, %v3949, %v3951
      %v3953 = vrot.slane %v3093, 2
      %v3954 = vrot.slane %v3094, 2
      %v3955 = vsel %vm1022, %v3953, %v3954
      %v3956 = vrot.slane %v3095, 2
      %v3957 = vsel %vm1022, %v3954, %v3956
      %v3958 = vrot.slane %v3096, 2
      %v3959 = vrot.slane %v3097, 2
      %v3960 = vsel %vm1022, %v3958, %v3959
      %v3961 = vrot.slane %v3098, 2
      %v3962 = vsel %vm1022, %v3959, %v3961
      %v3963 = vrot.slane %v3099, 2
      %v3964 = vrot.slane %v3100, 2
      %v3965 = vsel %vm1022, %v3963, %v3964
      %v3966 = vrot.slane %v3101, 2
      %v3967 = vsel %vm1022, %v3964, %v3966
      %s3968 = scalar_lea.vmem %s1, 44
      %v3969 = vld [vmem:[%s3968] sm:$0xf]
      %v3970 = vsel %vm436, %v3890, 0
      %v3972 = vsel %vm436, %v3892, 0
      %v3974 = vsel %vm436, %v3895, 0
      %v3976 = vsel %vm436, %v3897, 0
      %v3978 = vsel %vm436, %v3900, 0
      %v3980 = vsel %vm436, %v3902, 0
      %v3982 = vsel %vm436, %v3905, 0
      %v3984 = vsel %vm436, %v3907, 0
      %v3986 = vsel %vm436, %v3910, 0
      %v3988 = vsel %vm436, %v3912, 0
      %v3990 = vsel %vm436, %v3915, 0
      %v3992 = vsel %vm436, %v3917, 0
      %v3994 = vsel %vm436, %v3920, 0
      %v3996 = vsel %vm436, %v3922, 0
      %v3998 = vsel %vm436, %v3925, 0
      %v4000 = vsel %vm436, %v3927, 0
      %v4002 = vsel %vm436, %v3930, 0
      %v4004 = vsel %vm436, %v3932, 0
      %v4006 = vsel %vm436, %v3935, 0
      %v4008 = vsel %vm436, %v3937, 0
      %v4010 = vsel %vm436, %v3940, 0
      %v4012 = vsel %vm436, %v3942, 0
      %v4014 = vsel %vm436, %v3945, 0
      %v4016 = vsel %vm436, %v3947, 0
      %v4018 = vsel %vm436, %v3950, 0
      %v4020 = vsel %vm436, %v3952, 0
      %v4022 = vsel %vm436, %v3955, 0
      %v4024 = vsel %vm436, %v3957, 0
      %v4026 = vsel %vm436, %v3960, 0
      %v4028 = vsel %vm436, %v3962, 0
      %v4030 = vsel %vm436, %v3965, 0
      %v4032 = vsel %vm436, %v3967, 0
      %v4035 = vsel %vm501, %v3969, 0
      %4037 = vmatprep.subr.mxu0 0.0
      %4038 = vmatpush1.msra.mxu0 %v4035
      %4039 = vmatprep.subr.mxu0 0.0
      %4040 = vmatpush1.msra.mxu0 0.0
      %4041 = vmatprep.subr.mxu0 0.0
      %4042 = vmatpush1.msra.mxu0 0.0
      %4043 = vmatprep.subr.mxu0 0.0
      %4044 = vmatpush1.msra.mxu0 0.0
      %4045 = vmatprep.subr.mxu0 0.0
      %4046 = vmatpush1.msra.mxu0 0.0
      %4047 = vmatprep.subr.mxu0 0.0
      %4048 = vmatpush1.msra.mxu0 0.0
      %4049 = vmatprep.subr.mxu0 0.0
      %4050 = vmatpush1.msra.mxu0 0.0
      %4051 = vmatprep.subr.mxu0 0.0
      %4052 = vmatpush1.msra.mxu0 0.0
      %4053 = vmatprep.subr.mxu0 0.0
      %4054 = vmatpush1.msra.mxu0 0.0
      %4055 = vmatprep.subr.mxu0 0.0
      %4056 = vmatpush1.msra.mxu0 0.0
      %4057 = vmatprep.subr.mxu0 0.0
      %4058 = vmatpush1.msra.mxu0 0.0
      %4059 = vmatprep.subr.mxu0 0.0
      %4060 = vmatpush1.msra.mxu0 0.0
      %4061 = vmatprep.subr.mxu0 0.0
      %4062 = vmatpush1.msra.mxu0 0.0
      %4063 = vmatprep.subr.mxu0 0.0
      %4064 = vmatpush1.msra.mxu0 0.0
      %4065 = vmatprep.subr.mxu0 0.0
      %4066 = vmatpush1.msra.mxu0 0.0
      %4067 = vmatprep.subr.mxu0 0.0
      %4068 = vmatpush1.msra.mxu0 0.0
      %4069 = vmatprep.subr.mxu0 0.0
      %4070 = vmatpush1.msra.mxu0 0.0
      %4071 = vmatprep.subr.mxu0 0.0
      %4072 = vmatpush1.msra.mxu0 0.0
      %4073 = vmatprep.subr.mxu0 0.0
      %4074 = vmatpush1.msra.mxu0 0.0
      %4075 = vmatprep.subr.mxu0 0.0
      %4076 = vmatpush1.msra.mxu0 0.0
      %4077 = vmatprep.subr.mxu0 0.0
      %4078 = vmatpush1.msra.mxu0 0.0
      %4079 = vmatprep.subr.mxu0 0.0
      %4080 = vmatpush1.msra.mxu0 0.0
      %4081 = vmatprep.subr.mxu0 0.0
      %4082 = vmatpush1.msra.mxu0 0.0
      %4083 = vmatprep.subr.mxu0 0.0
      %4084 = vmatpush1.msra.mxu0 0.0
      %4085 = vmatprep.subr.mxu0 0.0
      %4086 = vmatpush1.msra.mxu0 0.0
      %4087 = vmatprep.subr.mxu0 0.0
      %4088 = vmatpush1.msra.mxu0 0.0
      %4089 = vmatprep.subr.mxu0 0.0
      %4090 = vmatpush1.msra.mxu0 0.0
      %4091 = vmatprep.subr.mxu0 0.0
      %4092 = vmatpush1.msra.mxu0 0.0
      %4093 = vmatprep.subr.mxu0 0.0
      %4094 = vmatpush1.msra.mxu0 0.0
      %4095 = vmatprep.subr.mxu0 0.0
      %4096 = vmatpush1.msra.mxu0 0.0
      %4097 = vmatprep.subr.mxu0 0.0
      %4098 = vmatpush1.msra.mxu0 0.0
      %4099 = vmatprep.subr.mxu0 0.0
      %4100 = vmatpush1.msra.mxu0 0.0
      %4101 = vmatprep.mubr.f32.mxu0 0.0
      %4102 = vmatmul.mubr.f32.gmra.mrb[0].mxu0 %v3970
      %v4103 = vpop.f32.mrb[0].mxu0
      %v4104 = vadd.f32 0.0, %v4103
      %v4105 = vpop.f32.mrb[0].mxu0
      %4106 = vmatprep.mubr.f32.mxu0 0.0
      %4107 = vmatmul.mubr.f32.gmra.mrb[0].mxu0 %v3972
      %v4108 = vpop.f32.mrb[0].mxu0
      %v4109 = vadd.f32 0.0, %v4108
      %v4110 = vpop.f32.mrb[0].mxu0
      %4111 = vmatprep.mubr.f32.mxu0 0.0
      %4112 = vmatmul.mubr.f32.gmra.mrb[0].mxu0 %v3974
      %v4113 = vpop.f32.mrb[0].mxu0
      %v4114 = vadd.f32 0.0, %v4113
      %v4115 = vpop.f32.mrb[0].mxu0
      %4116 = vmatprep.mubr.f32.mxu0 0.0
      %4117 = vmatmul.mubr.f32.gmra.mrb[0].mxu0 %v3976
      %v4118 = vpop.f32.mrb[0].mxu0
      %v4119 = vadd.f32 0.0, %v4118
      %v4120 = vpop.f32.mrb[0].mxu0
      %4121 = vmatprep.mubr.f32.mxu0 0.0
      %4122 = vmatmul.mubr.f32.gmra.mrb[0].mxu0 %v3978
      %v4123 = vpop.f32.mrb[0].mxu0
      %v4124 = vadd.f32 0.0, %v4123
      %v4125 = vpop.f32.mrb[0].mxu0
      %4126 = vmatprep.mubr.f32.mxu0 0.0
      %4127 = vmatmul.mubr.f32.gmra.mrb[0].mxu0 %v3980
      %v4128 = vpop.f32.mrb[0].mxu0
      %v4129 = vadd.f32 0.0, %v4128
      %v4130 = vpop.f32.mrb[0].mxu0
      %4131 = vmatprep.mubr.f32.mxu0 0.0
      %4132 = vmatmul.mubr.f32.gmra.mrb[0].mxu0 %v3982
      %v4133 = vpop.f32.mrb[0].mxu0
      %v4134 = vadd.f32 0.0, %v4133
      %v4135 = vpop.f32.mrb[0].mxu0
      %4136 = vmatprep.mubr.f32.mxu0 0.0
      %4137 = vmatmul.mubr.f32.gmra.mrb[0].mxu0 %v3984
      %v4138 = vpop.f32.mrb[0].mxu0
      %v4139 = vadd.f32 0.0, %v4138
      %v4140 = vpop.f32.mrb[0].mxu0
      %4141 = vmatprep.mubr.f32.mxu0 0.0
      %4142 = vmatmul.mubr.f32.gmra.mrb[0].mxu0 %v3986
      %v4143 = vpop.f32.mrb[0].mxu0
      %v4144 = vadd.f32 0.0, %v4143
      %v4145 = vpop.f32.mrb[0].mxu0
      %4146 = vmatprep.mubr.f32.mxu0 0.0
      %4147 = vmatmul.mubr.f32.gmra.mrb[0].mxu0 %v3988
      %v4148 = vpop.f32.mrb[0].mxu0
      %v4149 = vadd.f32 0.0, %v4148
      %v4150 = vpop.f32.mrb[0].mxu0
      %4151 = vmatprep.mubr.f32.mxu0 0.0
      %4152 = vmatmul.mubr.f32.gmra.mrb[0].mxu0 %v3990
      %v4153 = vpop.f32.mrb[0].mxu0
      %v4154 = vadd.f32 0.0, %v4153
      %v4155 = vpop.f32.mrb[0].mxu0
      %4156 = vmatprep.mubr.f32.mxu0 0.0
      %4157 = vmatmul.mubr.f32.gmra.mrb[0].mxu0 %v3992
      %v4158 = vpop.f32.mrb[0].mxu0
      %v4159 = vadd.f32 0.0, %v4158
      %v4160 = vpop.f32.mrb[0].mxu0
      %4161 = vmatprep.mubr.f32.mxu0 0.0
      %4162 = vmatmul.mubr.f32.gmra.mrb[0].mxu0 %v3994
      %v4163 = vpop.f32.mrb[0].mxu0
      %v4164 = vadd.f32 0.0, %v4163
      %v4165 = vpop.f32.mrb[0].mxu0
      %4166 = vmatprep.mubr.f32.mxu0 0.0
      %4167 = vmatmul.mubr.f32.gmra.mrb[0].mxu0 %v3996
      %v4168 = vpop.f32.mrb[0].mxu0
      %v4169 = vadd.f32 0.0, %v4168
      %v4170 = vpop.f32.mrb[0].mxu0
      %4171 = vmatprep.mubr.f32.mxu0 0.0
      %4172 = vmatmul.mubr.f32.gmra.mrb[0].mxu0 %v3998
      %v4173 = vpop.f32.mrb[0].mxu0
      %v4174 = vadd.f32 0.0, %v4173
      %v4175 = vpop.f32.mrb[0].mxu0
      %4176 = vmatprep.mubr.f32.mxu0 0.0
      %4177 = vmatmul.mubr.f32.gmra.mrb[0].mxu0 %v4000
      %v4178 = vpop.f32.mrb[0].mxu0
      %v4179 = vadd.f32 0.0, %v4178
      %v4180 = vpop.f32.mrb[0].mxu0
      %4181 = vmatprep.mubr.f32.mxu0 0.0
      %4182 = vmatmul.mubr.f32.gmra.mrb[0].mxu0 %v4002
      %v4183 = vpop.f32.mrb[0].mxu0
      %v4184 = vadd.f32 0.0, %v4183
      %v4185 = vpop.f32.mrb[0].mxu0
      %4186 = vmatprep.mubr.f32.mxu0 0.0
      %4187 = vmatmul.mubr.f32.gmra.mrb[0].mxu0 %v4004
      %v4188 = vpop.f32.mrb[0].mxu0
      %v4189 = vadd.f32 0.0, %v4188
      %v4190 = vpop.f32.mrb[0].mxu0
      %4191 = vmatprep.mubr.f32.mxu0 0.0
      %4192 = vmatmul.mubr.f32.gmra.mrb[0].mxu0 %v4006
      %v4193 = vpop.f32.mrb[0].mxu0
      %v4194 = vadd.f32 0.0, %v4193
      %v4195 = vpop.f32.mrb[0].mxu0
      %4196 = vmatprep.mubr.f32.mxu0 0.0
      %4197 = vmatmul.mubr.f32.gmra.mrb[0].mxu0 %v4008
      %v4198 = vpop.f32.mrb[0].mxu0
      %v4199 = vadd.f32 0.0, %v4198
      %v4200 = vpop.f32.mrb[0].mxu0
      %4201 = vmatprep.mubr.f32.mxu0 0.0
      %4202 = vmatmul.mubr.f32.gmra.mrb[0].mxu0 %v4010
      %v4203 = vpop.f32.mrb[0].mxu0
      %v4204 = vadd.f32 0.0, %v4203
      %v4205 = vpop.f32.mrb[0].mxu0
      %4206 = vmatprep.mubr.f32.mxu0 0.0
      %4207 = vmatmul.mubr.f32.gmra.mrb[0].mxu0 %v4012
      %v4208 = vpop.f32.mrb[0].mxu0
      %v4209 = vadd.f32 0.0, %v4208
      %v4210 = vpop.f32.mrb[0].mxu0
      %4211 = vmatprep.mubr.f32.mxu0 0.0
      %4212 = vmatmul.mubr.f32.gmra.mrb[0].mxu0 %v4014
      %v4213 = vpop.f32.mrb[0].mxu0
      %v4214 = vadd.f32 0.0, %v4213
      %v4215 = vpop.f32.mrb[0].mxu0
      %4216 = vmatprep.mubr.f32.mxu0 0.0
      %4217 = vmatmul.mubr.f32.gmra.mrb[0].mxu0 %v4016
      %v4218 = vpop.f32.mrb[0].mxu0
      %v4219 = vadd.f32 0.0, %v4218
      %v4220 = vpop.f32.mrb[0].mxu0
      %4221 = vmatprep.mubr.f32.mxu0 0.0
      %4222 = vmatmul.mubr.f32.gmra.mrb[0].mxu0 %v4018
      %v4223 = vpop.f32.mrb[0].mxu0
      %v4224 = vadd.f32 0.0, %v4223
      %v4225 = vpop.f32.mrb[0].mxu0
      %4226 = vmatprep.mubr.f32.mxu0 0.0
      %4227 = vmatmul.mubr.f32.gmra.mrb[0].mxu0 %v4020
      %v4228 = vpop.f32.mrb[0].mxu0
      %v4229 = vadd.f32 0.0, %v4228
      %v4230 = vpop.f32.mrb[0].mxu0
      %4231 = vmatprep.mubr.f32.mxu0 0.0
      %4232 = vmatmul.mubr.f32.gmra.mrb[0].mxu0 %v4022
      %v4233 = vpop.f32.mrb[0].mxu0
      %v4234 = vadd.f32 0.0, %v4233
      %v4235 = vpop.f32.mrb[0].mxu0
      %4236 = vmatprep.mubr.f32.mxu0 0.0
      %4237 = vmatmul.mubr.f32.gmra.mrb[0].mxu0 %v4024
      %v4238 = vpop.f32.mrb[0].mxu0
      %v4239 = vadd.f32 0.0, %v4238
      %v4240 = vpop.f32.mrb[0].mxu0
      %4241 = vmatprep.mubr.f32.mxu0 0.0
      %4242 = vmatmul.mubr.f32.gmra.mrb[0].mxu0 %v4026
      %v4243 = vpop.f32.mrb[0].mxu0
      %v4244 = vadd.f32 0.0, %v4243
      %v4245 = vpop.f32.mrb[0].mxu0
      %4246 = vmatprep.mubr.f32.mxu0 0.0
      %4247 = vmatmul.mubr.f32.gmra.mrb[0].mxu0 %v4028
      %v4248 = vpop.f32.mrb[0].mxu0
      %v4249 = vadd.f32 0.0, %v4248
      %v4250 = vpop.f32.mrb[0].mxu0
      %4251 = vmatprep.mubr.f32.mxu0 0.0
      %4252 = vmatmul.mubr.f32.gmra.mrb[0].mxu0 %v4030
      %v4253 = vpop.f32.mrb[0].mxu0
      %v4254 = vadd.f32 0.0, %v4253
      %v4255 = vpop.f32.mrb[0].mxu0
      %4256 = vmatprep.mubr.f32.mxu0 0.0
      %4257 = vmatmul.mubr.f32.gmra.mrb[0].mxu0 %v4032
      %v4258 = vpop.f32.mrb[0].mxu0
      %v4259 = vadd.f32 0.0, %v4258
      %v4260 = vpop.f32.mrb[0].mxu0
      %4261 = vdwg.mxu0
      %v4262 = vadd.f32 %v3856, %v4104
      %v4263 = vadd.f32 %v3857, %v4109
      %v4264 = vadd.f32 %v3858, %v4114
      %v4265 = vadd.f32 %v3859, %v4119
      %v4266 = vadd.f32 %v3860, %v4124
      %v4267 = vadd.f32 %v3861, %v4129
      %v4268 = vadd.f32 %v3862, %v4134
      %v4269 = vadd.f32 %v3863, %v4139
      %v4270 = vadd.f32 %v3864, %v4144
      %v4271 = vadd.f32 %v3865, %v4149
      %v4272 = vadd.f32 %v3866, %v4154
      %v4273 = vadd.f32 %v3867, %v4159
      %v4274 = vadd.f32 %v3868, %v4164
      %v4275 = vadd.f32 %v3869, %v4169
      %v4276 = vadd.f32 %v3870, %v4174
      %v4277 = vadd.f32 %v3871, %v4179
      %v4278 = vadd.f32 %v3872, %v4184
      %v4279 = vadd.f32 %v3873, %v4189
      %v4280 = vadd.f32 %v3874, %v4194
      %v4281 = vadd.f32 %v3875, %v4199
      %v4282 = vadd.f32 %v3876, %v4204
      %v4283 = vadd.f32 %v3877, %v4209
      %v4284 = vadd.f32 %v3878, %v4214
      %v4285 = vadd.f32 %v3879, %v4219
      %v4286 = vadd.f32 %v3880, %v4224
      %v4287 = vadd.f32 %v3881, %v4229
      %v4288 = vadd.f32 %v3882, %v4234
      %v4289 = vadd.f32 %v3883, %v4239
      %v4290 = vadd.f32 %v3884, %v4244
      %v4291 = vadd.f32 %v3885, %v4249
      %v4292 = vadd.f32 %v3886, %v4254
      %v4293 = vadd.f32 %v3887, %v4259
      %s4294 = scalar_lea.vmem %s1, 48
      %v4295 = vld [vmem:[%s4294] sm:$0xf]
      %v4297 = vsel %vm436, %v3102, 0
      %v4300 = vsel %vm436, %v3103, 0
      %v4303 = vsel %vm501, %v4295, 0
      %4305 = vmatprep.subr.mxu0 0.0
      %4306 = vmatpush1.msra.mxu0 %v4303
      %4307 = vmatprep.subr.mxu0 0.0
      %4308 = vmatpush1.msra.mxu0 0.0
      %4309 = vmatprep.subr.mxu0 0.0
      %4310 = vmatpush1.msra.mxu0 0.0
      %4311 = vmatprep.subr.mxu0 0.0
      %4312 = vmatpush1.msra.mxu0 0.0
      %4313 = vmatprep.subr.mxu0 0.0
      %4314 = vmatpush1.msra.mxu0 0.0
      %4315 = vmatprep.subr.mxu0 0.0
      %4316 = vmatpush1.msra.mxu0 0.0
      %4317 = vmatprep.subr.mxu0 0.0
      %4318 = vmatpush1.msra.mxu0 0.0
      %4319 = vmatprep.subr.mxu0 0.0
      %4320 = vmatpush1.msra.mxu0 0.0
      %4321 = vmatprep.subr.mxu0 0.0
      %4322 = vmatpush1.msra.mxu0 0.0
      %4323 = vmatprep.subr.mxu0 0.0
      %4324 = vmatpush1.msra.mxu0 0.0
      %4325 = vmatprep.subr.mxu0 0.0
      %4326 = vmatpush1.msra.mxu0 0.0
      %4327 = vmatprep.subr.mxu0 0.0
      %4328 = vmatpush1.msra.mxu0 0.0
      %4329 = vmatprep.subr.mxu0 0.0
      %4330 = vmatpush1.msra.mxu0 0.0
      %4331 = vmatprep.subr.mxu0 0.0
      %4332 = vmatpush1.msra.mxu0 0.0
      %4333 = vmatprep.subr.mxu0 0.0
      %4334 = vmatpush1.msra.mxu0 0.0
      %4335 = vmatprep.subr.mxu0 0.0
      %4336 = vmatpush1.msra.mxu0 0.0
      %4337 = vmatprep.subr.mxu0 0.0
      %4338 = vmatpush1.msra.mxu0 0.0
      %4339 = vmatprep.subr.mxu0 0.0
      %4340 = vmatpush1.msra.mxu0 0.0
      %4341 = vmatprep.subr.mxu0 0.0
      %4342 = vmatpush1.msra.mxu0 0.0
      %4343 = vmatprep.subr.mxu0 0.0
      %4344 = vmatpush1.msra.mxu0 0.0
      %4345 = vmatprep.subr.mxu0 0.0
      %4346 = vmatpush1.msra.mxu0 0.0
      %4347 = vmatprep.subr.mxu0 0.0
      %4348 = vmatpush1.msra.mxu0 0.0
      %4349 = vmatprep.subr.mxu0 0.0
      %4350 = vmatpush1.msra.mxu0 0.0
      %4351 = vmatprep.subr.mxu0 0.0
      %4352 = vmatpush1.msra.mxu0 0.0
      %4353 = vmatprep.subr.mxu0 0.0
      %4354 = vmatpush1.msra.mxu0 0.0
      %4355 = vmatprep.subr.mxu0 0.0
      %4356 = vmatpush1.msra.mxu0 0.0
      %4357 = vmatprep.subr.mxu0 0.0
      %4358 = vmatpush1.msra.mxu0 0.0
      %4359 = vmatprep.subr.mxu0 0.0
      %4360 = vmatpush1.msra.mxu0 0.0
      %4361 = vmatprep.subr.mxu0 0.0
      %4362 = vmatpush1.msra.mxu0 0.0
      %4363 = vmatprep.subr.mxu0 0.0
      %4364 = vmatpush1.msra.mxu0 0.0
      %4365 = vmatprep.subr.mxu0 0.0
      %4366 = vmatpush1.msra.mxu0 0.0
      %4367 = vmatprep.subr.mxu0 0.0
      %4368 = vmatpush1.msra.mxu0 0.0
      %4369 = vmatprep.mubr.f32.mxu0 0.0
      %4370 = vmatmul.mubr.f32.gmra.mrb[0].mxu0 %v3117
      %v4371 = vpop.f32.mrb[0].mxu0
      %v4372 = vadd.f32 0.0, %v4371
      %v4373 = vpop.f32.mrb[0].mxu0
      %4374 = vmatprep.mubr.f32.mxu0 0.0
      %4375 = vmatmul.mubr.f32.gmra.mrb[0].mxu0 %v3120
      %v4376 = vpop.f32.mrb[0].mxu0
      %v4377 = vadd.f32 0.0, %v4376
      %v4378 = vpop.f32.mrb[0].mxu0
      %4379 = vmatprep.mubr.f32.mxu0 0.0
      %4380 = vmatmul.mubr.f32.gmra.mrb[0].mxu0 %v3123
      %v4381 = vpop.f32.mrb[0].mxu0
      %v4382 = vadd.f32 0.0, %v4381
      %v4383 = vpop.f32.mrb[0].mxu0
      %4384 = vmatprep.mubr.f32.mxu0 0.0
      %4385 = vmatmul.mubr.f32.gmra.mrb[0].mxu0 %v3126
      %v4386 = vpop.f32.mrb[0].mxu0
      %v4387 = vadd.f32 0.0, %v4386
      %v4388 = vpop.f32.mrb[0].mxu0
      %4389 = vmatprep.mubr.f32.mxu0 0.0
      %4390 = vmatmul.mubr.f32.gmra.mrb[0].mxu0 %v3129
      %v4391 = vpop.f32.mrb[0].mxu0
      %v4392 = vadd.f32 0.0, %v4391
      %v4393 = vpop.f32.mrb[0].mxu0
      %4394 = vmatprep.mubr.f32.mxu0 0.0
      %4395 = vmatmul.mubr.f32.gmra.mrb[0].mxu0 %v3132
      %v4396 = vpop.f32.mrb[0].mxu0
      %v4397 = vadd.f32 0.0, %v4396
      %v4398 = vpop.f32.mrb[0].mxu0
      %4399 = vmatprep.mubr.f32.mxu0 0.0
      %4400 = vmatmul.mubr.f32.gmra.mrb[0].mxu0 %v3135
      %v4401 = vpop.f32.mrb[0].mxu0
      %v4402 = vadd.f32 0.0, %v4401
      %v4403 = vpop.f32.mrb[0].mxu0
      %4404 = vmatprep.mubr.f32.mxu0 0.0
      %4405 = vmatmul.mubr.f32.gmra.mrb[0].mxu0 %v3138
      %v4406 = vpop.f32.mrb[0].mxu0
      %v4407 = vadd.f32 0.0, %v4406
      %v4408 = vpop.f32.mrb[0].mxu0
      %4409 = vmatprep.mubr.f32.mxu0 0.0
      %4410 = vmatmul.mubr.f32.gmra.mrb[0].mxu0 %v3141
      %v4411 = vpop.f32.mrb[0].mxu0
      %v4412 = vadd.f32 0.0, %v4411
      %v4413 = vpop.f32.mrb[0].mxu0
      %4414 = vmatprep.mubr.f32.mxu0 0.0
      %4415 = vmatmul.mubr.f32.gmra.mrb[0].mxu0 %v3144
      %v4416 = vpop.f32.mrb[0].mxu0
      %v4417 = vadd.f32 0.0, %v4416
      %v4418 = vpop.f32.mrb[0].mxu0
      %4419 = vmatprep.mubr.f32.mxu0 0.0
      %4420 = vmatmul.mubr.f32.gmra.mrb[0].mxu0 %v3147
      %v4421 = vpop.f32.mrb[0].mxu0
      %v4422 = vadd.f32 0.0, %v4421
      %v4423 = vpop.f32.mrb[0].mxu0
      %4424 = vmatprep.mubr.f32.mxu0 0.0
      %4425 = vmatmul.mubr.f32.gmra.mrb[0].mxu0 %v3150
      %v4426 = vpop.f32.mrb[0].mxu0
      %v4427 = vadd.f32 0.0, %v4426
      %v4428 = vpop.f32.mrb[0].mxu0
      %4429 = vmatprep.mubr.f32.mxu0 0.0
      %4430 = vmatmul.mubr.f32.gmra.mrb[0].mxu0 %v3153
      %v4431 = vpop.f32.mrb[0].mxu0
      %v4432 = vadd.f32 0.0, %v4431
      %v4433 = vpop.f32.mrb[0].mxu0
      %4434 = vmatprep.mubr.f32.mxu0 0.0
      %4435 = vmatmul.mubr.f32.gmra.mrb[0].mxu0 %v3156
      %v4436 = vpop.f32.mrb[0].mxu0
      %v4437 = vadd.f32 0.0, %v4436
      %v4438 = vpop.f32.mrb[0].mxu0
      %4439 = vmatprep.mubr.f32.mxu0 0.0
      %4440 = vmatmul.mubr.f32.gmra.mrb[0].mxu0 %v3159
      %v4441 = vpop.f32.mrb[0].mxu0
      %v4442 = vadd.f32 0.0, %v4441
      %v4443 = vpop.f32.mrb[0].mxu0
      %4444 = vmatprep.mubr.f32.mxu0 0.0
      %4445 = vmatmul.mubr.f32.gmra.mrb[0].mxu0 %v3162
      %v4446 = vpop.f32.mrb[0].mxu0
      %v4447 = vadd.f32 0.0, %v4446
      %v4448 = vpop.f32.mrb[0].mxu0
      %4449 = vmatprep.mubr.f32.mxu0 0.0
      %4450 = vmatmul.mubr.f32.gmra.mrb[0].mxu0 %v3165
      %v4451 = vpop.f32.mrb[0].mxu0
      %v4452 = vadd.f32 0.0, %v4451
      %v4453 = vpop.f32.mrb[0].mxu0
      %4454 = vmatprep.mubr.f32.mxu0 0.0
      %4455 = vmatmul.mubr.f32.gmra.mrb[0].mxu0 %v3168
      %v4456 = vpop.f32.mrb[0].mxu0
      %v4457 = vadd.f32 0.0, %v4456
      %v4458 = vpop.f32.mrb[0].mxu0
      %4459 = vmatprep.mubr.f32.mxu0 0.0
      %4460 = vmatmul.mubr.f32.gmra.mrb[0].mxu0 %v3171
      %v4461 = vpop.f32.mrb[0].mxu0
      %v4462 = vadd.f32 0.0, %v4461
      %v4463 = vpop.f32.mrb[0].mxu0
      %4464 = vmatprep.mubr.f32.mxu0 0.0
      %4465 = vmatmul.mubr.f32.gmra.mrb[0].mxu0 %v3174
      %v4466 = vpop.f32.mrb[0].mxu0
      %v4467 = vadd.f32 0.0, %v4466
      %v4468 = vpop.f32.mrb[0].mxu0
      %4469 = vmatprep.mubr.f32.mxu0 0.0
      %4470 = vmatmul.mubr.f32.gmra.mrb[0].mxu0 %v3177
      %v4471 = vpop.f32.mrb[0].mxu0
      %v4472 = vadd.f32 0.0, %v4471
      %v4473 = vpop.f32.mrb[0].mxu0
      %4474 = vmatprep.mubr.f32.mxu0 0.0
      %4475 = vmatmul.mubr.f32.gmra.mrb[0].mxu0 %v3180
      %v4476 = vpop.f32.mrb[0].mxu0
      %v4477 = vadd.f32 0.0, %v4476
      %v4478 = vpop.f32.mrb[0].mxu0
      %4479 = vmatprep.mubr.f32.mxu0 0.0
      %4480 = vmatmul.mubr.f32.gmra.mrb[0].mxu0 %v3183
      %v4481 = vpop.f32.mrb[0].mxu0
      %v4482 = vadd.f32 0.0, %v4481
      %v4483 = vpop.f32.mrb[0].mxu0
      %4484 = vmatprep.mubr.f32.mxu0 0.0
      %4485 = vmatmul.mubr.f32.gmra.mrb[0].mxu0 %v3186
      %v4486 = vpop.f32.mrb[0].mxu0
      %v4487 = vadd.f32 0.0, %v4486
      %v4488 = vpop.f32.mrb[0].mxu0
      %4489 = vmatprep.mubr.f32.mxu0 0.0
      %4490 = vmatmul.mubr.f32.gmra.mrb[0].mxu0 %v3189
      %v4491 = vpop.f32.mrb[0].mxu0
      %v4492 = vadd.f32 0.0, %v4491
      %v4493 = vpop.f32.mrb[0].mxu0
      %4494 = vmatprep.mubr.f32.mxu0 0.0
      %4495 = vmatmul.mubr.f32.gmra.mrb[0].mxu0 %v3192
      %v4496 = vpop.f32.mrb[0].mxu0
      %v4497 = vadd.f32 0.0, %v4496
      %v4498 = vpop.f32.mrb[0].mxu0
      %4499 = vmatprep.mubr.f32.mxu0 0.0
      %4500 = vmatmul.mubr.f32.gmra.mrb[0].mxu0 %v3195
      %v4501 = vpop.f32.mrb[0].mxu0
      %v4502 = vadd.f32 0.0, %v4501
      %v4503 = vpop.f32.mrb[0].mxu0
      %4504 = vmatprep.mubr.f32.mxu0 0.0
      %4505 = vmatmul.mubr.f32.gmra.mrb[0].mxu0 %v3198
      %v4506 = vpop.f32.mrb[0].mxu0
      %v4507 = vadd.f32 0.0, %v4506
      %v4508 = vpop.f32.mrb[0].mxu0
      %4509 = vmatprep.mubr.f32.mxu0 0.0
      %4510 = vmatmul.mubr.f32.gmra.mrb[0].mxu0 %v3201
      %v4511 = vpop.f32.mrb[0].mxu0
      %v4512 = vadd.f32 0.0, %v4511
      %v4513 = vpop.f32.mrb[0].mxu0
      %4514 = vmatprep.mubr.f32.mxu0 0.0
      %4515 = vmatmul.mubr.f32.gmra.mrb[0].mxu0 %v3204
      %v4516 = vpop.f32.mrb[0].mxu0
      %v4517 = vadd.f32 0.0, %v4516
      %v4518 = vpop.f32.mrb[0].mxu0
      %4519 = vmatprep.mubr.f32.mxu0 0.0
      %4520 = vmatmul.mubr.f32.gmra.mrb[0].mxu0 %v4297
      %v4521 = vpop.f32.mrb[0].mxu0
      %v4522 = vadd.f32 0.0, %v4521
      %v4523 = vpop.f32.mrb[0].mxu0
      %4524 = vmatprep.mubr.f32.mxu0 0.0
      %4525 = vmatmul.mubr.f32.gmra.mrb[0].mxu0 %v4300
      %v4526 = vpop.f32.mrb[0].mxu0
      %v4527 = vadd.f32 0.0, %v4526
      %v4528 = vpop.f32.mrb[0].mxu0
      %4529 = vdwg.mxu0
      %v4530 = vadd.f32 %v4262, %v4372
      %v4531 = vadd.f32 %v4263, %v4377
      %v4532 = vadd.f32 %v4264, %v4382
      %v4533 = vadd.f32 %v4265, %v4387
      %v4534 = vadd.f32 %v4266, %v4392
      %v4535 = vadd.f32 %v4267, %v4397
      %v4536 = vadd.f32 %v4268, %v4402
      %v4537 = vadd.f32 %v4269, %v4407
      %v4538 = vadd.f32 %v4270, %v4412
      %v4539 = vadd.f32 %v4271, %v4417
      %v4540 = vadd.f32 %v4272, %v4422
      %v4541 = vadd.f32 %v4273, %v4427
      %v4542 = vadd.f32 %v4274, %v4432
      %v4543 = vadd.f32 %v4275, %v4437
      %v4544 = vadd.f32 %v4276, %v4442
      %v4545 = vadd.f32 %v4277, %v4447
      %v4546 = vadd.f32 %v4278, %v4452
      %v4547 = vadd.f32 %v4279, %v4457
      %v4548 = vadd.f32 %v4280, %v4462
      %v4549 = vadd.f32 %v4281, %v4467
      %v4550 = vadd.f32 %v4282, %v4472
      %v4551 = vadd.f32 %v4283, %v4477
      %v4552 = vadd.f32 %v4284, %v4482
      %v4553 = vadd.f32 %v4285, %v4487
      %v4554 = vadd.f32 %v4286, %v4492
      %v4555 = vadd.f32 %v4287, %v4497
      %v4556 = vadd.f32 %v4288, %v4502
      %v4557 = vadd.f32 %v4289, %v4507
      %v4558 = vadd.f32 %v4290, %v4512
      %v4559 = vadd.f32 %v4291, %v4517
      %v4560 = vadd.f32 %v4292, %v4522
      %v4561 = vadd.f32 %v4293, %v4527
      %v4563 = vrot.slane %v3102, 1
      %v4564 = vrot.slane %v3103, 1
      %v4565 = vsel %vm353, %v4563, %v4564
      %v4566 = vrot.slane %v3104, 1
      %v4567 = vsel %vm353, %v4564, %v4566
      %s4568 = scalar_lea.vmem %s1, 52
      %v4569 = vld [vmem:[%s4568] sm:$0xf]
      %v4570 = vsel %vm436, %v4565, 0
      %v4572 = vsel %vm436, %v4567, 0
      %v4575 = vsel %vm501, %v4569, 0
      %4577 = vmatprep.subr.mxu0 0.0
      %4578 = vmatpush1.msra.mxu0 %v4575
      %4579 = vmatprep.subr.mxu0 0.0
      %4580 = vmatpush1.msra.mxu0 0.0
      %4581 = vmatprep.subr.mxu0 0.0
      %4582 = vmatpush1.msra.mxu0 0.0
      %4583 = vmatprep.subr.mxu0 0.0
      %4584 = vmatpush1.msra.mxu0 0.0
      %4585 = vmatprep.subr.mxu0 0.0
      %4586 = vmatpush1.msra.mxu0 0.0
      %4587 = vmatprep.subr.mxu0 0.0
      %4588 = vmatpush1.msra.mxu0 0.0
      %4589 = vmatprep.subr.mxu0 0.0
      %4590 = vmatpush1.msra.mxu0 0.0
      %4591 = vmatprep.subr.mxu0 0.0
      %4592 = vmatpush1.msra.mxu0 0.0
      %4593 = vmatprep.subr.mxu0 0.0
      %4594 = vmatpush1.msra.mxu0 0.0
      %4595 = vmatprep.subr.mxu0 0.0
      %4596 = vmatpush1.msra.mxu0 0.0
      %4597 = vmatprep.subr.mxu0 0.0
      %4598 = vmatpush1.msra.mxu0 0.0
      %4599 = vmatprep.subr.mxu0 0.0
      %4600 = vmatpush1.msra.mxu0 0.0
      %4601 = vmatprep.subr.mxu0 0.0
      %4602 = vmatpush1.msra.mxu0 0.0
      %4603 = vmatprep.subr.mxu0 0.0
      %4604 = vmatpush1.msra.mxu0 0.0
      %4605 = vmatprep.subr.mxu0 0.0
      %4606 = vmatpush1.msra.mxu0 0.0
      %4607 = vmatprep.subr.mxu0 0.0
      %4608 = vmatpush1.msra.mxu0 0.0
      %4609 = vmatprep.subr.mxu0 0.0
      %4610 = vmatpush1.msra.mxu0 0.0
      %4611 = vmatprep.subr.mxu0 0.0
      %4612 = vmatpush1.msra.mxu0 0.0
      %4613 = vmatprep.subr.mxu0 0.0
      %4614 = vmatpush1.msra.mxu0 0.0
      %4615 = vmatprep.subr.mxu0 0.0
      %4616 = vmatpush1.msra.mxu0 0.0
      %4617 = vmatprep.subr.mxu0 0.0
      %4618 = vmatpush1.msra.mxu0 0.0
      %4619 = vmatprep.subr.mxu0 0.0
      %4620 = vmatpush1.msra.mxu0 0.0
      %4621 = vmatprep.subr.mxu0 0.0
      %4622 = vmatpush1.msra.mxu0 0.0
      %4623 = vmatprep.subr.mxu0 0.0
      %4624 = vmatpush1.msra.mxu0 0.0
      %4625 = vmatprep.subr.mxu0 0.0
      %4626 = vmatpush1.msra.mxu0 0.0
      %4627 = vmatprep.subr.mxu0 0.0
      %4628 = vmatpush1.msra.mxu0 0.0
      %4629 = vmatprep.subr.mxu0 0.0
      %4630 = vmatpush1.msra.mxu0 0.0
      %4631 = vmatprep.subr.mxu0 0.0
      %4632 = vmatpush1.msra.mxu0 0.0
      %4633 = vmatprep.subr.mxu0 0.0
      %4634 = vmatpush1.msra.mxu0 0.0
      %4635 = vmatprep.subr.mxu0 0.0
      %4636 = vmatpush1.msra.mxu0 0.0
      %4637 = vmatprep.subr.mxu0 0.0
      %4638 = vmatpush1.msra.mxu0 0.0
      %4639 = vmatprep.subr.mxu0 0.0
      %4640 = vmatpush1.msra.mxu0 0.0
      %4641 = vmatprep.mubr.f32.mxu0 0.0
      %4642 = vmatmul.mubr.f32.gmra.mrb[0].mxu0 %v3568
      %v4643 = vpop.f32.mrb[0].mxu0
      %v4644 = vadd.f32 0.0, %v4643
      %v4645 = vpop.f32.mrb[0].mxu0
      %4646 = vmatprep.mubr.f32.mxu0 0.0
      %4647 = vmatmul.mubr.f32.gmra.mrb[0].mxu0 %v3570
      %v4648 = vpop.f32.mrb[0].mxu0
      %v4649 = vadd.f32 0.0, %v4648
      %v4650 = vpop.f32.mrb[0].mxu0
      %4651 = vmatprep.mubr.f32.mxu0 0.0
      %4652 = vmatmul.mubr.f32.gmra.mrb[0].mxu0 %v3572
      %v4653 = vpop.f32.mrb[0].mxu0
      %v4654 = vadd.f32 0.0, %v4653
      %v4655 = vpop.f32.mrb[0].mxu0
      %4656 = vmatprep.mubr.f32.mxu0 0.0
      %4657 = vmatmul.mubr.f32.gmra.mrb[0].mxu0 %v3574
      %v4658 = vpop.f32.mrb[0].mxu0
      %v4659 = vadd.f32 0.0, %v4658
      %v4660 = vpop.f32.mrb[0].mxu0
      %4661 = vmatprep.mubr.f32.mxu0 0.0
      %4662 = vmatmul.mubr.f32.gmra.mrb[0].mxu0 %v3576
      %v4663 = vpop.f32.mrb[0].mxu0
      %v4664 = vadd.f32 0.0, %v4663
      %v4665 = vpop.f32.mrb[0].mxu0
      %4666 = vmatprep.mubr.f32.mxu0 0.0
      %4667 = vmatmul.mubr.f32.gmra.mrb[0].mxu0 %v3578
      %v4668 = vpop.f32.mrb[0].mxu0
      %v4669 = vadd.f32 0.0, %v4668
      %v4670 = vpop.f32.mrb[0].mxu0
      %4671 = vmatprep.mubr.f32.mxu0 0.0
      %4672 = vmatmul.mubr.f32.gmra.mrb[0].mxu0 %v3580
      %v4673 = vpop.f32.mrb[0].mxu0
      %v4674 = vadd.f32 0.0, %v4673
      %v4675 = vpop.f32.mrb[0].mxu0
      %4676 = vmatprep.mubr.f32.mxu0 0.0
      %4677 = vmatmul.mubr.f32.gmra.mrb[0].mxu0 %v3582
      %v4678 = vpop.f32.mrb[0].mxu0
      %v4679 = vadd.f32 0.0, %v4678
      %v4680 = vpop.f32.mrb[0].mxu0
      %4681 = vmatprep.mubr.f32.mxu0 0.0
      %4682 = vmatmul.mubr.f32.gmra.mrb[0].mxu0 %v3584
      %v4683 = vpop.f32.mrb[0].mxu0
      %v4684 = vadd.f32 0.0, %v4683
      %v4685 = vpop.f32.mrb[0].mxu0
      %4686 = vmatprep.mubr.f32.mxu0 0.0
      %4687 = vmatmul.mubr.f32.gmra.mrb[0].mxu0 %v3586
      %v4688 = vpop.f32.mrb[0].mxu0
      %v4689 = vadd.f32 0.0, %v4688
      %v4690 = vpop.f32.mrb[0].mxu0
      %4691 = vmatprep.mubr.f32.mxu0 0.0
      %4692 = vmatmul.mubr.f32.gmra.mrb[0].mxu0 %v3588
      %v4693 = vpop.f32.mrb[0].mxu0
      %v4694 = vadd.f32 0.0, %v4693
      %v4695 = vpop.f32.mrb[0].mxu0
      %4696 = vmatprep.mubr.f32.mxu0 0.0
      %4697 = vmatmul.mubr.f32.gmra.mrb[0].mxu0 %v3590
      %v4698 = vpop.f32.mrb[0].mxu0
      %v4699 = vadd.f32 0.0, %v4698
      %v4700 = vpop.f32.mrb[0].mxu0
      %4701 = vmatprep.mubr.f32.mxu0 0.0
      %4702 = vmatmul.mubr.f32.gmra.mrb[0].mxu0 %v3592
      %v4703 = vpop.f32.mrb[0].mxu0
      %v4704 = vadd.f32 0.0, %v4703
      %v4705 = vpop.f32.mrb[0].mxu0
      %4706 = vmatprep.mubr.f32.mxu0 0.0
      %4707 = vmatmul.mubr.f32.gmra.mrb[0].mxu0 %v3594
      %v4708 = vpop.f32.mrb[0].mxu0
      %v4709 = vadd.f32 0.0, %v4708
      %v4710 = vpop.f32.mrb[0].mxu0
      %4711 = vmatprep.mubr.f32.mxu0 0.0
      %4712 = vmatmul.mubr.f32.gmra.mrb[0].mxu0 %v3596
      %v4713 = vpop.f32.mrb[0].mxu0
      %v4714 = vadd.f32 0.0, %v4713
      %v4715 = vpop.f32.mrb[0].mxu0
      %4716 = vmatprep.mubr.f32.mxu0 0.0
      %4717 = vmatmul.mubr.f32.gmra.mrb[0].mxu0 %v3598
      %v4718 = vpop.f32.mrb[0].mxu0
      %v4719 = vadd.f32 0.0, %v4718
      %v4720 = vpop.f32.mrb[0].mxu0
      %4721 = vmatprep.mubr.f32.mxu0 0.0
      %4722 = vmatmul.mubr.f32.gmra.mrb[0].mxu0 %v3600
      %v4723 = vpop.f32.mrb[0].mxu0
      %v4724 = vadd.f32 0.0, %v4723
      %v4725 = vpop.f32.mrb[0].mxu0
      %4726 = vmatprep.mubr.f32.mxu0 0.0
      %4727 = vmatmul.mubr.f32.gmra.mrb[0].mxu0 %v3602
      %v4728 = vpop.f32.mrb[0].mxu0
      %v4729 = vadd.f32 0.0, %v4728
      %v4730 = vpop.f32.mrb[0].mxu0
      %4731 = vmatprep.mubr.f32.mxu0 0.0
      %4732 = vmatmul.mubr.f32.gmra.mrb[0].mxu0 %v3604
      %v4733 = vpop.f32.mrb[0].mxu0
      %v4734 = vadd.f32 0.0, %v4733
      %v4735 = vpop.f32.mrb[0].mxu0
      %4736 = vmatprep.mubr.f32.mxu0 0.0
      %4737 = vmatmul.mubr.f32.gmra.mrb[0].mxu0 %v3606
      %v4738 = vpop.f32.mrb[0].mxu0
      %v4739 = vadd.f32 0.0, %v4738
      %v4740 = vpop.f32.mrb[0].mxu0
      %4741 = vmatprep.mubr.f32.mxu0 0.0
      %4742 = vmatmul.mubr.f32.gmra.mrb[0].mxu0 %v3608
      %v4743 = vpop.f32.mrb[0].mxu0
      %v4744 = vadd.f32 0.0, %v4743
      %v4745 = vpop.f32.mrb[0].mxu0
      %4746 = vmatprep.mubr.f32.mxu0 0.0
      %4747 = vmatmul.mubr.f32.gmra.mrb[0].mxu0 %v3610
      %v4748 = vpop.f32.mrb[0].mxu0
      %v4749 = vadd.f32 0.0, %v4748
      %v4750 = vpop.f32.mrb[0].mxu0
      %4751 = vmatprep.mubr.f32.mxu0 0.0
      %4752 = vmatmul.mubr.f32.gmra.mrb[0].mxu0 %v3612
      %v4753 = vpop.f32.mrb[0].mxu0
      %v4754 = vadd.f32 0.0, %v4753
      %v4755 = vpop.f32.mrb[0].mxu0
      %4756 = vmatprep.mubr.f32.mxu0 0.0
      %4757 = vmatmul.mubr.f32.gmra.mrb[0].mxu0 %v3614
      %v4758 = vpop.f32.mrb[0].mxu0
      %v4759 = vadd.f32 0.0, %v4758
      %v4760 = vpop.f32.mrb[0].mxu0
      %4761 = vmatprep.mubr.f32.mxu0 0.0
      %4762 = vmatmul.mubr.f32.gmra.mrb[0].mxu0 %v3616
      %v4763 = vpop.f32.mrb[0].mxu0
      %v4764 = vadd.f32 0.0, %v4763
      %v4765 = vpop.f32.mrb[0].mxu0
      %4766 = vmatprep.mubr.f32.mxu0 0.0
      %4767 = vmatmul.mubr.f32.gmra.mrb[0].mxu0 %v3618
      %v4768 = vpop.f32.mrb[0].mxu0
      %v4769 = vadd.f32 0.0, %v4768
      %v4770 = vpop.f32.mrb[0].mxu0
      %4771 = vmatprep.mubr.f32.mxu0 0.0
      %4772 = vmatmul.mubr.f32.gmra.mrb[0].mxu0 %v3620
      %v4773 = vpop.f32.mrb[0].mxu0
      %v4774 = vadd.f32 0.0, %v4773
      %v4775 = vpop.f32.mrb[0].mxu0
      %4776 = vmatprep.mubr.f32.mxu0 0.0
      %4777 = vmatmul.mubr.f32.gmra.mrb[0].mxu0 %v3622
      %v4778 = vpop.f32.mrb[0].mxu0
      %v4779 = vadd.f32 0.0, %v4778
      %v4780 = vpop.f32.mrb[0].mxu0
      %4781 = vmatprep.mubr.f32.mxu0 0.0
      %4782 = vmatmul.mubr.f32.gmra.mrb[0].mxu0 %v3624
      %v4783 = vpop.f32.mrb[0].mxu0
      %v4784 = vadd.f32 0.0, %v4783
      %v4785 = vpop.f32.mrb[0].mxu0
      %4786 = vmatprep.mubr.f32.mxu0 0.0
      %4787 = vmatmul.mubr.f32.gmra.mrb[0].mxu0 %v3626
      %v4788 = vpop.f32.mrb[0].mxu0
      %v4789 = vadd.f32 0.0, %v4788
      %v4790 = vpop.f32.mrb[0].mxu0
      %4791 = vmatprep.mubr.f32.mxu0 0.0
      %4792 = vmatmul.mubr.f32.gmra.mrb[0].mxu0 %v4570
      %v4793 = vpop.f32.mrb[0].mxu0
      %v4794 = vadd.f32 0.0, %v4793
      %v4795 = vpop.f32.mrb[0].mxu0
      %4796 = vmatprep.mubr.f32.mxu0 0.0
      %4797 = vmatmul.mubr.f32.gmra.mrb[0].mxu0 %v4572
      %v4798 = vpop.f32.mrb[0].mxu0
      %v4799 = vadd.f32 0.0, %v4798
      %v4800 = vpop.f32.mrb[0].mxu0
      %4801 = vdwg.mxu0
      %v4802 = vadd.f32 %v4530, %v4644
      %v4803 = vadd.f32 %v4531, %v4649
      %v4804 = vadd.f32 %v4532, %v4654
      %v4805 = vadd.f32 %v4533, %v4659
      %v4806 = vadd.f32 %v4534, %v4664
      %v4807 = vadd.f32 %v4535, %v4669
      %v4808 = vadd.f32 %v4536, %v4674
      %v4809 = vadd.f32 %v4537, %v4679
      %v4810 = vadd.f32 %v4538, %v4684
      %v4811 = vadd.f32 %v4539, %v4689
      %v4812 = vadd.f32 %v4540, %v4694
      %v4813 = vadd.f32 %v4541, %v4699
      %v4814 = vadd.f32 %v4542, %v4704
      %v4815 = vadd.f32 %v4543, %v4709
      %v4816 = vadd.f32 %v4544, %v4714
      %v4817 = vadd.f32 %v4545, %v4719
      %v4818 = vadd.f32 %v4546, %v4724
      %v4819 = vadd.f32 %v4547, %v4729
      %v4820 = vadd.f32 %v4548, %v4734
      %v4821 = vadd.f32 %v4549, %v4739
      %v4822 = vadd.f32 %v4550, %v4744
      %v4823 = vadd.f32 %v4551, %v4749
      %v4824 = vadd.f32 %v4552, %v4754
      %v4825 = vadd.f32 %v4553, %v4759
      %v4826 = vadd.f32 %v4554, %v4764
      %v4827 = vadd.f32 %v4555, %v4769
      %v4828 = vadd.f32 %v4556, %v4774
      %v4829 = vadd.f32 %v4557, %v4779
      %v4830 = vadd.f32 %v4558, %v4784
      %v4831 = vadd.f32 %v4559, %v4789
      %v4832 = vadd.f32 %v4560, %v4794
      %v4833 = vadd.f32 %v4561, %v4799
      %v4834 = vrot.slane %v3102, 2
      %v4835 = vrot.slane %v3103, 2
      %v4836 = vsel %vm1022, %v4834, %v4835
      %v4837 = vrot.slane %v3104, 2
      %v4838 = vsel %vm1022, %v4835, %v4837
      %s4839 = scalar_lea.vmem %s1, 56
      %v4840 = vld [vmem:[%s4839] sm:$0xf]
      %v4841 = vsel %vm436, %v4836, 0
      %v4843 = vsel %vm436, %v4838, 0
      %v4846 = vsel %vm501, %v4840, 0
      %4848 = vmatprep.subr.mxu0 0.0
      %4849 = vmatpush1.msra.mxu0 %v4846
      %4850 = vmatprep.subr.mxu0 0.0
      %4851 = vmatpush1.msra.mxu0 0.0
      %4852 = vmatprep.subr.mxu0 0.0
      %4853 = vmatpush1.msra.mxu0 0.0
      %4854 = vmatprep.subr.mxu0 0.0
      %4855 = vmatpush1.msra.mxu0 0.0
      %4856 = vmatprep.subr.mxu0 0.0
      %4857 = vmatpush1.msra.mxu0 0.0
      %4858 = vmatprep.subr.mxu0 0.0
      %4859 = vmatpush1.msra.mxu0 0.0
      %4860 = vmatprep.subr.mxu0 0.0
      %4861 = vmatpush1.msra.mxu0 0.0
      %4862 = vmatprep.subr.mxu0 0.0
      %4863 = vmatpush1.msra.mxu0 0.0
      %4864 = vmatprep.subr.mxu0 0.0
      %4865 = vmatpush1.msra.mxu0 0.0
      %4866 = vmatprep.subr.mxu0 0.0
      %4867 = vmatpush1.msra.mxu0 0.0
      %4868 = vmatprep.subr.mxu0 0.0
      %4869 = vmatpush1.msra.mxu0 0.0
      %4870 = vmatprep.subr.mxu0 0.0
      %4871 = vmatpush1.msra.mxu0 0.0
      %4872 = vmatprep.subr.mxu0 0.0
      %4873 = vmatpush1.msra.mxu0 0.0
      %4874 = vmatprep.subr.mxu0 0.0
      %4875 = vmatpush1.msra.mxu0 0.0
      %4876 = vmatprep.subr.mxu0 0.0
      %4877 = vmatpush1.msra.mxu0 0.0
      %4878 = vmatprep.subr.mxu0 0.0
      %4879 = vmatpush1.msra.mxu0 0.0
      %4880 = vmatprep.subr.mxu0 0.0
      %4881 = vmatpush1.msra.mxu0 0.0
      %4882 = vmatprep.subr.mxu0 0.0
      %4883 = vmatpush1.msra.mxu0 0.0
      %4884 = vmatprep.subr.mxu0 0.0
      %4885 = vmatpush1.msra.mxu0 0.0
      %4886 = vmatprep.subr.mxu0 0.0
      %4887 = vmatpush1.msra.mxu0 0.0
      %4888 = vmatprep.subr.mxu0 0.0
      %4889 = vmatpush1.msra.mxu0 0.0
      %4890 = vmatprep.subr.mxu0 0.0
      %4891 = vmatpush1.msra.mxu0 0.0
      %4892 = vmatprep.subr.mxu0 0.0
      %4893 = vmatpush1.msra.mxu0 0.0
      %4894 = vmatprep.subr.mxu0 0.0
      %4895 = vmatpush1.msra.mxu0 0.0
      %4896 = vmatprep.subr.mxu0 0.0
      %4897 = vmatpush1.msra.mxu0 0.0
      %4898 = vmatprep.subr.mxu0 0.0
      %4899 = vmatpush1.msra.mxu0 0.0
      %4900 = vmatprep.subr.mxu0 0.0
      %4901 = vmatpush1.msra.mxu0 0.0
      %4902 = vmatprep.subr.mxu0 0.0
      %4903 = vmatpush1.msra.mxu0 0.0
      %4904 = vmatprep.subr.mxu0 0.0
      %4905 = vmatpush1.msra.mxu0 0.0
      %4906 = vmatprep.subr.mxu0 0.0
      %4907 = vmatpush1.msra.mxu0 0.0
      %4908 = vmatprep.subr.mxu0 0.0
      %4909 = vmatpush1.msra.mxu0 0.0
      %4910 = vmatprep.subr.mxu0 0.0
      %4911 = vmatpush1.msra.mxu0 0.0
      %4912 = vmatprep.mubr.f32.mxu0 0.0
      %4913 = vmatmul.mubr.f32.gmra.mrb[0].mxu0 %v3974
      %v4914 = vpop.f32.mrb[0].mxu0
      %v4915 = vadd.f32 0.0, %v4914
      %v4916 = vpop.f32.mrb[0].mxu0
      %4917 = vmatprep.mubr.f32.mxu0 0.0
      %4918 = vmatmul.mubr.f32.gmra.mrb[0].mxu0 %v3976
      %v4919 = vpop.f32.mrb[0].mxu0
      %v4920 = vadd.f32 0.0, %v4919
      %v4921 = vpop.f32.mrb[0].mxu0
      %4922 = vmatprep.mubr.f32.mxu0 0.0
      %4923 = vmatmul.mubr.f32.gmra.mrb[0].mxu0 %v3978
      %v4924 = vpop.f32.mrb[0].mxu0
      %v4925 = vadd.f32 0.0, %v4924
      %v4926 = vpop.f32.mrb[0].mxu0
      %4927 = vmatprep.mubr.f32.mxu0 0.0
      %4928 = vmatmul.mubr.f32.gmra.mrb[0].mxu0 %v3980
      %v4929 = vpop.f32.mrb[0].mxu0
      %v4930 = vadd.f32 0.0, %v4929
      %v4931 = vpop.f32.mrb[0].mxu0
      %4932 = vmatprep.mubr.f32.mxu0 0.0
      %4933 = vmatmul.mubr.f32.gmra.mrb[0].mxu0 %v3982
      %v4934 = vpop.f32.mrb[0].mxu0
      %v4935 = vadd.f32 0.0, %v4934
      %v4936 = vpop.f32.mrb[0].mxu0
      %4937 = vmatprep.mubr.f32.mxu0 0.0
      %4938 = vmatmul.mubr.f32.gmra.mrb[0].mxu0 %v3984
      %v4939 = vpop.f32.mrb[0].mxu0
      %v4940 = vadd.f32 0.0, %v4939
      %v4941 = vpop.f32.mrb[0].mxu0
      %4942 = vmatprep.mubr.f32.mxu0 0.0
      %4943 = vmatmul.mubr.f32.gmra.mrb[0].mxu0 %v3986
      %v4944 = vpop.f32.mrb[0].mxu0
      %v4945 = vadd.f32 0.0, %v4944
      %v4946 = vpop.f32.mrb[0].mxu0
      %4947 = vmatprep.mubr.f32.mxu0 0.0
      %4948 = vmatmul.mubr.f32.gmra.mrb[0].mxu0 %v3988
      %v4949 = vpop.f32.mrb[0].mxu0
      %v4950 = vadd.f32 0.0, %v4949
      %v4951 = vpop.f32.mrb[0].mxu0
      %4952 = vmatprep.mubr.f32.mxu0 0.0
      %4953 = vmatmul.mubr.f32.gmra.mrb[0].mxu0 %v3990
      %v4954 = vpop.f32.mrb[0].mxu0
      %v4955 = vadd.f32 0.0, %v4954
      %v4956 = vpop.f32.mrb[0].mxu0
      %4957 = vmatprep.mubr.f32.mxu0 0.0
      %4958 = vmatmul.mubr.f32.gmra.mrb[0].mxu0 %v3992
      %v4959 = vpop.f32.mrb[0].mxu0
      %v4960 = vadd.f32 0.0, %v4959
      %v4961 = vpop.f32.mrb[0].mxu0
      %4962 = vmatprep.mubr.f32.mxu0 0.0
      %4963 = vmatmul.mubr.f32.gmra.mrb[0].mxu0 %v3994
      %v4964 = vpop.f32.mrb[0].mxu0
      %v4965 = vadd.f32 0.0, %v4964
      %v4966 = vpop.f32.mrb[0].mxu0
      %4967 = vmatprep.mubr.f32.mxu0 0.0
      %4968 = vmatmul.mubr.f32.gmra.mrb[0].mxu0 %v3996
      %v4969 = vpop.f32.mrb[0].mxu0
      %v4970 = vadd.f32 0.0, %v4969
      %v4971 = vpop.f32.mrb[0].mxu0
      %4972 = vmatprep.mubr.f32.mxu0 0.0
      %4973 = vmatmul.mubr.f32.gmra.mrb[0].mxu0 %v3998
      %v4974 = vpop.f32.mrb[0].mxu0
      %v4975 = vadd.f32 0.0, %v4974
      %v4976 = vpop.f32.mrb[0].mxu0
      %4977 = vmatprep.mubr.f32.mxu0 0.0
      %4978 = vmatmul.mubr.f32.gmra.mrb[0].mxu0 %v4000
      %v4979 = vpop.f32.mrb[0].mxu0
      %v4980 = vadd.f32 0.0, %v4979
      %v4981 = vpop.f32.mrb[0].mxu0
      %4982 = vmatprep.mubr.f32.mxu0 0.0
      %4983 = vmatmul.mubr.f32.gmra.mrb[0].mxu0 %v4002
      %v4984 = vpop.f32.mrb[0].mxu0
      %v4985 = vadd.f32 0.0, %v4984
      %v4986 = vpop.f32.mrb[0].mxu0
      %4987 = vmatprep.mubr.f32.mxu0 0.0
      %4988 = vmatmul.mubr.f32.gmra.mrb[0].mxu0 %v4004
      %v4989 = vpop.f32.mrb[0].mxu0
      %v4990 = vadd.f32 0.0, %v4989
      %v4991 = vpop.f32.mrb[0].mxu0
      %4992 = vmatprep.mubr.f32.mxu0 0.0
      %4993 = vmatmul.mubr.f32.gmra.mrb[0].mxu0 %v4006
      %v4994 = vpop.f32.mrb[0].mxu0
      %v4995 = vadd.f32 0.0, %v4994
      %v4996 = vpop.f32.mrb[0].mxu0
      %4997 = vmatprep.mubr.f32.mxu0 0.0
      %4998 = vmatmul.mubr.f32.gmra.mrb[0].mxu0 %v4008
      %v4999 = vpop.f32.mrb[0].mxu0
      %v5000 = vadd.f32 0.0, %v4999
      %v5001 = vpop.f32.mrb[0].mxu0
      %5002 = vmatprep.mubr.f32.mxu0 0.0
      %5003 = vmatmul.mubr.f32.gmra.mrb[0].mxu0 %v4010
      %v5004 = vpop.f32.mrb[0].mxu0
      %v5005 = vadd.f32 0.0, %v5004
      %v5006 = vpop.f32.mrb[0].mxu0
      %5007 = vmatprep.mubr.f32.mxu0 0.0
      %5008 = vmatmul.mubr.f32.gmra.mrb[0].mxu0 %v4012
      %v5009 = vpop.f32.mrb[0].mxu0
      %v5010 = vadd.f32 0.0, %v5009
      %v5011 = vpop.f32.mrb[0].mxu0
      %5012 = vmatprep.mubr.f32.mxu0 0.0
      %5013 = vmatmul.mubr.f32.gmra.mrb[0].mxu0 %v4014
      %v5014 = vpop.f32.mrb[0].mxu0
      %v5015 = vadd.f32 0.0, %v5014
      %v5016 = vpop.f32.mrb[0].mxu0
      %5017 = vmatprep.mubr.f32.mxu0 0.0
      %5018 = vmatmul.mubr.f32.gmra.mrb[0].mxu0 %v4016
      %v5019 = vpop.f32.mrb[0].mxu0
      %v5020 = vadd.f32 0.0, %v5019
      %v5021 = vpop.f32.mrb[0].mxu0
      %5022 = vmatprep.mubr.f32.mxu0 0.0
      %5023 = vmatmul.mubr.f32.gmra.mrb[0].mxu0 %v4018
      %v5024 = vpop.f32.mrb[0].mxu0
      %v5025 = vadd.f32 0.0, %v5024
      %v5026 = vpop.f32.mrb[0].mxu0
      %5027 = vmatprep.mubr.f32.mxu0 0.0
      %5028 = vmatmul.mubr.f32.gmra.mrb[0].mxu0 %v4020
      %v5029 = vpop.f32.mrb[0].mxu0
      %v5030 = vadd.f32 0.0, %v5029
      %v5031 = vpop.f32.mrb[0].mxu0
      %5032 = vmatprep.mubr.f32.mxu0 0.0
      %5033 = vmatmul.mubr.f32.gmra.mrb[0].mxu0 %v4022
      %v5034 = vpop.f32.mrb[0].mxu0
      %v5035 = vadd.f32 0.0, %v5034
      %v5036 = vpop.f32.mrb[0].mxu0
      %5037 = vmatprep.mubr.f32.mxu0 0.0
      %5038 = vmatmul.mubr.f32.gmra.mrb[0].mxu0 %v4024
      %v5039 = vpop.f32.mrb[0].mxu0
      %v5040 = vadd.f32 0.0, %v5039
      %v5041 = vpop.f32.mrb[0].mxu0
      %5042 = vmatprep.mubr.f32.mxu0 0.0
      %5043 = vmatmul.mubr.f32.gmra.mrb[0].mxu0 %v4026
      %v5044 = vpop.f32.mrb[0].mxu0
      %v5045 = vadd.f32 0.0, %v5044
      %v5046 = vpop.f32.mrb[0].mxu0
      %5047 = vmatprep.mubr.f32.mxu0 0.0
      %5048 = vmatmul.mubr.f32.gmra.mrb[0].mxu0 %v4028
      %v5049 = vpop.f32.mrb[0].mxu0
      %v5050 = vadd.f32 0.0, %v5049
      %v5051 = vpop.f32.mrb[0].mxu0
      %5052 = vmatprep.mubr.f32.mxu0 0.0
      %5053 = vmatmul.mubr.f32.gmra.mrb[0].mxu0 %v4030
      %v5054 = vpop.f32.mrb[0].mxu0
      %v5055 = vadd.f32 0.0, %v5054
      %v5056 = vpop.f32.mrb[0].mxu0
      %5057 = vmatprep.mubr.f32.mxu0 0.0
      %5058 = vmatmul.mubr.f32.gmra.mrb[0].mxu0 %v4032
      %v5059 = vpop.f32.mrb[0].mxu0
      %v5060 = vadd.f32 0.0, %v5059
      %v5061 = vpop.f32.mrb[0].mxu0
      %5062 = vmatprep.mubr.f32.mxu0 0.0
      %5063 = vmatmul.mubr.f32.gmra.mrb[0].mxu0 %v4841
      %v5064 = vpop.f32.mrb[0].mxu0
      %v5065 = vadd.f32 0.0, %v5064
      %v5066 = vpop.f32.mrb[0].mxu0
      %5067 = vmatprep.mubr.f32.mxu0 0.0
      %5068 = vmatmul.mubr.f32.gmra.mrb[0].mxu0 %v4843
      %v5069 = vpop.f32.mrb[0].mxu0
      %v5070 = vadd.f32 0.0, %v5069
      %v5071 = vpop.f32.mrb[0].mxu0
      %5072 = vdwg.mxu0
      %v5073 = vadd.f32 %v4802, %v4915
      %v5074 = vadd.f32 %v4803, %v4920
      %v5075 = vadd.f32 %v4804, %v4925
      %v5076 = vadd.f32 %v4805, %v4930
      %v5077 = vadd.f32 %v4806, %v4935
      %v5078 = vadd.f32 %v4807, %v4940
      %v5079 = vadd.f32 %v4808, %v4945
      %v5080 = vadd.f32 %v4809, %v4950
      %v5081 = vadd.f32 %v4810, %v4955
      %v5082 = vadd.f32 %v4811, %v4960
      %v5083 = vadd.f32 %v4812, %v4965
      %v5084 = vadd.f32 %v4813, %v4970
      %v5085 = vadd.f32 %v4814, %v4975
      %v5086 = vadd.f32 %v4815, %v4980
      %v5087 = vadd.f32 %v4816, %v4985
      %v5088 = vadd.f32 %v4817, %v4990
      %v5089 = vadd.f32 %v4818, %v4995
      %v5090 = vadd.f32 %v4819, %v5000
      %v5091 = vadd.f32 %v4820, %v5005
      %v5092 = vadd.f32 %v4821, %v5010
      %v5093 = vadd.f32 %v4822, %v5015
      %v5094 = vadd.f32 %v4823, %v5020
      %v5095 = vadd.f32 %v4824, %v5025
      %v5096 = vadd.f32 %v4825, %v5030
      %v5097 = vadd.f32 %v4826, %v5035
      %v5098 = vadd.f32 %v4827, %v5040
      %v5099 = vadd.f32 %v4828, %v5045
      %v5100 = vadd.f32 %v4829, %v5050
      %v5101 = vadd.f32 %v4830, %v5055
      %v5102 = vadd.f32 %v4831, %v5060
      %v5103 = vadd.f32 %v4832, %v5065
      %v5104 = vadd.f32 %v4833, %v5070
      %s5105 = scalar_lea.vmem %s1, 60
      %v5106 = vld [vmem:[%s5105] sm:$0xf]
      %v5108 = vsel %vm436, %v3105, 0
      %v5111 = vsel %vm436, %v3106, 0
      %v5114 = vsel %vm501, %v5106, 0
      %5116 = vmatprep.subr.mxu0 0.0
      %5117 = vmatpush1.msra.mxu0 %v5114
      %5118 = vmatprep.subr.mxu0 0.0
      %5119 = vmatpush1.msra.mxu0 0.0
      %5120 = vmatprep.subr.mxu0 0.0
      %5121 = vmatpush1.msra.mxu0 0.0
      %5122 = vmatprep.subr.mxu0 0.0
      %5123 = vmatpush1.msra.mxu0 0.0
      %5124 = vmatprep.subr.mxu0 0.0
      %5125 = vmatpush1.msra.mxu0 0.0
      %5126 = vmatprep.subr.mxu0 0.0
      %5127 = vmatpush1.msra.mxu0 0.0
      %5128 = vmatprep.subr.mxu0 0.0
      %5129 = vmatpush1.msra.mxu0 0.0
      %5130 = vmatprep.subr.mxu0 0.0
      %5131 = vmatpush1.msra.mxu0 0.0
      %5132 = vmatprep.subr.mxu0 0.0
      %5133 = vmatpush1.msra.mxu0 0.0
      %5134 = vmatprep.subr.mxu0 0.0
      %5135 = vmatpush1.msra.mxu0 0.0
      %5136 = vmatprep.subr.mxu0 0.0
      %5137 = vmatpush1.msra.mxu0 0.0
      %5138 = vmatprep.subr.mxu0 0.0
      %5139 = vmatpush1.msra.mxu0 0.0
      %5140 = vmatprep.subr.mxu0 0.0
      %5141 = vmatpush1.msra.mxu0 0.0
      %5142 = vmatprep.subr.mxu0 0.0
      %5143 = vmatpush1.msra.mxu0 0.0
      %5144 = vmatprep.subr.mxu0 0.0
      %5145 = vmatpush1.msra.mxu0 0.0
      %5146 = vmatprep.subr.mxu0 0.0
      %5147 = vmatpush1.msra.mxu0 0.0
      %5148 = vmatprep.subr.mxu0 0.0
      %5149 = vmatpush1.msra.mxu0 0.0
      %5150 = vmatprep.subr.mxu0 0.0
      %5151 = vmatpush1.msra.mxu0 0.0
      %5152 = vmatprep.subr.mxu0 0.0
      %5153 = vmatpush1.msra.mxu0 0.0
      %5154 = vmatprep.subr.mxu0 0.0
      %5155 = vmatpush1.msra.mxu0 0.0
      %5156 = vmatprep.subr.mxu0 0.0
      %5157 = vmatpush1.msra.mxu0 0.0
      %5158 = vmatprep.subr.mxu0 0.0
      %5159 = vmatpush1.msra.mxu0 0.0
      %5160 = vmatprep.subr.mxu0 0.0
      %5161 = vmatpush1.msra.mxu0 0.0
      %5162 = vmatprep.subr.mxu0 0.0
      %5163 = vmatpush1.msra.mxu0 0.0
      %5164 = vmatprep.subr.mxu0 0.0
      %5165 = vmatpush1.msra.mxu0 0.0
      %5166 = vmatprep.subr.mxu0 0.0
      %5167 = vmatpush1.msra.mxu0 0.0
      %5168 = vmatprep.subr.mxu0 0.0
      %5169 = vmatpush1.msra.mxu0 0.0
      %5170 = vmatprep.subr.mxu0 0.0
      %5171 = vmatpush1.msra.mxu0 0.0
      %5172 = vmatprep.subr.mxu0 0.0
      %5173 = vmatpush1.msra.mxu0 0.0
      %5174 = vmatprep.subr.mxu0 0.0
      %5175 = vmatpush1.msra.mxu0 0.0
      %5176 = vmatprep.subr.mxu0 0.0
      %5177 = vmatpush1.msra.mxu0 0.0
      %5178 = vmatprep.subr.mxu0 0.0
      %5179 = vmatpush1.msra.mxu0 0.0
      %5180 = vmatprep.mubr.f32.mxu0 0.0
      %5181 = vmatmul.mubr.f32.gmra.mrb[0].mxu0 %v3123
      %v5182 = vpop.f32.mrb[0].mxu0
      %v5183 = vadd.f32 0.0, %v5182
      %v5184 = vpop.f32.mrb[0].mxu0
      %5185 = vmatprep.mubr.f32.mxu0 0.0
      %5186 = vmatmul.mubr.f32.gmra.mrb[0].mxu0 %v3126
      %v5187 = vpop.f32.mrb[0].mxu0
      %v5188 = vadd.f32 0.0, %v5187
      %v5189 = vpop.f32.mrb[0].mxu0
      %5190 = vmatprep.mubr.f32.mxu0 0.0
      %5191 = vmatmul.mubr.f32.gmra.mrb[0].mxu0 %v3129
      %v5192 = vpop.f32.mrb[0].mxu0
      %v5193 = vadd.f32 0.0, %v5192
      %v5194 = vpop.f32.mrb[0].mxu0
      %5195 = vmatprep.mubr.f32.mxu0 0.0
      %5196 = vmatmul.mubr.f32.gmra.mrb[0].mxu0 %v3132
      %v5197 = vpop.f32.mrb[0].mxu0
      %v5198 = vadd.f32 0.0, %v5197
      %v5199 = vpop.f32.mrb[0].mxu0
      %5200 = vmatprep.mubr.f32.mxu0 0.0
      %5201 = vmatmul.mubr.f32.gmra.mrb[0].mxu0 %v3135
      %v5202 = vpop.f32.mrb[0].mxu0
      %v5203 = vadd.f32 0.0, %v5202
      %v5204 = vpop.f32.mrb[0].mxu0
      %5205 = vmatprep.mubr.f32.mxu0 0.0
      %5206 = vmatmul.mubr.f32.gmra.mrb[0].mxu0 %v3138
      %v5207 = vpop.f32.mrb[0].mxu0
      %v5208 = vadd.f32 0.0, %v5207
      %v5209 = vpop.f32.mrb[0].mxu0
      %5210 = vmatprep.mubr.f32.mxu0 0.0
      %5211 = vmatmul.mubr.f32.gmra.mrb[0].mxu0 %v3141
      %v5212 = vpop.f32.mrb[0].mxu0
      %v5213 = vadd.f32 0.0, %v5212
      %v5214 = vpop.f32.mrb[0].mxu0
      %5215 = vmatprep.mubr.f32.mxu0 0.0
      %5216 = vmatmul.mubr.f32.gmra.mrb[0].mxu0 %v3144
      %v5217 = vpop.f32.mrb[0].mxu0
      %v5218 = vadd.f32 0.0, %v5217
      %v5219 = vpop.f32.mrb[0].mxu0
      %5220 = vmatprep.mubr.f32.mxu0 0.0
      %5221 = vmatmul.mubr.f32.gmra.mrb[0].mxu0 %v3147
      %v5222 = vpop.f32.mrb[0].mxu0
      %v5223 = vadd.f32 0.0, %v5222
      %v5224 = vpop.f32.mrb[0].mxu0
      %5225 = vmatprep.mubr.f32.mxu0 0.0
      %5226 = vmatmul.mubr.f32.gmra.mrb[0].mxu0 %v3150
      %v5227 = vpop.f32.mrb[0].mxu0
      %v5228 = vadd.f32 0.0, %v5227
      %v5229 = vpop.f32.mrb[0].mxu0
      %5230 = vmatprep.mubr.f32.mxu0 0.0
      %5231 = vmatmul.mubr.f32.gmra.mrb[0].mxu0 %v3153
      %v5232 = vpop.f32.mrb[0].mxu0
      %v5233 = vadd.f32 0.0, %v5232
      %v5234 = vpop.f32.mrb[0].mxu0
      %5235 = vmatprep.mubr.f32.mxu0 0.0
      %5236 = vmatmul.mubr.f32.gmra.mrb[0].mxu0 %v3156
      %v5237 = vpop.f32.mrb[0].mxu0
      %v5238 = vadd.f32 0.0, %v5237
      %v5239 = vpop.f32.mrb[0].mxu0
      %5240 = vmatprep.mubr.f32.mxu0 0.0
      %5241 = vmatmul.mubr.f32.gmra.mrb[0].mxu0 %v3159
      %v5242 = vpop.f32.mrb[0].mxu0
      %v5243 = vadd.f32 0.0, %v5242
      %v5244 = vpop.f32.mrb[0].mxu0
      %5245 = vmatprep.mubr.f32.mxu0 0.0
      %5246 = vmatmul.mubr.f32.gmra.mrb[0].mxu0 %v3162
      %v5247 = vpop.f32.mrb[0].mxu0
      %v5248 = vadd.f32 0.0, %v5247
      %v5249 = vpop.f32.mrb[0].mxu0
      %5250 = vmatprep.mubr.f32.mxu0 0.0
      %5251 = vmatmul.mubr.f32.gmra.mrb[0].mxu0 %v3165
      %v5252 = vpop.f32.mrb[0].mxu0
      %v5253 = vadd.f32 0.0, %v5252
      %v5254 = vpop.f32.mrb[0].mxu0
      %5255 = vmatprep.mubr.f32.mxu0 0.0
      %5256 = vmatmul.mubr.f32.gmra.mrb[0].mxu0 %v3168
      %v5257 = vpop.f32.mrb[0].mxu0
      %v5258 = vadd.f32 0.0, %v5257
      %v5259 = vpop.f32.mrb[0].mxu0
      %5260 = vmatprep.mubr.f32.mxu0 0.0
      %5261 = vmatmul.mubr.f32.gmra.mrb[0].mxu0 %v3171
      %v5262 = vpop.f32.mrb[0].mxu0
      %v5263 = vadd.f32 0.0, %v5262
      %v5264 = vpop.f32.mrb[0].mxu0
      %5265 = vmatprep.mubr.f32.mxu0 0.0
      %5266 = vmatmul.mubr.f32.gmra.mrb[0].mxu0 %v3174
      %v5267 = vpop.f32.mrb[0].mxu0
      %v5268 = vadd.f32 0.0, %v5267
      %v5269 = vpop.f32.mrb[0].mxu0
      %5270 = vmatprep.mubr.f32.mxu0 0.0
      %5271 = vmatmul.mubr.f32.gmra.mrb[0].mxu0 %v3177
      %v5272 = vpop.f32.mrb[0].mxu0
      %v5273 = vadd.f32 0.0, %v5272
      %v5274 = vpop.f32.mrb[0].mxu0
      %5275 = vmatprep.mubr.f32.mxu0 0.0
      %5276 = vmatmul.mubr.f32.gmra.mrb[0].mxu0 %v3180
      %v5277 = vpop.f32.mrb[0].mxu0
      %v5278 = vadd.f32 0.0, %v5277
      %v5279 = vpop.f32.mrb[0].mxu0
      %5280 = vmatprep.mubr.f32.mxu0 0.0
      %5281 = vmatmul.mubr.f32.gmra.mrb[0].mxu0 %v3183
      %v5282 = vpop.f32.mrb[0].mxu0
      %v5283 = vadd.f32 0.0, %v5282
      %v5284 = vpop.f32.mrb[0].mxu0
      %5285 = vmatprep.mubr.f32.mxu0 0.0
      %5286 = vmatmul.mubr.f32.gmra.mrb[0].mxu0 %v3186
      %v5287 = vpop.f32.mrb[0].mxu0
      %v5288 = vadd.f32 0.0, %v5287
      %v5289 = vpop.f32.mrb[0].mxu0
      %5290 = vmatprep.mubr.f32.mxu0 0.0
      %5291 = vmatmul.mubr.f32.gmra.mrb[0].mxu0 %v3189
      %v5292 = vpop.f32.mrb[0].mxu0
      %v5293 = vadd.f32 0.0, %v5292
      %v5294 = vpop.f32.mrb[0].mxu0
      %5295 = vmatprep.mubr.f32.mxu0 0.0
      %5296 = vmatmul.mubr.f32.gmra.mrb[0].mxu0 %v3192
      %v5297 = vpop.f32.mrb[0].mxu0
      %v5298 = vadd.f32 0.0, %v5297
      %v5299 = vpop.f32.mrb[0].mxu0
      %5300 = vmatprep.mubr.f32.mxu0 0.0
      %5301 = vmatmul.mubr.f32.gmra.mrb[0].mxu0 %v3195
      %v5302 = vpop.f32.mrb[0].mxu0
      %v5303 = vadd.f32 0.0, %v5302
      %v5304 = vpop.f32.mrb[0].mxu0
      %5305 = vmatprep.mubr.f32.mxu0 0.0
      %5306 = vmatmul.mubr.f32.gmra.mrb[0].mxu0 %v3198
      %v5307 = vpop.f32.mrb[0].mxu0
      %v5308 = vadd.f32 0.0, %v5307
      %v5309 = vpop.f32.mrb[0].mxu0
      %5310 = vmatprep.mubr.f32.mxu0 0.0
      %5311 = vmatmul.mubr.f32.gmra.mrb[0].mxu0 %v3201
      %v5312 = vpop.f32.mrb[0].mxu0
      %v5313 = vadd.f32 0.0, %v5312
      %v5314 = vpop.f32.mrb[0].mxu0
      %5315 = vmatprep.mubr.f32.mxu0 0.0
      %5316 = vmatmul.mubr.f32.gmra.mrb[0].mxu0 %v3204
      %v5317 = vpop.f32.mrb[0].mxu0
      %v5318 = vadd.f32 0.0, %v5317
      %v5319 = vpop.f32.mrb[0].mxu0
      %5320 = vmatprep.mubr.f32.mxu0 0.0
      %5321 = vmatmul.mubr.f32.gmra.mrb[0].mxu0 %v4297
      %v5322 = vpop.f32.mrb[0].mxu0
      %v5323 = vadd.f32 0.0, %v5322
      %v5324 = vpop.f32.mrb[0].mxu0
      %5325 = vmatprep.mubr.f32.mxu0 0.0
      %5326 = vmatmul.mubr.f32.gmra.mrb[0].mxu0 %v4300
      %v5327 = vpop.f32.mrb[0].mxu0
      %v5328 = vadd.f32 0.0, %v5327
      %v5329 = vpop.f32.mrb[0].mxu0
      %5330 = vmatprep.mubr.f32.mxu0 0.0
      %5331 = vmatmul.mubr.f32.gmra.mrb[0].mxu0 %v5108
      %v5332 = vpop.f32.mrb[0].mxu0
      %v5333 = vadd.f32 0.0, %v5332
      %v5334 = vpop.f32.mrb[0].mxu0
      %5335 = vmatprep.mubr.f32.mxu0 0.0
      %5336 = vmatmul.mubr.f32.gmra.mrb[0].mxu0 %v5111
      %v5337 = vpop.f32.mrb[0].mxu0
      %v5338 = vadd.f32 0.0, %v5337
      %v5339 = vpop.f32.mrb[0].mxu0
      %5340 = vdwg.mxu0
      %v5341 = vadd.f32 %v5073, %v5183
      %v5342 = vadd.f32 %v5074, %v5188
      %v5343 = vadd.f32 %v5075, %v5193
      %v5344 = vadd.f32 %v5076, %v5198
      %v5345 = vadd.f32 %v5077, %v5203
      %v5346 = vadd.f32 %v5078, %v5208
      %v5347 = vadd.f32 %v5079, %v5213
      %v5348 = vadd.f32 %v5080, %v5218
      %v5349 = vadd.f32 %v5081, %v5223
      %v5350 = vadd.f32 %v5082, %v5228
      %v5351 = vadd.f32 %v5083, %v5233
      %v5352 = vadd.f32 %v5084, %v5238
      %v5353 = vadd.f32 %v5085, %v5243
      %v5354 = vadd.f32 %v5086, %v5248
      %v5355 = vadd.f32 %v5087, %v5253
      %v5356 = vadd.f32 %v5088, %v5258
      %v5357 = vadd.f32 %v5089, %v5263
      %v5358 = vadd.f32 %v5090, %v5268
      %v5359 = vadd.f32 %v5091, %v5273
      %v5360 = vadd.f32 %v5092, %v5278
      %v5361 = vadd.f32 %v5093, %v5283
      %v5362 = vadd.f32 %v5094, %v5288
      %v5363 = vadd.f32 %v5095, %v5293
      %v5364 = vadd.f32 %v5096, %v5298
      %v5365 = vadd.f32 %v5097, %v5303
      %v5366 = vadd.f32 %v5098, %v5308
      %v5367 = vadd.f32 %v5099, %v5313
      %v5368 = vadd.f32 %v5100, %v5318
      %v5369 = vadd.f32 %v5101, %v5323
      %v5370 = vadd.f32 %v5102, %v5328
      %v5371 = vadd.f32 %v5103, %v5333
      %v5372 = vadd.f32 %v5104, %v5338
      %v5374 = vrot.slane %v3105, 1
      %v5375 = vrot.slane %v3106, 1
      %v5376 = vsel %vm353, %v5374, %v5375
      %v5377 = vrot.slane %v3107, 1
      %v5378 = vsel %vm353, %v5375, %v5377
      %s5379 = scalar_lea.vmem %s1, 64
      %v5380 = vld [vmem:[%s5379] sm:$0xf]
      %v5381 = vsel %vm436, %v5376, 0
      %v5383 = vsel %vm436, %v5378, 0
      %v5386 = vsel %vm501, %v5380, 0
      %5388 = vmatprep.subr.mxu0 0.0
      %5389 = vmatpush1.msra.mxu0 %v5386
      %5390 = vmatprep.subr.mxu0 0.0
      %5391 = vmatpush1.msra.mxu0 0.0
      %5392 = vmatprep.subr.mxu0 0.0
      %5393 = vmatpush1.msra.mxu0 0.0
      %5394 = vmatprep.subr.mxu0 0.0
      %5395 = vmatpush1.msra.mxu0 0.0
      %5396 = vmatprep.subr.mxu0 0.0
      %5397 = vmatpush1.msra.mxu0 0.0
      %5398 = vmatprep.subr.mxu0 0.0
      %5399 = vmatpush1.msra.mxu0 0.0
      %5400 = vmatprep.subr.mxu0 0.0
      %5401 = vmatpush1.msra.mxu0 0.0
      %5402 = vmatprep.subr.mxu0 0.0
      %5403 = vmatpush1.msra.mxu0 0.0
      %5404 = vmatprep.subr.mxu0 0.0
      %5405 = vmatpush1.msra.mxu0 0.0
      %5406 = vmatprep.subr.mxu0 0.0
      %5407 = vmatpush1.msra.mxu0 0.0
      %5408 = vmatprep.subr.mxu0 0.0
      %5409 = vmatpush1.msra.mxu0 0.0
      %5410 = vmatprep.subr.mxu0 0.0
      %5411 = vmatpush1.msra.mxu0 0.0
      %5412 = vmatprep.subr.mxu0 0.0
      %5413 = vmatpush1.msra.mxu0 0.0
      %5414 = vmatprep.subr.mxu0 0.0
      %5415 = vmatpush1.msra.mxu0 0.0
      %5416 = vmatprep.subr.mxu0 0.0
      %5417 = vmatpush1.msra.mxu0 0.0
      %5418 = vmatprep.subr.mxu0 0.0
      %5419 = vmatpush1.msra.mxu0 0.0
      %5420 = vmatprep.subr.mxu0 0.0
      %5421 = vmatpush1.msra.mxu0 0.0
      %5422 = vmatprep.subr.mxu0 0.0
      %5423 = vmatpush1.msra.mxu0 0.0
      %5424 = vmatprep.subr.mxu0 0.0
      %5425 = vmatpush1.msra.mxu0 0.0
      %5426 = vmatprep.subr.mxu0 0.0
      %5427 = vmatpush1.msra.mxu0 0.0
      %5428 = vmatprep.subr.mxu0 0.0
      %5429 = vmatpush1.msra.mxu0 0.0
      %5430 = vmatprep.subr.mxu0 0.0
      %5431 = vmatpush1.msra.mxu0 0.0
      %5432 = vmatprep.subr.mxu0 0.0
      %5433 = vmatpush1.msra.mxu0 0.0
      %5434 = vmatprep.subr.mxu0 0.0
      %5435 = vmatpush1.msra.mxu0 0.0
      %5436 = vmatprep.subr.mxu0 0.0
      %5437 = vmatpush1.msra.mxu0 0.0
      %5438 = vmatprep.subr.mxu0 0.0
      %5439 = vmatpush1.msra.mxu0 0.0
      %5440 = vmatprep.subr.mxu0 0.0
      %5441 = vmatpush1.msra.mxu0 0.0
      %5442 = vmatprep.subr.mxu0 0.0
      %5443 = vmatpush1.msra.mxu0 0.0
      %5444 = vmatprep.subr.mxu0 0.0
      %5445 = vmatpush1.msra.mxu0 0.0
      %5446 = vmatprep.subr.mxu0 0.0
      %5447 = vmatpush1.msra.mxu0 0.0
      %5448 = vmatprep.subr.mxu0 0.0
      %5449 = vmatpush1.msra.mxu0 0.0
      %5450 = vmatprep.subr.mxu0 0.0
      %5451 = vmatpush1.msra.mxu0 0.0
      %5452 = vmatprep.mubr.f32.mxu0 0.0
      %5453 = vmatmul.mubr.f32.gmra.mrb[0].mxu0 %v3572
      %v5454 = vpop.f32.mrb[0].mxu0
      %v5455 = vadd.f32 0.0, %v5454
      %v5456 = vpop.f32.mrb[0].mxu0
      %5457 = vmatprep.mubr.f32.mxu0 0.0
      %5458 = vmatmul.mubr.f32.gmra.mrb[0].mxu0 %v3574
      %v5459 = vpop.f32.mrb[0].mxu0
      %v5460 = vadd.f32 0.0, %v5459
      %v5461 = vpop.f32.mrb[0].mxu0
      %5462 = vmatprep.mubr.f32.mxu0 0.0
      %5463 = vmatmul.mubr.f32.gmra.mrb[0].mxu0 %v3576
      %v5464 = vpop.f32.mrb[0].mxu0
      %v5465 = vadd.f32 0.0, %v5464
      %v5466 = vpop.f32.mrb[0].mxu0
      %5467 = vmatprep.mubr.f32.mxu0 0.0
      %5468 = vmatmul.mubr.f32.gmra.mrb[0].mxu0 %v3578
      %v5469 = vpop.f32.mrb[0].mxu0
      %v5470 = vadd.f32 0.0, %v5469
      %v5471 = vpop.f32.mrb[0].mxu0
      %5472 = vmatprep.mubr.f32.mxu0 0.0
      %5473 = vmatmul.mubr.f32.gmra.mrb[0].mxu0 %v3580
      %v5474 = vpop.f32.mrb[0].mxu0
      %v5475 = vadd.f32 0.0, %v5474
      %v5476 = vpop.f32.mrb[0].mxu0
      %5477 = vmatprep.mubr.f32.mxu0 0.0
      %5478 = vmatmul.mubr.f32.gmra.mrb[0].mxu0 %v3582
      %v5479 = vpop.f32.mrb[0].mxu0
      %v5480 = vadd.f32 0.0, %v5479
      %v5481 = vpop.f32.mrb[0].mxu0
      %5482 = vmatprep.mubr.f32.mxu0 0.0
      %5483 = vmatmul.mubr.f32.gmra.mrb[0].mxu0 %v3584
      %v5484 = vpop.f32.mrb[0].mxu0
      %v5485 = vadd.f32 0.0, %v5484
      %v5486 = vpop.f32.mrb[0].mxu0
      %5487 = vmatprep.mubr.f32.mxu0 0.0
      %5488 = vmatmul.mubr.f32.gmra.mrb[0].mxu0 %v3586
      %v5489 = vpop.f32.mrb[0].mxu0
      %v5490 = vadd.f32 0.0, %v5489
      %v5491 = vpop.f32.mrb[0].mxu0
      %5492 = vmatprep.mubr.f32.mxu0 0.0
      %5493 = vmatmul.mubr.f32.gmra.mrb[0].mxu0 %v3588
      %v5494 = vpop.f32.mrb[0].mxu0
      %v5495 = vadd.f32 0.0, %v5494
      %v5496 = vpop.f32.mrb[0].mxu0
      %5497 = vmatprep.mubr.f32.mxu0 0.0
      %5498 = vmatmul.mubr.f32.gmra.mrb[0].mxu0 %v3590
      %v5499 = vpop.f32.mrb[0].mxu0
      %v5500 = vadd.f32 0.0, %v5499
      %v5501 = vpop.f32.mrb[0].mxu0
      %5502 = vmatprep.mubr.f32.mxu0 0.0
      %5503 = vmatmul.mubr.f32.gmra.mrb[0].mxu0 %v3592
      %v5504 = vpop.f32.mrb[0].mxu0
      %v5505 = vadd.f32 0.0, %v5504
      %v5506 = vpop.f32.mrb[0].mxu0
      %5507 = vmatprep.mubr.f32.mxu0 0.0
      %5508 = vmatmul.mubr.f32.gmra.mrb[0].mxu0 %v3594
      %v5509 = vpop.f32.mrb[0].mxu0
      %v5510 = vadd.f32 0.0, %v5509
      %v5511 = vpop.f32.mrb[0].mxu0
      %5512 = vmatprep.mubr.f32.mxu0 0.0
      %5513 = vmatmul.mubr.f32.gmra.mrb[0].mxu0 %v3596
      %v5514 = vpop.f32.mrb[0].mxu0
      %v5515 = vadd.f32 0.0, %v5514
      %v5516 = vpop.f32.mrb[0].mxu0
      %5517 = vmatprep.mubr.f32.mxu0 0.0
      %5518 = vmatmul.mubr.f32.gmra.mrb[0].mxu0 %v3598
      %v5519 = vpop.f32.mrb[0].mxu0
      %v5520 = vadd.f32 0.0, %v5519
      %v5521 = vpop.f32.mrb[0].mxu0
      %5522 = vmatprep.mubr.f32.mxu0 0.0
      %5523 = vmatmul.mubr.f32.gmra.mrb[0].mxu0 %v3600
      %v5524 = vpop.f32.mrb[0].mxu0
      %v5525 = vadd.f32 0.0, %v5524
      %v5526 = vpop.f32.mrb[0].mxu0
      %5527 = vmatprep.mubr.f32.mxu0 0.0
      %5528 = vmatmul.mubr.f32.gmra.mrb[0].mxu0 %v3602
      %v5529 = vpop.f32.mrb[0].mxu0
      %v5530 = vadd.f32 0.0, %v5529
      %v5531 = vpop.f32.mrb[0].mxu0
      %5532 = vmatprep.mubr.f32.mxu0 0.0
      %5533 = vmatmul.mubr.f32.gmra.mrb[0].mxu0 %v3604
      %v5534 = vpop.f32.mrb[0].mxu0
      %v5535 = vadd.f32 0.0, %v5534
      %v5536 = vpop.f32.mrb[0].mxu0
      %5537 = vmatprep.mubr.f32.mxu0 0.0
      %5538 = vmatmul.mubr.f32.gmra.mrb[0].mxu0 %v3606
      %v5539 = vpop.f32.mrb[0].mxu0
      %v5540 = vadd.f32 0.0, %v5539
      %v5541 = vpop.f32.mrb[0].mxu0
      %5542 = vmatprep.mubr.f32.mxu0 0.0
      %5543 = vmatmul.mubr.f32.gmra.mrb[0].mxu0 %v3608
      %v5544 = vpop.f32.mrb[0].mxu0
      %v5545 = vadd.f32 0.0, %v5544
      %v5546 = vpop.f32.mrb[0].mxu0
      %5547 = vmatprep.mubr.f32.mxu0 0.0
      %5548 = vmatmul.mubr.f32.gmra.mrb[0].mxu0 %v3610
      %v5549 = vpop.f32.mrb[0].mxu0
      %v5550 = vadd.f32 0.0, %v5549
      %v5551 = vpop.f32.mrb[0].mxu0
      %5552 = vmatprep.mubr.f32.mxu0 0.0
      %5553 = vmatmul.mubr.f32.gmra.mrb[0].mxu0 %v3612
      %v5554 = vpop.f32.mrb[0].mxu0
      %v5555 = vadd.f32 0.0, %v5554
      %v5556 = vpop.f32.mrb[0].mxu0
      %5557 = vmatprep.mubr.f32.mxu0 0.0
      %5558 = vmatmul.mubr.f32.gmra.mrb[0].mxu0 %v3614
      %v5559 = vpop.f32.mrb[0].mxu0
      %v5560 = vadd.f32 0.0, %v5559
      %v5561 = vpop.f32.mrb[0].mxu0
      %5562 = vmatprep.mubr.f32.mxu0 0.0
      %5563 = vmatmul.mubr.f32.gmra.mrb[0].mxu0 %v3616
      %v5564 = vpop.f32.mrb[0].mxu0
      %v5565 = vadd.f32 0.0, %v5564
      %v5566 = vpop.f32.mrb[0].mxu0
      %5567 = vmatprep.mubr.f32.mxu0 0.0
      %5568 = vmatmul.mubr.f32.gmra.mrb[0].mxu0 %v3618
      %v5569 = vpop.f32.mrb[0].mxu0
      %v5570 = vadd.f32 0.0, %v5569
      %v5571 = vpop.f32.mrb[0].mxu0
      %5572 = vmatprep.mubr.f32.mxu0 0.0
      %5573 = vmatmul.mubr.f32.gmra.mrb[0].mxu0 %v3620
      %v5574 = vpop.f32.mrb[0].mxu0
      %v5575 = vadd.f32 0.0, %v5574
      %v5576 = vpop.f32.mrb[0].mxu0
      %5577 = vmatprep.mubr.f32.mxu0 0.0
      %5578 = vmatmul.mubr.f32.gmra.mrb[0].mxu0 %v3622
      %v5579 = vpop.f32.mrb[0].mxu0
      %v5580 = vadd.f32 0.0, %v5579
      %v5581 = vpop.f32.mrb[0].mxu0
      %5582 = vmatprep.mubr.f32.mxu0 0.0
      %5583 = vmatmul.mubr.f32.gmra.mrb[0].mxu0 %v3624
      %v5584 = vpop.f32.mrb[0].mxu0
      %v5585 = vadd.f32 0.0, %v5584
      %v5586 = vpop.f32.mrb[0].mxu0
      %5587 = vmatprep.mubr.f32.mxu0 0.0
      %5588 = vmatmul.mubr.f32.gmra.mrb[0].mxu0 %v3626
      %v5589 = vpop.f32.mrb[0].mxu0
      %v5590 = vadd.f32 0.0, %v5589
      %v5591 = vpop.f32.mrb[0].mxu0
      %5592 = vmatprep.mubr.f32.mxu0 0.0
      %5593 = vmatmul.mubr.f32.gmra.mrb[0].mxu0 %v4570
      %v5594 = vpop.f32.mrb[0].mxu0
      %v5595 = vadd.f32 0.0, %v5594
      %v5596 = vpop.f32.mrb[0].mxu0
      %5597 = vmatprep.mubr.f32.mxu0 0.0
      %5598 = vmatmul.mubr.f32.gmra.mrb[0].mxu0 %v4572
      %v5599 = vpop.f32.mrb[0].mxu0
      %v5600 = vadd.f32 0.0, %v5599
      %v5601 = vpop.f32.mrb[0].mxu0
      %5602 = vmatprep.mubr.f32.mxu0 0.0
      %5603 = vmatmul.mubr.f32.gmra.mrb[0].mxu0 %v5381
      %v5604 = vpop.f32.mrb[0].mxu0
      %v5605 = vadd.f32 0.0, %v5604
      %v5606 = vpop.f32.mrb[0].mxu0
      %5607 = vmatprep.mubr.f32.mxu0 0.0
      %5608 = vmatmul.mubr.f32.gmra.mrb[0].mxu0 %v5383
      %v5609 = vpop.f32.mrb[0].mxu0
      %v5610 = vadd.f32 0.0, %v5609
      %v5611 = vpop.f32.mrb[0].mxu0
      %5612 = vdwg.mxu0
      %v5613 = vadd.f32 %v5341, %v5455
      %v5614 = vadd.f32 %v5342, %v5460
      %v5615 = vadd.f32 %v5343, %v5465
      %v5616 = vadd.f32 %v5344, %v5470
      %v5617 = vadd.f32 %v5345, %v5475
      %v5618 = vadd.f32 %v5346, %v5480
      %v5619 = vadd.f32 %v5347, %v5485
      %v5620 = vadd.f32 %v5348, %v5490
      %v5621 = vadd.f32 %v5349, %v5495
      %v5622 = vadd.f32 %v5350, %v5500
      %v5623 = vadd.f32 %v5351, %v5505
      %v5624 = vadd.f32 %v5352, %v5510
      %v5625 = vadd.f32 %v5353, %v5515
      %v5626 = vadd.f32 %v5354, %v5520
      %v5627 = vadd.f32 %v5355, %v5525
      %v5628 = vadd.f32 %v5356, %v5530
      %v5629 = vadd.f32 %v5357, %v5535
      %v5630 = vadd.f32 %v5358, %v5540
      %v5631 = vadd.f32 %v5359, %v5545
      %v5632 = vadd.f32 %v5360, %v5550
      %v5633 = vadd.f32 %v5361, %v5555
      %v5634 = vadd.f32 %v5362, %v5560
      %v5635 = vadd.f32 %v5363, %v5565
      %v5636 = vadd.f32 %v5364, %v5570
      %v5637 = vadd.f32 %v5365, %v5575
      %v5638 = vadd.f32 %v5366, %v5580
      %v5639 = vadd.f32 %v5367, %v5585
      %v5640 = vadd.f32 %v5368, %v5590
      %v5641 = vadd.f32 %v5369, %v5595
      %v5642 = vadd.f32 %v5370, %v5600
      %v5643 = vadd.f32 %v5371, %v5605
      %v5644 = vadd.f32 %v5372, %v5610
      %v5645 = vrot.slane %v3105, 2
      %v5646 = vrot.slane %v3106, 2
      %v5647 = vsel %vm1022, %v5645, %v5646
      %v5648 = vrot.slane %v3107, 2
      %v5649 = vsel %vm1022, %v5646, %v5648
      %s5650 = scalar_lea.vmem %s1, 68
      %v5651 = vld [vmem:[%s5650] sm:$0xf]
      %v5652 = vsel %vm436, %v5647, 0
      %v5654 = vsel %vm436, %v5649, 0
      %v5657 = vsel %vm501, %v5651, 0
      %5659 = vmatprep.subr.mxu0 0.0
      %5660 = vmatpush1.msra.mxu0 %v5657
      %5661 = vmatprep.subr.mxu0 0.0
      %5662 = vmatpush1.msra.mxu0 0.0
      %5663 = vmatprep.subr.mxu0 0.0
      %5664 = vmatpush1.msra.mxu0 0.0
      %5665 = vmatprep.subr.mxu0 0.0
      %5666 = vmatpush1.msra.mxu0 0.0
      %5667 = vmatprep.subr.mxu0 0.0
      %5668 = vmatpush1.msra.mxu0 0.0
      %5669 = vmatprep.subr.mxu0 0.0
      %5670 = vmatpush1.msra.mxu0 0.0
      %5671 = vmatprep.subr.mxu0 0.0
      %5672 = vmatpush1.msra.mxu0 0.0
      %5673 = vmatprep.subr.mxu0 0.0
      %5674 = vmatpush1.msra.mxu0 0.0
      %5675 = vmatprep.subr.mxu0 0.0
      %5676 = vmatpush1.msra.mxu0 0.0
      %5677 = vmatprep.subr.mxu0 0.0
      %5678 = vmatpush1.msra.mxu0 0.0
      %5679 = vmatprep.subr.mxu0 0.0
      %5680 = vmatpush1.msra.mxu0 0.0
      %5681 = vmatprep.subr.mxu0 0.0
      %5682 = vmatpush1.msra.mxu0 0.0
      %5683 = vmatprep.subr.mxu0 0.0
      %5684 = vmatpush1.msra.mxu0 0.0
      %5685 = vmatprep.subr.mxu0 0.0
      %5686 = vmatpush1.msra.mxu0 0.0
      %5687 = vmatprep.subr.mxu0 0.0
      %5688 = vmatpush1.msra.mxu0 0.0
      %5689 = vmatprep.subr.mxu0 0.0
      %5690 = vmatpush1.msra.mxu0 0.0
      %5691 = vmatprep.subr.mxu0 0.0
      %5692 = vmatpush1.msra.mxu0 0.0
      %5693 = vmatprep.subr.mxu0 0.0
      %5694 = vmatpush1.msra.mxu0 0.0
      %5695 = vmatprep.subr.mxu0 0.0
      %5696 = vmatpush1.msra.mxu0 0.0
      %5697 = vmatprep.subr.mxu0 0.0
      %5698 = vmatpush1.msra.mxu0 0.0
      %5699 = vmatprep.subr.mxu0 0.0
      %5700 = vmatpush1.msra.mxu0 0.0
      %5701 = vmatprep.subr.mxu0 0.0
      %5702 = vmatpush1.msra.mxu0 0.0
      %5703 = vmatprep.subr.mxu0 0.0
      %5704 = vmatpush1.msra.mxu0 0.0
      %5705 = vmatprep.subr.mxu0 0.0
      %5706 = vmatpush1.msra.mxu0 0.0
      %5707 = vmatprep.subr.mxu0 0.0
      %5708 = vmatpush1.msra.mxu0 0.0
      %5709 = vmatprep.subr.mxu0 0.0
      %5710 = vmatpush1.msra.mxu0 0.0
      %5711 = vmatprep.subr.mxu0 0.0
      %5712 = vmatpush1.msra.mxu0 0.0
      %5713 = vmatprep.subr.mxu0 0.0
      %5714 = vmatpush1.msra.mxu0 0.0
      %5715 = vmatprep.subr.mxu0 0.0
      %5716 = vmatpush1.msra.mxu0 0.0
      %5717 = vmatprep.subr.mxu0 0.0
      %5718 = vmatpush1.msra.mxu0 0.0
      %5719 = vmatprep.subr.mxu0 0.0
      %5720 = vmatpush1.msra.mxu0 0.0
      %5721 = vmatprep.subr.mxu0 0.0
      %5722 = vmatpush1.msra.mxu0 0.0
      %5723 = vmatprep.mubr.f32.mxu0 0.0
      %5724 = vmatmul.mubr.f32.gmra.mrb[0].mxu0 %v3978
      %v5725 = vpop.f32.mrb[0].mxu0
      %v5726 = vadd.f32 0.0, %v5725
      %v5727 = vpop.f32.mrb[0].mxu0
      %5728 = vmatprep.mubr.f32.mxu0 0.0
      %5729 = vmatmul.mubr.f32.gmra.mrb[0].mxu0 %v3980
      %v5730 = vpop.f32.mrb[0].mxu0
      %v5731 = vadd.f32 0.0, %v5730
      %v5732 = vpop.f32.mrb[0].mxu0
      %5733 = vmatprep.mubr.f32.mxu0 0.0
      %5734 = vmatmul.mubr.f32.gmra.mrb[0].mxu0 %v3982
      %v5735 = vpop.f32.mrb[0].mxu0
      %v5736 = vadd.f32 0.0, %v5735
      %v5737 = vpop.f32.mrb[0].mxu0
      %5738 = vmatprep.mubr.f32.mxu0 0.0
      %5739 = vmatmul.mubr.f32.gmra.mrb[0].mxu0 %v3984
      %v5740 = vpop.f32.mrb[0].mxu0
      %v5741 = vadd.f32 0.0, %v5740
      %v5742 = vpop.f32.mrb[0].mxu0
      %5743 = vmatprep.mubr.f32.mxu0 0.0
      %5744 = vmatmul.mubr.f32.gmra.mrb[0].mxu0 %v3986
      %v5745 = vpop.f32.mrb[0].mxu0
      %v5746 = vadd.f32 0.0, %v5745
      %v5747 = vpop.f32.mrb[0].mxu0
      %5748 = vmatprep.mubr.f32.mxu0 0.0
      %5749 = vmatmul.mubr.f32.gmra.mrb[0].mxu0 %v3988
      %v5750 = vpop.f32.mrb[0].mxu0
      %v5751 = vadd.f32 0.0, %v5750
      %v5752 = vpop.f32.mrb[0].mxu0
      %5753 = vmatprep.mubr.f32.mxu0 0.0
      %5754 = vmatmul.mubr.f32.gmra.mrb[0].mxu0 %v3990
      %v5755 = vpop.f32.mrb[0].mxu0
      %v5756 = vadd.f32 0.0, %v5755
      %v5757 = vpop.f32.mrb[0].mxu0
      %5758 = vmatprep.mubr.f32.mxu0 0.0
      %5759 = vmatmul.mubr.f32.gmra.mrb[0].mxu0 %v3992
      %v5760 = vpop.f32.mrb[0].mxu0
      %v5761 = vadd.f32 0.0, %v5760
      %v5762 = vpop.f32.mrb[0].mxu0
      %5763 = vmatprep.mubr.f32.mxu0 0.0
      %5764 = vmatmul.mubr.f32.gmra.mrb[0].mxu0 %v3994
      %v5765 = vpop.f32.mrb[0].mxu0
      %v5766 = vadd.f32 0.0, %v5765
      %v5767 = vpop.f32.mrb[0].mxu0
      %5768 = vmatprep.mubr.f32.mxu0 0.0
      %5769 = vmatmul.mubr.f32.gmra.mrb[0].mxu0 %v3996
      %v5770 = vpop.f32.mrb[0].mxu0
      %v5771 = vadd.f32 0.0, %v5770
      %v5772 = vpop.f32.mrb[0].mxu0
      %5773 = vmatprep.mubr.f32.mxu0 0.0
      %5774 = vmatmul.mubr.f32.gmra.mrb[0].mxu0 %v3998
      %v5775 = vpop.f32.mrb[0].mxu0
      %v5776 = vadd.f32 0.0, %v5775
      %v5777 = vpop.f32.mrb[0].mxu0
      %5778 = vmatprep.mubr.f32.mxu0 0.0
      %5779 = vmatmul.mubr.f32.gmra.mrb[0].mxu0 %v4000
      %v5780 = vpop.f32.mrb[0].mxu0
      %v5781 = vadd.f32 0.0, %v5780
      %v5782 = vpop.f32.mrb[0].mxu0
      %5783 = vmatprep.mubr.f32.mxu0 0.0
      %5784 = vmatmul.mubr.f32.gmra.mrb[0].mxu0 %v4002
      %v5785 = vpop.f32.mrb[0].mxu0
      %v5786 = vadd.f32 0.0, %v5785
      %v5787 = vpop.f32.mrb[0].mxu0
      %5788 = vmatprep.mubr.f32.mxu0 0.0
      %5789 = vmatmul.mubr.f32.gmra.mrb[0].mxu0 %v4004
      %v5790 = vpop.f32.mrb[0].mxu0
      %v5791 = vadd.f32 0.0, %v5790
      %v5792 = vpop.f32.mrb[0].mxu0
      %5793 = vmatprep.mubr.f32.mxu0 0.0
      %5794 = vmatmul.mubr.f32.gmra.mrb[0].mxu0 %v4006
      %v5795 = vpop.f32.mrb[0].mxu0
      %v5796 = vadd.f32 0.0, %v5795
      %v5797 = vpop.f32.mrb[0].mxu0
      %5798 = vmatprep.mubr.f32.mxu0 0.0
      %5799 = vmatmul.mubr.f32.gmra.mrb[0].mxu0 %v4008
      %v5800 = vpop.f32.mrb[0].mxu0
      %v5801 = vadd.f32 0.0, %v5800
      %v5802 = vpop.f32.mrb[0].mxu0
      %5803 = vmatprep.mubr.f32.mxu0 0.0
      %5804 = vmatmul.mubr.f32.gmra.mrb[0].mxu0 %v4010
      %v5805 = vpop.f32.mrb[0].mxu0
      %v5806 = vadd.f32 0.0, %v5805
      %v5807 = vpop.f32.mrb[0].mxu0
      %5808 = vmatprep.mubr.f32.mxu0 0.0
      %5809 = vmatmul.mubr.f32.gmra.mrb[0].mxu0 %v4012
      %v5810 = vpop.f32.mrb[0].mxu0
      %v5811 = vadd.f32 0.0, %v5810
      %v5812 = vpop.f32.mrb[0].mxu0
      %5813 = vmatprep.mubr.f32.mxu0 0.0
      %5814 = vmatmul.mubr.f32.gmra.mrb[0].mxu0 %v4014
      %v5815 = vpop.f32.mrb[0].mxu0
      %v5816 = vadd.f32 0.0, %v5815
      %v5817 = vpop.f32.mrb[0].mxu0
      %5818 = vmatprep.mubr.f32.mxu0 0.0
      %5819 = vmatmul.mubr.f32.gmra.mrb[0].mxu0 %v4016
      %v5820 = vpop.f32.mrb[0].mxu0
      %v5821 = vadd.f32 0.0, %v5820
      %v5822 = vpop.f32.mrb[0].mxu0
      %5823 = vmatprep.mubr.f32.mxu0 0.0
      %5824 = vmatmul.mubr.f32.gmra.mrb[0].mxu0 %v4018
      %v5825 = vpop.f32.mrb[0].mxu0
      %v5826 = vadd.f32 0.0, %v5825
      %v5827 = vpop.f32.mrb[0].mxu0
      %5828 = vmatprep.mubr.f32.mxu0 0.0
      %5829 = vmatmul.mubr.f32.gmra.mrb[0].mxu0 %v4020
      %v5830 = vpop.f32.mrb[0].mxu0
      %v5831 = vadd.f32 0.0, %v5830
      %v5832 = vpop.f32.mrb[0].mxu0
      %5833 = vmatprep.mubr.f32.mxu0 0.0
      %5834 = vmatmul.mubr.f32.gmra.mrb[0].mxu0 %v4022
      %v5835 = vpop.f32.mrb[0].mxu0
      %v5836 = vadd.f32 0.0, %v5835
      %v5837 = vpop.f32.mrb[0].mxu0
      %5838 = vmatprep.mubr.f32.mxu0 0.0
      %5839 = vmatmul.mubr.f32.gmra.mrb[0].mxu0 %v4024
      %v5840 = vpop.f32.mrb[0].mxu0
      %v5841 = vadd.f32 0.0, %v5840
      %v5842 = vpop.f32.mrb[0].mxu0
      %5843 = vmatprep.mubr.f32.mxu0 0.0
      %5844 = vmatmul.mubr.f32.gmra.mrb[0].mxu0 %v4026
      %v5845 = vpop.f32.mrb[0].mxu0
      %v5846 = vadd.f32 0.0, %v5845
      %v5847 = vpop.f32.mrb[0].mxu0
      %5848 = vmatprep.mubr.f32.mxu0 0.0
      %5849 = vmatmul.mubr.f32.gmra.mrb[0].mxu0 %v4028
      %v5850 = vpop.f32.mrb[0].mxu0
      %v5851 = vadd.f32 0.0, %v5850
      %v5852 = vpop.f32.mrb[0].mxu0
      %5853 = vmatprep.mubr.f32.mxu0 0.0
      %5854 = vmatmul.mubr.f32.gmra.mrb[0].mxu0 %v4030
      %v5855 = vpop.f32.mrb[0].mxu0
      %v5856 = vadd.f32 0.0, %v5855
      %v5857 = vpop.f32.mrb[0].mxu0
      %5858 = vmatprep.mubr.f32.mxu0 0.0
      %5859 = vmatmul.mubr.f32.gmra.mrb[0].mxu0 %v4032
      %v5860 = vpop.f32.mrb[0].mxu0
      %v5861 = vadd.f32 0.0, %v5860
      %v5862 = vpop.f32.mrb[0].mxu0
      %5863 = vmatprep.mubr.f32.mxu0 0.0
      %5864 = vmatmul.mubr.f32.gmra.mrb[0].mxu0 %v4841
      %v5865 = vpop.f32.mrb[0].mxu0
      %v5866 = vadd.f32 0.0, %v5865
      %v5867 = vpop.f32.mrb[0].mxu0
      %5868 = vmatprep.mubr.f32.mxu0 0.0
      %5869 = vmatmul.mubr.f32.gmra.mrb[0].mxu0 %v4843
      %v5870 = vpop.f32.mrb[0].mxu0
      %v5871 = vadd.f32 0.0, %v5870
      %v5872 = vpop.f32.mrb[0].mxu0
      %5873 = vmatprep.mubr.f32.mxu0 0.0
      %5874 = vmatmul.mubr.f32.gmra.mrb[0].mxu0 %v5652
      %v5875 = vpop.f32.mrb[0].mxu0
      %v5876 = vadd.f32 0.0, %v5875
      %v5877 = vpop.f32.mrb[0].mxu0
      %5878 = vmatprep.mubr.f32.mxu0 0.0
      %5879 = vmatmul.mubr.f32.gmra.mrb[0].mxu0 %v5654
      %v5880 = vpop.f32.mrb[0].mxu0
      %v5881 = vadd.f32 0.0, %v5880
      %v5882 = vpop.f32.mrb[0].mxu0
      %5883 = vdwg.mxu0
      %v5884 = vadd.f32 %v5613, %v5726
      %v5885 = vadd.f32 %v5614, %v5731
      %v5886 = vadd.f32 %v5615, %v5736
      %v5887 = vadd.f32 %v5616, %v5741
      %v5888 = vadd.f32 %v5617, %v5746
      %v5889 = vadd.f32 %v5618, %v5751
      %v5890 = vadd.f32 %v5619, %v5756
      %v5891 = vadd.f32 %v5620, %v5761
      %v5892 = vadd.f32 %v5621, %v5766
      %v5893 = vadd.f32 %v5622, %v5771
      %v5894 = vadd.f32 %v5623, %v5776
      %v5895 = vadd.f32 %v5624, %v5781
      %v5896 = vadd.f32 %v5625, %v5786
      %v5897 = vadd.f32 %v5626, %v5791
      %v5898 = vadd.f32 %v5627, %v5796
      %v5899 = vadd.f32 %v5628, %v5801
      %v5900 = vadd.f32 %v5629, %v5806
      %v5901 = vadd.f32 %v5630, %v5811
      %v5902 = vadd.f32 %v5631, %v5816
      %v5903 = vadd.f32 %v5632, %v5821
      %v5904 = vadd.f32 %v5633, %v5826
      %v5905 = vadd.f32 %v5634, %v5831
      %v5906 = vadd.f32 %v5635, %v5836
      %v5907 = vadd.f32 %v5636, %v5841
      %v5908 = vadd.f32 %v5637, %v5846
      %v5909 = vadd.f32 %v5638, %v5851
      %v5910 = vadd.f32 %v5639, %v5856
      %v5911 = vadd.f32 %v5640, %v5861
      %v5912 = vadd.f32 %v5641, %v5866
      %v5913 = vadd.f32 %v5642, %v5871
      %v5914 = vadd.f32 %v5643, %v5876
      %v5915 = vadd.f32 %v5644, %v5881
      %s5916 = sadd.s32 %s20, 2
      %s5917 = smul.u32 %s5916, 432
      %s5918 = scalar_lea.vmem %s232, %s5917
      %v5919 = vld [vmem:[%s5918] sm:$0xff]
      %v5920 = vld [vmem:[%s5918 + $0x8] sm:$0xff]
      %v5921 = vld [vmem:[%s5918 + $0x10] sm:$0x3]
      %v5922 = vld [vmem:[%s5918 + $0x18] sm:$0xff]
      %v5923 = vld [vmem:[%s5918 + $0x20] sm:$0xff]
      %v5924 = vld [vmem:[%s5918 + $0x28] sm:$0x3]
      %v5925 = vld [vmem:[%s5918 + $0x30] sm:$0xff]
      %v5926 = vld [vmem:[%s5918 + $0x38] sm:$0xff]
      %v5927 = vld [vmem:[%s5918 + $0x40] sm:$0x3]
      %v5928 = vld [vmem:[%s5918 + $0x48] sm:$0xff]
      %v5929 = vld [vmem:[%s5918 + $0x50] sm:$0xff]
      %v5930 = vld [vmem:[%s5918 + $0x58] sm:$0x3]
      %v5931 = vld [vmem:[%s5918 + $0x60] sm:$0xff]
      %v5932 = vld [vmem:[%s5918 + $0x68] sm:$0xff]
      %v5933 = vld [vmem:[%s5918 + $0x70] sm:$0x3]
      %v5934 = vld [vmem:[%s5918 + $0x78] sm:$0xff]
      %v5935 = vld [vmem:[%s5918 + $0x80] sm:$0xff]
      %v5936 = vld [vmem:[%s5918 + $0x88] sm:$0x3]
      %v5937 = vld [vmem:[%s5918 + $0x90] sm:$0xff]
      %v5938 = vld [vmem:[%s5918 + $0x98] sm:$0xff]
      %v5939 = vld [vmem:[%s5918 + $0xa0] sm:$0x3]
      %v5940 = vld [vmem:[%s5918 + $0xa8] sm:$0xff]
      %v5941 = vld [vmem:[%s5918 + $0xb0] sm:$0xff]
      %v5942 = vld [vmem:[%s5918 + $0xb8] sm:$0x3]
      %v5943 = vld [vmem:[%s5918 + $0xc0] sm:$0xff]
      %v5944 = vld [vmem:[%s5918 + $0xc8] sm:$0xff]
      %v5945 = vld [vmem:[%s5918 + $0xd0] sm:$0x3]
      %v5946 = vld [vmem:[%s5918 + $0xd8] sm:$0xff]
      %v5947 = vld [vmem:[%s5918 + $0xe0] sm:$0xff]
      %v5948 = vld [vmem:[%s5918 + $0xe8] sm:$0x3]
      %v5949 = vld [vmem:[%s5918 + $0xf0] sm:$0xff]
      %v5950 = vld [vmem:[%s5918 + $0xf8] sm:$0xff]
      %v5951 = vld [vmem:[%s5918 + $0x100] sm:$0x3]
      %v5952 = vld [vmem:[%s5918 + $0x108] sm:$0xff]
      %v5953 = vld [vmem:[%s5918 + $0x110] sm:$0xff]
      %v5954 = vld [vmem:[%s5918 + $0x118] sm:$0x3]
      %v5955 = vld [vmem:[%s5918 + $0x120] sm:$0xff]
      %v5956 = vld [vmem:[%s5918 + $0x128] sm:$0xff]
      %v5957 = vld [vmem:[%s5918 + $0x130] sm:$0x3]
      %v5958 = vld [vmem:[%s5918 + $0x138] sm:$0xff]
      %v5959 = vld [vmem:[%s5918 + $0x140] sm:$0xff]
      %v5960 = vld [vmem:[%s5918 + $0x148] sm:$0x3]
      %v5961 = vld [vmem:[%s5918 + $0x150] sm:$0xff]
      %v5962 = vld [vmem:[%s5918 + $0x158] sm:$0xff]
      %v5963 = vld [vmem:[%s5918 + $0x160] sm:$0x3]
      %v5964 = vld [vmem:[%s5918 + $0x168] sm:$0xff]
      %v5965 = vld [vmem:[%s5918 + $0x170] sm:$0xff]
      %v5966 = vld [vmem:[%s5918 + $0x178] sm:$0x3]
      %v5967 = vld [vmem:[%s5918 + $0x180] sm:$0xff]
      %v5968 = vld [vmem:[%s5918 + $0x188] sm:$0xff]
      %v5969 = vld [vmem:[%s5918 + $0x190] sm:$0x3]
      %v5970 = vld [vmem:[%s5918 + $0x198] sm:$0xff]
      %v5971 = vld [vmem:[%s5918 + $0x1a0] sm:$0xff]
      %v5972 = vld [vmem:[%s5918 + $0x1a8] sm:$0x3]
      %s5973 = scalar_lea.vmem %s1, 72
      %v5974 = vld [vmem:[%s5973] sm:$0xf]
      %v5976 = vsel %vm436, %v5919, 0
      %v5979 = vsel %vm436, %v5920, 0
      %v5982 = vsel %vm436, %v5922, 0
      %v5985 = vsel %vm436, %v5923, 0
      %v5988 = vsel %vm436, %v5925, 0
      %v5991 = vsel %vm436, %v5926, 0
      %v5994 = vsel %vm436, %v5928, 0
      %v5997 = vsel %vm436, %v5929, 0
      %v6000 = vsel %vm436, %v5931, 0
      %v6003 = vsel %vm436, %v5932, 0
      %v6006 = vsel %vm436, %v5934, 0
      %v6009 = vsel %vm436, %v5935, 0
      %v6012 = vsel %vm436, %v5937, 0
      %v6015 = vsel %vm436, %v5938, 0
      %v6018 = vsel %vm436, %v5940, 0
      %v6021 = vsel %vm436, %v5941, 0
      %v6024 = vsel %vm436, %v5943, 0
      %v6027 = vsel %vm436, %v5944, 0
      %v6030 = vsel %vm436, %v5946, 0
      %v6033 = vsel %vm436, %v5947, 0
      %v6036 = vsel %vm436, %v5949, 0
      %v6039 = vsel %vm436, %v5950, 0
      %v6042 = vsel %vm436, %v5952, 0
      %v6045 = vsel %vm436, %v5953, 0
      %v6048 = vsel %vm436, %v5955, 0
      %v6051 = vsel %vm436, %v5956, 0
      %v6054 = vsel %vm436, %v5958, 0
      %v6057 = vsel %vm436, %v5959, 0
      %v6060 = vsel %vm436, %v5961, 0
      %v6063 = vsel %vm436, %v5962, 0
      %v6066 = vsel %vm436, %v5964, 0
      %v6069 = vsel %vm436, %v5965, 0
      %v6072 = vsel %vm501, %v5974, 0
      %6074 = vmatprep.subr.mxu0 0.0
      %6075 = vmatpush1.msra.mxu0 %v6072
      %6076 = vmatprep.subr.mxu0 0.0
      %6077 = vmatpush1.msra.mxu0 0.0
      %6078 = vmatprep.subr.mxu0 0.0
      %6079 = vmatpush1.msra.mxu0 0.0
      %6080 = vmatprep.subr.mxu0 0.0
      %6081 = vmatpush1.msra.mxu0 0.0
      %6082 = vmatprep.subr.mxu0 0.0
      %6083 = vmatpush1.msra.mxu0 0.0
      %6084 = vmatprep.subr.mxu0 0.0
      %6085 = vmatpush1.msra.mxu0 0.0
      %6086 = vmatprep.subr.mxu0 0.0
      %6087 = vmatpush1.msra.mxu0 0.0
      %6088 = vmatprep.subr.mxu0 0.0
      %6089 = vmatpush1.msra.mxu0 0.0
      %6090 = vmatprep.subr.mxu0 0.0
      %6091 = vmatpush1.msra.mxu0 0.0
      %6092 = vmatprep.subr.mxu0 0.0
      %6093 = vmatpush1.msra.mxu0 0.0
      %6094 = vmatprep.subr.mxu0 0.0
      %6095 = vmatpush1.msra.mxu0 0.0
      %6096 = vmatprep.subr.mxu0 0.0
      %6097 = vmatpush1.msra.mxu0 0.0
      %6098 = vmatprep.subr.mxu0 0.0
      %6099 = vmatpush1.msra.mxu0 0.0
      %6100 = vmatprep.subr.mxu0 0.0
      %6101 = vmatpush1.msra.mxu0 0.0
      %6102 = vmatprep.subr.mxu0 0.0
      %6103 = vmatpush1.msra.mxu0 0.0
      %6104 = vmatprep.subr.mxu0 0.0
      %6105 = vmatpush1.msra.mxu0 0.0
      %6106 = vmatprep.subr.mxu0 0.0
      %6107 = vmatpush1.msra.mxu0 0.0
      %6108 = vmatprep.subr.mxu0 0.0
      %6109 = vmatpush1.msra.mxu0 0.0
      %6110 = vmatprep.subr.mxu0 0.0
      %6111 = vmatpush1.msra.mxu0 0.0
      %6112 = vmatprep.subr.mxu0 0.0
      %6113 = vmatpush1.msra.mxu0 0.0
      %6114 = vmatprep.subr.mxu0 0.0
      %6115 = vmatpush1.msra.mxu0 0.0
      %6116 = vmatprep.subr.mxu0 0.0
      %6117 = vmatpush1.msra.mxu0 0.0
      %6118 = vmatprep.subr.mxu0 0.0
      %6119 = vmatpush1.msra.mxu0 0.0
      %6120 = vmatprep.subr.mxu0 0.0
      %6121 = vmatpush1.msra.mxu0 0.0
      %6122 = vmatprep.subr.mxu0 0.0
      %6123 = vmatpush1.msra.mxu0 0.0
      %6124 = vmatprep.subr.mxu0 0.0
      %6125 = vmatpush1.msra.mxu0 0.0
      %6126 = vmatprep.subr.mxu0 0.0
      %6127 = vmatpush1.msra.mxu0 0.0
      %6128 = vmatprep.subr.mxu0 0.0
      %6129 = vmatpush1.msra.mxu0 0.0
      %6130 = vmatprep.subr.mxu0 0.0
      %6131 = vmatpush1.msra.mxu0 0.0
      %6132 = vmatprep.subr.mxu0 0.0
      %6133 = vmatpush1.msra.mxu0 0.0
      %6134 = vmatprep.subr.mxu0 0.0
      %6135 = vmatpush1.msra.mxu0 0.0
      %6136 = vmatprep.subr.mxu0 0.0
      %6137 = vmatpush1.msra.mxu0 0.0
      %6138 = vmatprep.mubr.f32.mxu0 0.0
      %6139 = vmatmul.mubr.f32.gmra.mrb[0].mxu0 %v5976
      %v6140 = vpop.f32.mrb[0].mxu0
      %v6141 = vadd.f32 0.0, %v6140
      %v6142 = vpop.f32.mrb[0].mxu0
      %6143 = vmatprep.mubr.f32.mxu0 0.0
      %6144 = vmatmul.mubr.f32.gmra.mrb[0].mxu0 %v5979
      %v6145 = vpop.f32.mrb[0].mxu0
      %v6146 = vadd.f32 0.0, %v6145
      %v6147 = vpop.f32.mrb[0].mxu0
      %6148 = vmatprep.mubr.f32.mxu0 0.0
      %6149 = vmatmul.mubr.f32.gmra.mrb[0].mxu0 %v5982
      %v6150 = vpop.f32.mrb[0].mxu0
      %v6151 = vadd.f32 0.0, %v6150
      %v6152 = vpop.f32.mrb[0].mxu0
      %6153 = vmatprep.mubr.f32.mxu0 0.0
      %6154 = vmatmul.mubr.f32.gmra.mrb[0].mxu0 %v5985
      %v6155 = vpop.f32.mrb[0].mxu0
      %v6156 = vadd.f32 0.0, %v6155
      %v6157 = vpop.f32.mrb[0].mxu0
      %6158 = vmatprep.mubr.f32.mxu0 0.0
      %6159 = vmatmul.mubr.f32.gmra.mrb[0].mxu0 %v5988
      %v6160 = vpop.f32.mrb[0].mxu0
      %v6161 = vadd.f32 0.0, %v6160
      %v6162 = vpop.f32.mrb[0].mxu0
      %6163 = vmatprep.mubr.f32.mxu0 0.0
      %6164 = vmatmul.mubr.f32.gmra.mrb[0].mxu0 %v5991
      %v6165 = vpop.f32.mrb[0].mxu0
      %v6166 = vadd.f32 0.0, %v6165
      %v6167 = vpop.f32.mrb[0].mxu0
      %6168 = vmatprep.mubr.f32.mxu0 0.0
      %6169 = vmatmul.mubr.f32.gmra.mrb[0].mxu0 %v5994
      %v6170 = vpop.f32.mrb[0].mxu0
      %v6171 = vadd.f32 0.0, %v6170
      %v6172 = vpop.f32.mrb[0].mxu0
      %6173 = vmatprep.mubr.f32.mxu0 0.0
      %6174 = vmatmul.mubr.f32.gmra.mrb[0].mxu0 %v5997
      %v6175 = vpop.f32.mrb[0].mxu0
      %v6176 = vadd.f32 0.0, %v6175
      %v6177 = vpop.f32.mrb[0].mxu0
      %6178 = vmatprep.mubr.f32.mxu0 0.0
      %6179 = vmatmul.mubr.f32.gmra.mrb[0].mxu0 %v6000
      %v6180 = vpop.f32.mrb[0].mxu0
      %v6181 = vadd.f32 0.0, %v6180
      %v6182 = vpop.f32.mrb[0].mxu0
      %6183 = vmatprep.mubr.f32.mxu0 0.0
      %6184 = vmatmul.mubr.f32.gmra.mrb[0].mxu0 %v6003
      %v6185 = vpop.f32.mrb[0].mxu0
      %v6186 = vadd.f32 0.0, %v6185
      %v6187 = vpop.f32.mrb[0].mxu0
      %6188 = vmatprep.mubr.f32.mxu0 0.0
      %6189 = vmatmul.mubr.f32.gmra.mrb[0].mxu0 %v6006
      %v6190 = vpop.f32.mrb[0].mxu0
      %v6191 = vadd.f32 0.0, %v6190
      %v6192 = vpop.f32.mrb[0].mxu0
      %6193 = vmatprep.mubr.f32.mxu0 0.0
      %6194 = vmatmul.mubr.f32.gmra.mrb[0].mxu0 %v6009
      %v6195 = vpop.f32.mrb[0].mxu0
      %v6196 = vadd.f32 0.0, %v6195
      %v6197 = vpop.f32.mrb[0].mxu0
      %6198 = vmatprep.mubr.f32.mxu0 0.0
      %6199 = vmatmul.mubr.f32.gmra.mrb[0].mxu0 %v6012
      %v6200 = vpop.f32.mrb[0].mxu0
      %v6201 = vadd.f32 0.0, %v6200
      %v6202 = vpop.f32.mrb[0].mxu0
      %6203 = vmatprep.mubr.f32.mxu0 0.0
      %6204 = vmatmul.mubr.f32.gmra.mrb[0].mxu0 %v6015
      %v6205 = vpop.f32.mrb[0].mxu0
      %v6206 = vadd.f32 0.0, %v6205
      %v6207 = vpop.f32.mrb[0].mxu0
      %6208 = vmatprep.mubr.f32.mxu0 0.0
      %6209 = vmatmul.mubr.f32.gmra.mrb[0].mxu0 %v6018
      %v6210 = vpop.f32.mrb[0].mxu0
      %v6211 = vadd.f32 0.0, %v6210
      %v6212 = vpop.f32.mrb[0].mxu0
      %6213 = vmatprep.mubr.f32.mxu0 0.0
      %6214 = vmatmul.mubr.f32.gmra.mrb[0].mxu0 %v6021
      %v6215 = vpop.f32.mrb[0].mxu0
      %v6216 = vadd.f32 0.0, %v6215
      %v6217 = vpop.f32.mrb[0].mxu0
      %6218 = vmatprep.mubr.f32.mxu0 0.0
      %6219 = vmatmul.mubr.f32.gmra.mrb[0].mxu0 %v6024
      %v6220 = vpop.f32.mrb[0].mxu0
      %v6221 = vadd.f32 0.0, %v6220
      %v6222 = vpop.f32.mrb[0].mxu0
      %6223 = vmatprep.mubr.f32.mxu0 0.0
      %6224 = vmatmul.mubr.f32.gmra.mrb[0].mxu0 %v6027
      %v6225 = vpop.f32.mrb[0].mxu0
      %v6226 = vadd.f32 0.0, %v6225
      %v6227 = vpop.f32.mrb[0].mxu0
      %6228 = vmatprep.mubr.f32.mxu0 0.0
      %6229 = vmatmul.mubr.f32.gmra.mrb[0].mxu0 %v6030
      %v6230 = vpop.f32.mrb[0].mxu0
      %v6231 = vadd.f32 0.0, %v6230
      %v6232 = vpop.f32.mrb[0].mxu0
      %6233 = vmatprep.mubr.f32.mxu0 0.0
      %6234 = vmatmul.mubr.f32.gmra.mrb[0].mxu0 %v6033
      %v6235 = vpop.f32.mrb[0].mxu0
      %v6236 = vadd.f32 0.0, %v6235
      %v6237 = vpop.f32.mrb[0].mxu0
      %6238 = vmatprep.mubr.f32.mxu0 0.0
      %6239 = vmatmul.mubr.f32.gmra.mrb[0].mxu0 %v6036
      %v6240 = vpop.f32.mrb[0].mxu0
      %v6241 = vadd.f32 0.0, %v6240
      %v6242 = vpop.f32.mrb[0].mxu0
      %6243 = vmatprep.mubr.f32.mxu0 0.0
      %6244 = vmatmul.mubr.f32.gmra.mrb[0].mxu0 %v6039
      %v6245 = vpop.f32.mrb[0].mxu0
      %v6246 = vadd.f32 0.0, %v6245
      %v6247 = vpop.f32.mrb[0].mxu0
      %6248 = vmatprep.mubr.f32.mxu0 0.0
      %6249 = vmatmul.mubr.f32.gmra.mrb[0].mxu0 %v6042
      %v6250 = vpop.f32.mrb[0].mxu0
      %v6251 = vadd.f32 0.0, %v6250
      %v6252 = vpop.f32.mrb[0].mxu0
      %6253 = vmatprep.mubr.f32.mxu0 0.0
      %6254 = vmatmul.mubr.f32.gmra.mrb[0].mxu0 %v6045
      %v6255 = vpop.f32.mrb[0].mxu0
      %v6256 = vadd.f32 0.0, %v6255
      %v6257 = vpop.f32.mrb[0].mxu0
      %6258 = vmatprep.mubr.f32.mxu0 0.0
      %6259 = vmatmul.mubr.f32.gmra.mrb[0].mxu0 %v6048
      %v6260 = vpop.f32.mrb[0].mxu0
      %v6261 = vadd.f32 0.0, %v6260
      %v6262 = vpop.f32.mrb[0].mxu0
      %6263 = vmatprep.mubr.f32.mxu0 0.0
      %6264 = vmatmul.mubr.f32.gmra.mrb[0].mxu0 %v6051
      %v6265 = vpop.f32.mrb[0].mxu0
      %v6266 = vadd.f32 0.0, %v6265
      %v6267 = vpop.f32.mrb[0].mxu0
      %6268 = vmatprep.mubr.f32.mxu0 0.0
      %6269 = vmatmul.mubr.f32.gmra.mrb[0].mxu0 %v6054
      %v6270 = vpop.f32.mrb[0].mxu0
      %v6271 = vadd.f32 0.0, %v6270
      %v6272 = vpop.f32.mrb[0].mxu0
      %6273 = vmatprep.mubr.f32.mxu0 0.0
      %6274 = vmatmul.mubr.f32.gmra.mrb[0].mxu0 %v6057
      %v6275 = vpop.f32.mrb[0].mxu0
      %v6276 = vadd.f32 0.0, %v6275
      %v6277 = vpop.f32.mrb[0].mxu0
      %6278 = vmatprep.mubr.f32.mxu0 0.0
      %6279 = vmatmul.mubr.f32.gmra.mrb[0].mxu0 %v6060
      %v6280 = vpop.f32.mrb[0].mxu0
      %v6281 = vadd.f32 0.0, %v6280
      %v6282 = vpop.f32.mrb[0].mxu0
      %6283 = vmatprep.mubr.f32.mxu0 0.0
      %6284 = vmatmul.mubr.f32.gmra.mrb[0].mxu0 %v6063
      %v6285 = vpop.f32.mrb[0].mxu0
      %v6286 = vadd.f32 0.0, %v6285
      %v6287 = vpop.f32.mrb[0].mxu0
      %6288 = vmatprep.mubr.f32.mxu0 0.0
      %6289 = vmatmul.mubr.f32.gmra.mrb[0].mxu0 %v6066
      %v6290 = vpop.f32.mrb[0].mxu0
      %v6291 = vadd.f32 0.0, %v6290
      %v6292 = vpop.f32.mrb[0].mxu0
      %6293 = vmatprep.mubr.f32.mxu0 0.0
      %6294 = vmatmul.mubr.f32.gmra.mrb[0].mxu0 %v6069
      %v6295 = vpop.f32.mrb[0].mxu0
      %v6296 = vadd.f32 0.0, %v6295
      %v6297 = vpop.f32.mrb[0].mxu0
      %6298 = vdwg.mxu0
      %v6299 = vadd.f32 %v5884, %v6141
      %v6300 = vadd.f32 %v5885, %v6146
      %v6301 = vadd.f32 %v5886, %v6151
      %v6302 = vadd.f32 %v5887, %v6156
      %v6303 = vadd.f32 %v5888, %v6161
      %v6304 = vadd.f32 %v5889, %v6166
      %v6305 = vadd.f32 %v5890, %v6171
      %v6306 = vadd.f32 %v5891, %v6176
      %v6307 = vadd.f32 %v5892, %v6181
      %v6308 = vadd.f32 %v5893, %v6186
      %v6309 = vadd.f32 %v5894, %v6191
      %v6310 = vadd.f32 %v5895, %v6196
      %v6311 = vadd.f32 %v5896, %v6201
      %v6312 = vadd.f32 %v5897, %v6206
      %v6313 = vadd.f32 %v5898, %v6211
      %v6314 = vadd.f32 %v5899, %v6216
      %v6315 = vadd.f32 %v5900, %v6221
      %v6316 = vadd.f32 %v5901, %v6226
      %v6317 = vadd.f32 %v5902, %v6231
      %v6318 = vadd.f32 %v5903, %v6236
      %v6319 = vadd.f32 %v5904, %v6241
      %v6320 = vadd.f32 %v5905, %v6246
      %v6321 = vadd.f32 %v5906, %v6251
      %v6322 = vadd.f32 %v5907, %v6256
      %v6323 = vadd.f32 %v5908, %v6261
      %v6324 = vadd.f32 %v5909, %v6266
      %v6325 = vadd.f32 %v5910, %v6271
      %v6326 = vadd.f32 %v5911, %v6276
      %v6327 = vadd.f32 %v5912, %v6281
      %v6328 = vadd.f32 %v5913, %v6286
      %v6329 = vadd.f32 %v5914, %v6291
      %v6330 = vadd.f32 %v5915, %v6296
      %v6347 = vrot.slane %v5919, 1
      %v6348 = vrot.slane %v5920, 1
      %v6349 = vsel %vm353, %v6347, %v6348
      %v6350 = vrot.slane %v5921, 1
      %v6351 = vsel %vm353, %v6348, %v6350
      %v6352 = vrot.slane %v5922, 1
      %v6353 = vrot.slane %v5923, 1
      %v6354 = vsel %vm353, %v6352, %v6353
      %v6355 = vrot.slane %v5924, 1
      %v6356 = vsel %vm353, %v6353, %v6355
      %v6357 = vrot.slane %v5925, 1
      %v6358 = vrot.slane %v5926, 1
      %v6359 = vsel %vm353, %v6357, %v6358
      %v6360 = vrot.slane %v5927, 1
      %v6361 = vsel %vm353, %v6358, %v6360
      %v6362 = vrot.slane %v5928, 1
      %v6363 = vrot.slane %v5929, 1
      %v6364 = vsel %vm353, %v6362, %v6363
      %v6365 = vrot.slane %v5930, 1
      %v6366 = vsel %vm353, %v6363, %v6365
      %v6367 = vrot.slane %v5931, 1
      %v6368 = vrot.slane %v5932, 1
      %v6369 = vsel %vm353, %v6367, %v6368
      %v6370 = vrot.slane %v5933, 1
      %v6371 = vsel %vm353, %v6368, %v6370
      %v6372 = vrot.slane %v5934, 1
      %v6373 = vrot.slane %v5935, 1
      %v6374 = vsel %vm353, %v6372, %v6373
      %v6375 = vrot.slane %v5936, 1
      %v6376 = vsel %vm353, %v6373, %v6375
      %v6377 = vrot.slane %v5937, 1
      %v6378 = vrot.slane %v5938, 1
      %v6379 = vsel %vm353, %v6377, %v6378
      %v6380 = vrot.slane %v5939, 1
      %v6381 = vsel %vm353, %v6378, %v6380
      %v6382 = vrot.slane %v5940, 1
      %v6383 = vrot.slane %v5941, 1
      %v6384 = vsel %vm353, %v6382, %v6383
      %v6385 = vrot.slane %v5942, 1
      %v6386 = vsel %vm353, %v6383, %v6385
      %v6387 = vrot.slane %v5943, 1
      %v6388 = vrot.slane %v5944, 1
      %v6389 = vsel %vm353, %v6387, %v6388
      %v6390 = vrot.slane %v5945, 1
      %v6391 = vsel %vm353, %v6388, %v6390
      %v6392 = vrot.slane %v5946, 1
      %v6393 = vrot.slane %v5947, 1
      %v6394 = vsel %vm353, %v6392, %v6393
      %v6395 = vrot.slane %v5948, 1
      %v6396 = vsel %vm353, %v6393, %v6395
      %v6397 = vrot.slane %v5949, 1
      %v6398 = vrot.slane %v5950, 1
      %v6399 = vsel %vm353, %v6397, %v6398
      %v6400 = vrot.slane %v5951, 1
      %v6401 = vsel %vm353, %v6398, %v6400
      %v6402 = vrot.slane %v5952, 1
      %v6403 = vrot.slane %v5953, 1
      %v6404 = vsel %vm353, %v6402, %v6403
      %v6405 = vrot.slane %v5954, 1
      %v6406 = vsel %vm353, %v6403, %v6405
      %v6407 = vrot.slane %v5955, 1
      %v6408 = vrot.slane %v5956, 1
      %v6409 = vsel %vm353, %v6407, %v6408
      %v6410 = vrot.slane %v5957, 1
      %v6411 = vsel %vm353, %v6408, %v6410
      %v6412 = vrot.slane %v5958, 1
      %v6413 = vrot.slane %v5959, 1
      %v6414 = vsel %vm353, %v6412, %v6413
      %v6415 = vrot.slane %v5960, 1
      %v6416 = vsel %vm353, %v6413, %v6415
      %v6417 = vrot.slane %v5961, 1
      %v6418 = vrot.slane %v5962, 1
      %v6419 = vsel %vm353, %v6417, %v6418
      %v6420 = vrot.slane %v5963, 1
      %v6421 = vsel %vm353, %v6418, %v6420
      %v6422 = vrot.slane %v5964, 1
      %v6423 = vrot.slane %v5965, 1
      %v6424 = vsel %vm353, %v6422, %v6423
      %v6425 = vrot.slane %v5966, 1
      %v6426 = vsel %vm353, %v6423, %v6425
      %s6427 = scalar_lea.vmem %s1, 76
      %v6428 = vld [vmem:[%s6427] sm:$0xf]
      %v6429 = vsel %vm436, %v6349, 0
      %v6431 = vsel %vm436, %v6351, 0
      %v6433 = vsel %vm436, %v6354, 0
      %v6435 = vsel %vm436, %v6356, 0
      %v6437 = vsel %vm436, %v6359, 0
      %v6439 = vsel %vm436, %v6361, 0
      %v6441 = vsel %vm436, %v6364, 0
      %v6443 = vsel %vm436, %v6366, 0
      %v6445 = vsel %vm436, %v6369, 0
      %v6447 = vsel %vm436, %v6371, 0
      %v6449 = vsel %vm436, %v6374, 0
      %v6451 = vsel %vm436, %v6376, 0
      %v6453 = vsel %vm436, %v6379, 0
      %v6455 = vsel %vm436, %v6381, 0
      %v6457 = vsel %vm436, %v6384, 0
      %v6459 = vsel %vm436, %v6386, 0
      %v6461 = vsel %vm436, %v6389, 0
      %v6463 = vsel %vm436, %v6391, 0
      %v6465 = vsel %vm436, %v6394, 0
      %v6467 = vsel %vm436, %v6396, 0
      %v6469 = vsel %vm436, %v6399, 0
      %v6471 = vsel %vm436, %v6401, 0
      %v6473 = vsel %vm436, %v6404, 0
      %v6475 = vsel %vm436, %v6406, 0
      %v6477 = vsel %vm436, %v6409, 0
      %v6479 = vsel %vm436, %v6411, 0
      %v6481 = vsel %vm436, %v6414, 0
      %v6483 = vsel %vm436, %v6416, 0
      %v6485 = vsel %vm436, %v6419, 0
      %v6487 = vsel %vm436, %v6421, 0
      %v6489 = vsel %vm436, %v6424, 0
      %v6491 = vsel %vm436, %v6426, 0
      %v6494 = vsel %vm501, %v6428, 0
      %6496 = vmatprep.subr.mxu0 0.0
      %6497 = vmatpush1.msra.mxu0 %v6494
      %6498 = vmatprep.subr.mxu0 0.0
      %6499 = vmatpush1.msra.mxu0 0.0
      %6500 = vmatprep.subr.mxu0 0.0
      %6501 = vmatpush1.msra.mxu0 0.0
      %6502 = vmatprep.subr.mxu0 0.0
      %6503 = vmatpush1.msra.mxu0 0.0
      %6504 = vmatprep.subr.mxu0 0.0
      %6505 = vmatpush1.msra.mxu0 0.0
      %6506 = vmatprep.subr.mxu0 0.0
      %6507 = vmatpush1.msra.mxu0 0.0
      %6508 = vmatprep.subr.mxu0 0.0
      %6509 = vmatpush1.msra.mxu0 0.0
      %6510 = vmatprep.subr.mxu0 0.0
      %6511 = vmatpush1.msra.mxu0 0.0
      %6512 = vmatprep.subr.mxu0 0.0
      %6513 = vmatpush1.msra.mxu0 0.0
      %6514 = vmatprep.subr.mxu0 0.0
      %6515 = vmatpush1.msra.mxu0 0.0
      %6516 = vmatprep.subr.mxu0 0.0
      %6517 = vmatpush1.msra.mxu0 0.0
      %6518 = vmatprep.subr.mxu0 0.0
      %6519 = vmatpush1.msra.mxu0 0.0
      %6520 = vmatprep.subr.mxu0 0.0
      %6521 = vmatpush1.msra.mxu0 0.0
      %6522 = vmatprep.subr.mxu0 0.0
      %6523 = vmatpush1.msra.mxu0 0.0
      %6524 = vmatprep.subr.mxu0 0.0
      %6525 = vmatpush1.msra.mxu0 0.0
      %6526 = vmatprep.subr.mxu0 0.0
      %6527 = vmatpush1.msra.mxu0 0.0
      %6528 = vmatprep.subr.mxu0 0.0
      %6529 = vmatpush1.msra.mxu0 0.0
      %6530 = vmatprep.subr.mxu0 0.0
      %6531 = vmatpush1.msra.mxu0 0.0
      %6532 = vmatprep.subr.mxu0 0.0
      %6533 = vmatpush1.msra.mxu0 0.0
      %6534 = vmatprep.subr.mxu0 0.0
      %6535 = vmatpush1.msra.mxu0 0.0
      %6536 = vmatprep.subr.mxu0 0.0
      %6537 = vmatpush1.msra.mxu0 0.0
      %6538 = vmatprep.subr.mxu0 0.0
      %6539 = vmatpush1.msra.mxu0 0.0
      %6540 = vmatprep.subr.mxu0 0.0
      %6541 = vmatpush1.msra.mxu0 0.0
      %6542 = vmatprep.subr.mxu0 0.0
      %6543 = vmatpush1.msra.mxu0 0.0
      %6544 = vmatprep.subr.mxu0 0.0
      %6545 = vmatpush1.msra.mxu0 0.0
      %6546 = vmatprep.subr.mxu0 0.0
      %6547 = vmatpush1.msra.mxu0 0.0
      %6548 = vmatprep.subr.mxu0 0.0
      %6549 = vmatpush1.msra.mxu0 0.0
      %6550 = vmatprep.subr.mxu0 0.0
      %6551 = vmatpush1.msra.mxu0 0.0
      %6552 = vmatprep.subr.mxu0 0.0
      %6553 = vmatpush1.msra.mxu0 0.0
      %6554 = vmatprep.subr.mxu0 0.0
      %6555 = vmatpush1.msra.mxu0 0.0
      %6556 = vmatprep.subr.mxu0 0.0
      %6557 = vmatpush1.msra.mxu0 0.0
      %6558 = vmatprep.subr.mxu0 0.0
      %6559 = vmatpush1.msra.mxu0 0.0
      %6560 = vmatprep.mubr.f32.mxu0 0.0
      %6561 = vmatmul.mubr.f32.gmra.mrb[0].mxu0 %v6429
      %v6562 = vpop.f32.mrb[0].mxu0
      %v6563 = vadd.f32 0.0, %v6562
      %v6564 = vpop.f32.mrb[0].mxu0
      %6565 = vmatprep.mubr.f32.mxu0 0.0
      %6566 = vmatmul.mubr.f32.gmra.mrb[0].mxu0 %v6431
      %v6567 = vpop.f32.mrb[0].mxu0
      %v6568 = vadd.f32 0.0, %v6567
      %v6569 = vpop.f32.mrb[0].mxu0
      %6570 = vmatprep.mubr.f32.mxu0 0.0
      %6571 = vmatmul.mubr.f32.gmra.mrb[0].mxu0 %v6433
      %v6572 = vpop.f32.mrb[0].mxu0
      %v6573 = vadd.f32 0.0, %v6572
      %v6574 = vpop.f32.mrb[0].mxu0
      %6575 = vmatprep.mubr.f32.mxu0 0.0
      %6576 = vmatmul.mubr.f32.gmra.mrb[0].mxu0 %v6435
      %v6577 = vpop.f32.mrb[0].mxu0
      %v6578 = vadd.f32 0.0, %v6577
      %v6579 = vpop.f32.mrb[0].mxu0
      %6580 = vmatprep.mubr.f32.mxu0 0.0
      %6581 = vmatmul.mubr.f32.gmra.mrb[0].mxu0 %v6437
      %v6582 = vpop.f32.mrb[0].mxu0
      %v6583 = vadd.f32 0.0, %v6582
      %v6584 = vpop.f32.mrb[0].mxu0
      %6585 = vmatprep.mubr.f32.mxu0 0.0
      %6586 = vmatmul.mubr.f32.gmra.mrb[0].mxu0 %v6439
      %v6587 = vpop.f32.mrb[0].mxu0
      %v6588 = vadd.f32 0.0, %v6587
      %v6589 = vpop.f32.mrb[0].mxu0
      %6590 = vmatprep.mubr.f32.mxu0 0.0
      %6591 = vmatmul.mubr.f32.gmra.mrb[0].mxu0 %v6441
      %v6592 = vpop.f32.mrb[0].mxu0
      %v6593 = vadd.f32 0.0, %v6592
      %v6594 = vpop.f32.mrb[0].mxu0
      %6595 = vmatprep.mubr.f32.mxu0 0.0
      %6596 = vmatmul.mubr.f32.gmra.mrb[0].mxu0 %v6443
      %v6597 = vpop.f32.mrb[0].mxu0
      %v6598 = vadd.f32 0.0, %v6597
      %v6599 = vpop.f32.mrb[0].mxu0
      %6600 = vmatprep.mubr.f32.mxu0 0.0
      %6601 = vmatmul.mubr.f32.gmra.mrb[0].mxu0 %v6445
      %v6602 = vpop.f32.mrb[0].mxu0
      %v6603 = vadd.f32 0.0, %v6602
      %v6604 = vpop.f32.mrb[0].mxu0
      %6605 = vmatprep.mubr.f32.mxu0 0.0
      %6606 = vmatmul.mubr.f32.gmra.mrb[0].mxu0 %v6447
      %v6607 = vpop.f32.mrb[0].mxu0
      %v6608 = vadd.f32 0.0, %v6607
      %v6609 = vpop.f32.mrb[0].mxu0
      %6610 = vmatprep.mubr.f32.mxu0 0.0
      %6611 = vmatmul.mubr.f32.gmra.mrb[0].mxu0 %v6449
      %v6612 = vpop.f32.mrb[0].mxu0
      %v6613 = vadd.f32 0.0, %v6612
      %v6614 = vpop.f32.mrb[0].mxu0
      %6615 = vmatprep.mubr.f32.mxu0 0.0
      %6616 = vmatmul.mubr.f32.gmra.mrb[0].mxu0 %v6451
      %v6617 = vpop.f32.mrb[0].mxu0
      %v6618 = vadd.f32 0.0, %v6617
      %v6619 = vpop.f32.mrb[0].mxu0
      %6620 = vmatprep.mubr.f32.mxu0 0.0
      %6621 = vmatmul.mubr.f32.gmra.mrb[0].mxu0 %v6453
      %v6622 = vpop.f32.mrb[0].mxu0
      %v6623 = vadd.f32 0.0, %v6622
      %v6624 = vpop.f32.mrb[0].mxu0
      %6625 = vmatprep.mubr.f32.mxu0 0.0
      %6626 = vmatmul.mubr.f32.gmra.mrb[0].mxu0 %v6455
      %v6627 = vpop.f32.mrb[0].mxu0
      %v6628 = vadd.f32 0.0, %v6627
      %v6629 = vpop.f32.mrb[0].mxu0
      %6630 = vmatprep.mubr.f32.mxu0 0.0
      %6631 = vmatmul.mubr.f32.gmra.mrb[0].mxu0 %v6457
      %v6632 = vpop.f32.mrb[0].mxu0
      %v6633 = vadd.f32 0.0, %v6632
      %v6634 = vpop.f32.mrb[0].mxu0
      %6635 = vmatprep.mubr.f32.mxu0 0.0
      %6636 = vmatmul.mubr.f32.gmra.mrb[0].mxu0 %v6459
      %v6637 = vpop.f32.mrb[0].mxu0
      %v6638 = vadd.f32 0.0, %v6637
      %v6639 = vpop.f32.mrb[0].mxu0
      %6640 = vmatprep.mubr.f32.mxu0 0.0
      %6641 = vmatmul.mubr.f32.gmra.mrb[0].mxu0 %v6461
      %v6642 = vpop.f32.mrb[0].mxu0
      %v6643 = vadd.f32 0.0, %v6642
      %v6644 = vpop.f32.mrb[0].mxu0
      %6645 = vmatprep.mubr.f32.mxu0 0.0
      %6646 = vmatmul.mubr.f32.gmra.mrb[0].mxu0 %v6463
      %v6647 = vpop.f32.mrb[0].mxu0
      %v6648 = vadd.f32 0.0, %v6647
      %v6649 = vpop.f32.mrb[0].mxu0
      %6650 = vmatprep.mubr.f32.mxu0 0.0
      %6651 = vmatmul.mubr.f32.gmra.mrb[0].mxu0 %v6465
      %v6652 = vpop.f32.mrb[0].mxu0
      %v6653 = vadd.f32 0.0, %v6652
      %v6654 = vpop.f32.mrb[0].mxu0
      %6655 = vmatprep.mubr.f32.mxu0 0.0
      %6656 = vmatmul.mubr.f32.gmra.mrb[0].mxu0 %v6467
      %v6657 = vpop.f32.mrb[0].mxu0
      %v6658 = vadd.f32 0.0, %v6657
      %v6659 = vpop.f32.mrb[0].mxu0
      %6660 = vmatprep.mubr.f32.mxu0 0.0
      %6661 = vmatmul.mubr.f32.gmra.mrb[0].mxu0 %v6469
      %v6662 = vpop.f32.mrb[0].mxu0
      %v6663 = vadd.f32 0.0, %v6662
      %v6664 = vpop.f32.mrb[0].mxu0
      %6665 = vmatprep.mubr.f32.mxu0 0.0
      %6666 = vmatmul.mubr.f32.gmra.mrb[0].mxu0 %v6471
      %v6667 = vpop.f32.mrb[0].mxu0
      %v6668 = vadd.f32 0.0, %v6667
      %v6669 = vpop.f32.mrb[0].mxu0
      %6670 = vmatprep.mubr.f32.mxu0 0.0
      %6671 = vmatmul.mubr.f32.gmra.mrb[0].mxu0 %v6473
      %v6672 = vpop.f32.mrb[0].mxu0
      %v6673 = vadd.f32 0.0, %v6672
      %v6674 = vpop.f32.mrb[0].mxu0
      %6675 = vmatprep.mubr.f32.mxu0 0.0
      %6676 = vmatmul.mubr.f32.gmra.mrb[0].mxu0 %v6475
      %v6677 = vpop.f32.mrb[0].mxu0
      %v6678 = vadd.f32 0.0, %v6677
      %v6679 = vpop.f32.mrb[0].mxu0
      %6680 = vmatprep.mubr.f32.mxu0 0.0
      %6681 = vmatmul.mubr.f32.gmra.mrb[0].mxu0 %v6477
      %v6682 = vpop.f32.mrb[0].mxu0
      %v6683 = vadd.f32 0.0, %v6682
      %v6684 = vpop.f32.mrb[0].mxu0
      %6685 = vmatprep.mubr.f32.mxu0 0.0
      %6686 = vmatmul.mubr.f32.gmra.mrb[0].mxu0 %v6479
      %v6687 = vpop.f32.mrb[0].mxu0
      %v6688 = vadd.f32 0.0, %v6687
      %v6689 = vpop.f32.mrb[0].mxu0
      %6690 = vmatprep.mubr.f32.mxu0 0.0
      %6691 = vmatmul.mubr.f32.gmra.mrb[0].mxu0 %v6481
      %v6692 = vpop.f32.mrb[0].mxu0
      %v6693 = vadd.f32 0.0, %v6692
      %v6694 = vpop.f32.mrb[0].mxu0
      %6695 = vmatprep.mubr.f32.mxu0 0.0
      %6696 = vmatmul.mubr.f32.gmra.mrb[0].mxu0 %v6483
      %v6697 = vpop.f32.mrb[0].mxu0
      %v6698 = vadd.f32 0.0, %v6697
      %v6699 = vpop.f32.mrb[0].mxu0
      %6700 = vmatprep.mubr.f32.mxu0 0.0
      %6701 = vmatmul.mubr.f32.gmra.mrb[0].mxu0 %v6485
      %v6702 = vpop.f32.mrb[0].mxu0
      %v6703 = vadd.f32 0.0, %v6702
      %v6704 = vpop.f32.mrb[0].mxu0
      %6705 = vmatprep.mubr.f32.mxu0 0.0
      %6706 = vmatmul.mubr.f32.gmra.mrb[0].mxu0 %v6487
      %v6707 = vpop.f32.mrb[0].mxu0
      %v6708 = vadd.f32 0.0, %v6707
      %v6709 = vpop.f32.mrb[0].mxu0
      %6710 = vmatprep.mubr.f32.mxu0 0.0
      %6711 = vmatmul.mubr.f32.gmra.mrb[0].mxu0 %v6489
      %v6712 = vpop.f32.mrb[0].mxu0
      %v6713 = vadd.f32 0.0, %v6712
      %v6714 = vpop.f32.mrb[0].mxu0
      %6715 = vmatprep.mubr.f32.mxu0 0.0
      %6716 = vmatmul.mubr.f32.gmra.mrb[0].mxu0 %v6491
      %v6717 = vpop.f32.mrb[0].mxu0
      %v6718 = vadd.f32 0.0, %v6717
      %v6719 = vpop.f32.mrb[0].mxu0
      %6720 = vdwg.mxu0
      %v6721 = vadd.f32 %v6299, %v6563
      %v6722 = vadd.f32 %v6300, %v6568
      %v6723 = vadd.f32 %v6301, %v6573
      %v6724 = vadd.f32 %v6302, %v6578
      %v6725 = vadd.f32 %v6303, %v6583
      %v6726 = vadd.f32 %v6304, %v6588
      %v6727 = vadd.f32 %v6305, %v6593
      %v6728 = vadd.f32 %v6306, %v6598
      %v6729 = vadd.f32 %v6307, %v6603
      %v6730 = vadd.f32 %v6308, %v6608
      %v6731 = vadd.f32 %v6309, %v6613
      %v6732 = vadd.f32 %v6310, %v6618
      %v6733 = vadd.f32 %v6311, %v6623
      %v6734 = vadd.f32 %v6312, %v6628
      %v6735 = vadd.f32 %v6313, %v6633
      %v6736 = vadd.f32 %v6314, %v6638
      %v6737 = vadd.f32 %v6315, %v6643
      %v6738 = vadd.f32 %v6316, %v6648
      %v6739 = vadd.f32 %v6317, %v6653
      %v6740 = vadd.f32 %v6318, %v6658
      %v6741 = vadd.f32 %v6319, %v6663
      %v6742 = vadd.f32 %v6320, %v6668
      %v6743 = vadd.f32 %v6321, %v6673
      %v6744 = vadd.f32 %v6322, %v6678
      %v6745 = vadd.f32 %v6323, %v6683
      %v6746 = vadd.f32 %v6324, %v6688
      %v6747 = vadd.f32 %v6325, %v6693
      %v6748 = vadd.f32 %v6326, %v6698
      %v6749 = vadd.f32 %v6327, %v6703
      %v6750 = vadd.f32 %v6328, %v6708
      %v6751 = vadd.f32 %v6329, %v6713
      %v6752 = vadd.f32 %v6330, %v6718
      %v6753 = vrot.slane %v5919, 2
      %v6754 = vrot.slane %v5920, 2
      %v6755 = vsel %vm1022, %v6753, %v6754
      %v6756 = vrot.slane %v5921, 2
      %v6757 = vsel %vm1022, %v6754, %v6756
      %v6758 = vrot.slane %v5922, 2
      %v6759 = vrot.slane %v5923, 2
      %v6760 = vsel %vm1022, %v6758, %v6759
      %v6761 = vrot.slane %v5924, 2
      %v6762 = vsel %vm1022, %v6759, %v6761
      %v6763 = vrot.slane %v5925, 2
      %v6764 = vrot.slane %v5926, 2
      %v6765 = vsel %vm1022, %v6763, %v6764
      %v6766 = vrot.slane %v5927, 2
      %v6767 = vsel %vm1022, %v6764, %v6766
      %v6768 = vrot.slane %v5928, 2
      %v6769 = vrot.slane %v5929, 2
      %v6770 = vsel %vm1022, %v6768, %v6769
      %v6771 = vrot.slane %v5930, 2
      %v6772 = vsel %vm1022, %v6769, %v6771
      %v6773 = vrot.slane %v5931, 2
      %v6774 = vrot.slane %v5932, 2
      %v6775 = vsel %vm1022, %v6773, %v6774
      %v6776 = vrot.slane %v5933, 2
      %v6777 = vsel %vm1022, %v6774, %v6776
      %v6778 = vrot.slane %v5934, 2
      %v6779 = vrot.slane %v5935, 2
      %v6780 = vsel %vm1022, %v6778, %v6779
      %v6781 = vrot.slane %v5936, 2
      %v6782 = vsel %vm1022, %v6779, %v6781
      %v6783 = vrot.slane %v5937, 2
      %v6784 = vrot.slane %v5938, 2
      %v6785 = vsel %vm1022, %v6783, %v6784
      %v6786 = vrot.slane %v5939, 2
      %v6787 = vsel %vm1022, %v6784, %v6786
      %v6788 = vrot.slane %v5940, 2
      %v6789 = vrot.slane %v5941, 2
      %v6790 = vsel %vm1022, %v6788, %v6789
      %v6791 = vrot.slane %v5942, 2
      %v6792 = vsel %vm1022, %v6789, %v6791
      %v6793 = vrot.slane %v5943, 2
      %v6794 = vrot.slane %v5944, 2
      %v6795 = vsel %vm1022, %v6793, %v6794
      %v6796 = vrot.slane %v5945, 2
      %v6797 = vsel %vm1022, %v6794, %v6796
      %v6798 = vrot.slane %v5946, 2
      %v6799 = vrot.slane %v5947, 2
      %v6800 = vsel %vm1022, %v6798, %v6799
      %v6801 = vrot.slane %v5948, 2
      %v6802 = vsel %vm1022, %v6799, %v6801
      %v6803 = vrot.slane %v5949, 2
      %v6804 = vrot.slane %v5950, 2
      %v6805 = vsel %vm1022, %v6803, %v6804
      %v6806 = vrot.slane %v5951, 2
      %v6807 = vsel %vm1022, %v6804, %v6806
      %v6808 = vrot.slane %v5952, 2
      %v6809 = vrot.slane %v5953, 2
      %v6810 = vsel %vm1022, %v6808, %v6809
      %v6811 = vrot.slane %v5954, 2
      %v6812 = vsel %vm1022, %v6809, %v6811
      %v6813 = vrot.slane %v5955, 2
      %v6814 = vrot.slane %v5956, 2
      %v6815 = vsel %vm1022, %v6813, %v6814
      %v6816 = vrot.slane %v5957, 2
      %v6817 = vsel %vm1022, %v6814, %v6816
      %v6818 = vrot.slane %v5958, 2
      %v6819 = vrot.slane %v5959, 2
      %v6820 = vsel %vm1022, %v6818, %v6819
      %v6821 = vrot.slane %v5960, 2
      %v6822 = vsel %vm1022, %v6819, %v6821
      %v6823 = vrot.slane %v5961, 2
      %v6824 = vrot.slane %v5962, 2
      %v6825 = vsel %vm1022, %v6823, %v6824
      %v6826 = vrot.slane %v5963, 2
      %v6827 = vsel %vm1022, %v6824, %v6826
      %v6828 = vrot.slane %v5964, 2
      %v6829 = vrot.slane %v5965, 2
      %v6830 = vsel %vm1022, %v6828, %v6829
      %v6831 = vrot.slane %v5966, 2
      %v6832 = vsel %vm1022, %v6829, %v6831
      %s6833 = scalar_lea.vmem %s1, 80
      %v6834 = vld [vmem:[%s6833] sm:$0xf]
      %v6835 = vsel %vm436, %v6755, 0
      %v6837 = vsel %vm436, %v6757, 0
      %v6839 = vsel %vm436, %v6760, 0
      %v6841 = vsel %vm436, %v6762, 0
      %v6843 = vsel %vm436, %v6765, 0
      %v6845 = vsel %vm436, %v6767, 0
      %v6847 = vsel %vm436, %v6770, 0
      %v6849 = vsel %vm436, %v6772, 0
      %v6851 = vsel %vm436, %v6775, 0
      %v6853 = vsel %vm436, %v6777, 0
      %v6855 = vsel %vm436, %v6780, 0
      %v6857 = vsel %vm436, %v6782, 0
      %v6859 = vsel %vm436, %v6785, 0
      %v6861 = vsel %vm436, %v6787, 0
      %v6863 = vsel %vm436, %v6790, 0
      %v6865 = vsel %vm436, %v6792, 0
      %v6867 = vsel %vm436, %v6795, 0
      %v6869 = vsel %vm436, %v6797, 0
      %v6871 = vsel %vm436, %v6800, 0
      %v6873 = vsel %vm436, %v6802, 0
      %v6875 = vsel %vm436, %v6805, 0
      %v6877 = vsel %vm436, %v6807, 0
      %v6879 = vsel %vm436, %v6810, 0
      %v6881 = vsel %vm436, %v6812, 0
      %v6883 = vsel %vm436, %v6815, 0
      %v6885 = vsel %vm436, %v6817, 0
      %v6887 = vsel %vm436, %v6820, 0
      %v6889 = vsel %vm436, %v6822, 0
      %v6891 = vsel %vm436, %v6825, 0
      %v6893 = vsel %vm436, %v6827, 0
      %v6895 = vsel %vm436, %v6830, 0
      %v6897 = vsel %vm436, %v6832, 0
      %v6900 = vsel %vm501, %v6834, 0
      %6902 = vmatprep.subr.mxu0 0.0
      %6903 = vmatpush1.msra.mxu0 %v6900
      %6904 = vmatprep.subr.mxu0 0.0
      %6905 = vmatpush1.msra.mxu0 0.0
      %6906 = vmatprep.subr.mxu0 0.0
      %6907 = vmatpush1.msra.mxu0 0.0
      %6908 = vmatprep.subr.mxu0 0.0
      %6909 = vmatpush1.msra.mxu0 0.0
      %6910 = vmatprep.subr.mxu0 0.0
      %6911 = vmatpush1.msra.mxu0 0.0
      %6912 = vmatprep.subr.mxu0 0.0
      %6913 = vmatpush1.msra.mxu0 0.0
      %6914 = vmatprep.subr.mxu0 0.0
      %6915 = vmatpush1.msra.mxu0 0.0
      %6916 = vmatprep.subr.mxu0 0.0
      %6917 = vmatpush1.msra.mxu0 0.0
      %6918 = vmatprep.subr.mxu0 0.0
      %6919 = vmatpush1.msra.mxu0 0.0
      %6920 = vmatprep.subr.mxu0 0.0
      %6921 = vmatpush1.msra.mxu0 0.0
      %6922 = vmatprep.subr.mxu0 0.0
      %6923 = vmatpush1.msra.mxu0 0.0
      %6924 = vmatprep.subr.mxu0 0.0
      %6925 = vmatpush1.msra.mxu0 0.0
      %6926 = vmatprep.subr.mxu0 0.0
      %6927 = vmatpush1.msra.mxu0 0.0
      %6928 = vmatprep.subr.mxu0 0.0
      %6929 = vmatpush1.msra.mxu0 0.0
      %6930 = vmatprep.subr.mxu0 0.0
      %6931 = vmatpush1.msra.mxu0 0.0
      %6932 = vmatprep.subr.mxu0 0.0
      %6933 = vmatpush1.msra.mxu0 0.0
      %6934 = vmatprep.subr.mxu0 0.0
      %6935 = vmatpush1.msra.mxu0 0.0
      %6936 = vmatprep.subr.mxu0 0.0
      %6937 = vmatpush1.msra.mxu0 0.0
      %6938 = vmatprep.subr.mxu0 0.0
      %6939 = vmatpush1.msra.mxu0 0.0
      %6940 = vmatprep.subr.mxu0 0.0
      %6941 = vmatpush1.msra.mxu0 0.0
      %6942 = vmatprep.subr.mxu0 0.0
      %6943 = vmatpush1.msra.mxu0 0.0
      %6944 = vmatprep.subr.mxu0 0.0
      %6945 = vmatpush1.msra.mxu0 0.0
      %6946 = vmatprep.subr.mxu0 0.0
      %6947 = vmatpush1.msra.mxu0 0.0
      %6948 = vmatprep.subr.mxu0 0.0
      %6949 = vmatpush1.msra.mxu0 0.0
      %6950 = vmatprep.subr.mxu0 0.0
      %6951 = vmatpush1.msra.mxu0 0.0
      %6952 = vmatprep.subr.mxu0 0.0
      %6953 = vmatpush1.msra.mxu0 0.0
      %6954 = vmatprep.subr.mxu0 0.0
      %6955 = vmatpush1.msra.mxu0 0.0
      %6956 = vmatprep.subr.mxu0 0.0
      %6957 = vmatpush1.msra.mxu0 0.0
      %6958 = vmatprep.subr.mxu0 0.0
      %6959 = vmatpush1.msra.mxu0 0.0
      %6960 = vmatprep.subr.mxu0 0.0
      %6961 = vmatpush1.msra.mxu0 0.0
      %6962 = vmatprep.subr.mxu0 0.0
      %6963 = vmatpush1.msra.mxu0 0.0
      %6964 = vmatprep.subr.mxu0 0.0
      %6965 = vmatpush1.msra.mxu0 0.0
      %6966 = vmatprep.mubr.f32.mxu0 0.0
      %6967 = vmatmul.mubr.f32.gmra.mrb[0].mxu0 %v6835
      %v6968 = vpop.f32.mrb[0].mxu0
      %v6969 = vadd.f32 0.0, %v6968
      %v6970 = vpop.f32.mrb[0].mxu0
      %6971 = vmatprep.mubr.f32.mxu0 0.0
      %6972 = vmatmul.mubr.f32.gmra.mrb[0].mxu0 %v6837
      %v6973 = vpop.f32.mrb[0].mxu0
      %v6974 = vadd.f32 0.0, %v6973
      %v6975 = vpop.f32.mrb[0].mxu0
      %6976 = vmatprep.mubr.f32.mxu0 0.0
      %6977 = vmatmul.mubr.f32.gmra.mrb[0].mxu0 %v6839
      %v6978 = vpop.f32.mrb[0].mxu0
      %v6979 = vadd.f32 0.0, %v6978
      %v6980 = vpop.f32.mrb[0].mxu0
      %6981 = vmatprep.mubr.f32.mxu0 0.0
      %6982 = vmatmul.mubr.f32.gmra.mrb[0].mxu0 %v6841
      %v6983 = vpop.f32.mrb[0].mxu0
      %v6984 = vadd.f32 0.0, %v6983
      %v6985 = vpop.f32.mrb[0].mxu0
      %6986 = vmatprep.mubr.f32.mxu0 0.0
      %6987 = vmatmul.mubr.f32.gmra.mrb[0].mxu0 %v6843
      %v6988 = vpop.f32.mrb[0].mxu0
      %v6989 = vadd.f32 0.0, %v6988
      %v6990 = vpop.f32.mrb[0].mxu0
      %6991 = vmatprep.mubr.f32.mxu0 0.0
      %6992 = vmatmul.mubr.f32.gmra.mrb[0].mxu0 %v6845
      %v6993 = vpop.f32.mrb[0].mxu0
      %v6994 = vadd.f32 0.0, %v6993
      %v6995 = vpop.f32.mrb[0].mxu0
      %6996 = vmatprep.mubr.f32.mxu0 0.0
      %6997 = vmatmul.mubr.f32.gmra.mrb[0].mxu0 %v6847
      %v6998 = vpop.f32.mrb[0].mxu0
      %v6999 = vadd.f32 0.0, %v6998
      %v7000 = vpop.f32.mrb[0].mxu0
      %7001 = vmatprep.mubr.f32.mxu0 0.0
      %7002 = vmatmul.mubr.f32.gmra.mrb[0].mxu0 %v6849
      %v7003 = vpop.f32.mrb[0].mxu0
      %v7004 = vadd.f32 0.0, %v7003
      %v7005 = vpop.f32.mrb[0].mxu0
      %7006 = vmatprep.mubr.f32.mxu0 0.0
      %7007 = vmatmul.mubr.f32.gmra.mrb[0].mxu0 %v6851
      %v7008 = vpop.f32.mrb[0].mxu0
      %v7009 = vadd.f32 0.0, %v7008
      %v7010 = vpop.f32.mrb[0].mxu0
      %7011 = vmatprep.mubr.f32.mxu0 0.0
      %7012 = vmatmul.mubr.f32.gmra.mrb[0].mxu0 %v6853
      %v7013 = vpop.f32.mrb[0].mxu0
      %v7014 = vadd.f32 0.0, %v7013
      %v7015 = vpop.f32.mrb[0].mxu0
      %7016 = vmatprep.mubr.f32.mxu0 0.0
      %7017 = vmatmul.mubr.f32.gmra.mrb[0].mxu0 %v6855
      %v7018 = vpop.f32.mrb[0].mxu0
      %v7019 = vadd.f32 0.0, %v7018
      %v7020 = vpop.f32.mrb[0].mxu0
      %7021 = vmatprep.mubr.f32.mxu0 0.0
      %7022 = vmatmul.mubr.f32.gmra.mrb[0].mxu0 %v6857
      %v7023 = vpop.f32.mrb[0].mxu0
      %v7024 = vadd.f32 0.0, %v7023
      %v7025 = vpop.f32.mrb[0].mxu0
      %7026 = vmatprep.mubr.f32.mxu0 0.0
      %7027 = vmatmul.mubr.f32.gmra.mrb[0].mxu0 %v6859
      %v7028 = vpop.f32.mrb[0].mxu0
      %v7029 = vadd.f32 0.0, %v7028
      %v7030 = vpop.f32.mrb[0].mxu0
      %7031 = vmatprep.mubr.f32.mxu0 0.0
      %7032 = vmatmul.mubr.f32.gmra.mrb[0].mxu0 %v6861
      %v7033 = vpop.f32.mrb[0].mxu0
      %v7034 = vadd.f32 0.0, %v7033
      %v7035 = vpop.f32.mrb[0].mxu0
      %7036 = vmatprep.mubr.f32.mxu0 0.0
      %7037 = vmatmul.mubr.f32.gmra.mrb[0].mxu0 %v6863
      %v7038 = vpop.f32.mrb[0].mxu0
      %v7039 = vadd.f32 0.0, %v7038
      %v7040 = vpop.f32.mrb[0].mxu0
      %7041 = vmatprep.mubr.f32.mxu0 0.0
      %7042 = vmatmul.mubr.f32.gmra.mrb[0].mxu0 %v6865
      %v7043 = vpop.f32.mrb[0].mxu0
      %v7044 = vadd.f32 0.0, %v7043
      %v7045 = vpop.f32.mrb[0].mxu0
      %7046 = vmatprep.mubr.f32.mxu0 0.0
      %7047 = vmatmul.mubr.f32.gmra.mrb[0].mxu0 %v6867
      %v7048 = vpop.f32.mrb[0].mxu0
      %v7049 = vadd.f32 0.0, %v7048
      %v7050 = vpop.f32.mrb[0].mxu0
      %7051 = vmatprep.mubr.f32.mxu0 0.0
      %7052 = vmatmul.mubr.f32.gmra.mrb[0].mxu0 %v6869
      %v7053 = vpop.f32.mrb[0].mxu0
      %v7054 = vadd.f32 0.0, %v7053
      %v7055 = vpop.f32.mrb[0].mxu0
      %7056 = vmatprep.mubr.f32.mxu0 0.0
      %7057 = vmatmul.mubr.f32.gmra.mrb[0].mxu0 %v6871
      %v7058 = vpop.f32.mrb[0].mxu0
      %v7059 = vadd.f32 0.0, %v7058
      %v7060 = vpop.f32.mrb[0].mxu0
      %7061 = vmatprep.mubr.f32.mxu0 0.0
      %7062 = vmatmul.mubr.f32.gmra.mrb[0].mxu0 %v6873
      %v7063 = vpop.f32.mrb[0].mxu0
      %v7064 = vadd.f32 0.0, %v7063
      %v7065 = vpop.f32.mrb[0].mxu0
      %7066 = vmatprep.mubr.f32.mxu0 0.0
      %7067 = vmatmul.mubr.f32.gmra.mrb[0].mxu0 %v6875
      %v7068 = vpop.f32.mrb[0].mxu0
      %v7069 = vadd.f32 0.0, %v7068
      %v7070 = vpop.f32.mrb[0].mxu0
      %7071 = vmatprep.mubr.f32.mxu0 0.0
      %7072 = vmatmul.mubr.f32.gmra.mrb[0].mxu0 %v6877
      %v7073 = vpop.f32.mrb[0].mxu0
      %v7074 = vadd.f32 0.0, %v7073
      %v7075 = vpop.f32.mrb[0].mxu0
      %7076 = vmatprep.mubr.f32.mxu0 0.0
      %7077 = vmatmul.mubr.f32.gmra.mrb[0].mxu0 %v6879
      %v7078 = vpop.f32.mrb[0].mxu0
      %v7079 = vadd.f32 0.0, %v7078
      %v7080 = vpop.f32.mrb[0].mxu0
      %7081 = vmatprep.mubr.f32.mxu0 0.0
      %7082 = vmatmul.mubr.f32.gmra.mrb[0].mxu0 %v6881
      %v7083 = vpop.f32.mrb[0].mxu0
      %v7084 = vadd.f32 0.0, %v7083
      %v7085 = vpop.f32.mrb[0].mxu0
      %7086 = vmatprep.mubr.f32.mxu0 0.0
      %7087 = vmatmul.mubr.f32.gmra.mrb[0].mxu0 %v6883
      %v7088 = vpop.f32.mrb[0].mxu0
      %v7089 = vadd.f32 0.0, %v7088
      %v7090 = vpop.f32.mrb[0].mxu0
      %7091 = vmatprep.mubr.f32.mxu0 0.0
      %7092 = vmatmul.mubr.f32.gmra.mrb[0].mxu0 %v6885
      %v7093 = vpop.f32.mrb[0].mxu0
      %v7094 = vadd.f32 0.0, %v7093
      %v7095 = vpop.f32.mrb[0].mxu0
      %7096 = vmatprep.mubr.f32.mxu0 0.0
      %7097 = vmatmul.mubr.f32.gmra.mrb[0].mxu0 %v6887
      %v7098 = vpop.f32.mrb[0].mxu0
      %v7099 = vadd.f32 0.0, %v7098
      %v7100 = vpop.f32.mrb[0].mxu0
      %7101 = vmatprep.mubr.f32.mxu0 0.0
      %7102 = vmatmul.mubr.f32.gmra.mrb[0].mxu0 %v6889
      %v7103 = vpop.f32.mrb[0].mxu0
      %v7104 = vadd.f32 0.0, %v7103
      %v7105 = vpop.f32.mrb[0].mxu0
      %7106 = vmatprep.mubr.f32.mxu0 0.0
      %7107 = vmatmul.mubr.f32.gmra.mrb[0].mxu0 %v6891
      %v7108 = vpop.f32.mrb[0].mxu0
      %v7109 = vadd.f32 0.0, %v7108
      %v7110 = vpop.f32.mrb[0].mxu0
      %7111 = vmatprep.mubr.f32.mxu0 0.0
      %7112 = vmatmul.mubr.f32.gmra.mrb[0].mxu0 %v6893
      %v7113 = vpop.f32.mrb[0].mxu0
      %v7114 = vadd.f32 0.0, %v7113
      %v7115 = vpop.f32.mrb[0].mxu0
      %7116 = vmatprep.mubr.f32.mxu0 0.0
      %7117 = vmatmul.mubr.f32.gmra.mrb[0].mxu0 %v6895
      %v7118 = vpop.f32.mrb[0].mxu0
      %v7119 = vadd.f32 0.0, %v7118
      %v7120 = vpop.f32.mrb[0].mxu0
      %7121 = vmatprep.mubr.f32.mxu0 0.0
      %7122 = vmatmul.mubr.f32.gmra.mrb[0].mxu0 %v6897
      %v7123 = vpop.f32.mrb[0].mxu0
      %v7124 = vadd.f32 0.0, %v7123
      %v7125 = vpop.f32.mrb[0].mxu0
      %7126 = vdwg.mxu0
      %v7127 = vadd.f32 %v6721, %v6969
      %v7128 = vadd.f32 %v6722, %v6974
      %v7129 = vadd.f32 %v6723, %v6979
      %v7130 = vadd.f32 %v6724, %v6984
      %v7131 = vadd.f32 %v6725, %v6989
      %v7132 = vadd.f32 %v6726, %v6994
      %v7133 = vadd.f32 %v6727, %v6999
      %v7134 = vadd.f32 %v6728, %v7004
      %v7135 = vadd.f32 %v6729, %v7009
      %v7136 = vadd.f32 %v6730, %v7014
      %v7137 = vadd.f32 %v6731, %v7019
      %v7138 = vadd.f32 %v6732, %v7024
      %v7139 = vadd.f32 %v6733, %v7029
      %v7140 = vadd.f32 %v6734, %v7034
      %v7141 = vadd.f32 %v6735, %v7039
      %v7142 = vadd.f32 %v6736, %v7044
      %v7143 = vadd.f32 %v6737, %v7049
      %v7144 = vadd.f32 %v6738, %v7054
      %v7145 = vadd.f32 %v6739, %v7059
      %v7146 = vadd.f32 %v6740, %v7064
      %v7147 = vadd.f32 %v6741, %v7069
      %v7148 = vadd.f32 %v6742, %v7074
      %v7149 = vadd.f32 %v6743, %v7079
      %v7150 = vadd.f32 %v6744, %v7084
      %v7151 = vadd.f32 %v6745, %v7089
      %v7152 = vadd.f32 %v6746, %v7094
      %v7153 = vadd.f32 %v6747, %v7099
      %v7154 = vadd.f32 %v6748, %v7104
      %v7155 = vadd.f32 %v6749, %v7109
      %v7156 = vadd.f32 %v6750, %v7114
      %v7157 = vadd.f32 %v6751, %v7119
      %v7158 = vadd.f32 %v6752, %v7124
      %s7159 = scalar_lea.vmem %s1, 84
      %v7160 = vld [vmem:[%s7159] sm:$0xf]
      %v7162 = vsel %vm436, %v5967, 0
      %v7165 = vsel %vm436, %v5968, 0
      %v7168 = vsel %vm501, %v7160, 0
      %7170 = vmatprep.subr.mxu0 0.0
      %7171 = vmatpush1.msra.mxu0 %v7168
      %7172 = vmatprep.subr.mxu0 0.0
      %7173 = vmatpush1.msra.mxu0 0.0
      %7174 = vmatprep.subr.mxu0 0.0
      %7175 = vmatpush1.msra.mxu0 0.0
      %7176 = vmatprep.subr.mxu0 0.0
      %7177 = vmatpush1.msra.mxu0 0.0
      %7178 = vmatprep.subr.mxu0 0.0
      %7179 = vmatpush1.msra.mxu0 0.0
      %7180 = vmatprep.subr.mxu0 0.0
      %7181 = vmatpush1.msra.mxu0 0.0
      %7182 = vmatprep.subr.mxu0 0.0
      %7183 = vmatpush1.msra.mxu0 0.0
      %7184 = vmatprep.subr.mxu0 0.0
      %7185 = vmatpush1.msra.mxu0 0.0
      %7186 = vmatprep.subr.mxu0 0.0
      %7187 = vmatpush1.msra.mxu0 0.0
      %7188 = vmatprep.subr.mxu0 0.0
      %7189 = vmatpush1.msra.mxu0 0.0
      %7190 = vmatprep.subr.mxu0 0.0
      %7191 = vmatpush1.msra.mxu0 0.0
      %7192 = vmatprep.subr.mxu0 0.0
      %7193 = vmatpush1.msra.mxu0 0.0
      %7194 = vmatprep.subr.mxu0 0.0
      %7195 = vmatpush1.msra.mxu0 0.0
      %7196 = vmatprep.subr.mxu0 0.0
      %7197 = vmatpush1.msra.mxu0 0.0
      %7198 = vmatprep.subr.mxu0 0.0
      %7199 = vmatpush1.msra.mxu0 0.0
      %7200 = vmatprep.subr.mxu0 0.0
      %7201 = vmatpush1.msra.mxu0 0.0
      %7202 = vmatprep.subr.mxu0 0.0
      %7203 = vmatpush1.msra.mxu0 0.0
      %7204 = vmatprep.subr.mxu0 0.0
      %7205 = vmatpush1.msra.mxu0 0.0
      %7206 = vmatprep.subr.mxu0 0.0
      %7207 = vmatpush1.msra.mxu0 0.0
      %7208 = vmatprep.subr.mxu0 0.0
      %7209 = vmatpush1.msra.mxu0 0.0
      %7210 = vmatprep.subr.mxu0 0.0
      %7211 = vmatpush1.msra.mxu0 0.0
      %7212 = vmatprep.subr.mxu0 0.0
      %7213 = vmatpush1.msra.mxu0 0.0
      %7214 = vmatprep.subr.mxu0 0.0
      %7215 = vmatpush1.msra.mxu0 0.0
      %7216 = vmatprep.subr.mxu0 0.0
      %7217 = vmatpush1.msra.mxu0 0.0
      %7218 = vmatprep.subr.mxu0 0.0
      %7219 = vmatpush1.msra.mxu0 0.0
      %7220 = vmatprep.subr.mxu0 0.0
      %7221 = vmatpush1.msra.mxu0 0.0
      %7222 = vmatprep.subr.mxu0 0.0
      %7223 = vmatpush1.msra.mxu0 0.0
      %7224 = vmatprep.subr.mxu0 0.0
      %7225 = vmatpush1.msra.mxu0 0.0
      %7226 = vmatprep.subr.mxu0 0.0
      %7227 = vmatpush1.msra.mxu0 0.0
      %7228 = vmatprep.subr.mxu0 0.0
      %7229 = vmatpush1.msra.mxu0 0.0
      %7230 = vmatprep.subr.mxu0 0.0
      %7231 = vmatpush1.msra.mxu0 0.0
      %7232 = vmatprep.subr.mxu0 0.0
      %7233 = vmatpush1.msra.mxu0 0.0
      %7234 = vmatprep.mubr.f32.mxu0 0.0
      %7235 = vmatmul.mubr.f32.gmra.mrb[0].mxu0 %v5982
      %v7236 = vpop.f32.mrb[0].mxu0
      %v7237 = vadd.f32 0.0, %v7236
      %v7238 = vpop.f32.mrb[0].mxu0
      %7239 = vmatprep.mubr.f32.mxu0 0.0
      %7240 = vmatmul.mubr.f32.gmra.mrb[0].mxu0 %v5985
      %v7241 = vpop.f32.mrb[0].mxu0
      %v7242 = vadd.f32 0.0, %v7241
      %v7243 = vpop.f32.mrb[0].mxu0
      %7244 = vmatprep.mubr.f32.mxu0 0.0
      %7245 = vmatmul.mubr.f32.gmra.mrb[0].mxu0 %v5988
      %v7246 = vpop.f32.mrb[0].mxu0
      %v7247 = vadd.f32 0.0, %v7246
      %v7248 = vpop.f32.mrb[0].mxu0
      %7249 = vmatprep.mubr.f32.mxu0 0.0
      %7250 = vmatmul.mubr.f32.gmra.mrb[0].mxu0 %v5991
      %v7251 = vpop.f32.mrb[0].mxu0
      %v7252 = vadd.f32 0.0, %v7251
      %v7253 = vpop.f32.mrb[0].mxu0
      %7254 = vmatprep.mubr.f32.mxu0 0.0
      %7255 = vmatmul.mubr.f32.gmra.mrb[0].mxu0 %v5994
      %v7256 = vpop.f32.mrb[0].mxu0
      %v7257 = vadd.f32 0.0, %v7256
      %v7258 = vpop.f32.mrb[0].mxu0
      %7259 = vmatprep.mubr.f32.mxu0 0.0
      %7260 = vmatmul.mubr.f32.gmra.mrb[0].mxu0 %v5997
      %v7261 = vpop.f32.mrb[0].mxu0
      %v7262 = vadd.f32 0.0, %v7261
      %v7263 = vpop.f32.mrb[0].mxu0
      %7264 = vmatprep.mubr.f32.mxu0 0.0
      %7265 = vmatmul.mubr.f32.gmra.mrb[0].mxu0 %v6000
      %v7266 = vpop.f32.mrb[0].mxu0
      %v7267 = vadd.f32 0.0, %v7266
      %v7268 = vpop.f32.mrb[0].mxu0
      %7269 = vmatprep.mubr.f32.mxu0 0.0
      %7270 = vmatmul.mubr.f32.gmra.mrb[0].mxu0 %v6003
      %v7271 = vpop.f32.mrb[0].mxu0
      %v7272 = vadd.f32 0.0, %v7271
      %v7273 = vpop.f32.mrb[0].mxu0
      %7274 = vmatprep.mubr.f32.mxu0 0.0
      %7275 = vmatmul.mubr.f32.gmra.mrb[0].mxu0 %v6006
      %v7276 = vpop.f32.mrb[0].mxu0
      %v7277 = vadd.f32 0.0, %v7276
      %v7278 = vpop.f32.mrb[0].mxu0
      %7279 = vmatprep.mubr.f32.mxu0 0.0
      %7280 = vmatmul.mubr.f32.gmra.mrb[0].mxu0 %v6009
      %v7281 = vpop.f32.mrb[0].mxu0
      %v7282 = vadd.f32 0.0, %v7281
      %v7283 = vpop.f32.mrb[0].mxu0
      %7284 = vmatprep.mubr.f32.mxu0 0.0
      %7285 = vmatmul.mubr.f32.gmra.mrb[0].mxu0 %v6012
      %v7286 = vpop.f32.mrb[0].mxu0
      %v7287 = vadd.f32 0.0, %v7286
      %v7288 = vpop.f32.mrb[0].mxu0
      %7289 = vmatprep.mubr.f32.mxu0 0.0
      %7290 = vmatmul.mubr.f32.gmra.mrb[0].mxu0 %v6015
      %v7291 = vpop.f32.mrb[0].mxu0
      %v7292 = vadd.f32 0.0, %v7291
      %v7293 = vpop.f32.mrb[0].mxu0
      %7294 = vmatprep.mubr.f32.mxu0 0.0
      %7295 = vmatmul.mubr.f32.gmra.mrb[0].mxu0 %v6018
      %v7296 = vpop.f32.mrb[0].mxu0
      %v7297 = vadd.f32 0.0, %v7296
      %v7298 = vpop.f32.mrb[0].mxu0
      %7299 = vmatprep.mubr.f32.mxu0 0.0
      %7300 = vmatmul.mubr.f32.gmra.mrb[0].mxu0 %v6021
      %v7301 = vpop.f32.mrb[0].mxu0
      %v7302 = vadd.f32 0.0, %v7301
      %v7303 = vpop.f32.mrb[0].mxu0
      %7304 = vmatprep.mubr.f32.mxu0 0.0
      %7305 = vmatmul.mubr.f32.gmra.mrb[0].mxu0 %v6024
      %v7306 = vpop.f32.mrb[0].mxu0
      %v7307 = vadd.f32 0.0, %v7306
      %v7308 = vpop.f32.mrb[0].mxu0
      %7309 = vmatprep.mubr.f32.mxu0 0.0
      %7310 = vmatmul.mubr.f32.gmra.mrb[0].mxu0 %v6027
      %v7311 = vpop.f32.mrb[0].mxu0
      %v7312 = vadd.f32 0.0, %v7311
      %v7313 = vpop.f32.mrb[0].mxu0
      %7314 = vmatprep.mubr.f32.mxu0 0.0
      %7315 = vmatmul.mubr.f32.gmra.mrb[0].mxu0 %v6030
      %v7316 = vpop.f32.mrb[0].mxu0
      %v7317 = vadd.f32 0.0, %v7316
      %v7318 = vpop.f32.mrb[0].mxu0
      %7319 = vmatprep.mubr.f32.mxu0 0.0
      %7320 = vmatmul.mubr.f32.gmra.mrb[0].mxu0 %v6033
      %v7321 = vpop.f32.mrb[0].mxu0
      %v7322 = vadd.f32 0.0, %v7321
      %v7323 = vpop.f32.mrb[0].mxu0
      %7324 = vmatprep.mubr.f32.mxu0 0.0
      %7325 = vmatmul.mubr.f32.gmra.mrb[0].mxu0 %v6036
      %v7326 = vpop.f32.mrb[0].mxu0
      %v7327 = vadd.f32 0.0, %v7326
      %v7328 = vpop.f32.mrb[0].mxu0
      %7329 = vmatprep.mubr.f32.mxu0 0.0
      %7330 = vmatmul.mubr.f32.gmra.mrb[0].mxu0 %v6039
      %v7331 = vpop.f32.mrb[0].mxu0
      %v7332 = vadd.f32 0.0, %v7331
      %v7333 = vpop.f32.mrb[0].mxu0
      %7334 = vmatprep.mubr.f32.mxu0 0.0
      %7335 = vmatmul.mubr.f32.gmra.mrb[0].mxu0 %v6042
      %v7336 = vpop.f32.mrb[0].mxu0
      %v7337 = vadd.f32 0.0, %v7336
      %v7338 = vpop.f32.mrb[0].mxu0
      %7339 = vmatprep.mubr.f32.mxu0 0.0
      %7340 = vmatmul.mubr.f32.gmra.mrb[0].mxu0 %v6045
      %v7341 = vpop.f32.mrb[0].mxu0
      %v7342 = vadd.f32 0.0, %v7341
      %v7343 = vpop.f32.mrb[0].mxu0
      %7344 = vmatprep.mubr.f32.mxu0 0.0
      %7345 = vmatmul.mubr.f32.gmra.mrb[0].mxu0 %v6048
      %v7346 = vpop.f32.mrb[0].mxu0
      %v7347 = vadd.f32 0.0, %v7346
      %v7348 = vpop.f32.mrb[0].mxu0
      %7349 = vmatprep.mubr.f32.mxu0 0.0
      %7350 = vmatmul.mubr.f32.gmra.mrb[0].mxu0 %v6051
      %v7351 = vpop.f32.mrb[0].mxu0
      %v7352 = vadd.f32 0.0, %v7351
      %v7353 = vpop.f32.mrb[0].mxu0
      %7354 = vmatprep.mubr.f32.mxu0 0.0
      %7355 = vmatmul.mubr.f32.gmra.mrb[0].mxu0 %v6054
      %v7356 = vpop.f32.mrb[0].mxu0
      %v7357 = vadd.f32 0.0, %v7356
      %v7358 = vpop.f32.mrb[0].mxu0
      %7359 = vmatprep.mubr.f32.mxu0 0.0
      %7360 = vmatmul.mubr.f32.gmra.mrb[0].mxu0 %v6057
      %v7361 = vpop.f32.mrb[0].mxu0
      %v7362 = vadd.f32 0.0, %v7361
      %v7363 = vpop.f32.mrb[0].mxu0
      %7364 = vmatprep.mubr.f32.mxu0 0.0
      %7365 = vmatmul.mubr.f32.gmra.mrb[0].mxu0 %v6060
      %v7366 = vpop.f32.mrb[0].mxu0
      %v7367 = vadd.f32 0.0, %v7366
      %v7368 = vpop.f32.mrb[0].mxu0
      %7369 = vmatprep.mubr.f32.mxu0 0.0
      %7370 = vmatmul.mubr.f32.gmra.mrb[0].mxu0 %v6063
      %v7371 = vpop.f32.mrb[0].mxu0
      %v7372 = vadd.f32 0.0, %v7371
      %v7373 = vpop.f32.mrb[0].mxu0
      %7374 = vmatprep.mubr.f32.mxu0 0.0
      %7375 = vmatmul.mubr.f32.gmra.mrb[0].mxu0 %v6066
      %v7376 = vpop.f32.mrb[0].mxu0
      %v7377 = vadd.f32 0.0, %v7376
      %v7378 = vpop.f32.mrb[0].mxu0
      %7379 = vmatprep.mubr.f32.mxu0 0.0
      %7380 = vmatmul.mubr.f32.gmra.mrb[0].mxu0 %v6069
      %v7381 = vpop.f32.mrb[0].mxu0
      %v7382 = vadd.f32 0.0, %v7381
      %v7383 = vpop.f32.mrb[0].mxu0
      %7384 = vmatprep.mubr.f32.mxu0 0.0
      %7385 = vmatmul.mubr.f32.gmra.mrb[0].mxu0 %v7162
      %v7386 = vpop.f32.mrb[0].mxu0
      %v7387 = vadd.f32 0.0, %v7386
      %v7388 = vpop.f32.mrb[0].mxu0
      %7389 = vmatprep.mubr.f32.mxu0 0.0
      %7390 = vmatmul.mubr.f32.gmra.mrb[0].mxu0 %v7165
      %v7391 = vpop.f32.mrb[0].mxu0
      %v7392 = vadd.f32 0.0, %v7391
      %v7393 = vpop.f32.mrb[0].mxu0
      %7394 = vdwg.mxu0
      %v7395 = vadd.f32 %v7127, %v7237
      %v7396 = vadd.f32 %v7128, %v7242
      %v7397 = vadd.f32 %v7129, %v7247
      %v7398 = vadd.f32 %v7130, %v7252
      %v7399 = vadd.f32 %v7131, %v7257
      %v7400 = vadd.f32 %v7132, %v7262
      %v7401 = vadd.f32 %v7133, %v7267
      %v7402 = vadd.f32 %v7134, %v7272
      %v7403 = vadd.f32 %v7135, %v7277
      %v7404 = vadd.f32 %v7136, %v7282
      %v7405 = vadd.f32 %v7137, %v7287
      %v7406 = vadd.f32 %v7138, %v7292
      %v7407 = vadd.f32 %v7139, %v7297
      %v7408 = vadd.f32 %v7140, %v7302
      %v7409 = vadd.f32 %v7141, %v7307
      %v7410 = vadd.f32 %v7142, %v7312
      %v7411 = vadd.f32 %v7143, %v7317
      %v7412 = vadd.f32 %v7144, %v7322
      %v7413 = vadd.f32 %v7145, %v7327
      %v7414 = vadd.f32 %v7146, %v7332
      %v7415 = vadd.f32 %v7147, %v7337
      %v7416 = vadd.f32 %v7148, %v7342
      %v7417 = vadd.f32 %v7149, %v7347
      %v7418 = vadd.f32 %v7150, %v7352
      %v7419 = vadd.f32 %v7151, %v7357
      %v7420 = vadd.f32 %v7152, %v7362
      %v7421 = vadd.f32 %v7153, %v7367
      %v7422 = vadd.f32 %v7154, %v7372
      %v7423 = vadd.f32 %v7155, %v7377
      %v7424 = vadd.f32 %v7156, %v7382
      %v7425 = vadd.f32 %v7157, %v7387
      %v7426 = vadd.f32 %v7158, %v7392
      %v7428 = vrot.slane %v5967, 1
      %v7429 = vrot.slane %v5968, 1
      %v7430 = vsel %vm353, %v7428, %v7429
      %v7431 = vrot.slane %v5969, 1
      %v7432 = vsel %vm353, %v7429, %v7431
      %s7433 = scalar_lea.vmem %s1, 88
      %v7434 = vld [vmem:[%s7433] sm:$0xf]
      %v7435 = vsel %vm436, %v7430, 0
      %v7437 = vsel %vm436, %v7432, 0
      %v7440 = vsel %vm501, %v7434, 0
      %7442 = vmatprep.subr.mxu0 0.0
      %7443 = vmatpush1.msra.mxu0 %v7440
      %7444 = vmatprep.subr.mxu0 0.0
      %7445 = vmatpush1.msra.mxu0 0.0
      %7446 = vmatprep.subr.mxu0 0.0
      %7447 = vmatpush1.msra.mxu0 0.0
      %7448 = vmatprep.subr.mxu0 0.0
      %7449 = vmatpush1.msra.mxu0 0.0
      %7450 = vmatprep.subr.mxu0 0.0
      %7451 = vmatpush1.msra.mxu0 0.0
      %7452 = vmatprep.subr.mxu0 0.0
      %7453 = vmatpush1.msra.mxu0 0.0
      %7454 = vmatprep.subr.mxu0 0.0
      %7455 = vmatpush1.msra.mxu0 0.0
      %7456 = vmatprep.subr.mxu0 0.0
      %7457 = vmatpush1.msra.mxu0 0.0
      %7458 = vmatprep.subr.mxu0 0.0
      %7459 = vmatpush1.msra.mxu0 0.0
      %7460 = vmatprep.subr.mxu0 0.0
      %7461 = vmatpush1.msra.mxu0 0.0
      %7462 = vmatprep.subr.mxu0 0.0
      %7463 = vmatpush1.msra.mxu0 0.0
      %7464 = vmatprep.subr.mxu0 0.0
      %7465 = vmatpush1.msra.mxu0 0.0
      %7466 = vmatprep.subr.mxu0 0.0
      %7467 = vmatpush1.msra.mxu0 0.0
      %7468 = vmatprep.subr.mxu0 0.0
      %7469 = vmatpush1.msra.mxu0 0.0
      %7470 = vmatprep.subr.mxu0 0.0
      %7471 = vmatpush1.msra.mxu0 0.0
      %7472 = vmatprep.subr.mxu0 0.0
      %7473 = vmatpush1.msra.mxu0 0.0
      %7474 = vmatprep.subr.mxu0 0.0
      %7475 = vmatpush1.msra.mxu0 0.0
      %7476 = vmatprep.subr.mxu0 0.0
      %7477 = vmatpush1.msra.mxu0 0.0
      %7478 = vmatprep.subr.mxu0 0.0
      %7479 = vmatpush1.msra.mxu0 0.0
      %7480 = vmatprep.subr.mxu0 0.0
      %7481 = vmatpush1.msra.mxu0 0.0
      %7482 = vmatprep.subr.mxu0 0.0
      %7483 = vmatpush1.msra.mxu0 0.0
      %7484 = vmatprep.subr.mxu0 0.0
      %7485 = vmatpush1.msra.mxu0 0.0
      %7486 = vmatprep.subr.mxu0 0.0
      %7487 = vmatpush1.msra.mxu0 0.0
      %7488 = vmatprep.subr.mxu0 0.0
      %7489 = vmatpush1.msra.mxu0 0.0
      %7490 = vmatprep.subr.mxu0 0.0
      %7491 = vmatpush1.msra.mxu0 0.0
      %7492 = vmatprep.subr.mxu0 0.0
      %7493 = vmatpush1.msra.mxu0 0.0
      %7494 = vmatprep.subr.mxu0 0.0
      %7495 = vmatpush1.msra.mxu0 0.0
      %7496 = vmatprep.subr.mxu0 0.0
      %7497 = vmatpush1.msra.mxu0 0.0
      %7498 = vmatprep.subr.mxu0 0.0
      %7499 = vmatpush1.msra.mxu0 0.0
      %7500 = vmatprep.subr.mxu0 0.0
      %7501 = vmatpush1.msra.mxu0 0.0
      %7502 = vmatprep.subr.mxu0 0.0
      %7503 = vmatpush1.msra.mxu0 0.0
      %7504 = vmatprep.subr.mxu0 0.0
      %7505 = vmatpush1.msra.mxu0 0.0
      %7506 = vmatprep.mubr.f32.mxu0 0.0
      %7507 = vmatmul.mubr.f32.gmra.mrb[0].mxu0 %v6433
      %v7508 = vpop.f32.mrb[0].mxu0
      %v7509 = vadd.f32 0.0, %v7508
      %v7510 = vpop.f32.mrb[0].mxu0
      %7511 = vmatprep.mubr.f32.mxu0 0.0
      %7512 = vmatmul.mubr.f32.gmra.mrb[0].mxu0 %v6435
      %v7513 = vpop.f32.mrb[0].mxu0
      %v7514 = vadd.f32 0.0, %v7513
      %v7515 = vpop.f32.mrb[0].mxu0
      %7516 = vmatprep.mubr.f32.mxu0 0.0
      %7517 = vmatmul.mubr.f32.gmra.mrb[0].mxu0 %v6437
      %v7518 = vpop.f32.mrb[0].mxu0
      %v7519 = vadd.f32 0.0, %v7518
      %v7520 = vpop.f32.mrb[0].mxu0
      %7521 = vmatprep.mubr.f32.mxu0 0.0
      %7522 = vmatmul.mubr.f32.gmra.mrb[0].mxu0 %v6439
      %v7523 = vpop.f32.mrb[0].mxu0
      %v7524 = vadd.f32 0.0, %v7523
      %v7525 = vpop.f32.mrb[0].mxu0
      %7526 = vmatprep.mubr.f32.mxu0 0.0
      %7527 = vmatmul.mubr.f32.gmra.mrb[0].mxu0 %v6441
      %v7528 = vpop.f32.mrb[0].mxu0
      %v7529 = vadd.f32 0.0, %v7528
      %v7530 = vpop.f32.mrb[0].mxu0
      %7531 = vmatprep.mubr.f32.mxu0 0.0
      %7532 = vmatmul.mubr.f32.gmra.mrb[0].mxu0 %v6443
      %v7533 = vpop.f32.mrb[0].mxu0
      %v7534 = vadd.f32 0.0, %v7533
      %v7535 = vpop.f32.mrb[0].mxu0
      %7536 = vmatprep.mubr.f32.mxu0 0.0
      %7537 = vmatmul.mubr.f32.gmra.mrb[0].mxu0 %v6445
      %v7538 = vpop.f32.mrb[0].mxu0
      %v7539 = vadd.f32 0.0, %v7538
      %v7540 = vpop.f32.mrb[0].mxu0
      %7541 = vmatprep.mubr.f32.mxu0 0.0
      %7542 = vmatmul.mubr.f32.gmra.mrb[0].mxu0 %v6447
      %v7543 = vpop.f32.mrb[0].mxu0
      %v7544 = vadd.f32 0.0, %v7543
      %v7545 = vpop.f32.mrb[0].mxu0
      %7546 = vmatprep.mubr.f32.mxu0 0.0
      %7547 = vmatmul.mubr.f32.gmra.mrb[0].mxu0 %v6449
      %v7548 = vpop.f32.mrb[0].mxu0
      %v7549 = vadd.f32 0.0, %v7548
      %v7550 = vpop.f32.mrb[0].mxu0
      %7551 = vmatprep.mubr.f32.mxu0 0.0
      %7552 = vmatmul.mubr.f32.gmra.mrb[0].mxu0 %v6451
      %v7553 = vpop.f32.mrb[0].mxu0
      %v7554 = vadd.f32 0.0, %v7553
      %v7555 = vpop.f32.mrb[0].mxu0
      %7556 = vmatprep.mubr.f32.mxu0 0.0
      %7557 = vmatmul.mubr.f32.gmra.mrb[0].mxu0 %v6453
      %v7558 = vpop.f32.mrb[0].mxu0
      %v7559 = vadd.f32 0.0, %v7558
      %v7560 = vpop.f32.mrb[0].mxu0
      %7561 = vmatprep.mubr.f32.mxu0 0.0
      %7562 = vmatmul.mubr.f32.gmra.mrb[0].mxu0 %v6455
      %v7563 = vpop.f32.mrb[0].mxu0
      %v7564 = vadd.f32 0.0, %v7563
      %v7565 = vpop.f32.mrb[0].mxu0
      %7566 = vmatprep.mubr.f32.mxu0 0.0
      %7567 = vmatmul.mubr.f32.gmra.mrb[0].mxu0 %v6457
      %v7568 = vpop.f32.mrb[0].mxu0
      %v7569 = vadd.f32 0.0, %v7568
      %v7570 = vpop.f32.mrb[0].mxu0
      %7571 = vmatprep.mubr.f32.mxu0 0.0
      %7572 = vmatmul.mubr.f32.gmra.mrb[0].mxu0 %v6459
      %v7573 = vpop.f32.mrb[0].mxu0
      %v7574 = vadd.f32 0.0, %v7573
      %v7575 = vpop.f32.mrb[0].mxu0
      %7576 = vmatprep.mubr.f32.mxu0 0.0
      %7577 = vmatmul.mubr.f32.gmra.mrb[0].mxu0 %v6461
      %v7578 = vpop.f32.mrb[0].mxu0
      %v7579 = vadd.f32 0.0, %v7578
      %v7580 = vpop.f32.mrb[0].mxu0
      %7581 = vmatprep.mubr.f32.mxu0 0.0
      %7582 = vmatmul.mubr.f32.gmra.mrb[0].mxu0 %v6463
      %v7583 = vpop.f32.mrb[0].mxu0
      %v7584 = vadd.f32 0.0, %v7583
      %v7585 = vpop.f32.mrb[0].mxu0
      %7586 = vmatprep.mubr.f32.mxu0 0.0
      %7587 = vmatmul.mubr.f32.gmra.mrb[0].mxu0 %v6465
      %v7588 = vpop.f32.mrb[0].mxu0
      %v7589 = vadd.f32 0.0, %v7588
      %v7590 = vpop.f32.mrb[0].mxu0
      %7591 = vmatprep.mubr.f32.mxu0 0.0
      %7592 = vmatmul.mubr.f32.gmra.mrb[0].mxu0 %v6467
      %v7593 = vpop.f32.mrb[0].mxu0
      %v7594 = vadd.f32 0.0, %v7593
      %v7595 = vpop.f32.mrb[0].mxu0
      %7596 = vmatprep.mubr.f32.mxu0 0.0
      %7597 = vmatmul.mubr.f32.gmra.mrb[0].mxu0 %v6469
      %v7598 = vpop.f32.mrb[0].mxu0
      %v7599 = vadd.f32 0.0, %v7598
      %v7600 = vpop.f32.mrb[0].mxu0
      %7601 = vmatprep.mubr.f32.mxu0 0.0
      %7602 = vmatmul.mubr.f32.gmra.mrb[0].mxu0 %v6471
      %v7603 = vpop.f32.mrb[0].mxu0
      %v7604 = vadd.f32 0.0, %v7603
      %v7605 = vpop.f32.mrb[0].mxu0
      %7606 = vmatprep.mubr.f32.mxu0 0.0
      %7607 = vmatmul.mubr.f32.gmra.mrb[0].mxu0 %v6473
      %v7608 = vpop.f32.mrb[0].mxu0
      %v7609 = vadd.f32 0.0, %v7608
      %v7610 = vpop.f32.mrb[0].mxu0
      %7611 = vmatprep.mubr.f32.mxu0 0.0
      %7612 = vmatmul.mubr.f32.gmra.mrb[0].mxu0 %v6475
      %v7613 = vpop.f32.mrb[0].mxu0
      %v7614 = vadd.f32 0.0, %v7613
      %v7615 = vpop.f32.mrb[0].mxu0
      %7616 = vmatprep.mubr.f32.mxu0 0.0
      %7617 = vmatmul.mubr.f32.gmra.mrb[0].mxu0 %v6477
      %v7618 = vpop.f32.mrb[0].mxu0
      %v7619 = vadd.f32 0.0, %v7618
      %v7620 = vpop.f32.mrb[0].mxu0
      %7621 = vmatprep.mubr.f32.mxu0 0.0
      %7622 = vmatmul.mubr.f32.gmra.mrb[0].mxu0 %v6479
      %v7623 = vpop.f32.mrb[0].mxu0
      %v7624 = vadd.f32 0.0, %v7623
      %v7625 = vpop.f32.mrb[0].mxu0
      %7626 = vmatprep.mubr.f32.mxu0 0.0
      %7627 = vmatmul.mubr.f32.gmra.mrb[0].mxu0 %v6481
      %v7628 = vpop.f32.mrb[0].mxu0
      %v7629 = vadd.f32 0.0, %v7628
      %v7630 = vpop.f32.mrb[0].mxu0
      %7631 = vmatprep.mubr.f32.mxu0 0.0
      %7632 = vmatmul.mubr.f32.gmra.mrb[0].mxu0 %v6483
      %v7633 = vpop.f32.mrb[0].mxu0
      %v7634 = vadd.f32 0.0, %v7633
      %v7635 = vpop.f32.mrb[0].mxu0
      %7636 = vmatprep.mubr.f32.mxu0 0.0
      %7637 = vmatmul.mubr.f32.gmra.mrb[0].mxu0 %v6485
      %v7638 = vpop.f32.mrb[0].mxu0
      %v7639 = vadd.f32 0.0, %v7638
      %v7640 = vpop.f32.mrb[0].mxu0
      %7641 = vmatprep.mubr.f32.mxu0 0.0
      %7642 = vmatmul.mubr.f32.gmra.mrb[0].mxu0 %v6487
      %v7643 = vpop.f32.mrb[0].mxu0
      %v7644 = vadd.f32 0.0, %v7643
      %v7645 = vpop.f32.mrb[0].mxu0
      %7646 = vmatprep.mubr.f32.mxu0 0.0
      %7647 = vmatmul.mubr.f32.gmra.mrb[0].mxu0 %v6489
      %v7648 = vpop.f32.mrb[0].mxu0
      %v7649 = vadd.f32 0.0, %v7648
      %v7650 = vpop.f32.mrb[0].mxu0
      %7651 = vmatprep.mubr.f32.mxu0 0.0
      %7652 = vmatmul.mubr.f32.gmra.mrb[0].mxu0 %v6491
      %v7653 = vpop.f32.mrb[0].mxu0
      %v7654 = vadd.f32 0.0, %v7653
      %v7655 = vpop.f32.mrb[0].mxu0
      %7656 = vmatprep.mubr.f32.mxu0 0.0
      %7657 = vmatmul.mubr.f32.gmra.mrb[0].mxu0 %v7435
      %v7658 = vpop.f32.mrb[0].mxu0
      %v7659 = vadd.f32 0.0, %v7658
      %v7660 = vpop.f32.mrb[0].mxu0
      %7661 = vmatprep.mubr.f32.mxu0 0.0
      %7662 = vmatmul.mubr.f32.gmra.mrb[0].mxu0 %v7437
      %v7663 = vpop.f32.mrb[0].mxu0
      %v7664 = vadd.f32 0.0, %v7663
      %v7665 = vpop.f32.mrb[0].mxu0
      %7666 = vdwg.mxu0
      %v7667 = vadd.f32 %v7395, %v7509
      %v7668 = vadd.f32 %v7396, %v7514
      %v7669 = vadd.f32 %v7397, %v7519
      %v7670 = vadd.f32 %v7398, %v7524
      %v7671 = vadd.f32 %v7399, %v7529
      %v7672 = vadd.f32 %v7400, %v7534
      %v7673 = vadd.f32 %v7401, %v7539
      %v7674 = vadd.f32 %v7402, %v7544
      %v7675 = vadd.f32 %v7403, %v7549
      %v7676 = vadd.f32 %v7404, %v7554
      %v7677 = vadd.f32 %v7405, %v7559
      %v7678 = vadd.f32 %v7406, %v7564
      %v7679 = vadd.f32 %v7407, %v7569
      %v7680 = vadd.f32 %v7408, %v7574
      %v7681 = vadd.f32 %v7409, %v7579
      %v7682 = vadd.f32 %v7410, %v7584
      %v7683 = vadd.f32 %v7411, %v7589
      %v7684 = vadd.f32 %v7412, %v7594
      %v7685 = vadd.f32 %v7413, %v7599
      %v7686 = vadd.f32 %v7414, %v7604
      %v7687 = vadd.f32 %v7415, %v7609
      %v7688 = vadd.f32 %v7416, %v7614
      %v7689 = vadd.f32 %v7417, %v7619
      %v7690 = vadd.f32 %v7418, %v7624
      %v7691 = vadd.f32 %v7419, %v7629
      %v7692 = vadd.f32 %v7420, %v7634
      %v7693 = vadd.f32 %v7421, %v7639
      %v7694 = vadd.f32 %v7422, %v7644
      %v7695 = vadd.f32 %v7423, %v7649
      %v7696 = vadd.f32 %v7424, %v7654
      %v7697 = vadd.f32 %v7425, %v7659
      %v7698 = vadd.f32 %v7426, %v7664
      %v7699 = vrot.slane %v5967, 2
      %v7700 = vrot.slane %v5968, 2
      %v7701 = vsel %vm1022, %v7699, %v7700
      %v7702 = vrot.slane %v5969, 2
      %v7703 = vsel %vm1022, %v7700, %v7702
      %s7704 = scalar_lea.vmem %s1, 92
      %v7705 = vld [vmem:[%s7704] sm:$0xf]
      %v7706 = vsel %vm436, %v7701, 0
      %v7708 = vsel %vm436, %v7703, 0
      %v7711 = vsel %vm501, %v7705, 0
      %7713 = vmatprep.subr.mxu0 0.0
      %7714 = vmatpush1.msra.mxu0 %v7711
      %7715 = vmatprep.subr.mxu0 0.0
      %7716 = vmatpush1.msra.mxu0 0.0
      %7717 = vmatprep.subr.mxu0 0.0
      %7718 = vmatpush1.msra.mxu0 0.0
      %7719 = vmatprep.subr.mxu0 0.0
      %7720 = vmatpush1.msra.mxu0 0.0
      %7721 = vmatprep.subr.mxu0 0.0
      %7722 = vmatpush1.msra.mxu0 0.0
      %7723 = vmatprep.subr.mxu0 0.0
      %7724 = vmatpush1.msra.mxu0 0.0
      %7725 = vmatprep.subr.mxu0 0.0
      %7726 = vmatpush1.msra.mxu0 0.0
      %7727 = vmatprep.subr.mxu0 0.0
      %7728 = vmatpush1.msra.mxu0 0.0
      %7729 = vmatprep.subr.mxu0 0.0
      %7730 = vmatpush1.msra.mxu0 0.0
      %7731 = vmatprep.subr.mxu0 0.0
      %7732 = vmatpush1.msra.mxu0 0.0
      %7733 = vmatprep.subr.mxu0 0.0
      %7734 = vmatpush1.msra.mxu0 0.0
      %7735 = vmatprep.subr.mxu0 0.0
      %7736 = vmatpush1.msra.mxu0 0.0
      %7737 = vmatprep.subr.mxu0 0.0
      %7738 = vmatpush1.msra.mxu0 0.0
      %7739 = vmatprep.subr.mxu0 0.0
      %7740 = vmatpush1.msra.mxu0 0.0
      %7741 = vmatprep.subr.mxu0 0.0
      %7742 = vmatpush1.msra.mxu0 0.0
      %7743 = vmatprep.subr.mxu0 0.0
      %7744 = vmatpush1.msra.mxu0 0.0
      %7745 = vmatprep.subr.mxu0 0.0
      %7746 = vmatpush1.msra.mxu0 0.0
      %7747 = vmatprep.subr.mxu0 0.0
      %7748 = vmatpush1.msra.mxu0 0.0
      %7749 = vmatprep.subr.mxu0 0.0
      %7750 = vmatpush1.msra.mxu0 0.0
      %7751 = vmatprep.subr.mxu0 0.0
      %7752 = vmatpush1.msra.mxu0 0.0
      %7753 = vmatprep.subr.mxu0 0.0
      %7754 = vmatpush1.msra.mxu0 0.0
      %7755 = vmatprep.subr.mxu0 0.0
      %7756 = vmatpush1.msra.mxu0 0.0
      %7757 = vmatprep.subr.mxu0 0.0
      %7758 = vmatpush1.msra.mxu0 0.0
      %7759 = vmatprep.subr.mxu0 0.0
      %7760 = vmatpush1.msra.mxu0 0.0
      %7761 = vmatprep.subr.mxu0 0.0
      %7762 = vmatpush1.msra.mxu0 0.0
      %7763 = vmatprep.subr.mxu0 0.0
      %7764 = vmatpush1.msra.mxu0 0.0
      %7765 = vmatprep.subr.mxu0 0.0
      %7766 = vmatpush1.msra.mxu0 0.0
      %7767 = vmatprep.subr.mxu0 0.0
      %7768 = vmatpush1.msra.mxu0 0.0
      %7769 = vmatprep.subr.mxu0 0.0
      %7770 = vmatpush1.msra.mxu0 0.0
      %7771 = vmatprep.subr.mxu0 0.0
      %7772 = vmatpush1.msra.mxu0 0.0
      %7773 = vmatprep.subr.mxu0 0.0
      %7774 = vmatpush1.msra.mxu0 0.0
      %7775 = vmatprep.subr.mxu0 0.0
      %7776 = vmatpush1.msra.mxu0 0.0
      %7777 = vmatprep.mubr.f32.mxu0 0.0
      %7778 = vmatmul.mubr.f32.gmra.mrb[0].mxu0 %v6839
      %v7779 = vpop.f32.mrb[0].mxu0
      %v7780 = vadd.f32 0.0, %v7779
      %v7781 = vpop.f32.mrb[0].mxu0
      %7782 = vmatprep.mubr.f32.mxu0 0.0
      %7783 = vmatmul.mubr.f32.gmra.mrb[0].mxu0 %v6841
      %v7784 = vpop.f32.mrb[0].mxu0
      %v7785 = vadd.f32 0.0, %v7784
      %v7786 = vpop.f32.mrb[0].mxu0
      %7787 = vmatprep.mubr.f32.mxu0 0.0
      %7788 = vmatmul.mubr.f32.gmra.mrb[0].mxu0 %v6843
      %v7789 = vpop.f32.mrb[0].mxu0
      %v7790 = vadd.f32 0.0, %v7789
      %v7791 = vpop.f32.mrb[0].mxu0
      %7792 = vmatprep.mubr.f32.mxu0 0.0
      %7793 = vmatmul.mubr.f32.gmra.mrb[0].mxu0 %v6845
      %v7794 = vpop.f32.mrb[0].mxu0
      %v7795 = vadd.f32 0.0, %v7794
      %v7796 = vpop.f32.mrb[0].mxu0
      %7797 = vmatprep.mubr.f32.mxu0 0.0
      %7798 = vmatmul.mubr.f32.gmra.mrb[0].mxu0 %v6847
      %v7799 = vpop.f32.mrb[0].mxu0
      %v7800 = vadd.f32 0.0, %v7799
      %v7801 = vpop.f32.mrb[0].mxu0
      %7802 = vmatprep.mubr.f32.mxu0 0.0
      %7803 = vmatmul.mubr.f32.gmra.mrb[0].mxu0 %v6849
      %v7804 = vpop.f32.mrb[0].mxu0
      %v7805 = vadd.f32 0.0, %v7804
      %v7806 = vpop.f32.mrb[0].mxu0
      %7807 = vmatprep.mubr.f32.mxu0 0.0
      %7808 = vmatmul.mubr.f32.gmra.mrb[0].mxu0 %v6851
      %v7809 = vpop.f32.mrb[0].mxu0
      %v7810 = vadd.f32 0.0, %v7809
      %v7811 = vpop.f32.mrb[0].mxu0
      %7812 = vmatprep.mubr.f32.mxu0 0.0
      %7813 = vmatmul.mubr.f32.gmra.mrb[0].mxu0 %v6853
      %v7814 = vpop.f32.mrb[0].mxu0
      %v7815 = vadd.f32 0.0, %v7814
      %v7816 = vpop.f32.mrb[0].mxu0
      %7817 = vmatprep.mubr.f32.mxu0 0.0
      %7818 = vmatmul.mubr.f32.gmra.mrb[0].mxu0 %v6855
      %v7819 = vpop.f32.mrb[0].mxu0
      %v7820 = vadd.f32 0.0, %v7819
      %v7821 = vpop.f32.mrb[0].mxu0
      %7822 = vmatprep.mubr.f32.mxu0 0.0
      %7823 = vmatmul.mubr.f32.gmra.mrb[0].mxu0 %v6857
      %v7824 = vpop.f32.mrb[0].mxu0
      %v7825 = vadd.f32 0.0, %v7824
      %v7826 = vpop.f32.mrb[0].mxu0
      %7827 = vmatprep.mubr.f32.mxu0 0.0
      %7828 = vmatmul.mubr.f32.gmra.mrb[0].mxu0 %v6859
      %v7829 = vpop.f32.mrb[0].mxu0
      %v7830 = vadd.f32 0.0, %v7829
      %v7831 = vpop.f32.mrb[0].mxu0
      %7832 = vmatprep.mubr.f32.mxu0 0.0
      %7833 = vmatmul.mubr.f32.gmra.mrb[0].mxu0 %v6861
      %v7834 = vpop.f32.mrb[0].mxu0
      %v7835 = vadd.f32 0.0, %v7834
      %v7836 = vpop.f32.mrb[0].mxu0
      %7837 = vmatprep.mubr.f32.mxu0 0.0
      %7838 = vmatmul.mubr.f32.gmra.mrb[0].mxu0 %v6863
      %v7839 = vpop.f32.mrb[0].mxu0
      %v7840 = vadd.f32 0.0, %v7839
      %v7841 = vpop.f32.mrb[0].mxu0
      %7842 = vmatprep.mubr.f32.mxu0 0.0
      %7843 = vmatmul.mubr.f32.gmra.mrb[0].mxu0 %v6865
      %v7844 = vpop.f32.mrb[0].mxu0
      %v7845 = vadd.f32 0.0, %v7844
      %v7846 = vpop.f32.mrb[0].mxu0
      %7847 = vmatprep.mubr.f32.mxu0 0.0
      %7848 = vmatmul.mubr.f32.gmra.mrb[0].mxu0 %v6867
      %v7849 = vpop.f32.mrb[0].mxu0
      %v7850 = vadd.f32 0.0, %v7849
      %v7851 = vpop.f32.mrb[0].mxu0
      %7852 = vmatprep.mubr.f32.mxu0 0.0
      %7853 = vmatmul.mubr.f32.gmra.mrb[0].mxu0 %v6869
      %v7854 = vpop.f32.mrb[0].mxu0
      %v7855 = vadd.f32 0.0, %v7854
      %v7856 = vpop.f32.mrb[0].mxu0
      %7857 = vmatprep.mubr.f32.mxu0 0.0
      %7858 = vmatmul.mubr.f32.gmra.mrb[0].mxu0 %v6871
      %v7859 = vpop.f32.mrb[0].mxu0
      %v7860 = vadd.f32 0.0, %v7859
      %v7861 = vpop.f32.mrb[0].mxu0
      %7862 = vmatprep.mubr.f32.mxu0 0.0
      %7863 = vmatmul.mubr.f32.gmra.mrb[0].mxu0 %v6873
      %v7864 = vpop.f32.mrb[0].mxu0
      %v7865 = vadd.f32 0.0, %v7864
      %v7866 = vpop.f32.mrb[0].mxu0
      %7867 = vmatprep.mubr.f32.mxu0 0.0
      %7868 = vmatmul.mubr.f32.gmra.mrb[0].mxu0 %v6875
      %v7869 = vpop.f32.mrb[0].mxu0
      %v7870 = vadd.f32 0.0, %v7869
      %v7871 = vpop.f32.mrb[0].mxu0
      %7872 = vmatprep.mubr.f32.mxu0 0.0
      %7873 = vmatmul.mubr.f32.gmra.mrb[0].mxu0 %v6877
      %v7874 = vpop.f32.mrb[0].mxu0
      %v7875 = vadd.f32 0.0, %v7874
      %v7876 = vpop.f32.mrb[0].mxu0
      %7877 = vmatprep.mubr.f32.mxu0 0.0
      %7878 = vmatmul.mubr.f32.gmra.mrb[0].mxu0 %v6879
      %v7879 = vpop.f32.mrb[0].mxu0
      %v7880 = vadd.f32 0.0, %v7879
      %v7881 = vpop.f32.mrb[0].mxu0
      %7882 = vmatprep.mubr.f32.mxu0 0.0
      %7883 = vmatmul.mubr.f32.gmra.mrb[0].mxu0 %v6881
      %v7884 = vpop.f32.mrb[0].mxu0
      %v7885 = vadd.f32 0.0, %v7884
      %v7886 = vpop.f32.mrb[0].mxu0
      %7887 = vmatprep.mubr.f32.mxu0 0.0
      %7888 = vmatmul.mubr.f32.gmra.mrb[0].mxu0 %v6883
      %v7889 = vpop.f32.mrb[0].mxu0
      %v7890 = vadd.f32 0.0, %v7889
      %v7891 = vpop.f32.mrb[0].mxu0
      %7892 = vmatprep.mubr.f32.mxu0 0.0
      %7893 = vmatmul.mubr.f32.gmra.mrb[0].mxu0 %v6885
      %v7894 = vpop.f32.mrb[0].mxu0
      %v7895 = vadd.f32 0.0, %v7894
      %v7896 = vpop.f32.mrb[0].mxu0
      %7897 = vmatprep.mubr.f32.mxu0 0.0
      %7898 = vmatmul.mubr.f32.gmra.mrb[0].mxu0 %v6887
      %v7899 = vpop.f32.mrb[0].mxu0
      %v7900 = vadd.f32 0.0, %v7899
      %v7901 = vpop.f32.mrb[0].mxu0
      %7902 = vmatprep.mubr.f32.mxu0 0.0
      %7903 = vmatmul.mubr.f32.gmra.mrb[0].mxu0 %v6889
      %v7904 = vpop.f32.mrb[0].mxu0
      %v7905 = vadd.f32 0.0, %v7904
      %v7906 = vpop.f32.mrb[0].mxu0
      %7907 = vmatprep.mubr.f32.mxu0 0.0
      %7908 = vmatmul.mubr.f32.gmra.mrb[0].mxu0 %v6891
      %v7909 = vpop.f32.mrb[0].mxu0
      %v7910 = vadd.f32 0.0, %v7909
      %v7911 = vpop.f32.mrb[0].mxu0
      %7912 = vmatprep.mubr.f32.mxu0 0.0
      %7913 = vmatmul.mubr.f32.gmra.mrb[0].mxu0 %v6893
      %v7914 = vpop.f32.mrb[0].mxu0
      %v7915 = vadd.f32 0.0, %v7914
      %v7916 = vpop.f32.mrb[0].mxu0
      %7917 = vmatprep.mubr.f32.mxu0 0.0
      %7918 = vmatmul.mubr.f32.gmra.mrb[0].mxu0 %v6895
      %v7919 = vpop.f32.mrb[0].mxu0
      %v7920 = vadd.f32 0.0, %v7919
      %v7921 = vpop.f32.mrb[0].mxu0
      %7922 = vmatprep.mubr.f32.mxu0 0.0
      %7923 = vmatmul.mubr.f32.gmra.mrb[0].mxu0 %v6897
      %v7924 = vpop.f32.mrb[0].mxu0
      %v7925 = vadd.f32 0.0, %v7924
      %v7926 = vpop.f32.mrb[0].mxu0
      %7927 = vmatprep.mubr.f32.mxu0 0.0
      %7928 = vmatmul.mubr.f32.gmra.mrb[0].mxu0 %v7706
      %v7929 = vpop.f32.mrb[0].mxu0
      %v7930 = vadd.f32 0.0, %v7929
      %v7931 = vpop.f32.mrb[0].mxu0
      %7932 = vmatprep.mubr.f32.mxu0 0.0
      %7933 = vmatmul.mubr.f32.gmra.mrb[0].mxu0 %v7708
      %v7934 = vpop.f32.mrb[0].mxu0
      %v7935 = vadd.f32 0.0, %v7934
      %v7936 = vpop.f32.mrb[0].mxu0
      %7937 = vdwg.mxu0
      %v7938 = vadd.f32 %v7667, %v7780
      %v7939 = vadd.f32 %v7668, %v7785
      %v7940 = vadd.f32 %v7669, %v7790
      %v7941 = vadd.f32 %v7670, %v7795
      %v7942 = vadd.f32 %v7671, %v7800
      %v7943 = vadd.f32 %v7672, %v7805
      %v7944 = vadd.f32 %v7673, %v7810
      %v7945 = vadd.f32 %v7674, %v7815
      %v7946 = vadd.f32 %v7675, %v7820
      %v7947 = vadd.f32 %v7676, %v7825
      %v7948 = vadd.f32 %v7677, %v7830
      %v7949 = vadd.f32 %v7678, %v7835
      %v7950 = vadd.f32 %v7679, %v7840
      %v7951 = vadd.f32 %v7680, %v7845
      %v7952 = vadd.f32 %v7681, %v7850
      %v7953 = vadd.f32 %v7682, %v7855
      %v7954 = vadd.f32 %v7683, %v7860
      %v7955 = vadd.f32 %v7684, %v7865
      %v7956 = vadd.f32 %v7685, %v7870
      %v7957 = vadd.f32 %v7686, %v7875
      %v7958 = vadd.f32 %v7687, %v7880
      %v7959 = vadd.f32 %v7688, %v7885
      %v7960 = vadd.f32 %v7689, %v7890
      %v7961 = vadd.f32 %v7690, %v7895
      %v7962 = vadd.f32 %v7691, %v7900
      %v7963 = vadd.f32 %v7692, %v7905
      %v7964 = vadd.f32 %v7693, %v7910
      %v7965 = vadd.f32 %v7694, %v7915
      %v7966 = vadd.f32 %v7695, %v7920
      %v7967 = vadd.f32 %v7696, %v7925
      %v7968 = vadd.f32 %v7697, %v7930
      %v7969 = vadd.f32 %v7698, %v7935
      %s7970 = scalar_lea.vmem %s1, 96
      %v7971 = vld [vmem:[%s7970] sm:$0xf]
      %v7973 = vsel %vm436, %v5970, 0
      %v7976 = vsel %vm436, %v5971, 0
      %v7979 = vsel %vm501, %v7971, 0
      %7981 = vmatprep.subr.mxu0 0.0
      %7982 = vmatpush1.msra.mxu0 %v7979
      %7983 = vmatprep.subr.mxu0 0.0
      %7984 = vmatpush1.msra.mxu0 0.0
      %7985 = vmatprep.subr.mxu0 0.0
      %7986 = vmatpush1.msra.mxu0 0.0
      %7987 = vmatprep.subr.mxu0 0.0
      %7988 = vmatpush1.msra.mxu0 0.0
      %7989 = vmatprep.subr.mxu0 0.0
      %7990 = vmatpush1.msra.mxu0 0.0
      %7991 = vmatprep.subr.mxu0 0.0
      %7992 = vmatpush1.msra.mxu0 0.0
      %7993 = vmatprep.subr.mxu0 0.0
      %7994 = vmatpush1.msra.mxu0 0.0
      %7995 = vmatprep.subr.mxu0 0.0
      %7996 = vmatpush1.msra.mxu0 0.0
      %7997 = vmatprep.subr.mxu0 0.0
      %7998 = vmatpush1.msra.mxu0 0.0
      %7999 = vmatprep.subr.mxu0 0.0
      %8000 = vmatpush1.msra.mxu0 0.0
      %8001 = vmatprep.subr.mxu0 0.0
      %8002 = vmatpush1.msra.mxu0 0.0
      %8003 = vmatprep.subr.mxu0 0.0
      %8004 = vmatpush1.msra.mxu0 0.0
      %8005 = vmatprep.subr.mxu0 0.0
      %8006 = vmatpush1.msra.mxu0 0.0
      %8007 = vmatprep.subr.mxu0 0.0
      %8008 = vmatpush1.msra.mxu0 0.0
      %8009 = vmatprep.subr.mxu0 0.0
      %8010 = vmatpush1.msra.mxu0 0.0
      %8011 = vmatprep.subr.mxu0 0.0
      %8012 = vmatpush1.msra.mxu0 0.0
      %8013 = vmatprep.subr.mxu0 0.0
      %8014 = vmatpush1.msra.mxu0 0.0
      %8015 = vmatprep.subr.mxu0 0.0
      %8016 = vmatpush1.msra.mxu0 0.0
      %8017 = vmatprep.subr.mxu0 0.0
      %8018 = vmatpush1.msra.mxu0 0.0
      %8019 = vmatprep.subr.mxu0 0.0
      %8020 = vmatpush1.msra.mxu0 0.0
      %8021 = vmatprep.subr.mxu0 0.0
      %8022 = vmatpush1.msra.mxu0 0.0
      %8023 = vmatprep.subr.mxu0 0.0
      %8024 = vmatpush1.msra.mxu0 0.0
      %8025 = vmatprep.subr.mxu0 0.0
      %8026 = vmatpush1.msra.mxu0 0.0
      %8027 = vmatprep.subr.mxu0 0.0
      %8028 = vmatpush1.msra.mxu0 0.0
      %8029 = vmatprep.subr.mxu0 0.0
      %8030 = vmatpush1.msra.mxu0 0.0
      %8031 = vmatprep.subr.mxu0 0.0
      %8032 = vmatpush1.msra.mxu0 0.0
      %8033 = vmatprep.subr.mxu0 0.0
      %8034 = vmatpush1.msra.mxu0 0.0
      %8035 = vmatprep.subr.mxu0 0.0
      %8036 = vmatpush1.msra.mxu0 0.0
      %8037 = vmatprep.subr.mxu0 0.0
      %8038 = vmatpush1.msra.mxu0 0.0
      %8039 = vmatprep.subr.mxu0 0.0
      %8040 = vmatpush1.msra.mxu0 0.0
      %8041 = vmatprep.subr.mxu0 0.0
      %8042 = vmatpush1.msra.mxu0 0.0
      %8043 = vmatprep.subr.mxu0 0.0
      %8044 = vmatpush1.msra.mxu0 0.0
      %8045 = vmatprep.mubr.f32.mxu0 0.0
      %8046 = vmatmul.mubr.f32.gmra.mrb[0].mxu0 %v5988
      %v8047 = vpop.f32.mrb[0].mxu0
      %v8048 = vadd.f32 0.0, %v8047
      %v8049 = vpop.f32.mrb[0].mxu0
      %8050 = vmatprep.mubr.f32.mxu0 0.0
      %8051 = vmatmul.mubr.f32.gmra.mrb[0].mxu0 %v5991
      %v8052 = vpop.f32.mrb[0].mxu0
      %v8053 = vadd.f32 0.0, %v8052
      %v8054 = vpop.f32.mrb[0].mxu0
      %8055 = vmatprep.mubr.f32.mxu0 0.0
      %8056 = vmatmul.mubr.f32.gmra.mrb[0].mxu0 %v5994
      %v8057 = vpop.f32.mrb[0].mxu0
      %v8058 = vadd.f32 0.0, %v8057
      %v8059 = vpop.f32.mrb[0].mxu0
      %8060 = vmatprep.mubr.f32.mxu0 0.0
      %8061 = vmatmul.mubr.f32.gmra.mrb[0].mxu0 %v5997
      %v8062 = vpop.f32.mrb[0].mxu0
      %v8063 = vadd.f32 0.0, %v8062
      %v8064 = vpop.f32.mrb[0].mxu0
      %8065 = vmatprep.mubr.f32.mxu0 0.0
      %8066 = vmatmul.mubr.f32.gmra.mrb[0].mxu0 %v6000
      %v8067 = vpop.f32.mrb[0].mxu0
      %v8068 = vadd.f32 0.0, %v8067
      %v8069 = vpop.f32.mrb[0].mxu0
      %8070 = vmatprep.mubr.f32.mxu0 0.0
      %8071 = vmatmul.mubr.f32.gmra.mrb[0].mxu0 %v6003
      %v8072 = vpop.f32.mrb[0].mxu0
      %v8073 = vadd.f32 0.0, %v8072
      %v8074 = vpop.f32.mrb[0].mxu0
      %8075 = vmatprep.mubr.f32.mxu0 0.0
      %8076 = vmatmul.mubr.f32.gmra.mrb[0].mxu0 %v6006
      %v8077 = vpop.f32.mrb[0].mxu0
      %v8078 = vadd.f32 0.0, %v8077
      %v8079 = vpop.f32.mrb[0].mxu0
      %8080 = vmatprep.mubr.f32.mxu0 0.0
      %8081 = vmatmul.mubr.f32.gmra.mrb[0].mxu0 %v6009
      %v8082 = vpop.f32.mrb[0].mxu0
      %v8083 = vadd.f32 0.0, %v8082
      %v8084 = vpop.f32.mrb[0].mxu0
      %8085 = vmatprep.mubr.f32.mxu0 0.0
      %8086 = vmatmul.mubr.f32.gmra.mrb[0].mxu0 %v6012
      %v8087 = vpop.f32.mrb[0].mxu0
      %v8088 = vadd.f32 0.0, %v8087
      %v8089 = vpop.f32.mrb[0].mxu0
      %8090 = vmatprep.mubr.f32.mxu0 0.0
      %8091 = vmatmul.mubr.f32.gmra.mrb[0].mxu0 %v6015
      %v8092 = vpop.f32.mrb[0].mxu0
      %v8093 = vadd.f32 0.0, %v8092
      %v8094 = vpop.f32.mrb[0].mxu0
      %8095 = vmatprep.mubr.f32.mxu0 0.0
      %8096 = vmatmul.mubr.f32.gmra.mrb[0].mxu0 %v6018
      %v8097 = vpop.f32.mrb[0].mxu0
      %v8098 = vadd.f32 0.0, %v8097
      %v8099 = vpop.f32.mrb[0].mxu0
      %8100 = vmatprep.mubr.f32.mxu0 0.0
      %8101 = vmatmul.mubr.f32.gmra.mrb[0].mxu0 %v6021
      %v8102 = vpop.f32.mrb[0].mxu0
      %v8103 = vadd.f32 0.0, %v8102
      %v8104 = vpop.f32.mrb[0].mxu0
      %8105 = vmatprep.mubr.f32.mxu0 0.0
      %8106 = vmatmul.mubr.f32.gmra.mrb[0].mxu0 %v6024
      %v8107 = vpop.f32.mrb[0].mxu0
      %v8108 = vadd.f32 0.0, %v8107
      %v8109 = vpop.f32.mrb[0].mxu0
      %8110 = vmatprep.mubr.f32.mxu0 0.0
      %8111 = vmatmul.mubr.f32.gmra.mrb[0].mxu0 %v6027
      %v8112 = vpop.f32.mrb[0].mxu0
      %v8113 = vadd.f32 0.0, %v8112
      %v8114 = vpop.f32.mrb[0].mxu0
      %8115 = vmatprep.mubr.f32.mxu0 0.0
      %8116 = vmatmul.mubr.f32.gmra.mrb[0].mxu0 %v6030
      %v8117 = vpop.f32.mrb[0].mxu0
      %v8118 = vadd.f32 0.0, %v8117
      %v8119 = vpop.f32.mrb[0].mxu0
      %8120 = vmatprep.mubr.f32.mxu0 0.0
      %8121 = vmatmul.mubr.f32.gmra.mrb[0].mxu0 %v6033
      %v8122 = vpop.f32.mrb[0].mxu0
      %v8123 = vadd.f32 0.0, %v8122
      %v8124 = vpop.f32.mrb[0].mxu0
      %8125 = vmatprep.mubr.f32.mxu0 0.0
      %8126 = vmatmul.mubr.f32.gmra.mrb[0].mxu0 %v6036
      %v8127 = vpop.f32.mrb[0].mxu0
      %v8128 = vadd.f32 0.0, %v8127
      %v8129 = vpop.f32.mrb[0].mxu0
      %8130 = vmatprep.mubr.f32.mxu0 0.0
      %8131 = vmatmul.mubr.f32.gmra.mrb[0].mxu0 %v6039
      %v8132 = vpop.f32.mrb[0].mxu0
      %v8133 = vadd.f32 0.0, %v8132
      %v8134 = vpop.f32.mrb[0].mxu0
      %8135 = vmatprep.mubr.f32.mxu0 0.0
      %8136 = vmatmul.mubr.f32.gmra.mrb[0].mxu0 %v6042
      %v8137 = vpop.f32.mrb[0].mxu0
      %v8138 = vadd.f32 0.0, %v8137
      %v8139 = vpop.f32.mrb[0].mxu0
      %8140 = vmatprep.mubr.f32.mxu0 0.0
      %8141 = vmatmul.mubr.f32.gmra.mrb[0].mxu0 %v6045
      %v8142 = vpop.f32.mrb[0].mxu0
      %v8143 = vadd.f32 0.0, %v8142
      %v8144 = vpop.f32.mrb[0].mxu0
      %8145 = vmatprep.mubr.f32.mxu0 0.0
      %8146 = vmatmul.mubr.f32.gmra.mrb[0].mxu0 %v6048
      %v8147 = vpop.f32.mrb[0].mxu0
      %v8148 = vadd.f32 0.0, %v8147
      %v8149 = vpop.f32.mrb[0].mxu0
      %8150 = vmatprep.mubr.f32.mxu0 0.0
      %8151 = vmatmul.mubr.f32.gmra.mrb[0].mxu0 %v6051
      %v8152 = vpop.f32.mrb[0].mxu0
      %v8153 = vadd.f32 0.0, %v8152
      %v8154 = vpop.f32.mrb[0].mxu0
      %8155 = vmatprep.mubr.f32.mxu0 0.0
      %8156 = vmatmul.mubr.f32.gmra.mrb[0].mxu0 %v6054
      %v8157 = vpop.f32.mrb[0].mxu0
      %v8158 = vadd.f32 0.0, %v8157
      %v8159 = vpop.f32.mrb[0].mxu0
      %8160 = vmatprep.mubr.f32.mxu0 0.0
      %8161 = vmatmul.mubr.f32.gmra.mrb[0].mxu0 %v6057
      %v8162 = vpop.f32.mrb[0].mxu0
      %v8163 = vadd.f32 0.0, %v8162
      %v8164 = vpop.f32.mrb[0].mxu0
      %8165 = vmatprep.mubr.f32.mxu0 0.0
      %8166 = vmatmul.mubr.f32.gmra.mrb[0].mxu0 %v6060
      %v8167 = vpop.f32.mrb[0].mxu0
      %v8168 = vadd.f32 0.0, %v8167
      %v8169 = vpop.f32.mrb[0].mxu0
      %8170 = vmatprep.mubr.f32.mxu0 0.0
      %8171 = vmatmul.mubr.f32.gmra.mrb[0].mxu0 %v6063
      %v8172 = vpop.f32.mrb[0].mxu0
      %v8173 = vadd.f32 0.0, %v8172
      %v8174 = vpop.f32.mrb[0].mxu0
      %8175 = vmatprep.mubr.f32.mxu0 0.0
      %8176 = vmatmul.mubr.f32.gmra.mrb[0].mxu0 %v6066
      %v8177 = vpop.f32.mrb[0].mxu0
      %v8178 = vadd.f32 0.0, %v8177
      %v8179 = vpop.f32.mrb[0].mxu0
      %8180 = vmatprep.mubr.f32.mxu0 0.0
      %8181 = vmatmul.mubr.f32.gmra.mrb[0].mxu0 %v6069
      %v8182 = vpop.f32.mrb[0].mxu0
      %v8183 = vadd.f32 0.0, %v8182
      %v8184 = vpop.f32.mrb[0].mxu0
      %8185 = vmatprep.mubr.f32.mxu0 0.0
      %8186 = vmatmul.mubr.f32.gmra.mrb[0].mxu0 %v7162
      %v8187 = vpop.f32.mrb[0].mxu0
      %v8188 = vadd.f32 0.0, %v8187
      %v8189 = vpop.f32.mrb[0].mxu0
      %8190 = vmatprep.mubr.f32.mxu0 0.0
      %8191 = vmatmul.mubr.f32.gmra.mrb[0].mxu0 %v7165
      %v8192 = vpop.f32.mrb[0].mxu0
      %v8193 = vadd.f32 0.0, %v8192
      %v8194 = vpop.f32.mrb[0].mxu0
      %8195 = vmatprep.mubr.f32.mxu0 0.0
      %8196 = vmatmul.mubr.f32.gmra.mrb[0].mxu0 %v7973
      %v8197 = vpop.f32.mrb[0].mxu0
      %v8198 = vadd.f32 0.0, %v8197
      %v8199 = vpop.f32.mrb[0].mxu0
      %8200 = vmatprep.mubr.f32.mxu0 0.0
      %8201 = vmatmul.mubr.f32.gmra.mrb[0].mxu0 %v7976
      %v8202 = vpop.f32.mrb[0].mxu0
      %v8203 = vadd.f32 0.0, %v8202
      %v8204 = vpop.f32.mrb[0].mxu0
      %8205 = vdwg.mxu0
      %v8206 = vadd.f32 %v7938, %v8048
      %v8207 = vadd.f32 %v7939, %v8053
      %v8208 = vadd.f32 %v7940, %v8058
      %v8209 = vadd.f32 %v7941, %v8063
      %v8210 = vadd.f32 %v7942, %v8068
      %v8211 = vadd.f32 %v7943, %v8073
      %v8212 = vadd.f32 %v7944, %v8078
      %v8213 = vadd.f32 %v7945, %v8083
      %v8214 = vadd.f32 %v7946, %v8088
      %v8215 = vadd.f32 %v7947, %v8093
      %v8216 = vadd.f32 %v7948, %v8098
      %v8217 = vadd.f32 %v7949, %v8103
      %v8218 = vadd.f32 %v7950, %v8108
      %v8219 = vadd.f32 %v7951, %v8113
      %v8220 = vadd.f32 %v7952, %v8118
      %v8221 = vadd.f32 %v7953, %v8123
      %v8222 = vadd.f32 %v7954, %v8128
      %v8223 = vadd.f32 %v7955, %v8133
      %v8224 = vadd.f32 %v7956, %v8138
      %v8225 = vadd.f32 %v7957, %v8143
      %v8226 = vadd.f32 %v7958, %v8148
      %v8227 = vadd.f32 %v7959, %v8153
      %v8228 = vadd.f32 %v7960, %v8158
      %v8229 = vadd.f32 %v7961, %v8163
      %v8230 = vadd.f32 %v7962, %v8168
      %v8231 = vadd.f32 %v7963, %v8173
      %v8232 = vadd.f32 %v7964, %v8178
      %v8233 = vadd.f32 %v7965, %v8183
      %v8234 = vadd.f32 %v7966, %v8188
      %v8235 = vadd.f32 %v7967, %v8193
      %v8236 = vadd.f32 %v7968, %v8198
      %v8237 = vadd.f32 %v7969, %v8203
      %v8239 = vrot.slane %v5970, 1
      %v8240 = vrot.slane %v5971, 1
      %v8241 = vsel %vm353, %v8239, %v8240
      %v8242 = vrot.slane %v5972, 1
      %v8243 = vsel %vm353, %v8240, %v8242
      %s8244 = scalar_lea.vmem %s1, 100
      %v8245 = vld [vmem:[%s8244] sm:$0xf]
      %v8246 = vsel %vm436, %v8241, 0
      %v8248 = vsel %vm436, %v8243, 0
      %v8251 = vsel %vm501, %v8245, 0
      %8253 = vmatprep.subr.mxu0 0.0
      %8254 = vmatpush1.msra.mxu0 %v8251
      %8255 = vmatprep.subr.mxu0 0.0
      %8256 = vmatpush1.msra.mxu0 0.0
      %8257 = vmatprep.subr.mxu0 0.0
      %8258 = vmatpush1.msra.mxu0 0.0
      %8259 = vmatprep.subr.mxu0 0.0
      %8260 = vmatpush1.msra.mxu0 0.0
      %8261 = vmatprep.subr.mxu0 0.0
      %8262 = vmatpush1.msra.mxu0 0.0
      %8263 = vmatprep.subr.mxu0 0.0
      %8264 = vmatpush1.msra.mxu0 0.0
      %8265 = vmatprep.subr.mxu0 0.0
      %8266 = vmatpush1.msra.mxu0 0.0
      %8267 = vmatprep.subr.mxu0 0.0
      %8268 = vmatpush1.msra.mxu0 0.0
      %8269 = vmatprep.subr.mxu0 0.0
      %8270 = vmatpush1.msra.mxu0 0.0
      %8271 = vmatprep.subr.mxu0 0.0
      %8272 = vmatpush1.msra.mxu0 0.0
      %8273 = vmatprep.subr.mxu0 0.0
      %8274 = vmatpush1.msra.mxu0 0.0
      %8275 = vmatprep.subr.mxu0 0.0
      %8276 = vmatpush1.msra.mxu0 0.0
      %8277 = vmatprep.subr.mxu0 0.0
      %8278 = vmatpush1.msra.mxu0 0.0
      %8279 = vmatprep.subr.mxu0 0.0
      %8280 = vmatpush1.msra.mxu0 0.0
      %8281 = vmatprep.subr.mxu0 0.0
      %8282 = vmatpush1.msra.mxu0 0.0
      %8283 = vmatprep.subr.mxu0 0.0
      %8284 = vmatpush1.msra.mxu0 0.0
      %8285 = vmatprep.subr.mxu0 0.0
      %8286 = vmatpush1.msra.mxu0 0.0
      %8287 = vmatprep.subr.mxu0 0.0
      %8288 = vmatpush1.msra.mxu0 0.0
      %8289 = vmatprep.subr.mxu0 0.0
      %8290 = vmatpush1.msra.mxu0 0.0
      %8291 = vmatprep.subr.mxu0 0.0
      %8292 = vmatpush1.msra.mxu0 0.0
      %8293 = vmatprep.subr.mxu0 0.0
      %8294 = vmatpush1.msra.mxu0 0.0
      %8295 = vmatprep.subr.mxu0 0.0
      %8296 = vmatpush1.msra.mxu0 0.0
      %8297 = vmatprep.subr.mxu0 0.0
      %8298 = vmatpush1.msra.mxu0 0.0
      %8299 = vmatprep.subr.mxu0 0.0
      %8300 = vmatpush1.msra.mxu0 0.0
      %8301 = vmatprep.subr.mxu0 0.0
      %8302 = vmatpush1.msra.mxu0 0.0
      %8303 = vmatprep.subr.mxu0 0.0
      %8304 = vmatpush1.msra.mxu0 0.0
      %8305 = vmatprep.subr.mxu0 0.0
      %8306 = vmatpush1.msra.mxu0 0.0
      %8307 = vmatprep.subr.mxu0 0.0
      %8308 = vmatpush1.msra.mxu0 0.0
      %8309 = vmatprep.subr.mxu0 0.0
      %8310 = vmatpush1.msra.mxu0 0.0
      %8311 = vmatprep.subr.mxu0 0.0
      %8312 = vmatpush1.msra.mxu0 0.0
      %8313 = vmatprep.subr.mxu0 0.0
      %8314 = vmatpush1.msra.mxu0 0.0
      %8315 = vmatprep.subr.mxu0 0.0
      %8316 = vmatpush1.msra.mxu0 0.0
      %8317 = vmatprep.mubr.f32.mxu0 0.0
      %8318 = vmatmul.mubr.f32.gmra.mrb[0].mxu0 %v6437
      %v8319 = vpop.f32.mrb[0].mxu0
      %v8320 = vadd.f32 0.0, %v8319
      %v8321 = vpop.f32.mrb[0].mxu0
      %8322 = vmatprep.mubr.f32.mxu0 0.0
      %8323 = vmatmul.mubr.f32.gmra.mrb[0].mxu0 %v6439
      %v8324 = vpop.f32.mrb[0].mxu0
      %v8325 = vadd.f32 0.0, %v8324
      %v8326 = vpop.f32.mrb[0].mxu0
      %8327 = vmatprep.mubr.f32.mxu0 0.0
      %8328 = vmatmul.mubr.f32.gmra.mrb[0].mxu0 %v6441
      %v8329 = vpop.f32.mrb[0].mxu0
      %v8330 = vadd.f32 0.0, %v8329
      %v8331 = vpop.f32.mrb[0].mxu0
      %8332 = vmatprep.mubr.f32.mxu0 0.0
      %8333 = vmatmul.mubr.f32.gmra.mrb[0].mxu0 %v6443
      %v8334 = vpop.f32.mrb[0].mxu0
      %v8335 = vadd.f32 0.0, %v8334
      %v8336 = vpop.f32.mrb[0].mxu0
      %8337 = vmatprep.mubr.f32.mxu0 0.0
      %8338 = vmatmul.mubr.f32.gmra.mrb[0].mxu0 %v6445
      %v8339 = vpop.f32.mrb[0].mxu0
      %v8340 = vadd.f32 0.0, %v8339
      %v8341 = vpop.f32.mrb[0].mxu0
      %8342 = vmatprep.mubr.f32.mxu0 0.0
      %8343 = vmatmul.mubr.f32.gmra.mrb[0].mxu0 %v6447
      %v8344 = vpop.f32.mrb[0].mxu0
      %v8345 = vadd.f32 0.0, %v8344
      %v8346 = vpop.f32.mrb[0].mxu0
      %8347 = vmatprep.mubr.f32.mxu0 0.0
      %8348 = vmatmul.mubr.f32.gmra.mrb[0].mxu0 %v6449
      %v8349 = vpop.f32.mrb[0].mxu0
      %v8350 = vadd.f32 0.0, %v8349
      %v8351 = vpop.f32.mrb[0].mxu0
      %8352 = vmatprep.mubr.f32.mxu0 0.0
      %8353 = vmatmul.mubr.f32.gmra.mrb[0].mxu0 %v6451
      %v8354 = vpop.f32.mrb[0].mxu0
      %v8355 = vadd.f32 0.0, %v8354
      %v8356 = vpop.f32.mrb[0].mxu0
      %8357 = vmatprep.mubr.f32.mxu0 0.0
      %8358 = vmatmul.mubr.f32.gmra.mrb[0].mxu0 %v6453
      %v8359 = vpop.f32.mrb[0].mxu0
      %v8360 = vadd.f32 0.0, %v8359
      %v8361 = vpop.f32.mrb[0].mxu0
      %8362 = vmatprep.mubr.f32.mxu0 0.0
      %8363 = vmatmul.mubr.f32.gmra.mrb[0].mxu0 %v6455
      %v8364 = vpop.f32.mrb[0].mxu0
      %v8365 = vadd.f32 0.0, %v8364
      %v8366 = vpop.f32.mrb[0].mxu0
      %8367 = vmatprep.mubr.f32.mxu0 0.0
      %8368 = vmatmul.mubr.f32.gmra.mrb[0].mxu0 %v6457
      %v8369 = vpop.f32.mrb[0].mxu0
      %v8370 = vadd.f32 0.0, %v8369
      %v8371 = vpop.f32.mrb[0].mxu0
      %8372 = vmatprep.mubr.f32.mxu0 0.0
      %8373 = vmatmul.mubr.f32.gmra.mrb[0].mxu0 %v6459
      %v8374 = vpop.f32.mrb[0].mxu0
      %v8375 = vadd.f32 0.0, %v8374
      %v8376 = vpop.f32.mrb[0].mxu0
      %8377 = vmatprep.mubr.f32.mxu0 0.0
      %8378 = vmatmul.mubr.f32.gmra.mrb[0].mxu0 %v6461
      %v8379 = vpop.f32.mrb[0].mxu0
      %v8380 = vadd.f32 0.0, %v8379
      %v8381 = vpop.f32.mrb[0].mxu0
      %8382 = vmatprep.mubr.f32.mxu0 0.0
      %8383 = vmatmul.mubr.f32.gmra.mrb[0].mxu0 %v6463
      %v8384 = vpop.f32.mrb[0].mxu0
      %v8385 = vadd.f32 0.0, %v8384
      %v8386 = vpop.f32.mrb[0].mxu0
      %8387 = vmatprep.mubr.f32.mxu0 0.0
      %8388 = vmatmul.mubr.f32.gmra.mrb[0].mxu0 %v6465
      %v8389 = vpop.f32.mrb[0].mxu0
      %v8390 = vadd.f32 0.0, %v8389
      %v8391 = vpop.f32.mrb[0].mxu0
      %8392 = vmatprep.mubr.f32.mxu0 0.0
      %8393 = vmatmul.mubr.f32.gmra.mrb[0].mxu0 %v6467
      %v8394 = vpop.f32.mrb[0].mxu0
      %v8395 = vadd.f32 0.0, %v8394
      %v8396 = vpop.f32.mrb[0].mxu0
      %8397 = vmatprep.mubr.f32.mxu0 0.0
      %8398 = vmatmul.mubr.f32.gmra.mrb[0].mxu0 %v6469
      %v8399 = vpop.f32.mrb[0].mxu0
      %v8400 = vadd.f32 0.0, %v8399
      %v8401 = vpop.f32.mrb[0].mxu0
      %8402 = vmatprep.mubr.f32.mxu0 0.0
      %8403 = vmatmul.mubr.f32.gmra.mrb[0].mxu0 %v6471
      %v8404 = vpop.f32.mrb[0].mxu0
      %v8405 = vadd.f32 0.0, %v8404
      %v8406 = vpop.f32.mrb[0].mxu0
      %8407 = vmatprep.mubr.f32.mxu0 0.0
      %8408 = vmatmul.mubr.f32.gmra.mrb[0].mxu0 %v6473
      %v8409 = vpop.f32.mrb[0].mxu0
      %v8410 = vadd.f32 0.0, %v8409
      %v8411 = vpop.f32.mrb[0].mxu0
      %8412 = vmatprep.mubr.f32.mxu0 0.0
      %8413 = vmatmul.mubr.f32.gmra.mrb[0].mxu0 %v6475
      %v8414 = vpop.f32.mrb[0].mxu0
      %v8415 = vadd.f32 0.0, %v8414
      %v8416 = vpop.f32.mrb[0].mxu0
      %8417 = vmatprep.mubr.f32.mxu0 0.0
      %8418 = vmatmul.mubr.f32.gmra.mrb[0].mxu0 %v6477
      %v8419 = vpop.f32.mrb[0].mxu0
      %v8420 = vadd.f32 0.0, %v8419
      %v8421 = vpop.f32.mrb[0].mxu0
      %8422 = vmatprep.mubr.f32.mxu0 0.0
      %8423 = vmatmul.mubr.f32.gmra.mrb[0].mxu0 %v6479
      %v8424 = vpop.f32.mrb[0].mxu0
      %v8425 = vadd.f32 0.0, %v8424
      %v8426 = vpop.f32.mrb[0].mxu0
      %8427 = vmatprep.mubr.f32.mxu0 0.0
      %8428 = vmatmul.mubr.f32.gmra.mrb[0].mxu0 %v6481
      %v8429 = vpop.f32.mrb[0].mxu0
      %v8430 = vadd.f32 0.0, %v8429
      %v8431 = vpop.f32.mrb[0].mxu0
      %8432 = vmatprep.mubr.f32.mxu0 0.0
      %8433 = vmatmul.mubr.f32.gmra.mrb[0].mxu0 %v6483
      %v8434 = vpop.f32.mrb[0].mxu0
      %v8435 = vadd.f32 0.0, %v8434
      %v8436 = vpop.f32.mrb[0].mxu0
      %8437 = vmatprep.mubr.f32.mxu0 0.0
      %8438 = vmatmul.mubr.f32.gmra.mrb[0].mxu0 %v6485
      %v8439 = vpop.f32.mrb[0].mxu0
      %v8440 = vadd.f32 0.0, %v8439
      %v8441 = vpop.f32.mrb[0].mxu0
      %8442 = vmatprep.mubr.f32.mxu0 0.0
      %8443 = vmatmul.mubr.f32.gmra.mrb[0].mxu0 %v6487
      %v8444 = vpop.f32.mrb[0].mxu0
      %v8445 = vadd.f32 0.0, %v8444
      %v8446 = vpop.f32.mrb[0].mxu0
      %8447 = vmatprep.mubr.f32.mxu0 0.0
      %8448 = vmatmul.mubr.f32.gmra.mrb[0].mxu0 %v6489
      %v8449 = vpop.f32.mrb[0].mxu0
      %v8450 = vadd.f32 0.0, %v8449
      %v8451 = vpop.f32.mrb[0].mxu0
      %8452 = vmatprep.mubr.f32.mxu0 0.0
      %8453 = vmatmul.mubr.f32.gmra.mrb[0].mxu0 %v6491
      %v8454 = vpop.f32.mrb[0].mxu0
      %v8455 = vadd.f32 0.0, %v8454
      %v8456 = vpop.f32.mrb[0].mxu0
      %8457 = vmatprep.mubr.f32.mxu0 0.0
      %8458 = vmatmul.mubr.f32.gmra.mrb[0].mxu0 %v7435
      %v8459 = vpop.f32.mrb[0].mxu0
      %v8460 = vadd.f32 0.0, %v8459
      %v8461 = vpop.f32.mrb[0].mxu0
      %8462 = vmatprep.mubr.f32.mxu0 0.0
      %8463 = vmatmul.mubr.f32.gmra.mrb[0].mxu0 %v7437
      %v8464 = vpop.f32.mrb[0].mxu0
      %v8465 = vadd.f32 0.0, %v8464
      %v8466 = vpop.f32.mrb[0].mxu0
      %8467 = vmatprep.mubr.f32.mxu0 0.0
      %8468 = vmatmul.mubr.f32.gmra.mrb[0].mxu0 %v8246
      %v8469 = vpop.f32.mrb[0].mxu0
      %v8470 = vadd.f32 0.0, %v8469
      %v8471 = vpop.f32.mrb[0].mxu0
      %8472 = vmatprep.mubr.f32.mxu0 0.0
      %8473 = vmatmul.mubr.f32.gmra.mrb[0].mxu0 %v8248
      %v8474 = vpop.f32.mrb[0].mxu0
      %v8475 = vadd.f32 0.0, %v8474
      %v8476 = vpop.f32.mrb[0].mxu0
      %8477 = vdwg.mxu0
      %v8478 = vadd.f32 %v8206, %v8320
      %v8479 = vadd.f32 %v8207, %v8325
      %v8480 = vadd.f32 %v8208, %v8330
      %v8481 = vadd.f32 %v8209, %v8335
      %v8482 = vadd.f32 %v8210, %v8340
      %v8483 = vadd.f32 %v8211, %v8345
      %v8484 = vadd.f32 %v8212, %v8350
      %v8485 = vadd.f32 %v8213, %v8355
      %v8486 = vadd.f32 %v8214, %v8360
      %v8487 = vadd.f32 %v8215, %v8365
      %v8488 = vadd.f32 %v8216, %v8370
      %v8489 = vadd.f32 %v8217, %v8375
      %v8490 = vadd.f32 %v8218, %v8380
      %v8491 = vadd.f32 %v8219, %v8385
      %v8492 = vadd.f32 %v8220, %v8390
      %v8493 = vadd.f32 %v8221, %v8395
      %v8494 = vadd.f32 %v8222, %v8400
      %v8495 = vadd.f32 %v8223, %v8405
      %v8496 = vadd.f32 %v8224, %v8410
      %v8497 = vadd.f32 %v8225, %v8415
      %v8498 = vadd.f32 %v8226, %v8420
      %v8499 = vadd.f32 %v8227, %v8425
      %v8500 = vadd.f32 %v8228, %v8430
      %v8501 = vadd.f32 %v8229, %v8435
      %v8502 = vadd.f32 %v8230, %v8440
      %v8503 = vadd.f32 %v8231, %v8445
      %v8504 = vadd.f32 %v8232, %v8450
      %v8505 = vadd.f32 %v8233, %v8455
      %v8506 = vadd.f32 %v8234, %v8460
      %v8507 = vadd.f32 %v8235, %v8465
      %v8508 = vadd.f32 %v8236, %v8470
      %v8509 = vadd.f32 %v8237, %v8475
      %v8510 = vrot.slane %v5970, 2
      %v8511 = vrot.slane %v5971, 2
      %v8512 = vsel %vm1022, %v8510, %v8511
      %v8513 = vrot.slane %v5972, 2
      %v8514 = vsel %vm1022, %v8511, %v8513
      %s8515 = scalar_lea.vmem %s1, 104
      %v8516 = vld [vmem:[%s8515] sm:$0xf]
      %v8517 = vsel %vm436, %v8512, 0
      %v8519 = vsel %vm436, %v8514, 0
      %v8522 = vsel %vm501, %v8516, 0
      %8524 = vmatprep.subr.mxu0 0.0
      %8525 = vmatpush1.msra.mxu0 %v8522
      %8526 = vmatprep.subr.mxu0 0.0
      %8527 = vmatpush1.msra.mxu0 0.0
      %8528 = vmatprep.subr.mxu0 0.0
      %8529 = vmatpush1.msra.mxu0 0.0
      %8530 = vmatprep.subr.mxu0 0.0
      %8531 = vmatpush1.msra.mxu0 0.0
      %8532 = vmatprep.subr.mxu0 0.0
      %8533 = vmatpush1.msra.mxu0 0.0
      %8534 = vmatprep.subr.mxu0 0.0
      %8535 = vmatpush1.msra.mxu0 0.0
      %8536 = vmatprep.subr.mxu0 0.0
      %8537 = vmatpush1.msra.mxu0 0.0
      %8538 = vmatprep.subr.mxu0 0.0
      %8539 = vmatpush1.msra.mxu0 0.0
      %8540 = vmatprep.subr.mxu0 0.0
      %8541 = vmatpush1.msra.mxu0 0.0
      %8542 = vmatprep.subr.mxu0 0.0
      %8543 = vmatpush1.msra.mxu0 0.0
      %8544 = vmatprep.subr.mxu0 0.0
      %8545 = vmatpush1.msra.mxu0 0.0
      %8546 = vmatprep.subr.mxu0 0.0
      %8547 = vmatpush1.msra.mxu0 0.0
      %8548 = vmatprep.subr.mxu0 0.0
      %8549 = vmatpush1.msra.mxu0 0.0
      %8550 = vmatprep.subr.mxu0 0.0
      %8551 = vmatpush1.msra.mxu0 0.0
      %8552 = vmatprep.subr.mxu0 0.0
      %8553 = vmatpush1.msra.mxu0 0.0
      %8554 = vmatprep.subr.mxu0 0.0
      %8555 = vmatpush1.msra.mxu0 0.0
      %8556 = vmatprep.subr.mxu0 0.0
      %8557 = vmatpush1.msra.mxu0 0.0
      %8558 = vmatprep.subr.mxu0 0.0
      %8559 = vmatpush1.msra.mxu0 0.0
      %8560 = vmatprep.subr.mxu0 0.0
      %8561 = vmatpush1.msra.mxu0 0.0
      %8562 = vmatprep.subr.mxu0 0.0
      %8563 = vmatpush1.msra.mxu0 0.0
      %8564 = vmatprep.subr.mxu0 0.0
      %8565 = vmatpush1.msra.mxu0 0.0
      %8566 = vmatprep.subr.mxu0 0.0
      %8567 = vmatpush1.msra.mxu0 0.0
      %8568 = vmatprep.subr.mxu0 0.0
      %8569 = vmatpush1.msra.mxu0 0.0
      %8570 = vmatprep.subr.mxu0 0.0
      %8571 = vmatpush1.msra.mxu0 0.0
      %8572 = vmatprep.subr.mxu0 0.0
      %8573 = vmatpush1.msra.mxu0 0.0
      %8574 = vmatprep.subr.mxu0 0.0
      %8575 = vmatpush1.msra.mxu0 0.0
      %8576 = vmatprep.subr.mxu0 0.0
      %8577 = vmatpush1.msra.mxu0 0.0
      %8578 = vmatprep.subr.mxu0 0.0
      %8579 = vmatpush1.msra.mxu0 0.0
      %8580 = vmatprep.subr.mxu0 0.0
      %8581 = vmatpush1.msra.mxu0 0.0
      %8582 = vmatprep.subr.mxu0 0.0
      %8583 = vmatpush1.msra.mxu0 0.0
      %8584 = vmatprep.subr.mxu0 0.0
      %8585 = vmatpush1.msra.mxu0 0.0
      %8586 = vmatprep.subr.mxu0 0.0
      %8587 = vmatpush1.msra.mxu0 0.0
      %8588 = vmatprep.mubr.f32.mxu0 0.0
      %8589 = vmatmul.mubr.f32.gmra.mrb[0].mxu0 %v6843
      %v8590 = vpop.f32.mrb[0].mxu0
      %v8591 = vadd.f32 0.0, %v8590
      %v8592 = vpop.f32.mrb[0].mxu0
      %8593 = vmatprep.mubr.f32.mxu0 0.0
      %8594 = vmatmul.mubr.f32.gmra.mrb[0].mxu0 %v6845
      %v8595 = vpop.f32.mrb[0].mxu0
      %v8596 = vadd.f32 0.0, %v8595
      %v8597 = vpop.f32.mrb[0].mxu0
      %8598 = vmatprep.mubr.f32.mxu0 0.0
      %8599 = vmatmul.mubr.f32.gmra.mrb[0].mxu0 %v6847
      %v8600 = vpop.f32.mrb[0].mxu0
      %v8601 = vadd.f32 0.0, %v8600
      %v8602 = vpop.f32.mrb[0].mxu0
      %8603 = vmatprep.mubr.f32.mxu0 0.0
      %8604 = vmatmul.mubr.f32.gmra.mrb[0].mxu0 %v6849
      %v8605 = vpop.f32.mrb[0].mxu0
      %v8606 = vadd.f32 0.0, %v8605
      %v8607 = vpop.f32.mrb[0].mxu0
      %8608 = vmatprep.mubr.f32.mxu0 0.0
      %8609 = vmatmul.mubr.f32.gmra.mrb[0].mxu0 %v6851
      %v8610 = vpop.f32.mrb[0].mxu0
      %v8611 = vadd.f32 0.0, %v8610
      %v8612 = vpop.f32.mrb[0].mxu0
      %8613 = vmatprep.mubr.f32.mxu0 0.0
      %8614 = vmatmul.mubr.f32.gmra.mrb[0].mxu0 %v6853
      %v8615 = vpop.f32.mrb[0].mxu0
      %v8616 = vadd.f32 0.0, %v8615
      %v8617 = vpop.f32.mrb[0].mxu0
      %8618 = vmatprep.mubr.f32.mxu0 0.0
      %8619 = vmatmul.mubr.f32.gmra.mrb[0].mxu0 %v6855
      %v8620 = vpop.f32.mrb[0].mxu0
      %v8621 = vadd.f32 0.0, %v8620
      %v8622 = vpop.f32.mrb[0].mxu0
      %8623 = vmatprep.mubr.f32.mxu0 0.0
      %8624 = vmatmul.mubr.f32.gmra.mrb[0].mxu0 %v6857
      %v8625 = vpop.f32.mrb[0].mxu0
      %v8626 = vadd.f32 0.0, %v8625
      %v8627 = vpop.f32.mrb[0].mxu0
      %8628 = vmatprep.mubr.f32.mxu0 0.0
      %8629 = vmatmul.mubr.f32.gmra.mrb[0].mxu0 %v6859
      %v8630 = vpop.f32.mrb[0].mxu0
      %v8631 = vadd.f32 0.0, %v8630
      %v8632 = vpop.f32.mrb[0].mxu0
      %8633 = vmatprep.mubr.f32.mxu0 0.0
      %8634 = vmatmul.mubr.f32.gmra.mrb[0].mxu0 %v6861
      %v8635 = vpop.f32.mrb[0].mxu0
      %v8636 = vadd.f32 0.0, %v8635
      %v8637 = vpop.f32.mrb[0].mxu0
      %8638 = vmatprep.mubr.f32.mxu0 0.0
      %8639 = vmatmul.mubr.f32.gmra.mrb[0].mxu0 %v6863
      %v8640 = vpop.f32.mrb[0].mxu0
      %v8641 = vadd.f32 0.0, %v8640
      %v8642 = vpop.f32.mrb[0].mxu0
      %8643 = vmatprep.mubr.f32.mxu0 0.0
      %8644 = vmatmul.mubr.f32.gmra.mrb[0].mxu0 %v6865
      %v8645 = vpop.f32.mrb[0].mxu0
      %v8646 = vadd.f32 0.0, %v8645
      %v8647 = vpop.f32.mrb[0].mxu0
      %8648 = vmatprep.mubr.f32.mxu0 0.0
      %8649 = vmatmul.mubr.f32.gmra.mrb[0].mxu0 %v6867
      %v8650 = vpop.f32.mrb[0].mxu0
      %v8651 = vadd.f32 0.0, %v8650
      %v8652 = vpop.f32.mrb[0].mxu0
      %8653 = vmatprep.mubr.f32.mxu0 0.0
      %8654 = vmatmul.mubr.f32.gmra.mrb[0].mxu0 %v6869
      %v8655 = vpop.f32.mrb[0].mxu0
      %v8656 = vadd.f32 0.0, %v8655
      %v8657 = vpop.f32.mrb[0].mxu0
      %8658 = vmatprep.mubr.f32.mxu0 0.0
      %8659 = vmatmul.mubr.f32.gmra.mrb[0].mxu0 %v6871
      %v8660 = vpop.f32.mrb[0].mxu0
      %v8661 = vadd.f32 0.0, %v8660
      %v8662 = vpop.f32.mrb[0].mxu0
      %8663 = vmatprep.mubr.f32.mxu0 0.0
      %8664 = vmatmul.mubr.f32.gmra.mrb[0].mxu0 %v6873
      %v8665 = vpop.f32.mrb[0].mxu0
      %v8666 = vadd.f32 0.0, %v8665
      %v8667 = vpop.f32.mrb[0].mxu0
      %8668 = vmatprep.mubr.f32.mxu0 0.0
      %8669 = vmatmul.mubr.f32.gmra.mrb[0].mxu0 %v6875
      %v8670 = vpop.f32.mrb[0].mxu0
      %v8671 = vadd.f32 0.0, %v8670
      %v8672 = vpop.f32.mrb[0].mxu0
      %8673 = vmatprep.mubr.f32.mxu0 0.0
      %8674 = vmatmul.mubr.f32.gmra.mrb[0].mxu0 %v6877
      %v8675 = vpop.f32.mrb[0].mxu0
      %v8676 = vadd.f32 0.0, %v8675
      %v8677 = vpop.f32.mrb[0].mxu0
      %8678 = vmatprep.mubr.f32.mxu0 0.0
      %8679 = vmatmul.mubr.f32.gmra.mrb[0].mxu0 %v6879
      %v8680 = vpop.f32.mrb[0].mxu0
      %v8681 = vadd.f32 0.0, %v8680
      %v8682 = vpop.f32.mrb[0].mxu0
      %8683 = vmatprep.mubr.f32.mxu0 0.0
      %8684 = vmatmul.mubr.f32.gmra.mrb[0].mxu0 %v6881
      %v8685 = vpop.f32.mrb[0].mxu0
      %v8686 = vadd.f32 0.0, %v8685
      %v8687 = vpop.f32.mrb[0].mxu0
      %8688 = vmatprep.mubr.f32.mxu0 0.0
      %8689 = vmatmul.mubr.f32.gmra.mrb[0].mxu0 %v6883
      %v8690 = vpop.f32.mrb[0].mxu0
      %v8691 = vadd.f32 0.0, %v8690
      %v8692 = vpop.f32.mrb[0].mxu0
      %8693 = vmatprep.mubr.f32.mxu0 0.0
      %8694 = vmatmul.mubr.f32.gmra.mrb[0].mxu0 %v6885
      %v8695 = vpop.f32.mrb[0].mxu0
      %v8696 = vadd.f32 0.0, %v8695
      %v8697 = vpop.f32.mrb[0].mxu0
      %8698 = vmatprep.mubr.f32.mxu0 0.0
      %8699 = vmatmul.mubr.f32.gmra.mrb[0].mxu0 %v6887
      %v8700 = vpop.f32.mrb[0].mxu0
      %v8701 = vadd.f32 0.0, %v8700
      %v8702 = vpop.f32.mrb[0].mxu0
      %8703 = vmatprep.mubr.f32.mxu0 0.0
      %8704 = vmatmul.mubr.f32.gmra.mrb[0].mxu0 %v6889
      %v8705 = vpop.f32.mrb[0].mxu0
      %v8706 = vadd.f32 0.0, %v8705
      %v8707 = vpop.f32.mrb[0].mxu0
      %8708 = vmatprep.mubr.f32.mxu0 0.0
      %8709 = vmatmul.mubr.f32.gmra.mrb[0].mxu0 %v6891
      %v8710 = vpop.f32.mrb[0].mxu0
      %v8711 = vadd.f32 0.0, %v8710
      %v8712 = vpop.f32.mrb[0].mxu0
      %8713 = vmatprep.mubr.f32.mxu0 0.0
      %8714 = vmatmul.mubr.f32.gmra.mrb[0].mxu0 %v6893
      %v8715 = vpop.f32.mrb[0].mxu0
      %v8716 = vadd.f32 0.0, %v8715
      %v8717 = vpop.f32.mrb[0].mxu0
      %8718 = vmatprep.mubr.f32.mxu0 0.0
      %8719 = vmatmul.mubr.f32.gmra.mrb[0].mxu0 %v6895
      %v8720 = vpop.f32.mrb[0].mxu0
      %v8721 = vadd.f32 0.0, %v8720
      %v8722 = vpop.f32.mrb[0].mxu0
      %8723 = vmatprep.mubr.f32.mxu0 0.0
      %8724 = vmatmul.mubr.f32.gmra.mrb[0].mxu0 %v6897
      %v8725 = vpop.f32.mrb[0].mxu0
      %v8726 = vadd.f32 0.0, %v8725
      %v8727 = vpop.f32.mrb[0].mxu0
      %8728 = vmatprep.mubr.f32.mxu0 0.0
      %8729 = vmatmul.mubr.f32.gmra.mrb[0].mxu0 %v7706
      %v8730 = vpop.f32.mrb[0].mxu0
      %v8731 = vadd.f32 0.0, %v8730
      %v8732 = vpop.f32.mrb[0].mxu0
      %8733 = vmatprep.mubr.f32.mxu0 0.0
      %8734 = vmatmul.mubr.f32.gmra.mrb[0].mxu0 %v7708
      %v8735 = vpop.f32.mrb[0].mxu0
      %v8736 = vadd.f32 0.0, %v8735
      %v8737 = vpop.f32.mrb[0].mxu0
      %8738 = vmatprep.mubr.f32.mxu0 0.0
      %8739 = vmatmul.mubr.f32.gmra.mrb[0].mxu0 %v8517
      %v8740 = vpop.f32.mrb[0].mxu0
      %v8741 = vadd.f32 0.0, %v8740
      %v8742 = vpop.f32.mrb[0].mxu0
      %8743 = vmatprep.mubr.f32.mxu0 0.0
      %8744 = vmatmul.mubr.f32.gmra.mrb[0].mxu0 %v8519
      %v8745 = vpop.f32.mrb[0].mxu0
      %v8746 = vadd.f32 0.0, %v8745
      %v8747 = vpop.f32.mrb[0].mxu0
      %8748 = vdwg.mxu0
      %v8749 = vadd.f32 %v8478, %v8591
      %v8750 = vadd.f32 %v8479, %v8596
      %v8751 = vadd.f32 %v8480, %v8601
      %v8752 = vadd.f32 %v8481, %v8606
      %v8753 = vadd.f32 %v8482, %v8611
      %v8754 = vadd.f32 %v8483, %v8616
      %v8755 = vadd.f32 %v8484, %v8621
      %v8756 = vadd.f32 %v8485, %v8626
      %v8757 = vadd.f32 %v8486, %v8631
      %v8758 = vadd.f32 %v8487, %v8636
      %v8759 = vadd.f32 %v8488, %v8641
      %v8760 = vadd.f32 %v8489, %v8646
      %v8761 = vadd.f32 %v8490, %v8651
      %v8762 = vadd.f32 %v8491, %v8656
      %v8763 = vadd.f32 %v8492, %v8661
      %v8764 = vadd.f32 %v8493, %v8666
      %v8765 = vadd.f32 %v8494, %v8671
      %v8766 = vadd.f32 %v8495, %v8676
      %v8767 = vadd.f32 %v8496, %v8681
      %v8768 = vadd.f32 %v8497, %v8686
      %v8769 = vadd.f32 %v8498, %v8691
      %v8770 = vadd.f32 %v8499, %v8696
      %v8771 = vadd.f32 %v8500, %v8701
      %v8772 = vadd.f32 %v8501, %v8706
      %v8773 = vadd.f32 %v8502, %v8711
      %v8774 = vadd.f32 %v8503, %v8716
      %v8775 = vadd.f32 %v8504, %v8721
      %v8776 = vadd.f32 %v8505, %v8726
      %v8777 = vadd.f32 %v8506, %v8731
      %v8778 = vadd.f32 %v8507, %v8736
      %v8779 = vadd.f32 %v8508, %v8741
      %v8780 = vadd.f32 %v8509, %v8746
      %v8781 = vld [vmem:[%s235] sm:$0x1]
      %v8783 = vlaneseq
      %v8784 = vshrl.u32 %v8783, 7
      %v8785 = vsub.s32 0, %v8784
      %v8786 = vrot.slane %v8781, %v8785
      %v8788 = vmul.f32 %v8749, %v8786
      %v8789 = vmul.f32 %v8750, %v8786
      %v8790 = vmul.f32 %v8751, %v8786
      %v8791 = vmul.f32 %v8752, %v8786
      %v8792 = vmul.f32 %v8753, %v8786
      %v8793 = vmul.f32 %v8754, %v8786
      %v8794 = vmul.f32 %v8755, %v8786
      %v8795 = vmul.f32 %v8756, %v8786
      %v8796 = vmul.f32 %v8757, %v8786
      %v8797 = vmul.f32 %v8758, %v8786
      %v8798 = vmul.f32 %v8759, %v8786
      %v8799 = vmul.f32 %v8760, %v8786
      %v8800 = vmul.f32 %v8761, %v8786
      %v8801 = vmul.f32 %v8762, %v8786
      %v8802 = vmul.f32 %v8763, %v8786
      %v8803 = vmul.f32 %v8764, %v8786
      %v8804 = vmul.f32 %v8765, %v8786
      %v8805 = vmul.f32 %v8766, %v8786
      %v8806 = vmul.f32 %v8767, %v8786
      %v8807 = vmul.f32 %v8768, %v8786
      %v8808 = vmul.f32 %v8769, %v8786
      %v8809 = vmul.f32 %v8770, %v8786
      %v8810 = vmul.f32 %v8771, %v8786
      %v8811 = vmul.f32 %v8772, %v8786
      %v8812 = vmul.f32 %v8773, %v8786
      %v8813 = vmul.f32 %v8774, %v8786
      %v8814 = vmul.f32 %v8775, %v8786
      %v8815 = vmul.f32 %v8776, %v8786
      %v8816 = vmul.f32 %v8777, %v8786
      %v8817 = vmul.f32 %v8778, %v8786
      %v8818 = vmul.f32 %v8779, %v8786
      %v8819 = vmul.f32 %v8780, %v8786
      %v8820 = vld [vmem:[%s238] sm:$0x1]
      %v8822 = vlaneseq
      %v8823 = vshrl.u32 %v8822, 7
      %v8824 = vsub.s32 0, %v8823
      %v8825 = vrot.slane %v8820, %v8824
      %v8827 = vadd.f32 %v8788, %v8825
      %v8828 = vadd.f32 %v8789, %v8825
      %v8829 = vadd.f32 %v8790, %v8825
      %v8830 = vadd.f32 %v8791, %v8825
      %v8831 = vadd.f32 %v8792, %v8825
      %v8832 = vadd.f32 %v8793, %v8825
      %v8833 = vadd.f32 %v8794, %v8825
      %v8834 = vadd.f32 %v8795, %v8825
      %v8835 = vadd.f32 %v8796, %v8825
      %v8836 = vadd.f32 %v8797, %v8825
      %v8837 = vadd.f32 %v8798, %v8825
      %v8838 = vadd.f32 %v8799, %v8825
      %v8839 = vadd.f32 %v8800, %v8825
      %v8840 = vadd.f32 %v8801, %v8825
      %v8841 = vadd.f32 %v8802, %v8825
      %v8842 = vadd.f32 %v8803, %v8825
      %v8843 = vadd.f32 %v8804, %v8825
      %v8844 = vadd.f32 %v8805, %v8825
      %v8845 = vadd.f32 %v8806, %v8825
      %v8846 = vadd.f32 %v8807, %v8825
      %v8847 = vadd.f32 %v8808, %v8825
      %v8848 = vadd.f32 %v8809, %v8825
      %v8849 = vadd.f32 %v8810, %v8825
      %v8850 = vadd.f32 %v8811, %v8825
      %v8851 = vadd.f32 %v8812, %v8825
      %v8852 = vadd.f32 %v8813, %v8825
      %v8853 = vadd.f32 %v8814, %v8825
      %v8854 = vadd.f32 %v8815, %v8825
      %v8855 = vadd.f32 %v8816, %v8825
      %v8856 = vadd.f32 %v8817, %v8825
      %v8857 = vadd.f32 %v8818, %v8825
      %v8858 = vadd.f32 %v8819, %v8825
      %v8859 = vmax.f32 %v8827, 0.0
      %v8860 = vmax.f32 %v8828, 0.0
      %v8861 = vmax.f32 %v8829, 0.0
      %v8862 = vmax.f32 %v8830, 0.0
      %v8863 = vmax.f32 %v8831, 0.0
      %v8864 = vmax.f32 %v8832, 0.0
      %v8865 = vmax.f32 %v8833, 0.0
      %v8866 = vmax.f32 %v8834, 0.0
      %v8867 = vmax.f32 %v8835, 0.0
      %v8868 = vmax.f32 %v8836, 0.0
      %v8869 = vmax.f32 %v8837, 0.0
      %v8870 = vmax.f32 %v8838, 0.0
      %v8871 = vmax.f32 %v8839, 0.0
      %v8872 = vmax.f32 %v8840, 0.0
      %v8873 = vmax.f32 %v8841, 0.0
      %v8874 = vmax.f32 %v8842, 0.0
      %v8875 = vmax.f32 %v8843, 0.0
      %v8876 = vmax.f32 %v8844, 0.0
      %v8877 = vmax.f32 %v8845, 0.0
      %v8878 = vmax.f32 %v8846, 0.0
      %v8879 = vmax.f32 %v8847, 0.0
      %v8880 = vmax.f32 %v8848, 0.0
      %v8881 = vmax.f32 %v8849, 0.0
      %v8882 = vmax.f32 %v8850, 0.0
      %v8883 = vmax.f32 %v8851, 0.0
      %v8884 = vmax.f32 %v8852, 0.0
      %v8885 = vmax.f32 %v8853, 0.0
      %v8886 = vmax.f32 %v8854, 0.0
      %v8887 = vmax.f32 %v8855, 0.0
      %v8888 = vmax.f32 %v8856, 0.0
      %v8889 = vmax.f32 %v8857, 0.0
      %v8890 = vmax.f32 %v8858, 0.0
      %vm8891 = vcmask 64512
      %8892 = vst.msk [vmem:[%s247] sm:$0xff] %vm8891, %v8859
      %8893 = vst.msk [vmem:[%s247 + $0x8] sm:$0xff] %vm8891, %v8860
      %8894 = vst.msk [vmem:[%s247 + $0x10] sm:$0xff] %vm8891, %v8861
      %8895 = vst.msk [vmem:[%s247 + $0x18] sm:$0xff] %vm8891, %v8862
      %8896 = vst.msk [vmem:[%s247 + $0x20] sm:$0xff] %vm8891, %v8863
      %8897 = vst.msk [vmem:[%s247 + $0x28] sm:$0xff] %vm8891, %v8864
      %8898 = vst.msk [vmem:[%s247 + $0x30] sm:$0xff] %vm8891, %v8865
      %8899 = vst.msk [vmem:[%s247 + $0x38] sm:$0xff] %vm8891, %v8866
      %8900 = vst.msk [vmem:[%s247 + $0x40] sm:$0xff] %vm8891, %v8867
      %8901 = vst.msk [vmem:[%s247 + $0x48] sm:$0xff] %vm8891, %v8868
      %8902 = vst.msk [vmem:[%s247 + $0x50] sm:$0xff] %vm8891, %v8869
      %8903 = vst.msk [vmem:[%s247 + $0x58] sm:$0xff] %vm8891, %v8870
      %8904 = vst.msk [vmem:[%s247 + $0x60] sm:$0xff] %vm8891, %v8871
      %8905 = vst.msk [vmem:[%s247 + $0x68] sm:$0xff] %vm8891, %v8872
      %8906 = vst.msk [vmem:[%s247 + $0x70] sm:$0xff] %vm8891, %v8873
      %8907 = vst.msk [vmem:[%s247 + $0x78] sm:$0xff] %vm8891, %v8874
      %8908 = vst.msk [vmem:[%s247 + $0x80] sm:$0xff] %vm8891, %v8875
      %8909 = vst.msk [vmem:[%s247 + $0x88] sm:$0xff] %vm8891, %v8876
      %8910 = vst.msk [vmem:[%s247 + $0x90] sm:$0xff] %vm8891, %v8877
      %8911 = vst.msk [vmem:[%s247 + $0x98] sm:$0xff] %vm8891, %v8878
      %8912 = vst.msk [vmem:[%s247 + $0xa0] sm:$0xff] %vm8891, %v8879
      %8913 = vst.msk [vmem:[%s247 + $0xa8] sm:$0xff] %vm8891, %v8880
      %8914 = vst.msk [vmem:[%s247 + $0xb0] sm:$0xff] %vm8891, %v8881
      %8915 = vst.msk [vmem:[%s247 + $0xb8] sm:$0xff] %vm8891, %v8882
      %8916 = vst.msk [vmem:[%s247 + $0xc0] sm:$0xff] %vm8891, %v8883
      %8917 = vst.msk [vmem:[%s247 + $0xc8] sm:$0xff] %vm8891, %v8884
      %8918 = vst.msk [vmem:[%s247 + $0xd0] sm:$0xff] %vm8891, %v8885
      %8919 = vst.msk [vmem:[%s247 + $0xd8] sm:$0xff] %vm8891, %v8886
      %8920 = vst.msk [vmem:[%s247 + $0xe0] sm:$0xff] %vm8891, %v8887
      %8921 = vst.msk [vmem:[%s247 + $0xe8] sm:$0xff] %vm8891, %v8888
      %8922 = vst.msk [vmem:[%s247 + $0xf0] sm:$0xff] %vm8891, %v8889
      %8923 = vst.msk [vmem:[%s247 + $0xf8] sm:$0xff] %vm8891, %v8890
      %p8924 = scmp.lt.s32.totalorder %s19, 1
      %s8925 = scalar_select %p8924, %s19, 1
      %p8926 = scmp.lt.s32.totalorder %s20, 7
      %s8927 = scalar_select %p8926, %s20, 7
      %s8928 = smul.addr %s8927, 32
      %s8929 = smul.addr %s8925, 256
      %s8930 = sadd.s32 %s8928, %s8929
      %s8931 = smul.addr %s8930, 8
      %s8932 = scalar_lea.vmem %s4, %s8931
      // Predicated region
      $region37: #{tpu_custom_call.1} parent=35 // pred_check
        %p8933 = pneg %p146
      $region38: #{tpu_custom_call.1} parent=35 // pred_check_branch
        %8935 = sbr.rel (%p8933) target = $region40
      $region39: #{tpu_custom_call.1} parent=35 // pred_region
        _
      $region40: #{tpu_custom_call.1} parent=35 // pred_fallthru
        _
    $region36: #{tpu_custom_call.1} parent=5 // pred_fallthru
      _
    %p8936 = scmp.le.s32.totalorder 2, %s10
    // Predicated region
    $region41: #{tpu_custom_call.1} parent=5 // pred_check
      %p8937 = pneg %p8936
    $region42: #{tpu_custom_call.1} parent=5 // pred_check_branch
      %8939 = sbr.rel (%p8937) target = $region44
    $region43: #{tpu_custom_call.1} parent=5 // pred_region
      %s8940 = ssub.s32 %s10, 2
      // Predicated region
      $region45: #{tpu_custom_call.1} parent=43 // pred_check
        %p8941 = pneg %p152
      $region46: #{tpu_custom_call.1} parent=43 // pred_check_branch
        %8943 = sbr.rel (%p8941) target = $region48
      $region47: #{tpu_custom_call.1} parent=43 // pred_region
        %p8944 = scmp.lt.s32.totalorder %s21, 1
        %s8945 = scalar_select %p8944, %s21, 1
        %p8946 = scmp.lt.s32.totalorder %s22, 7
        %s8947 = scalar_select %p8946, %s22, 7
        %s8948 = smul.addr %s8947, 32
        %s8949 = smul.addr %s8945, 256
        %s8950 = sadd.s32 %s8948, %s8949
        %s8951 = smul.addr %s8950, 8
        %s8952 = scalar_lea.vmem %s4, %s8951
      $region48: #{tpu_custom_call.1} parent=43 // pred_fallthru
        _
    $region44: #{tpu_custom_call.1} parent=5 // pred_fallthru
      _
  $region6: #{tpu_custom_call.1} parent=0 // loop_footer
    %s14 = sadd.s32 1, %s10
  $region7: #{tpu_custom_call.1} parent=0 // loop_footer_branch
    %9 = sbr.rel target = $region3
  $region8: #{tpu_custom_call.1} parent=0 // loop_exit
    _

</llo_original>
